<compile_context>
chip_gen: v5e
topology: v5e:2x2
jax: 0.10.0
libtpu: 0.0.40
codegen_flags: <defaults>
</compile_context>

<pallas_src>
import functools

import jax
import jax.numpy as jnp
from jax.experimental import pallas as pl
from jax.experimental.pallas import tpu as pltpu

_INV_SQRT2 = 0.7071067811865476


def _erf(x):
    # Abramowitz & Stegun 7.1.26 polynomial erf, |err| ~ 1.5e-7 (f32-level).
    a1, a2, a3, a4, a5 = 0.254829592, -0.284496736, 1.421413741, -1.453152027, 1.061405429
    p = 0.3275911
    sgn = jnp.where(x >= 0.0, 1.0, -1.0)
    ax = jnp.abs(x)
    # divide moved to the (otherwise idle) EUP slot
    t = pl.reciprocal(1.0 + p * ax, approx=True)
    poly = ((((a5 * t + a4) * t + a3) * t + a2) * t + a1) * t
    return sgn * (1.0 - poly * jnp.exp(-ax * ax))


def _gelu_exact(x):
    # matches torch.nn.GELU() (approximate='none')
    return 0.5 * x * (1.0 + _erf(x * _INV_SQRT2))


# ---------------------------------------------------------------------------
# Fused whole-forward kernel: grid=(B,), one batch element per grid step.
# ---------------------------------------------------------------------------
def _prenet_kernel(eeg_ref,                     # (1, C_eeg, T)           f32
                   w1_ref, b1_ref,              # (nb, F, K*C_eeg) bf16 / (nb, F, 1) f32
                   wc_ref, bc_ref,              # (nb*nr, F, K*F) bf16 / (nb*nr, F, 1) f32
                   g_ref, bt_ref,               # (nb*nr, F, T) f32 each
                   wl_ref, bl_ref,              # (nb, lin_out, F) bf16 / (nb, lin_out, 1) f32
                   wo_ref, bo_ref,              # (nb, C_eeg, K*lin_out) bf16 / (nb, C_eeg, 1) f32
                   o_ref,                       # (1, C_eeg, T)           f32
                   xpad_ref,                    # (C_max, T+K-1)          bf16 scratch
                   col_ref,                     # (K*C_max, T)            bf16 scratch
                   *, nblock, n_rep, K, T, left, F, lin_out, C_eeg, eps):
    # Zero ONLY the 'same'-padding column bands once per grid step.  Every
    # conv overwrites exactly the data columns [left, left+T), so the padding
    # stays zero for all convs of all blocks.
    right = K - 1 - left
    if left > 0:
        xpad_ref[:, 0:left] = jnp.zeros_like(xpad_ref[:, 0:left])
    if right > 0:
        xpad_ref[:, left + T:] = jnp.zeros_like(xpad_ref[:, left + T:])

    def conv_same(x, c_in, w_packed, bias):
        """PyTorch Conv1d(padding='same') as one im2col matmul.

        x: (c_in, T) f32, w_packed: (c_out, K*c_in) bf16 with
        w_packed[o, k*c_in + c] = w_torch[o, c, k]; bias: (c_out, 1) f32.
        PyTorch 'same' split: left = (K-1)//2 zeros, right = K-1-left zeros.
        """
        xpad_ref[0:c_in, left:left + T] = x.astype(jnp.bfloat16)
        for k in range(K):                         # build (K*c_in, T) im2col
            col_ref[k * c_in:(k + 1) * c_in, :] = xpad_ref[0:c_in, k:k + T]
        acc = jnp.dot(w_packed, col_ref[0:K * c_in, :],
                      preferred_element_type=jnp.float32)
        return acc + bias

    def layer_norm(x, gamma=None, beta=None):
        # One-pass stats over the whole (C, T) slab (PyTorch LayerNorm with
        # normalized_shape = x.shape[1:], biased variance), per batch element.
        inv_n = 1.0 / float(x.shape[0] * x.shape[1])
        mean = jnp.sum(x) * inv_n
        ex2 = jnp.sum(x * x) * inv_n
        var = ex2 - mean * mean
        y = (x - mean) * jax.lax.rsqrt(var + eps)
        if gamma is not None:
            y = y * gamma + beta
        return y

    eeg = eeg_ref[0].astype(jnp.float32)                       # (C_eeg, T)
    for blk in range(nblock):
        # --- CNN: conv1 (no activation / norm) ---
        out = conv_same(eeg, C_eeg, w1_ref[blk], b1_ref[blk])  # (F, T)
        # --- CNN: (conv -> GELU -> LayerNorm([F, T]) -> dropout=id) ^ n_rep ---
        for r in range(n_rep):
            i = blk * n_rep + r
            out = conv_same(out, F, wc_ref[i], bc_ref[i])      # (F, T)
            out = _gelu_exact(out)
            out = layer_norm(out, g_ref[i], bt_ref[i])
        # --- Linear(filter_size, lin_out) as 1x1 conv (permutes folded) ---
        out = jnp.dot(wl_ref[blk], out.astype(jnp.bfloat16),
                      preferred_element_type=jnp.float32) + bl_ref[blk]
        # --- convout + GELU ---
        out = conv_same(out, lin_out, wo_ref[blk], bo_ref[blk])  # (C_eeg, T)
        out = _gelu_exact(out)
        # --- fresh LayerNorm (gamma=1, beta=0) + residual: eeg = eeg + LN(out) ---
        eeg = eeg + layer_norm(out)
    o_ref[0] = eeg.astype(o_ref.dtype)


# ---------------------------------------------------------------------------
# Wrapper: pack weights, build specs, single pallas_call for the whole forward.
# ---------------------------------------------------------------------------
def _pack_conv_w(w):
    """(C_out, C_in, K) -> (C_out, K*C_in) with [o, k*C_in + c] = w[o, c, k]."""
    c_out, c_in, k = w.shape
    return jnp.transpose(w, (0, 2, 1)).reshape(c_out, k * c_in)


def encoder_prenet_forward(params, eeg):
    B, C, T = eeg.shape
    nblock = len(params)
    p0 = params[0]
    F, _, K = p0["cnn_conv1"][0].shape
    n_rep = len(p0["cnn_convs"])
    lin_out = p0["linear"][0].shape[0]
    assert n_rep >= 1, "fused kernel assumes nconvs >= 2"
    left = (K - 1) // 2                     # PyTorch 'same' padding split
    c_max = max(C, F, lin_out)

    # Stack (and pack / bf16-cast) all block weights; leading dim = block (or
    # block*rep) index so the kernel indexes with a single static int.
    w1p = jnp.stack([_pack_conv_w(p["cnn_conv1"][0]) for p in params]).astype(jnp.bfloat16)
    b1 = jnp.stack([p["cnn_conv1"][1].reshape(F, 1) for p in params])
    wcp = jnp.stack([_pack_conv_w(w) for p in params for w, _ in p["cnn_convs"]]).astype(jnp.bfloat16)
    bc = jnp.stack([b.reshape(F, 1) for p in params for _, b in p["cnn_convs"]])
    g = jnp.stack([gm for p in params for gm, _ in p["cnn_ln"]])
    bt = jnp.stack([bb for p in params for _, bb in p["cnn_ln"]])
    wl = jnp.stack([p["linear"][0] for p in params]).astype(jnp.bfloat16)
    bl = jnp.stack([p["linear"][1].reshape(lin_out, 1) for p in params])
    wop = jnp.stack([_pack_conv_w(p["convout"][0]) for p in params]).astype(jnp.bfloat16)
    bo = jnp.stack([p["convout"][1].reshape(C, 1) for p in params])

    def _full(shape):
        n = len(shape)
        return pl.BlockSpec(shape, lambda *_: (0,) * n)

    per_b = pl.BlockSpec((1, C, T), lambda b: (b, 0, 0))

    kernel = functools.partial(_prenet_kernel, nblock=nblock, n_rep=n_rep,
                               K=K, T=T, left=left, F=F, lin_out=lin_out,
                               C_eeg=C, eps=1e-5)
    return pl.pallas_call(
        kernel,
        out_shape=jax.ShapeDtypeStruct((B, C, T), eeg.dtype),
        grid_spec=pltpu.PrefetchScalarGridSpec(
            num_scalar_prefetch=0,
            grid=(B,),
            in_specs=[per_b,
                      _full(w1p.shape), _full(b1.shape),
                      _full(wcp.shape), _full(bc.shape),
                      _full(g.shape), _full(bt.shape),
                      _full(wl.shape), _full(bl.shape),
                      _full(wop.shape), _full(bo.shape)],
            out_specs=per_b,
            scratch_shapes=[
                pltpu.VMEM((c_max, T + K - 1), jnp.bfloat16),   # padded activation
                pltpu.VMEM((K * c_max, T), jnp.bfloat16),       # im2col matrix
            ],
        ),
        compiler_params=pltpu.CompilerParams(
            dimension_semantics=("parallel",)),
    )(eeg, w1p, b1, wcp, bc, g, bt, wl, bl, wop, bo)


# ---------------------------------------------------------------------------
# Parameter init (deterministic, torch-default-style fan_in uniform bounds).
# ---------------------------------------------------------------------------
def _init_conv(key, c_out, c_in, k):
    k1, k2 = jax.random.split(key)
    bound = 1.0 / float(c_in * k) ** 0.5
    w = jax.random.uniform(k1, (c_out, c_in, k), jnp.float32, -bound, bound)
    b = jax.random.uniform(k2, (c_out,), jnp.float32, -bound, bound)
    return w, b


def _init_linear(key, out_f, in_f):
    k1, k2 = jax.random.split(key)
    bound = 1.0 / float(in_f) ** 0.5
    w = jax.random.uniform(k1, (out_f, in_f), jnp.float32, -bound, bound)
    b = jax.random.uniform(k2, (out_f,), jnp.float32, -bound, bound)
    return w, b


def init_encoder_prenet(key, *, nblock, lin_out, preksize, nconvs,
                        filter_size, times, num_eeg=64):
    assert nconvs >= 2
    params = []
    for _ in range(nblock):
        key, *ks = jax.random.split(key, 4 + nconvs)
        blk = {
            "cnn_conv1": _init_conv(ks[0], filter_size, num_eeg, preksize),
            "cnn_convs": [_init_conv(ks[1 + i], filter_size, filter_size, preksize)
                          for i in range(nconvs - 1)],
            "cnn_ln": [(jnp.ones((filter_size, times), jnp.float32),
                        jnp.zeros((filter_size, times), jnp.float32))
                       for _ in range(nconvs - 1)],
            # nn.Linear(filter_size, lin_out) applied along features in NTC
            "linear": _init_linear(ks[nconvs], lin_out, filter_size),
            "convout": _init_conv(ks[nconvs + 1], 64, lin_out, preksize),
        }
        params.append(blk)
    return params


if __name__ == "__main__":
    # Small, module-consistent shapes: 64 EEG channels (fixed by the module),
    # times=128 (lane-dense), batch=2, nblock=2, nconvs=3, filter=32,
    # lin_out=32, kernel=8.
    NBLOCK, LIN_OUT, PREKSIZE, NCONVS, FILTER, TIMES, BATCH = 2, 32, 8, 3, 32, 128, 2

    key = jax.random.PRNGKey(0)
    k_param, k_data = jax.random.split(key)
    params = init_encoder_prenet(k_param, nblock=NBLOCK, lin_out=LIN_OUT,
                                 preksize=PREKSIZE, nconvs=NCONVS,
                                 filter_size=FILTER, times=TIMES)
    eeg = jax.random.normal(k_data, (BATCH, 64, TIMES), jnp.float32)

    fwd = jax.jit(encoder_prenet_forward)
    out = fwd(params, eeg)
    jax.block_until_ready(out)
    assert out.shape == (BATCH, 64, TIMES)
    assert bool(jnp.all(jnp.isfinite(out)))
    print("KERNEL_OK")
</pallas_src>

<mosaic_0001>
module attributes {stable_mosaic.version = 11 : i64} {
  func.func @_prenet_kernel(%arg0: i32, %arg1: memref<1x64x128xf32, #tpu.memory_space<vmem>>, %arg2: memref<2x32x512xbf16, #tpu.memory_space<vmem>>, %arg3: memref<2x32x1xf32, #tpu.memory_space<vmem>>, %arg4: memref<4x32x256xbf16, #tpu.memory_space<vmem>>, %arg5: memref<4x32x1xf32, #tpu.memory_space<vmem>>, %arg6: memref<4x32x128xf32, #tpu.memory_space<vmem>>, %arg7: memref<4x32x128xf32, #tpu.memory_space<vmem>>, %arg8: memref<2x32x32xbf16, #tpu.memory_space<vmem>>, %arg9: memref<2x32x1xf32, #tpu.memory_space<vmem>>, %arg10: memref<2x64x256xbf16, #tpu.memory_space<vmem>>, %arg11: memref<2x64x1xf32, #tpu.memory_space<vmem>>, %arg12: memref<1x64x128xf32, #tpu.memory_space<vmem>>, %arg13: memref<64x135xbf16, #tpu.memory_space<vmem>>, %arg14: memref<512x128xbf16, #tpu.memory_space<vmem>>) attributes {dimension_semantics = [#tpu.dimension_semantics<parallel>], iteration_bounds = array<i64: 2>, scalar_prefetch = 0 : i64, scratch_operands = 2 : i64, tpu.core_type = #tpu.core_type<tc>, window_params = [{transform_indices = @transform_0, window_bounds = array<i64: 1, 64, 128>}, {pipeline_mode = #tpu.pipeline_mode<synchronous>, transform_indices = @transform_1, window_bounds = array<i64: 2, 32, 512>}, {pipeline_mode = #tpu.pipeline_mode<synchronous>, transform_indices = @transform_2, window_bounds = array<i64: 2, 32, 1>}, {pipeline_mode = #tpu.pipeline_mode<synchronous>, transform_indices = @transform_3, window_bounds = array<i64: 4, 32, 256>}, {pipeline_mode = #tpu.pipeline_mode<synchronous>, transform_indices = @transform_4, window_bounds = array<i64: 4, 32, 1>}, {pipeline_mode = #tpu.pipeline_mode<synchronous>, transform_indices = @transform_5, window_bounds = array<i64: 4, 32, 128>}, {pipeline_mode = #tpu.pipeline_mode<synchronous>, transform_indices = @transform_6, window_bounds = array<i64: 4, 32, 128>}, {pipeline_mode = #tpu.pipeline_mode<synchronous>, transform_indices = @transform_7, window_bounds = array<i64: 2, 32, 32>}, {pipeline_mode = #tpu.pipeline_mode<synchronous>, transform_indices = @transform_8, window_bounds = array<i64: 2, 32, 1>}, {pipeline_mode = #tpu.pipeline_mode<synchronous>, transform_indices = @transform_9, window_bounds = array<i64: 2, 64, 256>}, {pipeline_mode = #tpu.pipeline_mode<synchronous>, transform_indices = @transform_10, window_bounds = array<i64: 2, 64, 1>}, {transform_indices = @transform_11, window_bounds = array<i64: 1, 64, 128>}]} {
    %cst = arith.constant 0.000000e+00 : bf16
    %0 = vector.broadcast %cst : bf16 to vector<64x3xbf16>
    %c0 = arith.constant 0 : index
    %c0_0 = arith.constant 0 : index
    %1 = vector.load %arg13[%c0, %c0_0] : memref<64x135xbf16, #tpu.memory_space<vmem>>, vector<64x3xbf16>
    tpu.vector_store %arg13[%c0, %c0_0], %0 {strides = array<i32>} : memref<64x135xbf16, #tpu.memory_space<vmem>>, vector<64x3xbf16>,
    %cst_1 = arith.constant 0.000000e+00 : bf16
    %2 = vector.broadcast %cst_1 : bf16 to vector<64x4xbf16>
    %c0_2 = arith.constant 0 : index
    %c131 = arith.constant 131 : index
    %3 = vector.load %arg13[%c0_2, %c131] : memref<64x135xbf16, #tpu.memory_space<vmem>>, vector<64x4xbf16>
    tpu.vector_store %arg13[%c0_2, %c131], %2 {strides = array<i32>} : memref<64x135xbf16, #tpu.memory_space<vmem>>, vector<64x4xbf16>,
    %c0_3 = arith.constant 0 : index
    %c0_4 = arith.constant 0 : index
    %c0_5 = arith.constant 0 : index
    %4 = vector.load %arg1[%c0_3, %c0_4, %c0_5] : memref<1x64x128xf32, #tpu.memory_space<vmem>>, vector<1x64x128xf32>
    %5 = vector.shape_cast %4 : vector<1x64x128xf32> to vector<64x128xf32>
    %c0_6 = arith.constant 0 : index
    %c0_7 = arith.constant 0 : index
    %c0_8 = arith.constant 0 : index
    %6 = vector.load %arg2[%c0_6, %c0_7, %c0_8] : memref<2x32x512xbf16, #tpu.memory_space<vmem>>, vector<1x32x512xbf16>
    %7 = vector.shape_cast %6 : vector<1x32x512xbf16> to vector<32x512xbf16>
    %c0_9 = arith.constant 0 : index
    %c0_10 = arith.constant 0 : index
    %c0_11 = arith.constant 0 : index
    %8 = vector.load %arg3[%c0_9, %c0_10, %c0_11] : memref<2x32x1xf32, #tpu.memory_space<vmem>>, vector<1x32x1xf32>
    %9 = vector.shape_cast %8 : vector<1x32x1xf32> to vector<32x1xf32>
    %10 = arith.truncf %5 : vector<64x128xf32> to vector<64x128xbf16>
    %c0_12 = arith.constant 0 : index
    %c3 = arith.constant 3 : index
    %11 = vector.load %arg13[%c0_12, %c3] : memref<64x135xbf16, #tpu.memory_space<vmem>>, vector<64x128xbf16>
    tpu.vector_store %arg13[%c0_12, %c3], %10 {strides = array<i32>} : memref<64x135xbf16, #tpu.memory_space<vmem>>, vector<64x128xbf16>,
    %c0_13 = arith.constant 0 : index
    %c0_14 = arith.constant 0 : index
    %12 = vector.load %arg13[%c0_13, %c0_14] : memref<64x135xbf16, #tpu.memory_space<vmem>>, vector<64x128xbf16>
    %c0_15 = arith.constant 0 : index
    %c0_16 = arith.constant 0 : index
    %13 = vector.load %arg14[%c0_15, %c0_16] : memref<512x128xbf16, #tpu.memory_space<vmem>>, vector<64x128xbf16>
    tpu.vector_store %arg14[%c0_15, %c0_16], %12 {strides = array<i32>} : memref<512x128xbf16, #tpu.memory_space<vmem>>, vector<64x128xbf16>,
    %c0_17 = arith.constant 0 : index
    %c1 = arith.constant 1 : index
    %14 = vector.load %arg13[%c0_17, %c1] : memref<64x135xbf16, #tpu.memory_space<vmem>>, vector<64x128xbf16>
    %c64 = arith.constant 64 : index
    %c0_18 = arith.constant 0 : index
    %15 = vector.load %arg14[%c64, %c0_18] : memref<512x128xbf16, #tpu.memory_space<vmem>>, vector<64x128xbf16>
    tpu.vector_store %arg14[%c64, %c0_18], %14 {strides = array<i32>} : memref<512x128xbf16, #tpu.memory_space<vmem>>, vector<64x128xbf16>,
    %c0_19 = arith.constant 0 : index
    %c2 = arith.constant 2 : index
    %16 = vector.load %arg13[%c0_19, %c2] : memref<64x135xbf16, #tpu.memory_space<vmem>>, vector<64x128xbf16>
    %c128 = arith.constant 128 : index
    %c0_20 = arith.constant 0 : index
    %17 = vector.load %arg14[%c128, %c0_20] : memref<512x128xbf16, #tpu.memory_space<vmem>>, vector<64x128xbf16>
    tpu.vector_store %arg14[%c128, %c0_20], %16 {strides = array<i32>} : memref<512x128xbf16, #tpu.memory_space<vmem>>, vector<64x128xbf16>,
    %c0_21 = arith.constant 0 : index
    %c3_22 = arith.constant 3 : index
    %18 = vector.load %arg13[%c0_21, %c3_22] : memref<64x135xbf16, #tpu.memory_space<vmem>>, vector<64x128xbf16>
    %c192 = arith.constant 192 : index
    %c0_23 = arith.constant 0 : index
    %19 = vector.load %arg14[%c192, %c0_23] : memref<512x128xbf16, #tpu.memory_space<vmem>>, vector<64x128xbf16>
    tpu.vector_store %arg14[%c192, %c0_23], %18 {strides = array<i32>} : memref<512x128xbf16, #tpu.memory_space<vmem>>, vector<64x128xbf16>,
    %c0_24 = arith.constant 0 : index
    %c4 = arith.constant 4 : index
    %20 = vector.load %arg13[%c0_24, %c4] : memref<64x135xbf16, #tpu.memory_space<vmem>>, vector<64x128xbf16>
    %c256 = arith.constant 256 : index
    %c0_25 = arith.constant 0 : index
    %21 = vector.load %arg14[%c256, %c0_25] : memref<512x128xbf16, #tpu.memory_space<vmem>>, vector<64x128xbf16>
    tpu.vector_store %arg14[%c256, %c0_25], %20 {strides = array<i32>} : memref<512x128xbf16, #tpu.memory_space<vmem>>, vector<64x128xbf16>,
    %c0_26 = arith.constant 0 : index
    %c5 = arith.constant 5 : index
    %22 = vector.load %arg13[%c0_26, %c5] : memref<64x135xbf16, #tpu.memory_space<vmem>>, vector<64x128xbf16>
    %c320 = arith.constant 320 : index
    %c0_27 = arith.constant 0 : index
    %23 = vector.load %arg14[%c320, %c0_27] : memref<512x128xbf16, #tpu.memory_space<vmem>>, vector<64x128xbf16>
    tpu.vector_store %arg14[%c320, %c0_27], %22 {strides = array<i32>} : memref<512x128xbf16, #tpu.memory_space<vmem>>, vector<64x128xbf16>,
    %c0_28 = arith.constant 0 : index
    %c6 = arith.constant 6 : index
    %24 = vector.load %arg13[%c0_28, %c6] : memref<64x135xbf16, #tpu.memory_space<vmem>>, vector<64x128xbf16>
    %c384 = arith.constant 384 : index
    %c0_29 = arith.constant 0 : index
    %25 = vector.load %arg14[%c384, %c0_29] : memref<512x128xbf16, #tpu.memory_space<vmem>>, vector<64x128xbf16>
    tpu.vector_store %arg14[%c384, %c0_29], %24 {strides = array<i32>} : memref<512x128xbf16, #tpu.memory_space<vmem>>, vector<64x128xbf16>,
    %c0_30 = arith.constant 0 : index
    %c7 = arith.constant 7 : index
    %26 = vector.load %arg13[%c0_30, %c7] : memref<64x135xbf16, #tpu.memory_space<vmem>>, vector<64x128xbf16>
    %c448 = arith.constant 448 : index
    %c0_31 = arith.constant 0 : index
    %27 = vector.load %arg14[%c448, %c0_31] : memref<512x128xbf16, #tpu.memory_space<vmem>>, vector<64x128xbf16>
    tpu.vector_store %arg14[%c448, %c0_31], %26 {strides = array<i32>} : memref<512x128xbf16, #tpu.memory_space<vmem>>, vector<64x128xbf16>,
    %c0_32 = arith.constant 0 : index
    %c0_33 = arith.constant 0 : index
    %28 = vector.load %arg14[%c0_32, %c0_33] : memref<512x128xbf16, #tpu.memory_space<vmem>>, vector<512x128xbf16>
    %cst_34 = arith.constant dense<0.000000e+00> : vector<32x128xf32>
    %29 = tpu.matmul %7, %28, %cst_34 {dimension_numbers = #tpu.dot_dimension_numbers<[1], [0], [0], [1], [0, 0, 1, 1], [], []>} : vector<32x512xbf16>, vector<512x128xbf16>, vector<32x128xf32> -> vector<32x128xf32>
    %30 = vector.broadcast %9 : vector<32x1xf32> to vector<32x128xf32>
    %31 = arith.addf %29, %30 : vector<32x128xf32>
    %c0_35 = arith.constant 0 : index
    %c0_36 = arith.constant 0 : index
    %c0_37 = arith.constant 0 : index
    %32 = vector.load %arg4[%c0_35, %c0_36, %c0_37] : memref<4x32x256xbf16, #tpu.memory_space<vmem>>, vector<1x32x256xbf16>
    %33 = vector.shape_cast %32 : vector<1x32x256xbf16> to vector<32x256xbf16>
    %c0_38 = arith.constant 0 : index
    %c0_39 = arith.constant 0 : index
    %c0_40 = arith.constant 0 : index
    %34 = vector.load %arg5[%c0_38, %c0_39, %c0_40] : memref<4x32x1xf32, #tpu.memory_space<vmem>>, vector<1x32x1xf32>
    %35 = vector.shape_cast %34 : vector<1x32x1xf32> to vector<32x1xf32>
    %36 = arith.truncf %31 : vector<32x128xf32> to vector<32x128xbf16>
    %c0_41 = arith.constant 0 : index
    %c3_42 = arith.constant 3 : index
    %37 = vector.load %arg13[%c0_41, %c3_42] : memref<64x135xbf16, #tpu.memory_space<vmem>>, vector<32x128xbf16>
    tpu.vector_store %arg13[%c0_41, %c3_42], %36 {strides = array<i32>} : memref<64x135xbf16, #tpu.memory_space<vmem>>, vector<32x128xbf16>,
    %c0_43 = arith.constant 0 : index
    %c0_44 = arith.constant 0 : index
    %38 = vector.load %arg13[%c0_43, %c0_44] : memref<64x135xbf16, #tpu.memory_space<vmem>>, vector<32x128xbf16>
    %c0_45 = arith.constant 0 : index
    %c0_46 = arith.constant 0 : index
    %39 = vector.load %arg14[%c0_45, %c0_46] : memref<512x128xbf16, #tpu.memory_space<vmem>>, vector<32x128xbf16>
    tpu.vector_store %arg14[%c0_45, %c0_46], %38 {strides = array<i32>} : memref<512x128xbf16, #tpu.memory_space<vmem>>, vector<32x128xbf16>,
    %c0_47 = arith.constant 0 : index
    %c1_48 = arith.constant 1 : index
    %40 = vector.load %arg13[%c0_47, %c1_48] : memref<64x135xbf16, #tpu.memory_space<vmem>>, vector<32x128xbf16>
    %c32 = arith.constant 32 : index
    %c0_49 = arith.constant 0 : index
    %41 = vector.load %arg14[%c32, %c0_49] : memref<512x128xbf16, #tpu.memory_space<vmem>>, vector<32x128xbf16>
    tpu.vector_store %arg14[%c32, %c0_49], %40 {strides = array<i32>} : memref<512x128xbf16, #tpu.memory_space<vmem>>, vector<32x128xbf16>,
    %c0_50 = arith.constant 0 : index
    %c2_51 = arith.constant 2 : index
    %42 = vector.load %arg13[%c0_50, %c2_51] : memref<64x135xbf16, #tpu.memory_space<vmem>>, vector<32x128xbf16>
    %c64_52 = arith.constant 64 : index
    %c0_53 = arith.constant 0 : index
    %43 = vector.load %arg14[%c64_52, %c0_53] : memref<512x128xbf16, #tpu.memory_space<vmem>>, vector<32x128xbf16>
    tpu.vector_store %arg14[%c64_52, %c0_53], %42 {strides = array<i32>} : memref<512x128xbf16, #tpu.memory_space<vmem>>, vector<32x128xbf16>,
    %c0_54 = arith.constant 0 : index
    %c3_55 = arith.constant 3 : index
    %44 = vector.load %arg13[%c0_54, %c3_55] : memref<64x135xbf16, #tpu.memory_space<vmem>>, vector<32x128xbf16>
    %c96 = arith.constant 96 : index
    %c0_56 = arith.constant 0 : index
    %45 = vector.load %arg14[%c96, %c0_56] : memref<512x128xbf16, #tpu.memory_space<vmem>>, vector<32x128xbf16>
    tpu.vector_store %arg14[%c96, %c0_56], %44 {strides = array<i32>} : memref<512x128xbf16, #tpu.memory_space<vmem>>, vector<32x128xbf16>,
    %c0_57 = arith.constant 0 : index
    %c4_58 = arith.constant 4 : index
    %46 = vector.load %arg13[%c0_57, %c4_58] : memref<64x135xbf16, #tpu.memory_space<vmem>>, vector<32x128xbf16>
    %c128_59 = arith.constant 128 : index
    %c0_60 = arith.constant 0 : index
    %47 = vector.load %arg14[%c128_59, %c0_60] : memref<512x128xbf16, #tpu.memory_space<vmem>>, vector<32x128xbf16>
    tpu.vector_store %arg14[%c128_59, %c0_60], %46 {strides = array<i32>} : memref<512x128xbf16, #tpu.memory_space<vmem>>, vector<32x128xbf16>,
    %c0_61 = arith.constant 0 : index
    %c5_62 = arith.constant 5 : index
    %48 = vector.load %arg13[%c0_61, %c5_62] : memref<64x135xbf16, #tpu.memory_space<vmem>>, vector<32x128xbf16>
    %c160 = arith.constant 160 : index
    %c0_63 = arith.constant 0 : index
    %49 = vector.load %arg14[%c160, %c0_63] : memref<512x128xbf16, #tpu.memory_space<vmem>>, vector<32x128xbf16>
    tpu.vector_store %arg14[%c160, %c0_63], %48 {strides = array<i32>} : memref<512x128xbf16, #tpu.memory_space<vmem>>, vector<32x128xbf16>,
    %c0_64 = arith.constant 0 : index
    %c6_65 = arith.constant 6 : index
    %50 = vector.load %arg13[%c0_64, %c6_65] : memref<64x135xbf16, #tpu.memory_space<vmem>>, vector<32x128xbf16>
    %c192_66 = arith.constant 192 : index
    %c0_67 = arith.constant 0 : index
    %51 = vector.load %arg14[%c192_66, %c0_67] : memref<512x128xbf16, #tpu.memory_space<vmem>>, vector<32x128xbf16>
    tpu.vector_store %arg14[%c192_66, %c0_67], %50 {strides = array<i32>} : memref<512x128xbf16, #tpu.memory_space<vmem>>, vector<32x128xbf16>,
    %c0_68 = arith.constant 0 : index
    %c7_69 = arith.constant 7 : index
    %52 = vector.load %arg13[%c0_68, %c7_69] : memref<64x135xbf16, #tpu.memory_space<vmem>>, vector<32x128xbf16>
    %c224 = arith.constant 224 : index
    %c0_70 = arith.constant 0 : index
    %53 = vector.load %arg14[%c224, %c0_70] : memref<512x128xbf16, #tpu.memory_space<vmem>>, vector<32x128xbf16>
    tpu.vector_store %arg14[%c224, %c0_70], %52 {strides = array<i32>} : memref<512x128xbf16, #tpu.memory_space<vmem>>, vector<32x128xbf16>,
    %c0_71 = arith.constant 0 : index
    %c0_72 = arith.constant 0 : index
    %54 = vector.load %arg14[%c0_71, %c0_72] : memref<512x128xbf16, #tpu.memory_space<vmem>>, vector<256x128xbf16>
    %cst_73 = arith.constant dense<0.000000e+00> : vector<32x128xf32>
    %55 = tpu.matmul %33, %54, %cst_73 {dimension_numbers = #tpu.dot_dimension_numbers<[1], [0], [0], [1], [0, 0, 1, 1], [], []>} : vector<32x256xbf16>, vector<256x128xbf16>, vector<32x128xf32> -> vector<32x128xf32>
    %56 = vector.broadcast %35 : vector<32x1xf32> to vector<32x128xf32>
    %57 = arith.addf %55, %56 : vector<32x128xf32>
    %cst_74 = arith.constant 5.000000e-01 : f32
    %58 = vector.broadcast %cst_74 : f32 to vector<32x128xf32>
    %59 = arith.mulf %58, %57 : vector<32x128xf32>
    %cst_75 = arith.constant 0.707106769 : f32
    %60 = vector.broadcast %cst_75 : f32 to vector<32x128xf32>
    %61 = arith.mulf %57, %60 : vector<32x128xf32>
    %cst_76 = arith.constant 0.000000e+00 : f32
    %62 = vector.broadcast %cst_76 : f32 to vector<32x128xf32>
    %63 = arith.cmpf oge, %61, %62 : vector<32x128xf32>
    %cst_77 = arith.constant 1.000000e+00 : f32
    %cst_78 = arith.constant -1.000000e+00 : f32
    %64 = vector.broadcast %cst_77 : f32 to vector<32x128xf32>
    %65 = vector.broadcast %cst_78 : f32 to vector<32x128xf32>
    %66 = arith.select %63, %64, %65 : vector<32x128xi1>, vector<32x128xf32>
    %67 = math.absf %61 : vector<32x128xf32>
    %cst_79 = arith.constant 0.327591091 : f32
    %68 = vector.broadcast %cst_79 : f32 to vector<32x128xf32>
    %69 = arith.mulf %68, %67 : vector<32x128xf32>
    %cst_80 = arith.constant 1.000000e+00 : f32
    %70 = vector.broadcast %cst_80 : f32 to vector<32x128xf32>
    %71 = arith.addf %70, %69 : vector<32x128xf32>
    %72 = tpu.reciprocal %71 {approx = true} : vector<32x128xf32> -> vector<32x128xf32>
    %cst_81 = arith.constant 1.06140542 : f32
    %73 = vector.broadcast %cst_81 : f32 to vector<32x128xf32>
    %74 = arith.mulf %73, %72 : vector<32x128xf32>
    %cst_82 = arith.constant -1.45315206 : f32
    %75 = vector.broadcast %cst_82 : f32 to vector<32x128xf32>
    %76 = arith.addf %74, %75 : vector<32x128xf32>
    %77 = arith.mulf %76, %72 : vector<32x128xf32>
    %cst_83 = arith.constant 1.42141378 : f32
    %78 = vector.broadcast %cst_83 : f32 to vector<32x128xf32>
    %79 = arith.addf %77, %78 : vector<32x128xf32>
    %80 = arith.mulf %79, %72 : vector<32x128xf32>
    %cst_84 = arith.constant -0.284496725 : f32
    %81 = vector.broadcast %cst_84 : f32 to vector<32x128xf32>
    %82 = arith.addf %80, %81 : vector<32x128xf32>
    %83 = arith.mulf %82, %72 : vector<32x128xf32>
    %cst_85 = arith.constant 0.254829586 : f32
    %84 = vector.broadcast %cst_85 : f32 to vector<32x128xf32>
    %85 = arith.addf %83, %84 : vector<32x128xf32>
    %86 = arith.mulf %85, %72 : vector<32x128xf32>
    %cst_86 = arith.constant 0.000000e+00 : f32
    %87 = vector.broadcast %cst_86 : f32 to vector<32x128xf32>
    %88 = arith.subf %87, %67 : vector<32x128xf32>
    %89 = arith.mulf %88, %67 : vector<32x128xf32>
    %90 = math.exp %89 : vector<32x128xf32>
    %91 = arith.mulf %86, %90 : vector<32x128xf32>
    %cst_87 = arith.constant 1.000000e+00 : f32
    %92 = vector.broadcast %cst_87 : f32 to vector<32x128xf32>
    %93 = arith.subf %92, %91 : vector<32x128xf32>
    %94 = arith.mulf %66, %93 : vector<32x128xf32>
    %cst_88 = arith.constant 1.000000e+00 : f32
    %95 = vector.broadcast %cst_88 : f32 to vector<32x128xf32>
    %96 = arith.addf %95, %94 : vector<32x128xf32>
    %97 = arith.mulf %59, %96 : vector<32x128xf32>
    %c0_89 = arith.constant 0 : index
    %c0_90 = arith.constant 0 : index
    %c0_91 = arith.constant 0 : index
    %98 = vector.load %arg6[%c0_89, %c0_90, %c0_91] : memref<4x32x128xf32, #tpu.memory_space<vmem>>, vector<1x32x128xf32>
    %99 = vector.shape_cast %98 : vector<1x32x128xf32> to vector<32x128xf32>
    %c0_92 = arith.constant 0 : index
    %c0_93 = arith.constant 0 : index
    %c0_94 = arith.constant 0 : index
    %100 = vector.load %arg7[%c0_92, %c0_93, %c0_94] : memref<4x32x128xf32, #tpu.memory_space<vmem>>, vector<1x32x128xf32>
    %101 = vector.shape_cast %100 : vector<1x32x128xf32> to vector<32x128xf32>
    %102 = vector.shape_cast %97 : vector<32x128xf32> to vector<1x32x128xf32>
    %cst_95 = arith.constant dense<0.000000e+00> : vector<1xf32>
    %103 = vector.multi_reduction <add>, %102, %cst_95 [1, 2] : vector<1x32x128xf32> to vector<1xf32>
    %104 = vector.shape_cast %103 : vector<1xf32> to vector<1x1x1xf32>
    %105 = vector.extract %104[0, 0, 0] : f32 from vector<1x1x1xf32>
    %cst_96 = arith.constant 2.44140625E-4 : f32
    %106 = arith.mulf %105, %cst_96 : f32
    %107 = arith.mulf %97, %97 : vector<32x128xf32>
    %108 = vector.shape_cast %107 : vector<32x128xf32> to vector<1x32x128xf32>
    %cst_97 = arith.constant dense<0.000000e+00> : vector<1xf32>
    %109 = vector.multi_reduction <add>, %108, %cst_97 [1, 2] : vector<1x32x128xf32> to vector<1xf32>
    %110 = vector.shape_cast %109 : vector<1xf32> to vector<1x1x1xf32>
    %111 = vector.extract %110[0, 0, 0] : f32 from vector<1x1x1xf32>
    %cst_98 = arith.constant 2.44140625E-4 : f32
    %112 = arith.mulf %111, %cst_98 : f32
    %113 = arith.mulf %106, %106 : f32
    %114 = arith.subf %112, %113 : f32
    %115 = vector.broadcast %106 : f32 to vector<32x128xf32>
    %116 = arith.subf %97, %115 : vector<32x128xf32>
    %cst_99 = arith.constant 9.99999974E-6 : f32
    %117 = arith.addf %114, %cst_99 : f32
    %118 = math.rsqrt %117 : f32
    %119 = vector.broadcast %118 : f32 to vector<32x128xf32>
    %120 = arith.mulf %116, %119 : vector<32x128xf32>
    %121 = arith.mulf %120, %99 : vector<32x128xf32>
    %122 = arith.addf %121, %101 : vector<32x128xf32>
    %c1_100 = arith.constant 1 : index
    %c0_101 = arith.constant 0 : index
    %c0_102 = arith.constant 0 : index
    %123 = vector.load %arg4[%c1_100, %c0_101, %c0_102] : memref<4x32x256xbf16, #tpu.memory_space<vmem>>, vector<1x32x256xbf16>
    %124 = vector.shape_cast %123 : vector<1x32x256xbf16> to vector<32x256xbf16>
    %c1_103 = arith.constant 1 : index
    %c0_104 = arith.constant 0 : index
    %c0_105 = arith.constant 0 : index
    %125 = vector.load %arg5[%c1_103, %c0_104, %c0_105] : memref<4x32x1xf32, #tpu.memory_space<vmem>>, vector<1x32x1xf32>
    %126 = vector.shape_cast %125 : vector<1x32x1xf32> to vector<32x1xf32>
    %127 = arith.truncf %122 : vector<32x128xf32> to vector<32x128xbf16>
    %c0_106 = arith.constant 0 : index
    %c3_107 = arith.constant 3 : index
    %128 = vector.load %arg13[%c0_106, %c3_107] : memref<64x135xbf16, #tpu.memory_space<vmem>>, vector<32x128xbf16>
    tpu.vector_store %arg13[%c0_106, %c3_107], %127 {strides = array<i32>} : memref<64x135xbf16, #tpu.memory_space<vmem>>, vector<32x128xbf16>,
    %c0_108 = arith.constant 0 : index
    %c0_109 = arith.constant 0 : index
    %129 = vector.load %arg13[%c0_108, %c0_109] : memref<64x135xbf16, #tpu.memory_space<vmem>>, vector<32x128xbf16>
    %c0_110 = arith.constant 0 : index
    %c0_111 = arith.constant 0 : index
    %130 = vector.load %arg14[%c0_110, %c0_111] : memref<512x128xbf16, #tpu.memory_space<vmem>>, vector<32x128xbf16>
    tpu.vector_store %arg14[%c0_110, %c0_111], %129 {strides = array<i32>} : memref<512x128xbf16, #tpu.memory_space<vmem>>, vector<32x128xbf16>,
    %c0_112 = arith.constant 0 : index
    %c1_113 = arith.constant 1 : index
    %131 = vector.load %arg13[%c0_112, %c1_113] : memref<64x135xbf16, #tpu.memory_space<vmem>>, vector<32x128xbf16>
    %c32_114 = arith.constant 32 : index
    %c0_115 = arith.constant 0 : index
    %132 = vector.load %arg14[%c32_114, %c0_115] : memref<512x128xbf16, #tpu.memory_space<vmem>>, vector<32x128xbf16>
    tpu.vector_store %arg14[%c32_114, %c0_115], %131 {strides = array<i32>} : memref<512x128xbf16, #tpu.memory_space<vmem>>, vector<32x128xbf16>,
    %c0_116 = arith.constant 0 : index
    %c2_117 = arith.constant 2 : index
    %133 = vector.load %arg13[%c0_116, %c2_117] : memref<64x135xbf16, #tpu.memory_space<vmem>>, vector<32x128xbf16>
    %c64_118 = arith.constant 64 : index
    %c0_119 = arith.constant 0 : index
    %134 = vector.load %arg14[%c64_118, %c0_119] : memref<512x128xbf16, #tpu.memory_space<vmem>>, vector<32x128xbf16>
    tpu.vector_store %arg14[%c64_118, %c0_119], %133 {strides = array<i32>} : memref<512x128xbf16, #tpu.memory_space<vmem>>, vector<32x128xbf16>,
    %c0_120 = arith.constant 0 : index
    %c3_121 = arith.constant 3 : index
    %135 = vector.load %arg13[%c0_120, %c3_121] : memref<64x135xbf16, #tpu.memory_space<vmem>>, vector<32x128xbf16>
    %c96_122 = arith.constant 96 : index
    %c0_123 = arith.constant 0 : index
    %136 = vector.load %arg14[%c96_122, %c0_123] : memref<512x128xbf16, #tpu.memory_space<vmem>>, vector<32x128xbf16>
    tpu.vector_store %arg14[%c96_122, %c0_123], %135 {strides = array<i32>} : memref<512x128xbf16, #tpu.memory_space<vmem>>, vector<32x128xbf16>,
    %c0_124 = arith.constant 0 : index
    %c4_125 = arith.constant 4 : index
    %137 = vector.load %arg13[%c0_124, %c4_125] : memref<64x135xbf16, #tpu.memory_space<vmem>>, vector<32x128xbf16>
    %c128_126 = arith.constant 128 : index
    %c0_127 = arith.constant 0 : index
    %138 = vector.load %arg14[%c128_126, %c0_127] : memref<512x128xbf16, #tpu.memory_space<vmem>>, vector<32x128xbf16>
    tpu.vector_store %arg14[%c128_126, %c0_127], %137 {strides = array<i32>} : memref<512x128xbf16, #tpu.memory_space<vmem>>, vector<32x128xbf16>,
    %c0_128 = arith.constant 0 : index
    %c5_129 = arith.constant 5 : index
    %139 = vector.load %arg13[%c0_128, %c5_129] : memref<64x135xbf16, #tpu.memory_space<vmem>>, vector<32x128xbf16>
    %c160_130 = arith.constant 160 : index
    %c0_131 = arith.constant 0 : index
    %140 = vector.load %arg14[%c160_130, %c0_131] : memref<512x128xbf16, #tpu.memory_space<vmem>>, vector<32x128xbf16>
    tpu.vector_store %arg14[%c160_130, %c0_131], %139 {strides = array<i32>} : memref<512x128xbf16, #tpu.memory_space<vmem>>, vector<32x128xbf16>,
    %c0_132 = arith.constant 0 : index
    %c6_133 = arith.constant 6 : index
    %141 = vector.load %arg13[%c0_132, %c6_133] : memref<64x135xbf16, #tpu.memory_space<vmem>>, vector<32x128xbf16>
    %c192_134 = arith.constant 192 : index
    %c0_135 = arith.constant 0 : index
    %142 = vector.load %arg14[%c192_134, %c0_135] : memref<512x128xbf16, #tpu.memory_space<vmem>>, vector<32x128xbf16>
    tpu.vector_store %arg14[%c192_134, %c0_135], %141 {strides = array<i32>} : memref<512x128xbf16, #tpu.memory_space<vmem>>, vector<32x128xbf16>,
    %c0_136 = arith.constant 0 : index
    %c7_137 = arith.constant 7 : index
    %143 = vector.load %arg13[%c0_136, %c7_137] : memref<64x135xbf16, #tpu.memory_space<vmem>>, vector<32x128xbf16>
    %c224_138 = arith.constant 224 : index
    %c0_139 = arith.constant 0 : index
    %144 = vector.load %arg14[%c224_138, %c0_139] : memref<512x128xbf16, #tpu.memory_space<vmem>>, vector<32x128xbf16>
    tpu.vector_store %arg14[%c224_138, %c0_139], %143 {strides = array<i32>} : memref<512x128xbf16, #tpu.memory_space<vmem>>, vector<32x128xbf16>,
    %c0_140 = arith.constant 0 : index
    %c0_141 = arith.constant 0 : index
    %145 = vector.load %arg14[%c0_140, %c0_141] : memref<512x128xbf16, #tpu.memory_space<vmem>>, vector<256x128xbf16>
    %cst_142 = arith.constant dense<0.000000e+00> : vector<32x128xf32>
    %146 = tpu.matmul %124, %145, %cst_142 {dimension_numbers = #tpu.dot_dimension_numbers<[1], [0], [0], [1], [0, 0, 1, 1], [], []>} : vector<32x256xbf16>, vector<256x128xbf16>, vector<32x128xf32> -> vector<32x128xf32>
    %147 = vector.broadcast %126 : vector<32x1xf32> to vector<32x128xf32>
    %148 = arith.addf %146, %147 : vector<32x128xf32>
    %cst_143 = arith.constant 5.000000e-01 : f32
    %149 = vector.broadcast %cst_143 : f32 to vector<32x128xf32>
    %150 = arith.mulf %149, %148 : vector<32x128xf32>
    %cst_144 = arith.constant 0.707106769 : f32
    %151 = vector.broadcast %cst_144 : f32 to vector<32x128xf32>
    %152 = arith.mulf %148, %151 : vector<32x128xf32>
    %cst_145 = arith.constant 0.000000e+00 : f32
    %153 = vector.broadcast %cst_145 : f32 to vector<32x128xf32>
    %154 = arith.cmpf oge, %152, %153 : vector<32x128xf32>
    %cst_146 = arith.constant 1.000000e+00 : f32
    %cst_147 = arith.constant -1.000000e+00 : f32
    %155 = vector.broadcast %cst_146 : f32 to vector<32x128xf32>
    %156 = vector.broadcast %cst_147 : f32 to vector<32x128xf32>
    %157 = arith.select %154, %155, %156 : vector<32x128xi1>, vector<32x128xf32>
    %158 = math.absf %152 : vector<32x128xf32>
    %cst_148 = arith.constant 0.327591091 : f32
    %159 = vector.broadcast %cst_148 : f32 to vector<32x128xf32>
    %160 = arith.mulf %159, %158 : vector<32x128xf32>
    %cst_149 = arith.constant 1.000000e+00 : f32
    %161 = vector.broadcast %cst_149 : f32 to vector<32x128xf32>
    %162 = arith.addf %161, %160 : vector<32x128xf32>
    %163 = tpu.reciprocal %162 {approx = true} : vector<32x128xf32> -> vector<32x128xf32>
    %cst_150 = arith.constant 1.06140542 : f32
    %164 = vector.broadcast %cst_150 : f32 to vector<32x128xf32>
    %165 = arith.mulf %164, %163 : vector<32x128xf32>
    %cst_151 = arith.constant -1.45315206 : f32
    %166 = vector.broadcast %cst_151 : f32 to vector<32x128xf32>
    %167 = arith.addf %165, %166 : vector<32x128xf32>
    %168 = arith.mulf %167, %163 : vector<32x128xf32>
    %cst_152 = arith.constant 1.42141378 : f32
    %169 = vector.broadcast %cst_152 : f32 to vector<32x128xf32>
    %170 = arith.addf %168, %169 : vector<32x128xf32>
    %171 = arith.mulf %170, %163 : vector<32x128xf32>
    %cst_153 = arith.constant -0.284496725 : f32
    %172 = vector.broadcast %cst_153 : f32 to vector<32x128xf32>
    %173 = arith.addf %171, %172 : vector<32x128xf32>
    %174 = arith.mulf %173, %163 : vector<32x128xf32>
    %cst_154 = arith.constant 0.254829586 : f32
    %175 = vector.broadcast %cst_154 : f32 to vector<32x128xf32>
    %176 = arith.addf %174, %175 : vector<32x128xf32>
    %177 = arith.mulf %176, %163 : vector<32x128xf32>
    %cst_155 = arith.constant 0.000000e+00 : f32
    %178 = vector.broadcast %cst_155 : f32 to vector<32x128xf32>
    %179 = arith.subf %178, %158 : vector<32x128xf32>
    %180 = arith.mulf %179, %158 : vector<32x128xf32>
    %181 = math.exp %180 : vector<32x128xf32>
    %182 = arith.mulf %177, %181 : vector<32x128xf32>
    %cst_156 = arith.constant 1.000000e+00 : f32
    %183 = vector.broadcast %cst_156 : f32 to vector<32x128xf32>
    %184 = arith.subf %183, %182 : vector<32x128xf32>
    %185 = arith.mulf %157, %184 : vector<32x128xf32>
    %cst_157 = arith.constant 1.000000e+00 : f32
    %186 = vector.broadcast %cst_157 : f32 to vector<32x128xf32>
    %187 = arith.addf %186, %185 : vector<32x128xf32>
    %188 = arith.mulf %150, %187 : vector<32x128xf32>
    %c1_158 = arith.constant 1 : index
    %c0_159 = arith.constant 0 : index
    %c0_160 = arith.constant 0 : index
    %189 = vector.load %arg6[%c1_158, %c0_159, %c0_160] : memref<4x32x128xf32, #tpu.memory_space<vmem>>, vector<1x32x128xf32>
    %190 = vector.shape_cast %189 : vector<1x32x128xf32> to vector<32x128xf32>
    %c1_161 = arith.constant 1 : index
    %c0_162 = arith.constant 0 : index
    %c0_163 = arith.constant 0 : index
    %191 = vector.load %arg7[%c1_161, %c0_162, %c0_163] : memref<4x32x128xf32, #tpu.memory_space<vmem>>, vector<1x32x128xf32>
    %192 = vector.shape_cast %191 : vector<1x32x128xf32> to vector<32x128xf32>
    %193 = vector.shape_cast %188 : vector<32x128xf32> to vector<1x32x128xf32>
    %cst_164 = arith.constant dense<0.000000e+00> : vector<1xf32>
    %194 = vector.multi_reduction <add>, %193, %cst_164 [1, 2] : vector<1x32x128xf32> to vector<1xf32>
    %195 = vector.shape_cast %194 : vector<1xf32> to vector<1x1x1xf32>
    %196 = vector.extract %195[0, 0, 0] : f32 from vector<1x1x1xf32>
    %cst_165 = arith.constant 2.44140625E-4 : f32
    %197 = arith.mulf %196, %cst_165 : f32
    %198 = arith.mulf %188, %188 : vector<32x128xf32>
    %199 = vector.shape_cast %198 : vector<32x128xf32> to vector<1x32x128xf32>
    %cst_166 = arith.constant dense<0.000000e+00> : vector<1xf32>
    %200 = vector.multi_reduction <add>, %199, %cst_166 [1, 2] : vector<1x32x128xf32> to vector<1xf32>
    %201 = vector.shape_cast %200 : vector<1xf32> to vector<1x1x1xf32>
    %202 = vector.extract %201[0, 0, 0] : f32 from vector<1x1x1xf32>
    %cst_167 = arith.constant 2.44140625E-4 : f32
    %203 = arith.mulf %202, %cst_167 : f32
    %204 = arith.mulf %197, %197 : f32
    %205 = arith.subf %203, %204 : f32
    %206 = vector.broadcast %197 : f32 to vector<32x128xf32>
    %207 = arith.subf %188, %206 : vector<32x128xf32>
    %cst_168 = arith.constant 9.99999974E-6 : f32
    %208 = arith.addf %205, %cst_168 : f32
    %209 = math.rsqrt %208 : f32
    %210 = vector.broadcast %209 : f32 to vector<32x128xf32>
    %211 = arith.mulf %207, %210 : vector<32x128xf32>
    %212 = arith.mulf %211, %190 : vector<32x128xf32>
    %213 = arith.addf %212, %192 : vector<32x128xf32>
    %c0_169 = arith.constant 0 : index
    %c0_170 = arith.constant 0 : index
    %c0_171 = arith.constant 0 : index
    %214 = vector.load %arg8[%c0_169, %c0_170, %c0_171] : memref<2x32x32xbf16, #tpu.memory_space<vmem>>, vector<1x32x32xbf16>
    %215 = vector.shape_cast %214 : vector<1x32x32xbf16> to vector<32x32xbf16>
    %216 = arith.truncf %213 : vector<32x128xf32> to vector<32x128xbf16>
    %cst_172 = arith.constant dense<0.000000e+00> : vector<32x128xf32>
    %217 = tpu.matmul %215, %216, %cst_172 {dimension_numbers = #tpu.dot_dimension_numbers<[1], [0], [0], [1], [0, 0, 1, 1], [], []>} : vector<32x32xbf16>, vector<32x128xbf16>, vector<32x128xf32> -> vector<32x128xf32>
    %c0_173 = arith.constant 0 : index
    %c0_174 = arith.constant 0 : index
    %c0_175 = arith.constant 0 : index
    %218 = vector.load %arg9[%c0_173, %c0_174, %c0_175] : memref<2x32x1xf32, #tpu.memory_space<vmem>>, vector<1x32x1xf32>
    %219 = vector.shape_cast %218 : vector<1x32x1xf32> to vector<32x1xf32>
    %220 = vector.broadcast %219 : vector<32x1xf32> to vector<32x128xf32>
    %221 = arith.addf %217, %220 : vector<32x128xf32>
    %c0_176 = arith.constant 0 : index
    %c0_177 = arith.constant 0 : index
    %c0_178 = arith.constant 0 : index
    %222 = vector.load %arg10[%c0_176, %c0_177, %c0_178] : memref<2x64x256xbf16, #tpu.memory_space<vmem>>, vector<1x64x256xbf16>
    %223 = vector.shape_cast %222 : vector<1x64x256xbf16> to vector<64x256xbf16>
    %c0_179 = arith.constant 0 : index
    %c0_180 = arith.constant 0 : index
    %c0_181 = arith.constant 0 : index
    %224 = vector.load %arg11[%c0_179, %c0_180, %c0_181] : memref<2x64x1xf32, #tpu.memory_space<vmem>>, vector<1x64x1xf32>
    %225 = vector.shape_cast %224 : vector<1x64x1xf32> to vector<64x1xf32>
    %226 = arith.truncf %221 : vector<32x128xf32> to vector<32x128xbf16>
    %c0_182 = arith.constant 0 : index
    %c3_183 = arith.constant 3 : index
    %227 = vector.load %arg13[%c0_182, %c3_183] : memref<64x135xbf16, #tpu.memory_space<vmem>>, vector<32x128xbf16>
    tpu.vector_store %arg13[%c0_182, %c3_183], %226 {strides = array<i32>} : memref<64x135xbf16, #tpu.memory_space<vmem>>, vector<32x128xbf16>,
    %c0_184 = arith.constant 0 : index
    %c0_185 = arith.constant 0 : index
    %228 = vector.load %arg13[%c0_184, %c0_185] : memref<64x135xbf16, #tpu.memory_space<vmem>>, vector<32x128xbf16>
    %c0_186 = arith.constant 0 : index
    %c0_187 = arith.constant 0 : index
    %229 = vector.load %arg14[%c0_186, %c0_187] : memref<512x128xbf16, #tpu.memory_space<vmem>>, vector<32x128xbf16>
    tpu.vector_store %arg14[%c0_186, %c0_187], %228 {strides = array<i32>} : memref<512x128xbf16, #tpu.memory_space<vmem>>, vector<32x128xbf16>,
    %c0_188 = arith.constant 0 : index
    %c1_189 = arith.constant 1 : index
    %230 = vector.load %arg13[%c0_188, %c1_189] : memref<64x135xbf16, #tpu.memory_space<vmem>>, vector<32x128xbf16>
    %c32_190 = arith.constant 32 : index
    %c0_191 = arith.constant 0 : index
    %231 = vector.load %arg14[%c32_190, %c0_191] : memref<512x128xbf16, #tpu.memory_space<vmem>>, vector<32x128xbf16>
    tpu.vector_store %arg14[%c32_190, %c0_191], %230 {strides = array<i32>} : memref<512x128xbf16, #tpu.memory_space<vmem>>, vector<32x128xbf16>,
    %c0_192 = arith.constant 0 : index
    %c2_193 = arith.constant 2 : index
    %232 = vector.load %arg13[%c0_192, %c2_193] : memref<64x135xbf16, #tpu.memory_space<vmem>>, vector<32x128xbf16>
    %c64_194 = arith.constant 64 : index
    %c0_195 = arith.constant 0 : index
    %233 = vector.load %arg14[%c64_194, %c0_195] : memref<512x128xbf16, #tpu.memory_space<vmem>>, vector<32x128xbf16>
    tpu.vector_store %arg14[%c64_194, %c0_195], %232 {strides = array<i32>} : memref<512x128xbf16, #tpu.memory_space<vmem>>, vector<32x128xbf16>,
    %c0_196 = arith.constant 0 : index
    %c3_197 = arith.constant 3 : index
    %234 = vector.load %arg13[%c0_196, %c3_197] : memref<64x135xbf16, #tpu.memory_space<vmem>>, vector<32x128xbf16>
    %c96_198 = arith.constant 96 : index
    %c0_199 = arith.constant 0 : index
    %235 = vector.load %arg14[%c96_198, %c0_199] : memref<512x128xbf16, #tpu.memory_space<vmem>>, vector<32x128xbf16>
    tpu.vector_store %arg14[%c96_198, %c0_199], %234 {strides = array<i32>} : memref<512x128xbf16, #tpu.memory_space<vmem>>, vector<32x128xbf16>,
    %c0_200 = arith.constant 0 : index
    %c4_201 = arith.constant 4 : index
    %236 = vector.load %arg13[%c0_200, %c4_201] : memref<64x135xbf16, #tpu.memory_space<vmem>>, vector<32x128xbf16>
    %c128_202 = arith.constant 128 : index
    %c0_203 = arith.constant 0 : index
    %237 = vector.load %arg14[%c128_202, %c0_203] : memref<512x128xbf16, #tpu.memory_space<vmem>>, vector<32x128xbf16>
    tpu.vector_store %arg14[%c128_202, %c0_203], %236 {strides = array<i32>} : memref<512x128xbf16, #tpu.memory_space<vmem>>, vector<32x128xbf16>,
    %c0_204 = arith.constant 0 : index
    %c5_205 = arith.constant 5 : index
    %238 = vector.load %arg13[%c0_204, %c5_205] : memref<64x135xbf16, #tpu.memory_space<vmem>>, vector<32x128xbf16>
    %c160_206 = arith.constant 160 : index
    %c0_207 = arith.constant 0 : index
    %239 = vector.load %arg14[%c160_206, %c0_207] : memref<512x128xbf16, #tpu.memory_space<vmem>>, vector<32x128xbf16>
    tpu.vector_store %arg14[%c160_206, %c0_207], %238 {strides = array<i32>} : memref<512x128xbf16, #tpu.memory_space<vmem>>, vector<32x128xbf16>,
    %c0_208 = arith.constant 0 : index
    %c6_209 = arith.constant 6 : index
    %240 = vector.load %arg13[%c0_208, %c6_209] : memref<64x135xbf16, #tpu.memory_space<vmem>>, vector<32x128xbf16>
    %c192_210 = arith.constant 192 : index
    %c0_211 = arith.constant 0 : index
    %241 = vector.load %arg14[%c192_210, %c0_211] : memref<512x128xbf16, #tpu.memory_space<vmem>>, vector<32x128xbf16>
    tpu.vector_store %arg14[%c192_210, %c0_211], %240 {strides = array<i32>} : memref<512x128xbf16, #tpu.memory_space<vmem>>, vector<32x128xbf16>,
    %c0_212 = arith.constant 0 : index
    %c7_213 = arith.constant 7 : index
    %242 = vector.load %arg13[%c0_212, %c7_213] : memref<64x135xbf16, #tpu.memory_space<vmem>>, vector<32x128xbf16>
    %c224_214 = arith.constant 224 : index
    %c0_215 = arith.constant 0 : index
    %243 = vector.load %arg14[%c224_214, %c0_215] : memref<512x128xbf16, #tpu.memory_space<vmem>>, vector<32x128xbf16>
    tpu.vector_store %arg14[%c224_214, %c0_215], %242 {strides = array<i32>} : memref<512x128xbf16, #tpu.memory_space<vmem>>, vector<32x128xbf16>,
    %c0_216 = arith.constant 0 : index
    %c0_217 = arith.constant 0 : index
    %244 = vector.load %arg14[%c0_216, %c0_217] : memref<512x128xbf16, #tpu.memory_space<vmem>>, vector<256x128xbf16>
    %cst_218 = arith.constant dense<0.000000e+00> : vector<64x128xf32>
    %245 = tpu.matmul %223, %244, %cst_218 {dimension_numbers = #tpu.dot_dimension_numbers<[1], [0], [0], [1], [0, 0, 1, 1], [], []>} : vector<64x256xbf16>, vector<256x128xbf16>, vector<64x128xf32> -> vector<64x128xf32>
    %246 = vector.broadcast %225 : vector<64x1xf32> to vector<64x128xf32>
    %247 = arith.addf %245, %246 : vector<64x128xf32>
    %cst_219 = arith.constant 5.000000e-01 : f32
    %248 = vector.broadcast %cst_219 : f32 to vector<64x128xf32>
    %249 = arith.mulf %248, %247 : vector<64x128xf32>
    %cst_220 = arith.constant 0.707106769 : f32
    %250 = vector.broadcast %cst_220 : f32 to vector<64x128xf32>
    %251 = arith.mulf %247, %250 : vector<64x128xf32>
    %cst_221 = arith.constant 0.000000e+00 : f32
    %252 = vector.broadcast %cst_221 : f32 to vector<64x128xf32>
    %253 = arith.cmpf oge, %251, %252 : vector<64x128xf32>
    %cst_222 = arith.constant 1.000000e+00 : f32
    %cst_223 = arith.constant -1.000000e+00 : f32
    %254 = vector.broadcast %cst_222 : f32 to vector<64x128xf32>
    %255 = vector.broadcast %cst_223 : f32 to vector<64x128xf32>
    %256 = arith.select %253, %254, %255 : vector<64x128xi1>, vector<64x128xf32>
    %257 = math.absf %251 : vector<64x128xf32>
    %cst_224 = arith.constant 0.327591091 : f32
    %258 = vector.broadcast %cst_224 : f32 to vector<64x128xf32>
    %259 = arith.mulf %258, %257 : vector<64x128xf32>
    %cst_225 = arith.constant 1.000000e+00 : f32
    %260 = vector.broadcast %cst_225 : f32 to vector<64x128xf32>
    %261 = arith.addf %260, %259 : vector<64x128xf32>
    %262 = tpu.reciprocal %261 {approx = true} : vector<64x128xf32> -> vector<64x128xf32>
    %cst_226 = arith.constant 1.06140542 : f32
    %263 = vector.broadcast %cst_226 : f32 to vector<64x128xf32>
    %264 = arith.mulf %263, %262 : vector<64x128xf32>
    %cst_227 = arith.constant -1.45315206 : f32
    %265 = vector.broadcast %cst_227 : f32 to vector<64x128xf32>
    %266 = arith.addf %264, %265 : vector<64x128xf32>
    %267 = arith.mulf %266, %262 : vector<64x128xf32>
    %cst_228 = arith.constant 1.42141378 : f32
    %268 = vector.broadcast %cst_228 : f32 to vector<64x128xf32>
    %269 = arith.addf %267, %268 : vector<64x128xf32>
    %270 = arith.mulf %269, %262 : vector<64x128xf32>
    %cst_229 = arith.constant -0.284496725 : f32
    %271 = vector.broadcast %cst_229 : f32 to vector<64x128xf32>
    %272 = arith.addf %270, %271 : vector<64x128xf32>
    %273 = arith.mulf %272, %262 : vector<64x128xf32>
    %cst_230 = arith.constant 0.254829586 : f32
    %274 = vector.broadcast %cst_230 : f32 to vector<64x128xf32>
    %275 = arith.addf %273, %274 : vector<64x128xf32>
    %276 = arith.mulf %275, %262 : vector<64x128xf32>
    %cst_231 = arith.constant 0.000000e+00 : f32
    %277 = vector.broadcast %cst_231 : f32 to vector<64x128xf32>
    %278 = arith.subf %277, %257 : vector<64x128xf32>
    %279 = arith.mulf %278, %257 : vector<64x128xf32>
    %280 = math.exp %279 : vector<64x128xf32>
    %281 = arith.mulf %276, %280 : vector<64x128xf32>
    %cst_232 = arith.constant 1.000000e+00 : f32
    %282 = vector.broadcast %cst_232 : f32 to vector<64x128xf32>
    %283 = arith.subf %282, %281 : vector<64x128xf32>
    %284 = arith.mulf %256, %283 : vector<64x128xf32>
    %cst_233 = arith.constant 1.000000e+00 : f32
    %285 = vector.broadcast %cst_233 : f32 to vector<64x128xf32>
    %286 = arith.addf %285, %284 : vector<64x128xf32>
    %287 = arith.mulf %249, %286 : vector<64x128xf32>
    %288 = vector.shape_cast %287 : vector<64x128xf32> to vector<1x64x128xf32>
    %cst_234 = arith.constant dense<0.000000e+00> : vector<1xf32>
    %289 = vector.multi_reduction <add>, %288, %cst_234 [1, 2] : vector<1x64x128xf32> to vector<1xf32>
    %290 = vector.shape_cast %289 : vector<1xf32> to vector<1x1x1xf32>
    %291 = vector.extract %290[0, 0, 0] : f32 from vector<1x1x1xf32>
    %cst_235 = arith.constant 1.22070313E-4 : f32
    %292 = arith.mulf %291, %cst_235 : f32
    %293 = arith.mulf %287, %287 : vector<64x128xf32>
    %294 = vector.shape_cast %293 : vector<64x128xf32> to vector<1x64x128xf32>
    %cst_236 = arith.constant dense<0.000000e+00> : vector<1xf32>
    %295 = vector.multi_reduction <add>, %294, %cst_236 [1, 2] : vector<1x64x128xf32> to vector<1xf32>
    %296 = vector.shape_cast %295 : vector<1xf32> to vector<1x1x1xf32>
    %297 = vector.extract %296[0, 0, 0] : f32 from vector<1x1x1xf32>
    %cst_237 = arith.constant 1.22070313E-4 : f32
    %298 = arith.mulf %297, %cst_237 : f32
    %299 = arith.mulf %292, %292 : f32
    %300 = arith.subf %298, %299 : f32
    %301 = vector.broadcast %292 : f32 to vector<64x128xf32>
    %302 = arith.subf %287, %301 : vector<64x128xf32>
    %cst_238 = arith.constant 9.99999974E-6 : f32
    %303 = arith.addf %300, %cst_238 : f32
    %304 = math.rsqrt %303 : f32
    %305 = vector.broadcast %304 : f32 to vector<64x128xf32>
    %306 = arith.mulf %302, %305 : vector<64x128xf32>
    %307 = arith.addf %5, %306 : vector<64x128xf32>
    %c1_239 = arith.constant 1 : index
    %c0_240 = arith.constant 0 : index
    %c0_241 = arith.constant 0 : index
    %308 = vector.load %arg2[%c1_239, %c0_240, %c0_241] : memref<2x32x512xbf16, #tpu.memory_space<vmem>>, vector<1x32x512xbf16>
    %309 = vector.shape_cast %308 : vector<1x32x512xbf16> to vector<32x512xbf16>
    %c1_242 = arith.constant 1 : index
    %c0_243 = arith.constant 0 : index
    %c0_244 = arith.constant 0 : index
    %310 = vector.load %arg3[%c1_242, %c0_243, %c0_244] : memref<2x32x1xf32, #tpu.memory_space<vmem>>, vector<1x32x1xf32>
    %311 = vector.shape_cast %310 : vector<1x32x1xf32> to vector<32x1xf32>
    %312 = arith.truncf %307 : vector<64x128xf32> to vector<64x128xbf16>
    %c0_245 = arith.constant 0 : index
    %c3_246 = arith.constant 3 : index
    %313 = vector.load %arg13[%c0_245, %c3_246] : memref<64x135xbf16, #tpu.memory_space<vmem>>, vector<64x128xbf16>
    tpu.vector_store %arg13[%c0_245, %c3_246], %312 {strides = array<i32>} : memref<64x135xbf16, #tpu.memory_space<vmem>>, vector<64x128xbf16>,
    %c0_247 = arith.constant 0 : index
    %c0_248 = arith.constant 0 : index
    %314 = vector.load %arg13[%c0_247, %c0_248] : memref<64x135xbf16, #tpu.memory_space<vmem>>, vector<64x128xbf16>
    %c0_249 = arith.constant 0 : index
    %c0_250 = arith.constant 0 : index
    %315 = vector.load %arg14[%c0_249, %c0_250] : memref<512x128xbf16, #tpu.memory_space<vmem>>, vector<64x128xbf16>
    tpu.vector_store %arg14[%c0_249, %c0_250], %314 {strides = array<i32>} : memref<512x128xbf16, #tpu.memory_space<vmem>>, vector<64x128xbf16>,
    %c0_251 = arith.constant 0 : index
    %c1_252 = arith.constant 1 : index
    %316 = vector.load %arg13[%c0_251, %c1_252] : memref<64x135xbf16, #tpu.memory_space<vmem>>, vector<64x128xbf16>
    %c64_253 = arith.constant 64 : index
    %c0_254 = arith.constant 0 : index
    %317 = vector.load %arg14[%c64_253, %c0_254] : memref<512x128xbf16, #tpu.memory_space<vmem>>, vector<64x128xbf16>
    tpu.vector_store %arg14[%c64_253, %c0_254], %316 {strides = array<i32>} : memref<512x128xbf16, #tpu.memory_space<vmem>>, vector<64x128xbf16>,
    %c0_255 = arith.constant 0 : index
    %c2_256 = arith.constant 2 : index
    %318 = vector.load %arg13[%c0_255, %c2_256] : memref<64x135xbf16, #tpu.memory_space<vmem>>, vector<64x128xbf16>
    %c128_257 = arith.constant 128 : index
    %c0_258 = arith.constant 0 : index
    %319 = vector.load %arg14[%c128_257, %c0_258] : memref<512x128xbf16, #tpu.memory_space<vmem>>, vector<64x128xbf16>
    tpu.vector_store %arg14[%c128_257, %c0_258], %318 {strides = array<i32>} : memref<512x128xbf16, #tpu.memory_space<vmem>>, vector<64x128xbf16>,
    %c0_259 = arith.constant 0 : index
    %c3_260 = arith.constant 3 : index
    %320 = vector.load %arg13[%c0_259, %c3_260] : memref<64x135xbf16, #tpu.memory_space<vmem>>, vector<64x128xbf16>
    %c192_261 = arith.constant 192 : index
    %c0_262 = arith.constant 0 : index
    %321 = vector.load %arg14[%c192_261, %c0_262] : memref<512x128xbf16, #tpu.memory_space<vmem>>, vector<64x128xbf16>
    tpu.vector_store %arg14[%c192_261, %c0_262], %320 {strides = array<i32>} : memref<512x128xbf16, #tpu.memory_space<vmem>>, vector<64x128xbf16>,
    %c0_263 = arith.constant 0 : index
    %c4_264 = arith.constant 4 : index
    %322 = vector.load %arg13[%c0_263, %c4_264] : memref<64x135xbf16, #tpu.memory_space<vmem>>, vector<64x128xbf16>
    %c256_265 = arith.constant 256 : index
    %c0_266 = arith.constant 0 : index
    %323 = vector.load %arg14[%c256_265, %c0_266] : memref<512x128xbf16, #tpu.memory_space<vmem>>, vector<64x128xbf16>
    tpu.vector_store %arg14[%c256_265, %c0_266], %322 {strides = array<i32>} : memref<512x128xbf16, #tpu.memory_space<vmem>>, vector<64x128xbf16>,
    %c0_267 = arith.constant 0 : index
    %c5_268 = arith.constant 5 : index
    %324 = vector.load %arg13[%c0_267, %c5_268] : memref<64x135xbf16, #tpu.memory_space<vmem>>, vector<64x128xbf16>
    %c320_269 = arith.constant 320 : index
    %c0_270 = arith.constant 0 : index
    %325 = vector.load %arg14[%c320_269, %c0_270] : memref<512x128xbf16, #tpu.memory_space<vmem>>, vector<64x128xbf16>
    tpu.vector_store %arg14[%c320_269, %c0_270], %324 {strides = array<i32>} : memref<512x128xbf16, #tpu.memory_space<vmem>>, vector<64x128xbf16>,
    %c0_271 = arith.constant 0 : index
    %c6_272 = arith.constant 6 : index
    %326 = vector.load %arg13[%c0_271, %c6_272] : memref<64x135xbf16, #tpu.memory_space<vmem>>, vector<64x128xbf16>
    %c384_273 = arith.constant 384 : index
    %c0_274 = arith.constant 0 : index
    %327 = vector.load %arg14[%c384_273, %c0_274] : memref<512x128xbf16, #tpu.memory_space<vmem>>, vector<64x128xbf16>
    tpu.vector_store %arg14[%c384_273, %c0_274], %326 {strides = array<i32>} : memref<512x128xbf16, #tpu.memory_space<vmem>>, vector<64x128xbf16>,
    %c0_275 = arith.constant 0 : index
    %c7_276 = arith.constant 7 : index
    %328 = vector.load %arg13[%c0_275, %c7_276] : memref<64x135xbf16, #tpu.memory_space<vmem>>, vector<64x128xbf16>
    %c448_277 = arith.constant 448 : index
    %c0_278 = arith.constant 0 : index
    %329 = vector.load %arg14[%c448_277, %c0_278] : memref<512x128xbf16, #tpu.memory_space<vmem>>, vector<64x128xbf16>
    tpu.vector_store %arg14[%c448_277, %c0_278], %328 {strides = array<i32>} : memref<512x128xbf16, #tpu.memory_space<vmem>>, vector<64x128xbf16>,
    %c0_279 = arith.constant 0 : index
    %c0_280 = arith.constant 0 : index
    %330 = vector.load %arg14[%c0_279, %c0_280] : memref<512x128xbf16, #tpu.memory_space<vmem>>, vector<512x128xbf16>
    %cst_281 = arith.constant dense<0.000000e+00> : vector<32x128xf32>
    %331 = tpu.matmul %309, %330, %cst_281 {dimension_numbers = #tpu.dot_dimension_numbers<[1], [0], [0], [1], [0, 0, 1, 1], [], []>} : vector<32x512xbf16>, vector<512x128xbf16>, vector<32x128xf32> -> vector<32x128xf32>
    %332 = vector.broadcast %311 : vector<32x1xf32> to vector<32x128xf32>
    %333 = arith.addf %331, %332 : vector<32x128xf32>
    %c2_282 = arith.constant 2 : index
    %c0_283 = arith.constant 0 : index
    %c0_284 = arith.constant 0 : index
    %334 = vector.load %arg4[%c2_282, %c0_283, %c0_284] : memref<4x32x256xbf16, #tpu.memory_space<vmem>>, vector<1x32x256xbf16>
    %335 = vector.shape_cast %334 : vector<1x32x256xbf16> to vector<32x256xbf16>
    %c2_285 = arith.constant 2 : index
    %c0_286 = arith.constant 0 : index
    %c0_287 = arith.constant 0 : index
    %336 = vector.load %arg5[%c2_285, %c0_286, %c0_287] : memref<4x32x1xf32, #tpu.memory_space<vmem>>, vector<1x32x1xf32>
    %337 = vector.shape_cast %336 : vector<1x32x1xf32> to vector<32x1xf32>
    %338 = arith.truncf %333 : vector<32x128xf32> to vector<32x128xbf16>
    %c0_288 = arith.constant 0 : index
    %c3_289 = arith.constant 3 : index
    %339 = vector.load %arg13[%c0_288, %c3_289] : memref<64x135xbf16, #tpu.memory_space<vmem>>, vector<32x128xbf16>
    tpu.vector_store %arg13[%c0_288, %c3_289], %338 {strides = array<i32>} : memref<64x135xbf16, #tpu.memory_space<vmem>>, vector<32x128xbf16>,
    %c0_290 = arith.constant 0 : index
    %c0_291 = arith.constant 0 : index
    %340 = vector.load %arg13[%c0_290, %c0_291] : memref<64x135xbf16, #tpu.memory_space<vmem>>, vector<32x128xbf16>
    %c0_292 = arith.constant 0 : index
    %c0_293 = arith.constant 0 : index
    %341 = vector.load %arg14[%c0_292, %c0_293] : memref<512x128xbf16, #tpu.memory_space<vmem>>, vector<32x128xbf16>
    tpu.vector_store %arg14[%c0_292, %c0_293], %340 {strides = array<i32>} : memref<512x128xbf16, #tpu.memory_space<vmem>>, vector<32x128xbf16>,
    %c0_294 = arith.constant 0 : index
    %c1_295 = arith.constant 1 : index
    %342 = vector.load %arg13[%c0_294, %c1_295] : memref<64x135xbf16, #tpu.memory_space<vmem>>, vector<32x128xbf16>
    %c32_296 = arith.constant 32 : index
    %c0_297 = arith.constant 0 : index
    %343 = vector.load %arg14[%c32_296, %c0_297] : memref<512x128xbf16, #tpu.memory_space<vmem>>, vector<32x128xbf16>
    tpu.vector_store %arg14[%c32_296, %c0_297], %342 {strides = array<i32>} : memref<512x128xbf16, #tpu.memory_space<vmem>>, vector<32x128xbf16>,
    %c0_298 = arith.constant 0 : index
    %c2_299 = arith.constant 2 : index
    %344 = vector.load %arg13[%c0_298, %c2_299] : memref<64x135xbf16, #tpu.memory_space<vmem>>, vector<32x128xbf16>
    %c64_300 = arith.constant 64 : index
    %c0_301 = arith.constant 0 : index
    %345 = vector.load %arg14[%c64_300, %c0_301] : memref<512x128xbf16, #tpu.memory_space<vmem>>, vector<32x128xbf16>
    tpu.vector_store %arg14[%c64_300, %c0_301], %344 {strides = array<i32>} : memref<512x128xbf16, #tpu.memory_space<vmem>>, vector<32x128xbf16>,
    %c0_302 = arith.constant 0 : index
    %c3_303 = arith.constant 3 : index
    %346 = vector.load %arg13[%c0_302, %c3_303] : memref<64x135xbf16, #tpu.memory_space<vmem>>, vector<32x128xbf16>
    %c96_304 = arith.constant 96 : index
    %c0_305 = arith.constant 0 : index
    %347 = vector.load %arg14[%c96_304, %c0_305] : memref<512x128xbf16, #tpu.memory_space<vmem>>, vector<32x128xbf16>
    tpu.vector_store %arg14[%c96_304, %c0_305], %346 {strides = array<i32>} : memref<512x128xbf16, #tpu.memory_space<vmem>>, vector<32x128xbf16>,
    %c0_306 = arith.constant 0 : index
    %c4_307 = arith.constant 4 : index
    %348 = vector.load %arg13[%c0_306, %c4_307] : memref<64x135xbf16, #tpu.memory_space<vmem>>, vector<32x128xbf16>
    %c128_308 = arith.constant 128 : index
    %c0_309 = arith.constant 0 : index
    %349 = vector.load %arg14[%c128_308, %c0_309] : memref<512x128xbf16, #tpu.memory_space<vmem>>, vector<32x128xbf16>
    tpu.vector_store %arg14[%c128_308, %c0_309], %348 {strides = array<i32>} : memref<512x128xbf16, #tpu.memory_space<vmem>>, vector<32x128xbf16>,
    %c0_310 = arith.constant 0 : index
    %c5_311 = arith.constant 5 : index
    %350 = vector.load %arg13[%c0_310, %c5_311] : memref<64x135xbf16, #tpu.memory_space<vmem>>, vector<32x128xbf16>
    %c160_312 = arith.constant 160 : index
    %c0_313 = arith.constant 0 : index
    %351 = vector.load %arg14[%c160_312, %c0_313] : memref<512x128xbf16, #tpu.memory_space<vmem>>, vector<32x128xbf16>
    tpu.vector_store %arg14[%c160_312, %c0_313], %350 {strides = array<i32>} : memref<512x128xbf16, #tpu.memory_space<vmem>>, vector<32x128xbf16>,
    %c0_314 = arith.constant 0 : index
    %c6_315 = arith.constant 6 : index
    %352 = vector.load %arg13[%c0_314, %c6_315] : memref<64x135xbf16, #tpu.memory_space<vmem>>, vector<32x128xbf16>
    %c192_316 = arith.constant 192 : index
    %c0_317 = arith.constant 0 : index
    %353 = vector.load %arg14[%c192_316, %c0_317] : memref<512x128xbf16, #tpu.memory_space<vmem>>, vector<32x128xbf16>
    tpu.vector_store %arg14[%c192_316, %c0_317], %352 {strides = array<i32>} : memref<512x128xbf16, #tpu.memory_space<vmem>>, vector<32x128xbf16>,
    %c0_318 = arith.constant 0 : index
    %c7_319 = arith.constant 7 : index
    %354 = vector.load %arg13[%c0_318, %c7_319] : memref<64x135xbf16, #tpu.memory_space<vmem>>, vector<32x128xbf16>
    %c224_320 = arith.constant 224 : index
    %c0_321 = arith.constant 0 : index
    %355 = vector.load %arg14[%c224_320, %c0_321] : memref<512x128xbf16, #tpu.memory_space<vmem>>, vector<32x128xbf16>
    tpu.vector_store %arg14[%c224_320, %c0_321], %354 {strides = array<i32>} : memref<512x128xbf16, #tpu.memory_space<vmem>>, vector<32x128xbf16>,
    %c0_322 = arith.constant 0 : index
    %c0_323 = arith.constant 0 : index
    %356 = vector.load %arg14[%c0_322, %c0_323] : memref<512x128xbf16, #tpu.memory_space<vmem>>, vector<256x128xbf16>
    %cst_324 = arith.constant dense<0.000000e+00> : vector<32x128xf32>
    %357 = tpu.matmul %335, %356, %cst_324 {dimension_numbers = #tpu.dot_dimension_numbers<[1], [0], [0], [1], [0, 0, 1, 1], [], []>} : vector<32x256xbf16>, vector<256x128xbf16>, vector<32x128xf32> -> vector<32x128xf32>
    %358 = vector.broadcast %337 : vector<32x1xf32> to vector<32x128xf32>
    %359 = arith.addf %357, %358 : vector<32x128xf32>
    %cst_325 = arith.constant 5.000000e-01 : f32
    %360 = vector.broadcast %cst_325 : f32 to vector<32x128xf32>
    %361 = arith.mulf %360, %359 : vector<32x128xf32>
    %cst_326 = arith.constant 0.707106769 : f32
    %362 = vector.broadcast %cst_326 : f32 to vector<32x128xf32>
    %363 = arith.mulf %359, %362 : vector<32x128xf32>
    %cst_327 = arith.constant 0.000000e+00 : f32
    %364 = vector.broadcast %cst_327 : f32 to vector<32x128xf32>
    %365 = arith.cmpf oge, %363, %364 : vector<32x128xf32>
    %cst_328 = arith.constant 1.000000e+00 : f32
    %cst_329 = arith.constant -1.000000e+00 : f32
    %366 = vector.broadcast %cst_328 : f32 to vector<32x128xf32>
    %367 = vector.broadcast %cst_329 : f32 to vector<32x128xf32>
    %368 = arith.select %365, %366, %367 : vector<32x128xi1>, vector<32x128xf32>
    %369 = math.absf %363 : vector<32x128xf32>
    %cst_330 = arith.constant 0.327591091 : f32
    %370 = vector.broadcast %cst_330 : f32 to vector<32x128xf32>
    %371 = arith.mulf %370, %369 : vector<32x128xf32>
    %cst_331 = arith.constant 1.000000e+00 : f32
    %372 = vector.broadcast %cst_331 : f32 to vector<32x128xf32>
    %373 = arith.addf %372, %371 : vector<32x128xf32>
    %374 = tpu.reciprocal %373 {approx = true} : vector<32x128xf32> -> vector<32x128xf32>
    %cst_332 = arith.constant 1.06140542 : f32
    %375 = vector.broadcast %cst_332 : f32 to vector<32x128xf32>
    %376 = arith.mulf %375, %374 : vector<32x128xf32>
    %cst_333 = arith.constant -1.45315206 : f32
    %377 = vector.broadcast %cst_333 : f32 to vector<32x128xf32>
    %378 = arith.addf %376, %377 : vector<32x128xf32>
    %379 = arith.mulf %378, %374 : vector<32x128xf32>
    %cst_334 = arith.constant 1.42141378 : f32
    %380 = vector.broadcast %cst_334 : f32 to vector<32x128xf32>
    %381 = arith.addf %379, %380 : vector<32x128xf32>
    %382 = arith.mulf %381, %374 : vector<32x128xf32>
    %cst_335 = arith.constant -0.284496725 : f32
    %383 = vector.broadcast %cst_335 : f32 to vector<32x128xf32>
    %384 = arith.addf %382, %383 : vector<32x128xf32>
    %385 = arith.mulf %384, %374 : vector<32x128xf32>
    %cst_336 = arith.constant 0.254829586 : f32
    %386 = vector.broadcast %cst_336 : f32 to vector<32x128xf32>
    %387 = arith.addf %385, %386 : vector<32x128xf32>
    %388 = arith.mulf %387, %374 : vector<32x128xf32>
    %cst_337 = arith.constant 0.000000e+00 : f32
    %389 = vector.broadcast %cst_337 : f32 to vector<32x128xf32>
    %390 = arith.subf %389, %369 : vector<32x128xf32>
    %391 = arith.mulf %390, %369 : vector<32x128xf32>
    %392 = math.exp %391 : vector<32x128xf32>
    %393 = arith.mulf %388, %392 : vector<32x128xf32>
    %cst_338 = arith.constant 1.000000e+00 : f32
    %394 = vector.broadcast %cst_338 : f32 to vector<32x128xf32>
    %395 = arith.subf %394, %393 : vector<32x128xf32>
    %396 = arith.mulf %368, %395 : vector<32x128xf32>
    %cst_339 = arith.constant 1.000000e+00 : f32
    %397 = vector.broadcast %cst_339 : f32 to vector<32x128xf32>
    %398 = arith.addf %397, %396 : vector<32x128xf32>
    %399 = arith.mulf %361, %398 : vector<32x128xf32>
    %c2_340 = arith.constant 2 : index
    %c0_341 = arith.constant 0 : index
    %c0_342 = arith.constant 0 : index
    %400 = vector.load %arg6[%c2_340, %c0_341, %c0_342] : memref<4x32x128xf32, #tpu.memory_space<vmem>>, vector<1x32x128xf32>
    %401 = vector.shape_cast %400 : vector<1x32x128xf32> to vector<32x128xf32>
    %c2_343 = arith.constant 2 : index
    %c0_344 = arith.constant 0 : index
    %c0_345 = arith.constant 0 : index
    %402 = vector.load %arg7[%c2_343, %c0_344, %c0_345] : memref<4x32x128xf32, #tpu.memory_space<vmem>>, vector<1x32x128xf32>
    %403 = vector.shape_cast %402 : vector<1x32x128xf32> to vector<32x128xf32>
    %404 = vector.shape_cast %399 : vector<32x128xf32> to vector<1x32x128xf32>
    %cst_346 = arith.constant dense<0.000000e+00> : vector<1xf32>
    %405 = vector.multi_reduction <add>, %404, %cst_346 [1, 2] : vector<1x32x128xf32> to vector<1xf32>
    %406 = vector.shape_cast %405 : vector<1xf32> to vector<1x1x1xf32>
    %407 = vector.extract %406[0, 0, 0] : f32 from vector<1x1x1xf32>
    %cst_347 = arith.constant 2.44140625E-4 : f32
    %408 = arith.mulf %407, %cst_347 : f32
    %409 = arith.mulf %399, %399 : vector<32x128xf32>
    %410 = vector.shape_cast %409 : vector<32x128xf32> to vector<1x32x128xf32>
    %cst_348 = arith.constant dense<0.000000e+00> : vector<1xf32>
    %411 = vector.multi_reduction <add>, %410, %cst_348 [1, 2] : vector<1x32x128xf32> to vector<1xf32>
    %412 = vector.shape_cast %411 : vector<1xf32> to vector<1x1x1xf32>
    %413 = vector.extract %412[0, 0, 0] : f32 from vector<1x1x1xf32>
    %cst_349 = arith.constant 2.44140625E-4 : f32
    %414 = arith.mulf %413, %cst_349 : f32
    %415 = arith.mulf %408, %408 : f32
    %416 = arith.subf %414, %415 : f32
    %417 = vector.broadcast %408 : f32 to vector<32x128xf32>
    %418 = arith.subf %399, %417 : vector<32x128xf32>
    %cst_350 = arith.constant 9.99999974E-6 : f32
    %419 = arith.addf %416, %cst_350 : f32
    %420 = math.rsqrt %419 : f32
    %421 = vector.broadcast %420 : f32 to vector<32x128xf32>
    %422 = arith.mulf %418, %421 : vector<32x128xf32>
    %423 = arith.mulf %422, %401 : vector<32x128xf32>
    %424 = arith.addf %423, %403 : vector<32x128xf32>
    %c3_351 = arith.constant 3 : index
    %c0_352 = arith.constant 0 : index
    %c0_353 = arith.constant 0 : index
    %425 = vector.load %arg4[%c3_351, %c0_352, %c0_353] : memref<4x32x256xbf16, #tpu.memory_space<vmem>>, vector<1x32x256xbf16>
    %426 = vector.shape_cast %425 : vector<1x32x256xbf16> to vector<32x256xbf16>
    %c3_354 = arith.constant 3 : index
    %c0_355 = arith.constant 0 : index
    %c0_356 = arith.constant 0 : index
    %427 = vector.load %arg5[%c3_354, %c0_355, %c0_356] : memref<4x32x1xf32, #tpu.memory_space<vmem>>, vector<1x32x1xf32>
    %428 = vector.shape_cast %427 : vector<1x32x1xf32> to vector<32x1xf32>
    %429 = arith.truncf %424 : vector<32x128xf32> to vector<32x128xbf16>
    %c0_357 = arith.constant 0 : index
    %c3_358 = arith.constant 3 : index
    %430 = vector.load %arg13[%c0_357, %c3_358] : memref<64x135xbf16, #tpu.memory_space<vmem>>, vector<32x128xbf16>
    tpu.vector_store %arg13[%c0_357, %c3_358], %429 {strides = array<i32>} : memref<64x135xbf16, #tpu.memory_space<vmem>>, vector<32x128xbf16>,
    %c0_359 = arith.constant 0 : index
    %c0_360 = arith.constant 0 : index
    %431 = vector.load %arg13[%c0_359, %c0_360] : memref<64x135xbf16, #tpu.memory_space<vmem>>, vector<32x128xbf16>
    %c0_361 = arith.constant 0 : index
    %c0_362 = arith.constant 0 : index
    %432 = vector.load %arg14[%c0_361, %c0_362] : memref<512x128xbf16, #tpu.memory_space<vmem>>, vector<32x128xbf16>
    tpu.vector_store %arg14[%c0_361, %c0_362], %431 {strides = array<i32>} : memref<512x128xbf16, #tpu.memory_space<vmem>>, vector<32x128xbf16>,
    %c0_363 = arith.constant 0 : index
    %c1_364 = arith.constant 1 : index
    %433 = vector.load %arg13[%c0_363, %c1_364] : memref<64x135xbf16, #tpu.memory_space<vmem>>, vector<32x128xbf16>
    %c32_365 = arith.constant 32 : index
    %c0_366 = arith.constant 0 : index
    %434 = vector.load %arg14[%c32_365, %c0_366] : memref<512x128xbf16, #tpu.memory_space<vmem>>, vector<32x128xbf16>
    tpu.vector_store %arg14[%c32_365, %c0_366], %433 {strides = array<i32>} : memref<512x128xbf16, #tpu.memory_space<vmem>>, vector<32x128xbf16>,
    %c0_367 = arith.constant 0 : index
    %c2_368 = arith.constant 2 : index
    %435 = vector.load %arg13[%c0_367, %c2_368] : memref<64x135xbf16, #tpu.memory_space<vmem>>, vector<32x128xbf16>
    %c64_369 = arith.constant 64 : index
    %c0_370 = arith.constant 0 : index
    %436 = vector.load %arg14[%c64_369, %c0_370] : memref<512x128xbf16, #tpu.memory_space<vmem>>, vector<32x128xbf16>
    tpu.vector_store %arg14[%c64_369, %c0_370], %435 {strides = array<i32>} : memref<512x128xbf16, #tpu.memory_space<vmem>>, vector<32x128xbf16>,
    %c0_371 = arith.constant 0 : index
    %c3_372 = arith.constant 3 : index
    %437 = vector.load %arg13[%c0_371, %c3_372] : memref<64x135xbf16, #tpu.memory_space<vmem>>, vector<32x128xbf16>
    %c96_373 = arith.constant 96 : index
    %c0_374 = arith.constant 0 : index
    %438 = vector.load %arg14[%c96_373, %c0_374] : memref<512x128xbf16, #tpu.memory_space<vmem>>, vector<32x128xbf16>
    tpu.vector_store %arg14[%c96_373, %c0_374], %437 {strides = array<i32>} : memref<512x128xbf16, #tpu.memory_space<vmem>>, vector<32x128xbf16>,
    %c0_375 = arith.constant 0 : index
    %c4_376 = arith.constant 4 : index
    %439 = vector.load %arg13[%c0_375, %c4_376] : memref<64x135xbf16, #tpu.memory_space<vmem>>, vector<32x128xbf16>
    %c128_377 = arith.constant 128 : index
    %c0_378 = arith.constant 0 : index
    %440 = vector.load %arg14[%c128_377, %c0_378] : memref<512x128xbf16, #tpu.memory_space<vmem>>, vector<32x128xbf16>
    tpu.vector_store %arg14[%c128_377, %c0_378], %439 {strides = array<i32>} : memref<512x128xbf16, #tpu.memory_space<vmem>>, vector<32x128xbf16>,
    %c0_379 = arith.constant 0 : index
    %c5_380 = arith.constant 5 : index
    %441 = vector.load %arg13[%c0_379, %c5_380] : memref<64x135xbf16, #tpu.memory_space<vmem>>, vector<32x128xbf16>
    %c160_381 = arith.constant 160 : index
    %c0_382 = arith.constant 0 : index
    %442 = vector.load %arg14[%c160_381, %c0_382] : memref<512x128xbf16, #tpu.memory_space<vmem>>, vector<32x128xbf16>
    tpu.vector_store %arg14[%c160_381, %c0_382], %441 {strides = array<i32>} : memref<512x128xbf16, #tpu.memory_space<vmem>>, vector<32x128xbf16>,
    %c0_383 = arith.constant 0 : index
    %c6_384 = arith.constant 6 : index
    %443 = vector.load %arg13[%c0_383, %c6_384] : memref<64x135xbf16, #tpu.memory_space<vmem>>, vector<32x128xbf16>
    %c192_385 = arith.constant 192 : index
    %c0_386 = arith.constant 0 : index
    %444 = vector.load %arg14[%c192_385, %c0_386] : memref<512x128xbf16, #tpu.memory_space<vmem>>, vector<32x128xbf16>
    tpu.vector_store %arg14[%c192_385, %c0_386], %443 {strides = array<i32>} : memref<512x128xbf16, #tpu.memory_space<vmem>>, vector<32x128xbf16>,
    %c0_387 = arith.constant 0 : index
    %c7_388 = arith.constant 7 : index
    %445 = vector.load %arg13[%c0_387, %c7_388] : memref<64x135xbf16, #tpu.memory_space<vmem>>, vector<32x128xbf16>
    %c224_389 = arith.constant 224 : index
    %c0_390 = arith.constant 0 : index
    %446 = vector.load %arg14[%c224_389, %c0_390] : memref<512x128xbf16, #tpu.memory_space<vmem>>, vector<32x128xbf16>
    tpu.vector_store %arg14[%c224_389, %c0_390], %445 {strides = array<i32>} : memref<512x128xbf16, #tpu.memory_space<vmem>>, vector<32x128xbf16>,
    %c0_391 = arith.constant 0 : index
    %c0_392 = arith.constant 0 : index
    %447 = vector.load %arg14[%c0_391, %c0_392] : memref<512x128xbf16, #tpu.memory_space<vmem>>, vector<256x128xbf16>
    %cst_393 = arith.constant dense<0.000000e+00> : vector<32x128xf32>
    %448 = tpu.matmul %426, %447, %cst_393 {dimension_numbers = #tpu.dot_dimension_numbers<[1], [0], [0], [1], [0, 0, 1, 1], [], []>} : vector<32x256xbf16>, vector<256x128xbf16>, vector<32x128xf32> -> vector<32x128xf32>
    %449 = vector.broadcast %428 : vector<32x1xf32> to vector<32x128xf32>
    %450 = arith.addf %448, %449 : vector<32x128xf32>
    %cst_394 = arith.constant 5.000000e-01 : f32
    %451 = vector.broadcast %cst_394 : f32 to vector<32x128xf32>
    %452 = arith.mulf %451, %450 : vector<32x128xf32>
    %cst_395 = arith.constant 0.707106769 : f32
    %453 = vector.broadcast %cst_395 : f32 to vector<32x128xf32>
    %454 = arith.mulf %450, %453 : vector<32x128xf32>
    %cst_396 = arith.constant 0.000000e+00 : f32
    %455 = vector.broadcast %cst_396 : f32 to vector<32x128xf32>
    %456 = arith.cmpf oge, %454, %455 : vector<32x128xf32>
    %cst_397 = arith.constant 1.000000e+00 : f32
    %cst_398 = arith.constant -1.000000e+00 : f32
    %457 = vector.broadcast %cst_397 : f32 to vector<32x128xf32>
    %458 = vector.broadcast %cst_398 : f32 to vector<32x128xf32>
    %459 = arith.select %456, %457, %458 : vector<32x128xi1>, vector<32x128xf32>
    %460 = math.absf %454 : vector<32x128xf32>
    %cst_399 = arith.constant 0.327591091 : f32
    %461 = vector.broadcast %cst_399 : f32 to vector<32x128xf32>
    %462 = arith.mulf %461, %460 : vector<32x128xf32>
    %cst_400 = arith.constant 1.000000e+00 : f32
    %463 = vector.broadcast %cst_400 : f32 to vector<32x128xf32>
    %464 = arith.addf %463, %462 : vector<32x128xf32>
    %465 = tpu.reciprocal %464 {approx = true} : vector<32x128xf32> -> vector<32x128xf32>
    %cst_401 = arith.constant 1.06140542 : f32
    %466 = vector.broadcast %cst_401 : f32 to vector<32x128xf32>
    %467 = arith.mulf %466, %465 : vector<32x128xf32>
    %cst_402 = arith.constant -1.45315206 : f32
    %468 = vector.broadcast %cst_402 : f32 to vector<32x128xf32>
    %469 = arith.addf %467, %468 : vector<32x128xf32>
    %470 = arith.mulf %469, %465 : vector<32x128xf32>
    %cst_403 = arith.constant 1.42141378 : f32
    %471 = vector.broadcast %cst_403 : f32 to vector<32x128xf32>
    %472 = arith.addf %470, %471 : vector<32x128xf32>
    %473 = arith.mulf %472, %465 : vector<32x128xf32>
    %cst_404 = arith.constant -0.284496725 : f32
    %474 = vector.broadcast %cst_404 : f32 to vector<32x128xf32>
    %475 = arith.addf %473, %474 : vector<32x128xf32>
    %476 = arith.mulf %475, %465 : vector<32x128xf32>
    %cst_405 = arith.constant 0.254829586 : f32
    %477 = vector.broadcast %cst_405 : f32 to vector<32x128xf32>
    %478 = arith.addf %476, %477 : vector<32x128xf32>
    %479 = arith.mulf %478, %465 : vector<32x128xf32>
    %cst_406 = arith.constant 0.000000e+00 : f32
    %480 = vector.broadcast %cst_406 : f32 to vector<32x128xf32>
    %481 = arith.subf %480, %460 : vector<32x128xf32>
    %482 = arith.mulf %481, %460 : vector<32x128xf32>
    %483 = math.exp %482 : vector<32x128xf32>
    %484 = arith.mulf %479, %483 : vector<32x128xf32>
    %cst_407 = arith.constant 1.000000e+00 : f32
    %485 = vector.broadcast %cst_407 : f32 to vector<32x128xf32>
    %486 = arith.subf %485, %484 : vector<32x128xf32>
    %487 = arith.mulf %459, %486 : vector<32x128xf32>
    %cst_408 = arith.constant 1.000000e+00 : f32
    %488 = vector.broadcast %cst_408 : f32 to vector<32x128xf32>
    %489 = arith.addf %488, %487 : vector<32x128xf32>
    %490 = arith.mulf %452, %489 : vector<32x128xf32>
    %c3_409 = arith.constant 3 : index
    %c0_410 = arith.constant 0 : index
    %c0_411 = arith.constant 0 : index
    %491 = vector.load %arg6[%c3_409, %c0_410, %c0_411] : memref<4x32x128xf32, #tpu.memory_space<vmem>>, vector<1x32x128xf32>
    %492 = vector.shape_cast %491 : vector<1x32x128xf32> to vector<32x128xf32>
    %c3_412 = arith.constant 3 : index
    %c0_413 = arith.constant 0 : index
    %c0_414 = arith.constant 0 : index
    %493 = vector.load %arg7[%c3_412, %c0_413, %c0_414] : memref<4x32x128xf32, #tpu.memory_space<vmem>>, vector<1x32x128xf32>
    %494 = vector.shape_cast %493 : vector<1x32x128xf32> to vector<32x128xf32>
    %495 = vector.shape_cast %490 : vector<32x128xf32> to vector<1x32x128xf32>
    %cst_415 = arith.constant dense<0.000000e+00> : vector<1xf32>
    %496 = vector.multi_reduction <add>, %495, %cst_415 [1, 2] : vector<1x32x128xf32> to vector<1xf32>
    %497 = vector.shape_cast %496 : vector<1xf32> to vector<1x1x1xf32>
    %498 = vector.extract %497[0, 0, 0] : f32 from vector<1x1x1xf32>
    %cst_416 = arith.constant 2.44140625E-4 : f32
    %499 = arith.mulf %498, %cst_416 : f32
    %500 = arith.mulf %490, %490 : vector<32x128xf32>
    %501 = vector.shape_cast %500 : vector<32x128xf32> to vector<1x32x128xf32>
    %cst_417 = arith.constant dense<0.000000e+00> : vector<1xf32>
    %502 = vector.multi_reduction <add>, %501, %cst_417 [1, 2] : vector<1x32x128xf32> to vector<1xf32>
    %503 = vector.shape_cast %502 : vector<1xf32> to vector<1x1x1xf32>
    %504 = vector.extract %503[0, 0, 0] : f32 from vector<1x1x1xf32>
    %cst_418 = arith.constant 2.44140625E-4 : f32
    %505 = arith.mulf %504, %cst_418 : f32
    %506 = arith.mulf %499, %499 : f32
    %507 = arith.subf %505, %506 : f32
    %508 = vector.broadcast %499 : f32 to vector<32x128xf32>
    %509 = arith.subf %490, %508 : vector<32x128xf32>
    %cst_419 = arith.constant 9.99999974E-6 : f32
    %510 = arith.addf %507, %cst_419 : f32
    %511 = math.rsqrt %510 : f32
    %512 = vector.broadcast %511 : f32 to vector<32x128xf32>
    %513 = arith.mulf %509, %512 : vector<32x128xf32>
    %514 = arith.mulf %513, %492 : vector<32x128xf32>
    %515 = arith.addf %514, %494 : vector<32x128xf32>
    %c1_420 = arith.constant 1 : index
    %c0_421 = arith.constant 0 : index
    %c0_422 = arith.constant 0 : index
    %516 = vector.load %arg8[%c1_420, %c0_421, %c0_422] : memref<2x32x32xbf16, #tpu.memory_space<vmem>>, vector<1x32x32xbf16>
    %517 = vector.shape_cast %516 : vector<1x32x32xbf16> to vector<32x32xbf16>
    %518 = arith.truncf %515 : vector<32x128xf32> to vector<32x128xbf16>
    %cst_423 = arith.constant dense<0.000000e+00> : vector<32x128xf32>
    %519 = tpu.matmul %517, %518, %cst_423 {dimension_numbers = #tpu.dot_dimension_numbers<[1], [0], [0], [1], [0, 0, 1, 1], [], []>} : vector<32x32xbf16>, vector<32x128xbf16>, vector<32x128xf32> -> vector<32x128xf32>
    %c1_424 = arith.constant 1 : index
    %c0_425 = arith.constant 0 : index
    %c0_426 = arith.constant 0 : index
    %520 = vector.load %arg9[%c1_424, %c0_425, %c0_426] : memref<2x32x1xf32, #tpu.memory_space<vmem>>, vector<1x32x1xf32>
    %521 = vector.shape_cast %520 : vector<1x32x1xf32> to vector<32x1xf32>
    %522 = vector.broadcast %521 : vector<32x1xf32> to vector<32x128xf32>
    %523 = arith.addf %519, %522 : vector<32x128xf32>
    %c1_427 = arith.constant 1 : index
    %c0_428 = arith.constant 0 : index
    %c0_429 = arith.constant 0 : index
    %524 = vector.load %arg10[%c1_427, %c0_428, %c0_429] : memref<2x64x256xbf16, #tpu.memory_space<vmem>>, vector<1x64x256xbf16>
    %525 = vector.shape_cast %524 : vector<1x64x256xbf16> to vector<64x256xbf16>
    %c1_430 = arith.constant 1 : index
    %c0_431 = arith.constant 0 : index
    %c0_432 = arith.constant 0 : index
    %526 = vector.load %arg11[%c1_430, %c0_431, %c0_432] : memref<2x64x1xf32, #tpu.memory_space<vmem>>, vector<1x64x1xf32>
    %527 = vector.shape_cast %526 : vector<1x64x1xf32> to vector<64x1xf32>
    %528 = arith.truncf %523 : vector<32x128xf32> to vector<32x128xbf16>
    %c0_433 = arith.constant 0 : index
    %c3_434 = arith.constant 3 : index
    %529 = vector.load %arg13[%c0_433, %c3_434] : memref<64x135xbf16, #tpu.memory_space<vmem>>, vector<32x128xbf16>
    tpu.vector_store %arg13[%c0_433, %c3_434], %528 {strides = array<i32>} : memref<64x135xbf16, #tpu.memory_space<vmem>>, vector<32x128xbf16>,
    %c0_435 = arith.constant 0 : index
    %c0_436 = arith.constant 0 : index
    %530 = vector.load %arg13[%c0_435, %c0_436] : memref<64x135xbf16, #tpu.memory_space<vmem>>, vector<32x128xbf16>
    %c0_437 = arith.constant 0 : index
    %c0_438 = arith.constant 0 : index
    %531 = vector.load %arg14[%c0_437, %c0_438] : memref<512x128xbf16, #tpu.memory_space<vmem>>, vector<32x128xbf16>
    tpu.vector_store %arg14[%c0_437, %c0_438], %530 {strides = array<i32>} : memref<512x128xbf16, #tpu.memory_space<vmem>>, vector<32x128xbf16>,
    %c0_439 = arith.constant 0 : index
    %c1_440 = arith.constant 1 : index
    %532 = vector.load %arg13[%c0_439, %c1_440] : memref<64x135xbf16, #tpu.memory_space<vmem>>, vector<32x128xbf16>
    %c32_441 = arith.constant 32 : index
    %c0_442 = arith.constant 0 : index
    %533 = vector.load %arg14[%c32_441, %c0_442] : memref<512x128xbf16, #tpu.memory_space<vmem>>, vector<32x128xbf16>
    tpu.vector_store %arg14[%c32_441, %c0_442], %532 {strides = array<i32>} : memref<512x128xbf16, #tpu.memory_space<vmem>>, vector<32x128xbf16>,
    %c0_443 = arith.constant 0 : index
    %c2_444 = arith.constant 2 : index
    %534 = vector.load %arg13[%c0_443, %c2_444] : memref<64x135xbf16, #tpu.memory_space<vmem>>, vector<32x128xbf16>
    %c64_445 = arith.constant 64 : index
    %c0_446 = arith.constant 0 : index
    %535 = vector.load %arg14[%c64_445, %c0_446] : memref<512x128xbf16, #tpu.memory_space<vmem>>, vector<32x128xbf16>
    tpu.vector_store %arg14[%c64_445, %c0_446], %534 {strides = array<i32>} : memref<512x128xbf16, #tpu.memory_space<vmem>>, vector<32x128xbf16>,
    %c0_447 = arith.constant 0 : index
    %c3_448 = arith.constant 3 : index
    %536 = vector.load %arg13[%c0_447, %c3_448] : memref<64x135xbf16, #tpu.memory_space<vmem>>, vector<32x128xbf16>
    %c96_449 = arith.constant 96 : index
    %c0_450 = arith.constant 0 : index
    %537 = vector.load %arg14[%c96_449, %c0_450] : memref<512x128xbf16, #tpu.memory_space<vmem>>, vector<32x128xbf16>
    tpu.vector_store %arg14[%c96_449, %c0_450], %536 {strides = array<i32>} : memref<512x128xbf16, #tpu.memory_space<vmem>>, vector<32x128xbf16>,
    %c0_451 = arith.constant 0 : index
    %c4_452 = arith.constant 4 : index
    %538 = vector.load %arg13[%c0_451, %c4_452] : memref<64x135xbf16, #tpu.memory_space<vmem>>, vector<32x128xbf16>
    %c128_453 = arith.constant 128 : index
    %c0_454 = arith.constant 0 : index
    %539 = vector.load %arg14[%c128_453, %c0_454] : memref<512x128xbf16, #tpu.memory_space<vmem>>, vector<32x128xbf16>
    tpu.vector_store %arg14[%c128_453, %c0_454], %538 {strides = array<i32>} : memref<512x128xbf16, #tpu.memory_space<vmem>>, vector<32x128xbf16>,
    %c0_455 = arith.constant 0 : index
    %c5_456 = arith.constant 5 : index
    %540 = vector.load %arg13[%c0_455, %c5_456] : memref<64x135xbf16, #tpu.memory_space<vmem>>, vector<32x128xbf16>
    %c160_457 = arith.constant 160 : index
    %c0_458 = arith.constant 0 : index
    %541 = vector.load %arg14[%c160_457, %c0_458] : memref<512x128xbf16, #tpu.memory_space<vmem>>, vector<32x128xbf16>
    tpu.vector_store %arg14[%c160_457, %c0_458], %540 {strides = array<i32>} : memref<512x128xbf16, #tpu.memory_space<vmem>>, vector<32x128xbf16>,
    %c0_459 = arith.constant 0 : index
    %c6_460 = arith.constant 6 : index
    %542 = vector.load %arg13[%c0_459, %c6_460] : memref<64x135xbf16, #tpu.memory_space<vmem>>, vector<32x128xbf16>
    %c192_461 = arith.constant 192 : index
    %c0_462 = arith.constant 0 : index
    %543 = vector.load %arg14[%c192_461, %c0_462] : memref<512x128xbf16, #tpu.memory_space<vmem>>, vector<32x128xbf16>
    tpu.vector_store %arg14[%c192_461, %c0_462], %542 {strides = array<i32>} : memref<512x128xbf16, #tpu.memory_space<vmem>>, vector<32x128xbf16>,
    %c0_463 = arith.constant 0 : index
    %c7_464 = arith.constant 7 : index
    %544 = vector.load %arg13[%c0_463, %c7_464] : memref<64x135xbf16, #tpu.memory_space<vmem>>, vector<32x128xbf16>
    %c224_465 = arith.constant 224 : index
    %c0_466 = arith.constant 0 : index
    %545 = vector.load %arg14[%c224_465, %c0_466] : memref<512x128xbf16, #tpu.memory_space<vmem>>, vector<32x128xbf16>
    tpu.vector_store %arg14[%c224_465, %c0_466], %544 {strides = array<i32>} : memref<512x128xbf16, #tpu.memory_space<vmem>>, vector<32x128xbf16>,
    %c0_467 = arith.constant 0 : index
    %c0_468 = arith.constant 0 : index
    %546 = vector.load %arg14[%c0_467, %c0_468] : memref<512x128xbf16, #tpu.memory_space<vmem>>, vector<256x128xbf16>
    %cst_469 = arith.constant dense<0.000000e+00> : vector<64x128xf32>
    %547 = tpu.matmul %525, %546, %cst_469 {dimension_numbers = #tpu.dot_dimension_numbers<[1], [0], [0], [1], [0, 0, 1, 1], [], []>} : vector<64x256xbf16>, vector<256x128xbf16>, vector<64x128xf32> -> vector<64x128xf32>
    %548 = vector.broadcast %527 : vector<64x1xf32> to vector<64x128xf32>
    %549 = arith.addf %547, %548 : vector<64x128xf32>
    %cst_470 = arith.constant 5.000000e-01 : f32
    %550 = vector.broadcast %cst_470 : f32 to vector<64x128xf32>
    %551 = arith.mulf %550, %549 : vector<64x128xf32>
    %cst_471 = arith.constant 0.707106769 : f32
    %552 = vector.broadcast %cst_471 : f32 to vector<64x128xf32>
    %553 = arith.mulf %549, %552 : vector<64x128xf32>
    %cst_472 = arith.constant 0.000000e+00 : f32
    %554 = vector.broadcast %cst_472 : f32 to vector<64x128xf32>
    %555 = arith.cmpf oge, %553, %554 : vector<64x128xf32>
    %cst_473 = arith.constant 1.000000e+00 : f32
    %cst_474 = arith.constant -1.000000e+00 : f32
    %556 = vector.broadcast %cst_473 : f32 to vector<64x128xf32>
    %557 = vector.broadcast %cst_474 : f32 to vector<64x128xf32>
    %558 = arith.select %555, %556, %557 : vector<64x128xi1>, vector<64x128xf32>
    %559 = math.absf %553 : vector<64x128xf32>
    %cst_475 = arith.constant 0.327591091 : f32
    %560 = vector.broadcast %cst_475 : f32 to vector<64x128xf32>
    %561 = arith.mulf %560, %559 : vector<64x128xf32>
    %cst_476 = arith.constant 1.000000e+00 : f32
    %562 = vector.broadcast %cst_476 : f32 to vector<64x128xf32>
    %563 = arith.addf %562, %561 : vector<64x128xf32>
    %564 = tpu.reciprocal %563 {approx = true} : vector<64x128xf32> -> vector<64x128xf32>
    %cst_477 = arith.constant 1.06140542 : f32
    %565 = vector.broadcast %cst_477 : f32 to vector<64x128xf32>
    %566 = arith.mulf %565, %564 : vector<64x128xf32>
    %cst_478 = arith.constant -1.45315206 : f32
    %567 = vector.broadcast %cst_478 : f32 to vector<64x128xf32>
    %568 = arith.addf %566, %567 : vector<64x128xf32>
    %569 = arith.mulf %568, %564 : vector<64x128xf32>
    %cst_479 = arith.constant 1.42141378 : f32
    %570 = vector.broadcast %cst_479 : f32 to vector<64x128xf32>
    %571 = arith.addf %569, %570 : vector<64x128xf32>
    %572 = arith.mulf %571, %564 : vector<64x128xf32>
    %cst_480 = arith.constant -0.284496725 : f32
    %573 = vector.broadcast %cst_480 : f32 to vector<64x128xf32>
    %574 = arith.addf %572, %573 : vector<64x128xf32>
    %575 = arith.mulf %574, %564 : vector<64x128xf32>
    %cst_481 = arith.constant 0.254829586 : f32
    %576 = vector.broadcast %cst_481 : f32 to vector<64x128xf32>
    %577 = arith.addf %575, %576 : vector<64x128xf32>
    %578 = arith.mulf %577, %564 : vector<64x128xf32>
    %cst_482 = arith.constant 0.000000e+00 : f32
    %579 = vector.broadcast %cst_482 : f32 to vector<64x128xf32>
    %580 = arith.subf %579, %559 : vector<64x128xf32>
    %581 = arith.mulf %580, %559 : vector<64x128xf32>
    %582 = math.exp %581 : vector<64x128xf32>
    %583 = arith.mulf %578, %582 : vector<64x128xf32>
    %cst_483 = arith.constant 1.000000e+00 : f32
    %584 = vector.broadcast %cst_483 : f32 to vector<64x128xf32>
    %585 = arith.subf %584, %583 : vector<64x128xf32>
    %586 = arith.mulf %558, %585 : vector<64x128xf32>
    %cst_484 = arith.constant 1.000000e+00 : f32
    %587 = vector.broadcast %cst_484 : f32 to vector<64x128xf32>
    %588 = arith.addf %587, %586 : vector<64x128xf32>
    %589 = arith.mulf %551, %588 : vector<64x128xf32>
    %590 = vector.shape_cast %589 : vector<64x128xf32> to vector<1x64x128xf32>
    %cst_485 = arith.constant dense<0.000000e+00> : vector<1xf32>
    %591 = vector.multi_reduction <add>, %590, %cst_485 [1, 2] : vector<1x64x128xf32> to vector<1xf32>
    %592 = vector.shape_cast %591 : vector<1xf32> to vector<1x1x1xf32>
    %593 = vector.extract %592[0, 0, 0] : f32 from vector<1x1x1xf32>
    %cst_486 = arith.constant 1.22070313E-4 : f32
    %594 = arith.mulf %593, %cst_486 : f32
    %595 = arith.mulf %589, %589 : vector<64x128xf32>
    %596 = vector.shape_cast %595 : vector<64x128xf32> to vector<1x64x128xf32>
    %cst_487 = arith.constant dense<0.000000e+00> : vector<1xf32>
    %597 = vector.multi_reduction <add>, %596, %cst_487 [1, 2] : vector<1x64x128xf32> to vector<1xf32>
    %598 = vector.shape_cast %597 : vector<1xf32> to vector<1x1x1xf32>
    %599 = vector.extract %598[0, 0, 0] : f32 from vector<1x1x1xf32>
    %cst_488 = arith.constant 1.22070313E-4 : f32
    %600 = arith.mulf %599, %cst_488 : f32
    %601 = arith.mulf %594, %594 : f32
    %602 = arith.subf %600, %601 : f32
    %603 = vector.broadcast %594 : f32 to vector<64x128xf32>
    %604 = arith.subf %589, %603 : vector<64x128xf32>
    %cst_489 = arith.constant 9.99999974E-6 : f32
    %605 = arith.addf %602, %cst_489 : f32
    %606 = math.rsqrt %605 : f32
    %607 = vector.broadcast %606 : f32 to vector<64x128xf32>
    %608 = arith.mulf %604, %607 : vector<64x128xf32>
    %609 = arith.addf %307, %608 : vector<64x128xf32>
    %c0_490 = arith.constant 0 : index
    %c0_491 = arith.constant 0 : index
    %c0_492 = arith.constant 0 : index
    %610 = vector.load %arg12[%c0_490, %c0_491, %c0_492] : memref<1x64x128xf32, #tpu.memory_space<vmem>>, vector<1x64x128xf32>
    %611 = vector.shape_cast %610 : vector<1x64x128xf32> to vector<64x128xf32>
    %612 = vector.shape_cast %609 : vector<64x128xf32> to vector<1x64x128xf32>
    tpu.vector_store %arg12[%c0_490, %c0_491, %c0_492], %612 {strides = array<i32>} : memref<1x64x128xf32, #tpu.memory_space<vmem>>, vector<1x64x128xf32>,
    return
  }
  func.func @transform_0(%arg0: i32) -> (i32, i32, i32) {
    %c0_i32 = arith.constant 0 : i32
    %c0_i32_0 = arith.constant 0 : i32
    %c0_i32_1 = arith.constant 0 : i32
    return %arg0, %c0_i32, %c0_i32_0 : i32, i32, i32
  }
  func.func @transform_1(%arg0: i32) -> (i32, i32, i32) {
    %c0_i32 = arith.constant 0 : i32
    %c0_i32_0 = arith.constant 0 : i32
    %c0_i32_1 = arith.constant 0 : i32
    %c0_i32_2 = arith.constant 0 : i32
    return %c0_i32, %c0_i32_0, %c0_i32_1 : i32, i32, i32
  }
  func.func @transform_2(%arg0: i32) -> (i32, i32, i32) {
    %c0_i32 = arith.constant 0 : i32
    %c0_i32_0 = arith.constant 0 : i32
    %c0_i32_1 = arith.constant 0 : i32
    %c0_i32_2 = arith.constant 0 : i32
    return %c0_i32, %c0_i32_0, %c0_i32_1 : i32, i32, i32
  }
  func.func @transform_3(%arg0: i32) -> (i32, i32, i32) {
    %c0_i32 = arith.constant 0 : i32
    %c0_i32_0 = arith.constant 0 : i32
    %c0_i32_1 = arith.constant 0 : i32
    %c0_i32_2 = arith.constant 0 : i32
    return %c0_i32, %c0_i32_0, %c0_i32_1 : i32, i32, i32
  }
  func.func @transform_4(%arg0: i32) -> (i32, i32, i32) {
    %c0_i32 = arith.constant 0 : i32
    %c0_i32_0 = arith.constant 0 : i32
    %c0_i32_1 = arith.constant 0 : i32
    %c0_i32_2 = arith.constant 0 : i32
    return %c0_i32, %c0_i32_0, %c0_i32_1 : i32, i32, i32
  }
  func.func @transform_5(%arg0: i32) -> (i32, i32, i32) {
    %c0_i32 = arith.constant 0 : i32
    %c0_i32_0 = arith.constant 0 : i32
    %c0_i32_1 = arith.constant 0 : i32
    %c0_i32_2 = arith.constant 0 : i32
    return %c0_i32, %c0_i32_0, %c0_i32_1 : i32, i32, i32
  }
  func.func @transform_6(%arg0: i32) -> (i32, i32, i32) {
    %c0_i32 = arith.constant 0 : i32
    %c0_i32_0 = arith.constant 0 : i32
    %c0_i32_1 = arith.constant 0 : i32
    %c0_i32_2 = arith.constant 0 : i32
    return %c0_i32, %c0_i32_0, %c0_i32_1 : i32, i32, i32
  }
  func.func @transform_7(%arg0: i32) -> (i32, i32, i32) {
    %c0_i32 = arith.constant 0 : i32
    %c0_i32_0 = arith.constant 0 : i32
    %c0_i32_1 = arith.constant 0 : i32
    %c0_i32_2 = arith.constant 0 : i32
    return %c0_i32, %c0_i32_0, %c0_i32_1 : i32, i32, i32
  }
  func.func @transform_8(%arg0: i32) -> (i32, i32, i32) {
    %c0_i32 = arith.constant 0 : i32
    %c0_i32_0 = arith.constant 0 : i32
    %c0_i32_1 = arith.constant 0 : i32
    %c0_i32_2 = arith.constant 0 : i32
    return %c0_i32, %c0_i32_0, %c0_i32_1 : i32, i32, i32
  }
  func.func @transform_9(%arg0: i32) -> (i32, i32, i32) {
    %c0_i32 = arith.constant 0 : i32
    %c0_i32_0 = arith.constant 0 : i32
    %c0_i32_1 = arith.constant 0 : i32
    %c0_i32_2 = arith.constant 0 : i32
    return %c0_i32, %c0_i32_0, %c0_i32_1 : i32, i32, i32
  }
  func.func @transform_10(%arg0: i32) -> (i32, i32, i32) {
    %c0_i32 = arith.constant 0 : i32
    %c0_i32_0 = arith.constant 0 : i32
    %c0_i32_1 = arith.constant 0 : i32
    %c0_i32_2 = arith.constant 0 : i32
    return %c0_i32, %c0_i32_0, %c0_i32_1 : i32, i32, i32
  }
  func.func @transform_11(%arg0: i32) -> (i32, i32, i32) {
    %c0_i32 = arith.constant 0 : i32
    %c0_i32_0 = arith.constant 0 : i32
    %c0_i32_1 = arith.constant 0 : i32
    return %arg0, %c0_i32, %c0_i32_0 : i32, i32, i32
  }
}

</mosaic_0001>

<llo_original>
// kernel: encoder_prenet_forward.1
$region0: #{encoder_prenet_forward.1}
  #allocation0 [shape = 'u32[]', space=smem, size = 0x4, offset = 0x4, fixed_abs, tag = 'smem constant byte address 0x4 - core index']
  #allocation1 [shape = 'u32[72,128]{1,0:T(1,128)}', space=vmem, size = 0x9000, scoped, tag = 'internal scratch']
  #allocation2 [shape = 'bf16[64,135]{1,0:T(8,128)(2,1)}', space=vmem, size = 0x8000, scoped, tag = 'scratch operand']
  #allocation3 [shape = 'bf16[512,128]{1,0:T(8,128)(2,1)}', space=vmem, size = 0x20000, scoped, tag = 'scratch operand']
  %s0 = inlined_call_operand.vmem [shape: f32[2,64,128], index: 0, kind: input, shape index: {}]
  %s1 = inlined_call_operand.vmem [shape: bf16[2,32,512], index: 1, kind: input, shape index: {}]
  %s2 = inlined_call_operand.vmem [shape: f32[2,32,1], index: 2, kind: input, shape index: {}]
  %s3 = inlined_call_operand.vmem [shape: bf16[4,32,256], index: 3, kind: input, shape index: {}]
  %s4 = inlined_call_operand.vmem [shape: f32[4,32,1], index: 4, kind: input, shape index: {}]
  %s5 = inlined_call_operand.vmem [shape: f32[4,32,128], index: 5, kind: input, shape index: {}]
  %s6 = inlined_call_operand.vmem [shape: f32[4,32,128], index: 6, kind: input, shape index: {}]
  %s7 = inlined_call_operand.vmem [shape: bf16[2,32,32], index: 7, kind: input, shape index: {}]
  %s8 = inlined_call_operand.vmem [shape: f32[2,32,1], index: 8, kind: input, shape index: {}]
  %s9 = inlined_call_operand.vmem [shape: bf16[2,64,256], index: 9, kind: input, shape index: {}]
  %s10 = inlined_call_operand.vmem [shape: f32[2,64,1], index: 10, kind: input, shape index: {}]
  %s11 = inlined_call_operand.hbm [shape: f32[2,64,128], index: 11, kind: output, shape index: {}]
  %s12 = sld [smem:[#allocation0]]
  $region77: #{encoder_prenet_forward.1} parent=0
    _
  %s14 = ssub.s32 1, %s12
  %s15 = scalar_select 0, %s14, %s12
  $region1: #{encoder_prenet_forward.1} parent=0
    #allocation4 [shape = 'u8[65536]{0}', space=vmem, size = 0x10000, scoped, tag = 'output window, operand 0']
    #allocation5 [shape = 's32[2]{0}', space=sflag, size = 0x8, scoped, tag = 'scoped memory for encoder_prenet_forward.1']
    %16 = vsyncpa [#allocation5], 0
    %s17 = scalar_lea.sflag [#allocation5], 1
    %18 = vsyncpa %s17, 0
    loop: start=0, step=1, limit=4
    $region2: #{encoder_prenet_forward.1} parent=1 // loop_pre_header
      _
    $region3: #{encoder_prenet_forward.1} parent=1 // loop_header
      %s20 = sphi 0, %s24
      %p21 = scmp.ge.s32.totalorder %s20, 4
      %s30 = sphi 0, %s32
      %s33 = sphi 0, %s30
      %s34 = sphi 0, %s33
      %s50 = sphi 0, %s34
      %s54 = sphi 0, %s54
      %s56 = sphi 0, %s54
      %s57 = sphi 0, %s56
      %s71 = sphi 0, %s57
      %s75 = sphi 0, %s75
      %s77 = sphi 0, %s75
      %s78 = sphi 0, %s77
      %s92 = sphi 0, %s78
      %s96 = sphi 0, %s96
      %s98 = sphi 0, %s96
      %s99 = sphi 0, %s98
      %s113 = sphi 0, %s99
      %s117 = sphi 0, %s117
      %s119 = sphi 0, %s117
      %s120 = sphi 0, %s119
      %s134 = sphi 0, %s120
      %s138 = sphi 0, %s138
      %s140 = sphi 0, %s138
      %s141 = sphi 0, %s140
      %s155 = sphi 0, %s141
      %s159 = sphi 0, %s159
      %s161 = sphi 0, %s159
      %s162 = sphi 0, %s161
      %s176 = sphi 0, %s162
      %s180 = sphi 0, %s180
      %s182 = sphi 0, %s180
      %s183 = sphi 0, %s182
      %s197 = sphi 0, %s183
      %s201 = sphi 0, %s201
      %s203 = sphi 0, %s201
      %s204 = sphi 0, %s203
      %s218 = sphi 0, %s204
      %s222 = sphi 0, %s222
      %s224 = sphi 0, %s222
      %s225 = sphi 0, %s224
      %s239 = sphi 0, %s225
      %s243 = sphi 0, %s243
      %s245 = sphi 0, %s243
      %s246 = sphi 0, %s245
      %s260 = sphi 0, %s246
      %s266 = sphi 0, %s268
      %s269 = sphi 0, %s266
      %s270 = sphi 0, %s269
      %s286 = sphi 0, %s270
    $region4: #{encoder_prenet_forward.1} parent=1 // loop_header_branch
      %23 = sbr.rel (%p21) target = $region8
    $region5: #{encoder_prenet_forward.1} parent=1 // loop_body
      %s25 = ssub.s32 %s20, 1
      %s26 = ssub.s32 %s20, 2
      %s27 = sadd.s32 %s20, 1
      %s28 = ssub.s32 %s20, %s27
      %p29 = scmp.eq.s32.totalorder %s28, 0
      %s31 = sadd.s32 %s30, 1
      %s32 = scalar_select %p29, %s30, %s31
      %p35 = pneg %p29
      %p36 = scmp.eq.s32.totalorder %s20, 1
      %p37 = por %p35, %p36
      %p38 = scmp.ne.s32.totalorder %s30, %s33
      %p39 = scmp.eq.s32.totalorder %s20, 0
      %p40 = por %p38, %p39
      %p41 = scmp.ne.s32.totalorder %s30, %s33
      %p42 = scmp.eq.s32.totalorder %s25, 1
      %p43 = por %p41, %p42
      %p44 = scmp.ne.s32.totalorder %s33, %s34
      %p45 = scmp.eq.s32.totalorder %s25, 0
      %p46 = por %p44, %p45
      %p47 = scmp.ne.s32.totalorder %s33, %s34
      %p48 = scmp.eq.s32.totalorder %s26, 1
      %p49 = por %p47, %p48
      %p51 = scmp.ne.s32.totalorder %s34, %s50
      %p52 = scmp.eq.s32.totalorder %s26, 0
      %p53 = por %p51, %p52
      %s55 = sadd.s32 %s54, 1
      %p58 = scmp.eq.s32.totalorder %s20, 1
      %p59 = scmp.ne.s32.totalorder %s54, %s56
      %p60 = scmp.eq.s32.totalorder %s20, 0
      %p61 = por %p59, %p60
      %p62 = scmp.ne.s32.totalorder %s54, %s56
      %p63 = scmp.eq.s32.totalorder %s25, 1
      %p64 = por %p62, %p63
      %p65 = scmp.ne.s32.totalorder %s56, %s57
      %p66 = scmp.eq.s32.totalorder %s25, 0
      %p67 = por %p65, %p66
      %p68 = scmp.ne.s32.totalorder %s56, %s57
      %p69 = scmp.eq.s32.totalorder %s26, 1
      %p70 = por %p68, %p69
      %p72 = scmp.ne.s32.totalorder %s57, %s71
      %p73 = scmp.eq.s32.totalorder %s26, 0
      %p74 = por %p72, %p73
      %s76 = sadd.s32 %s75, 1
      %p79 = scmp.eq.s32.totalorder %s20, 1
      %p80 = scmp.ne.s32.totalorder %s75, %s77
      %p81 = scmp.eq.s32.totalorder %s20, 0
      %p82 = por %p80, %p81
      %p83 = scmp.ne.s32.totalorder %s75, %s77
      %p84 = scmp.eq.s32.totalorder %s25, 1
      %p85 = por %p83, %p84
      %p86 = scmp.ne.s32.totalorder %s77, %s78
      %p87 = scmp.eq.s32.totalorder %s25, 0
      %p88 = por %p86, %p87
      %p89 = scmp.ne.s32.totalorder %s77, %s78
      %p90 = scmp.eq.s32.totalorder %s26, 1
      %p91 = por %p89, %p90
      %p93 = scmp.ne.s32.totalorder %s78, %s92
      %p94 = scmp.eq.s32.totalorder %s26, 0
      %p95 = por %p93, %p94
      %s97 = sadd.s32 %s96, 1
      %p100 = scmp.eq.s32.totalorder %s20, 1
      %p101 = scmp.ne.s32.totalorder %s96, %s98
      %p102 = scmp.eq.s32.totalorder %s20, 0
      %p103 = por %p101, %p102
      %p104 = scmp.ne.s32.totalorder %s96, %s98
      %p105 = scmp.eq.s32.totalorder %s25, 1
      %p106 = por %p104, %p105
      %p107 = scmp.ne.s32.totalorder %s98, %s99
      %p108 = scmp.eq.s32.totalorder %s25, 0
      %p109 = por %p107, %p108
      %p110 = scmp.ne.s32.totalorder %s98, %s99
      %p111 = scmp.eq.s32.totalorder %s26, 1
      %p112 = por %p110, %p111
      %p114 = scmp.ne.s32.totalorder %s99, %s113
      %p115 = scmp.eq.s32.totalorder %s26, 0
      %p116 = por %p114, %p115
      %s118 = sadd.s32 %s117, 1
      %p121 = scmp.eq.s32.totalorder %s20, 1
      %p122 = scmp.ne.s32.totalorder %s117, %s119
      %p123 = scmp.eq.s32.totalorder %s20, 0
      %p124 = por %p122, %p123
      %p125 = scmp.ne.s32.totalorder %s117, %s119
      %p126 = scmp.eq.s32.totalorder %s25, 1
      %p127 = por %p125, %p126
      %p128 = scmp.ne.s32.totalorder %s119, %s120
      %p129 = scmp.eq.s32.totalorder %s25, 0
      %p130 = por %p128, %p129
      %p131 = scmp.ne.s32.totalorder %s119, %s120
      %p132 = scmp.eq.s32.totalorder %s26, 1
      %p133 = por %p131, %p132
      %p135 = scmp.ne.s32.totalorder %s120, %s134
      %p136 = scmp.eq.s32.totalorder %s26, 0
      %p137 = por %p135, %p136
      %s139 = sadd.s32 %s138, 1
      %p142 = scmp.eq.s32.totalorder %s20, 1
      %p143 = scmp.ne.s32.totalorder %s138, %s140
      %p144 = scmp.eq.s32.totalorder %s20, 0
      %p145 = por %p143, %p144
      %p146 = scmp.ne.s32.totalorder %s138, %s140
      %p147 = scmp.eq.s32.totalorder %s25, 1
      %p148 = por %p146, %p147
      %p149 = scmp.ne.s32.totalorder %s140, %s141
      %p150 = scmp.eq.s32.totalorder %s25, 0
      %p151 = por %p149, %p150
      %p152 = scmp.ne.s32.totalorder %s140, %s141
      %p153 = scmp.eq.s32.totalorder %s26, 1
      %p154 = por %p152, %p153
      %p156 = scmp.ne.s32.totalorder %s141, %s155
      %p157 = scmp.eq.s32.totalorder %s26, 0
      %p158 = por %p156, %p157
      %s160 = sadd.s32 %s159, 1
      %p163 = scmp.eq.s32.totalorder %s20, 1
      %p164 = scmp.ne.s32.totalorder %s159, %s161
      %p165 = scmp.eq.s32.totalorder %s20, 0
      %p166 = por %p164, %p165
      %p167 = scmp.ne.s32.totalorder %s159, %s161
      %p168 = scmp.eq.s32.totalorder %s25, 1
      %p169 = por %p167, %p168
      %p170 = scmp.ne.s32.totalorder %s161, %s162
      %p171 = scmp.eq.s32.totalorder %s25, 0
      %p172 = por %p170, %p171
      %p173 = scmp.ne.s32.totalorder %s161, %s162
      %p174 = scmp.eq.s32.totalorder %s26, 1
      %p175 = por %p173, %p174
      %p177 = scmp.ne.s32.totalorder %s162, %s176
      %p178 = scmp.eq.s32.totalorder %s26, 0
      %p179 = por %p177, %p178
      %s181 = sadd.s32 %s180, 1
      %p184 = scmp.eq.s32.totalorder %s20, 1
      %p185 = scmp.ne.s32.totalorder %s180, %s182
      %p186 = scmp.eq.s32.totalorder %s20, 0
      %p187 = por %p185, %p186
      %p188 = scmp.ne.s32.totalorder %s180, %s182
      %p189 = scmp.eq.s32.totalorder %s25, 1
      %p190 = por %p188, %p189
      %p191 = scmp.ne.s32.totalorder %s182, %s183
      %p192 = scmp.eq.s32.totalorder %s25, 0
      %p193 = por %p191, %p192
      %p194 = scmp.ne.s32.totalorder %s182, %s183
      %p195 = scmp.eq.s32.totalorder %s26, 1
      %p196 = por %p194, %p195
      %p198 = scmp.ne.s32.totalorder %s183, %s197
      %p199 = scmp.eq.s32.totalorder %s26, 0
      %p200 = por %p198, %p199
      %s202 = sadd.s32 %s201, 1
      %p205 = scmp.eq.s32.totalorder %s20, 1
      %p206 = scmp.ne.s32.totalorder %s201, %s203
      %p207 = scmp.eq.s32.totalorder %s20, 0
      %p208 = por %p206, %p207
      %p209 = scmp.ne.s32.totalorder %s201, %s203
      %p210 = scmp.eq.s32.totalorder %s25, 1
      %p211 = por %p209, %p210
      %p212 = scmp.ne.s32.totalorder %s203, %s204
      %p213 = scmp.eq.s32.totalorder %s25, 0
      %p214 = por %p212, %p213
      %p215 = scmp.ne.s32.totalorder %s203, %s204
      %p216 = scmp.eq.s32.totalorder %s26, 1
      %p217 = por %p215, %p216
      %p219 = scmp.ne.s32.totalorder %s204, %s218
      %p220 = scmp.eq.s32.totalorder %s26, 0
      %p221 = por %p219, %p220
      %s223 = sadd.s32 %s222, 1
      %p226 = scmp.eq.s32.totalorder %s20, 1
      %p227 = scmp.ne.s32.totalorder %s222, %s224
      %p228 = scmp.eq.s32.totalorder %s20, 0
      %p229 = por %p227, %p228
      %p230 = scmp.ne.s32.totalorder %s222, %s224
      %p231 = scmp.eq.s32.totalorder %s25, 1
      %p232 = por %p230, %p231
      %p233 = scmp.ne.s32.totalorder %s224, %s225
      %p234 = scmp.eq.s32.totalorder %s25, 0
      %p235 = por %p233, %p234
      %p236 = scmp.ne.s32.totalorder %s224, %s225
      %p237 = scmp.eq.s32.totalorder %s26, 1
      %p238 = por %p236, %p237
      %p240 = scmp.ne.s32.totalorder %s225, %s239
      %p241 = scmp.eq.s32.totalorder %s26, 0
      %p242 = por %p240, %p241
      %s244 = sadd.s32 %s243, 1
      %p247 = scmp.eq.s32.totalorder %s20, 1
      %p248 = scmp.ne.s32.totalorder %s243, %s245
      %p249 = scmp.eq.s32.totalorder %s20, 0
      %p250 = por %p248, %p249
      %p251 = scmp.ne.s32.totalorder %s243, %s245
      %p252 = scmp.eq.s32.totalorder %s25, 1
      %p253 = por %p251, %p252
      %p254 = scmp.ne.s32.totalorder %s245, %s246
      %p255 = scmp.eq.s32.totalorder %s25, 0
      %p256 = por %p254, %p255
      %p257 = scmp.ne.s32.totalorder %s245, %s246
      %p258 = scmp.eq.s32.totalorder %s26, 1
      %p259 = por %p257, %p258
      %p261 = scmp.ne.s32.totalorder %s246, %s260
      %p262 = scmp.eq.s32.totalorder %s26, 0
      %p263 = por %p261, %p262
      %s264 = ssub.s32 %s20, %s27
      %p265 = scmp.eq.s32.totalorder %s264, 0
      %s267 = sadd.s32 %s266, 1
      %s268 = scalar_select %p265, %s266, %s267
      %p271 = pneg %p265
      %p272 = scmp.eq.s32.totalorder %s20, 1
      %p273 = por %p271, %p272
      %p274 = scmp.ne.s32.totalorder %s266, %s269
      %p275 = scmp.eq.s32.totalorder %s20, 0
      %p276 = por %p274, %p275
      %p277 = scmp.ne.s32.totalorder %s266, %s269
      %p278 = scmp.eq.s32.totalorder %s25, 1
      %p279 = por %p277, %p278
      %p280 = scmp.ne.s32.totalorder %s269, %s270
      %p281 = scmp.eq.s32.totalorder %s25, 0
      %p282 = por %p280, %p281
      %p283 = scmp.ne.s32.totalorder %s269, %s270
      %p284 = scmp.eq.s32.totalorder %s26, 1
      %p285 = por %p283, %p284
      %p287 = scmp.ne.s32.totalorder %s270, %s286
      %p288 = scmp.eq.s32.totalorder %s26, 0
      %p289 = por %p287, %p288
      %p290 = scmp.le.s32.totalorder 1, %s20
      %p291 = scmp.lt.s32.totalorder %s20, 3
      %p292 = pnand %p290, %p291
      %p293 = pneg %p292
      // Predicated region
      $region9: #{encoder_prenet_forward.1} parent=5 // pred_check
        _
      $region10: #{encoder_prenet_forward.1} parent=5 // pred_check_branch
        %295 = sbr.rel (%p292) target = $region12
      $region11: #{encoder_prenet_forward.1} parent=5 // pred_region
        %s296 = ssub.s32 %s20, 1
        // Predicated region
        $region13: #{encoder_prenet_forward.1} parent=11 // pred_check
          %p297 = pneg %p67
        $region14: #{encoder_prenet_forward.1} parent=11 // pred_check_branch
          %299 = sbr.rel (%p297) target = $region16
        $region15: #{encoder_prenet_forward.1} parent=11 // pred_region
          _
        $region16: #{encoder_prenet_forward.1} parent=11 // pred_fallthru
          _
        // Predicated region
        $region17: #{encoder_prenet_forward.1} parent=11 // pred_check
          %p300 = pneg %p88
        $region18: #{encoder_prenet_forward.1} parent=11 // pred_check_branch
          %302 = sbr.rel (%p300) target = $region20
        $region19: #{encoder_prenet_forward.1} parent=11 // pred_region
          _
        $region20: #{encoder_prenet_forward.1} parent=11 // pred_fallthru
          _
        // Predicated region
        $region21: #{encoder_prenet_forward.1} parent=11 // pred_check
          %p303 = pneg %p109
        $region22: #{encoder_prenet_forward.1} parent=11 // pred_check_branch
          %305 = sbr.rel (%p303) target = $region24
        $region23: #{encoder_prenet_forward.1} parent=11 // pred_region
          _
        $region24: #{encoder_prenet_forward.1} parent=11 // pred_fallthru
          _
        // Predicated region
        $region25: #{encoder_prenet_forward.1} parent=11 // pred_check
          %p306 = pneg %p130
        $region26: #{encoder_prenet_forward.1} parent=11 // pred_check_branch
          %308 = sbr.rel (%p306) target = $region28
        $region27: #{encoder_prenet_forward.1} parent=11 // pred_region
          _
        $region28: #{encoder_prenet_forward.1} parent=11 // pred_fallthru
          _
        // Predicated region
        $region29: #{encoder_prenet_forward.1} parent=11 // pred_check
          %p309 = pneg %p151
        $region30: #{encoder_prenet_forward.1} parent=11 // pred_check_branch
          %311 = sbr.rel (%p309) target = $region32
        $region31: #{encoder_prenet_forward.1} parent=11 // pred_region
          _
        $region32: #{encoder_prenet_forward.1} parent=11 // pred_fallthru
          _
        // Predicated region
        $region33: #{encoder_prenet_forward.1} parent=11 // pred_check
          %p312 = pneg %p172
        $region34: #{encoder_prenet_forward.1} parent=11 // pred_check_branch
          %314 = sbr.rel (%p312) target = $region36
        $region35: #{encoder_prenet_forward.1} parent=11 // pred_region
          _
        $region36: #{encoder_prenet_forward.1} parent=11 // pred_fallthru
          _
        // Predicated region
        $region37: #{encoder_prenet_forward.1} parent=11 // pred_check
          %p315 = pneg %p193
        $region38: #{encoder_prenet_forward.1} parent=11 // pred_check_branch
          %317 = sbr.rel (%p315) target = $region40
        $region39: #{encoder_prenet_forward.1} parent=11 // pred_region
          _
        $region40: #{encoder_prenet_forward.1} parent=11 // pred_fallthru
          _
        // Predicated region
        $region41: #{encoder_prenet_forward.1} parent=11 // pred_check
          %p318 = pneg %p214
        $region42: #{encoder_prenet_forward.1} parent=11 // pred_check_branch
          %320 = sbr.rel (%p318) target = $region44
        $region43: #{encoder_prenet_forward.1} parent=11 // pred_region
          _
        $region44: #{encoder_prenet_forward.1} parent=11 // pred_fallthru
          _
        // Predicated region
        $region45: #{encoder_prenet_forward.1} parent=11 // pred_check
          %p321 = pneg %p235
        $region46: #{encoder_prenet_forward.1} parent=11 // pred_check_branch
          %323 = sbr.rel (%p321) target = $region48
        $region47: #{encoder_prenet_forward.1} parent=11 // pred_region
          _
        $region48: #{encoder_prenet_forward.1} parent=11 // pred_fallthru
          _
        // Predicated region
        $region49: #{encoder_prenet_forward.1} parent=11 // pred_check
          %p324 = pneg %p256
        $region50: #{encoder_prenet_forward.1} parent=11 // pred_check_branch
          %326 = sbr.rel (%p324) target = $region52
        $region51: #{encoder_prenet_forward.1} parent=11 // pred_region
          _
        $region52: #{encoder_prenet_forward.1} parent=11 // pred_fallthru
          _
      $region12: #{encoder_prenet_forward.1} parent=5 // pred_fallthru
        _
      %p327 = scmp.lt.s32.totalorder %s20, 2
      // Predicated region
      $region53: #{encoder_prenet_forward.1} parent=5 // pred_check
        %p328 = pneg %p327
      $region54: #{encoder_prenet_forward.1} parent=5 // pred_check_branch
        %330 = sbr.rel (%p328) target = $region56
      $region55: #{encoder_prenet_forward.1} parent=5 // pred_region
        // Predicated region
        $region57: #{encoder_prenet_forward.1} parent=55 // pred_check
          %p331 = pneg %p40
        $region58: #{encoder_prenet_forward.1} parent=55 // pred_check_branch
          %333 = sbr.rel (%p331) target = $region60
        $region59: #{encoder_prenet_forward.1} parent=55 // pred_region
          %p334 = scmp.lt.s32.totalorder %s20, 1
          %s335 = scalar_select %p334, %s20, 1
          %s336 = smul.addr %s335, 8
          %s337 = smul.addr %s336, 8
          %s338 = scalar_lea.vmem %s0, %s337
        $region60: #{encoder_prenet_forward.1} parent=55 // pred_fallthru
          _
      $region56: #{encoder_prenet_forward.1} parent=5 // pred_fallthru
        _
      %p339 = scmp.le.s32.totalorder 1, %s20
      %p340 = scmp.lt.s32.totalorder %s20, 3
      %p341 = pnand %p339, %p340
      %p342 = pneg %p341
      // Predicated region
      $region61: #{encoder_prenet_forward.1} parent=5 // pred_check
        _
      $region62: #{encoder_prenet_forward.1} parent=5 // pred_check_branch
        %344 = sbr.rel (%p341) target = $region64
      $region63: #{encoder_prenet_forward.1} parent=5 // pred_region
        %s345 = ssub.s32 %s20, 1
        %p346 = scmp.lt.s32.totalorder %s25, 1
        %s347 = scalar_select %p346, %s25, 1
        %s348 = smul.addr %s347, 8
        %s349 = smul.addr %s348, 8
        %s350 = scalar_lea.vmem %s0, %s349
        %p351 = pneg %p46
        %p352 = pneg %p43
        %p353 = pneg %p67
        %p354 = pneg %p64
        %p355 = pneg %p88
        %p356 = pneg %p85
        %p357 = pneg %p109
        %p358 = pneg %p106
        %p359 = pneg %p130
        %p360 = pneg %p127
        %p361 = pneg %p151
        %p362 = pneg %p148
        %p363 = pneg %p172
        %p364 = pneg %p169
        %p365 = pneg %p193
        %p366 = pneg %p190
        %p367 = pneg %p214
        %p368 = pneg %p211
        %p369 = pneg %p235
        %p370 = pneg %p232
        %p371 = pneg %p256
        %p372 = pneg %p253
        %p373 = pneg %p282
        %p374 = pneg %p279
        %s375 = sand.u32 %s269, 1
        %s376 = scalar_lea.sflag [#allocation5], %s375
        %s377 = sand.u32 %s269, 1
        %s378 = smul.addr %s377, 64
        %s379 = scalar_lea.vmem [#allocation4], %s378
        %p380 = scmp.lt.s32.totalorder %s25, 1
        %s381 = scalar_select %p380, %s25, 1
        %s382 = smul.addr %s381, 8
        %s383 = smul.addr %s382, 8
        %s384 = scalar_lea.vmem %s0, %s383
        %vm386 = vcmask 19456
        %387 = vst.msk [vmem:[#allocation2] sm:$0xf] %vm386, 0
        %388 = vst.msk [vmem:[#allocation2 + $0x8] sm:$0xf] %vm386, 0
        %389 = vst.msk [vmem:[#allocation2 + $0x10] sm:$0xf] %vm386, 0
        %390 = vst.msk [vmem:[#allocation2 + $0x18] sm:$0xf] %vm386, 0
        %391 = vst.msk [vmem:[#allocation2 + $0x20] sm:$0xf] %vm386, 0
        %392 = vst.msk [vmem:[#allocation2 + $0x28] sm:$0xf] %vm386, 0
        %393 = vst.msk [vmem:[#allocation2 + $0x30] sm:$0xf] %vm386, 0
        %394 = vst.msk [vmem:[#allocation2 + $0x38] sm:$0xf] %vm386, 0
        %vm395 = vcmask 52248
        %396 = vst.msk [vmem:[#allocation2 + $0x4] sm:$0xf] %vm395, 0
        %397 = vst.msk [vmem:[#allocation2 + $0xc] sm:$0xf] %vm395, 0
        %398 = vst.msk [vmem:[#allocation2 + $0x14] sm:$0xf] %vm395, 0
        %399 = vst.msk [vmem:[#allocation2 + $0x1c] sm:$0xf] %vm395, 0
        %400 = vst.msk [vmem:[#allocation2 + $0x24] sm:$0xf] %vm395, 0
        %401 = vst.msk [vmem:[#allocation2 + $0x2c] sm:$0xf] %vm395, 0
        %402 = vst.msk [vmem:[#allocation2 + $0x34] sm:$0xf] %vm395, 0
        %403 = vst.msk [vmem:[#allocation2 + $0x3c] sm:$0xf] %vm395, 0
        %v404 = vld [vmem:[%s384] sm:$0xff]
        %v405 = vld [vmem:[%s384 + $0x8] sm:$0xff]
        %v406 = vld [vmem:[%s384 + $0x10] sm:$0xff]
        %v407 = vld [vmem:[%s384 + $0x18] sm:$0xff]
        %v408 = vld [vmem:[%s384 + $0x20] sm:$0xff]
        %v409 = vld [vmem:[%s384 + $0x28] sm:$0xff]
        %v410 = vld [vmem:[%s384 + $0x30] sm:$0xff]
        %v411 = vld [vmem:[%s384 + $0x38] sm:$0xff]
        %v412 = vld [vmem:[%s1] sm:$0xff]
        %v413 = vld [vmem:[%s1 + $0x8] sm:$0xff]
        %v414 = vld [vmem:[%s1 + $0x10] sm:$0xff]
        %v415 = vld [vmem:[%s1 + $0x18] sm:$0xff]
        %v416 = vld [vmem:[%s1 + $0x20] sm:$0xff]
        %v417 = vld [vmem:[%s1 + $0x28] sm:$0xff]
        %v418 = vld [vmem:[%s1 + $0x30] sm:$0xff]
        %v419 = vld [vmem:[%s1 + $0x38] sm:$0xff]
        %v420 = vld [vmem:[%s2] sm:$0xff]
        %v421 = vld [vmem:[%s2 + $0x8] sm:$0xff]
        %v422 = vld [vmem:[%s2 + $0x10] sm:$0xff]
        %v423 = vld [vmem:[%s2 + $0x18] sm:$0xff]
        %v424 = vpack.c.bf16 %v404, %v404
        %v425 = vpack.c.bf16 %v405, %v405
        %v426 = vpack.c.bf16 %v406, %v406
        %v427 = vpack.c.bf16 %v407, %v407
        %v428 = vpack.c.bf16 %v408, %v408
        %v429 = vpack.c.bf16 %v409, %v409
        %v430 = vpack.c.bf16 %v410, %v410
        %v431 = vpack.c.bf16 %v411, %v411
        %440 = vrot.lane.b32.xlu0 %v424, 3
        %v441 = vpop.permute.xlu0 %440
        %442 = vrot.lane.b32.xlu0 %v425, 3
        %v443 = vpop.permute.xlu0 %442
        %444 = vrot.lane.b32.xlu0 %v426, 3
        %v445 = vpop.permute.xlu0 %444
        %446 = vrot.lane.b32.xlu0 %v427, 3
        %v447 = vpop.permute.xlu0 %446
        %448 = vrot.lane.b32.xlu0 %v428, 3
        %v449 = vpop.permute.xlu0 %448
        %450 = vrot.lane.b32.xlu0 %v429, 3
        %v451 = vpop.permute.xlu0 %450
        %452 = vrot.lane.b32.xlu0 %v430, 3
        %v453 = vpop.permute.xlu0 %452
        %454 = vrot.lane.b32.xlu0 %v431, 3
        %v455 = vpop.permute.xlu0 %454
        %v456 = vrot.slane %v441, 4
        %v457 = vrot.slane %v443, 4
        %v458 = vrot.slane %v445, 4
        %v459 = vrot.slane %v447, 4
        %v460 = vrot.slane %v449, 4
        %v461 = vrot.slane %v451, 4
        %v462 = vrot.slane %v453, 4
        %v463 = vrot.slane %v455, 4
        %vm464 = vcmask 23552
        %v465 = vsel %vm464, %v456, %v441
        %v466 = vsel %vm464, %v457, %v443
        %v467 = vsel %vm464, %v458, %v445
        %v468 = vsel %vm464, %v459, %v447
        %v469 = vsel %vm464, %v460, %v449
        %v470 = vsel %vm464, %v461, %v451
        %v471 = vsel %vm464, %v462, %v453
        %v472 = vsel %vm464, %v463, %v455
        %vm481 = vcmask 1043480
        %vm482 = vcmask 23556
        %vm483 = vmor %vm482, %vm481
        %484 = vst.msk [vmem:[#allocation2] sm:$0xff] %vm483, %v465
        %485 = vst.msk [vmem:[#allocation2 + $0x8] sm:$0xff] %vm483, %v466
        %486 = vst.msk [vmem:[#allocation2 + $0x10] sm:$0xff] %vm483, %v467
        %487 = vst.msk [vmem:[#allocation2 + $0x18] sm:$0xff] %vm483, %v468
        %488 = vst.msk [vmem:[#allocation2 + $0x20] sm:$0xff] %vm483, %v469
        %489 = vst.msk [vmem:[#allocation2 + $0x28] sm:$0xff] %vm483, %v470
        %490 = vst.msk [vmem:[#allocation2 + $0x30] sm:$0xff] %vm483, %v471
        %491 = vst.msk [vmem:[#allocation2 + $0x38] sm:$0xff] %vm483, %v472
        %v492 = vld [vmem:[#allocation2] sm:$0xf]
        %v493 = vld [vmem:[#allocation2 + $0x8] sm:$0xf]
        %v494 = vld [vmem:[#allocation2 + $0x10] sm:$0xf]
        %v495 = vld [vmem:[#allocation2 + $0x18] sm:$0xf]
        %v496 = vld [vmem:[#allocation2 + $0x20] sm:$0xf]
        %v497 = vld [vmem:[#allocation2 + $0x28] sm:$0xf]
        %v498 = vld [vmem:[#allocation2 + $0x30] sm:$0xf]
        %v499 = vld [vmem:[#allocation2 + $0x38] sm:$0xf]
        %500 = vst [vmem:[#allocation3] sm:$0xf] %v492
        %501 = vst [vmem:[#allocation3 + $0x4] sm:$0xf] %v493
        %502 = vst [vmem:[#allocation3 + $0x8] sm:$0xf] %v494
        %503 = vst [vmem:[#allocation3 + $0xc] sm:$0xf] %v495
        %504 = vst [vmem:[#allocation3 + $0x10] sm:$0xf] %v496
        %505 = vst [vmem:[#allocation3 + $0x14] sm:$0xf] %v497
        %506 = vst [vmem:[#allocation3 + $0x18] sm:$0xf] %v498
        %507 = vst [vmem:[#allocation3 + $0x1c] sm:$0xf] %v499
        %v508 = vld [vmem:[#allocation2] sm:$0xff]
        %v509 = vld [vmem:[#allocation2 + $0x8] sm:$0xff]
        %v510 = vld [vmem:[#allocation2 + $0x10] sm:$0xff]
        %v511 = vld [vmem:[#allocation2 + $0x18] sm:$0xff]
        %v512 = vld [vmem:[#allocation2 + $0x20] sm:$0xff]
        %v513 = vld [vmem:[#allocation2 + $0x28] sm:$0xff]
        %v514 = vld [vmem:[#allocation2 + $0x30] sm:$0xff]
        %v515 = vld [vmem:[#allocation2 + $0x38] sm:$0xff]
        %524 = vrot.lane.b32.xlu0 %v508, 127
        %v525 = vpop.permute.xlu0 %524
        %526 = vrot.lane.b32.xlu0 %v509, 127
        %v527 = vpop.permute.xlu0 %526
        %528 = vrot.lane.b32.xlu0 %v510, 127
        %v529 = vpop.permute.xlu0 %528
        %530 = vrot.lane.b32.xlu0 %v511, 127
        %v531 = vpop.permute.xlu0 %530
        %532 = vrot.lane.b32.xlu0 %v512, 127
        %v533 = vpop.permute.xlu0 %532
        %534 = vrot.lane.b32.xlu0 %v513, 127
        %v535 = vpop.permute.xlu0 %534
        %536 = vrot.lane.b32.xlu0 %v514, 127
        %v537 = vpop.permute.xlu0 %536
        %538 = vrot.lane.b32.xlu0 %v515, 127
        %v539 = vpop.permute.xlu0 %538
        %v540 = vrot.slane %v525, 4
        %v541 = vrot.slane %v527, 4
        %v542 = vrot.slane %v529, 4
        %v543 = vrot.slane %v531, 4
        %v544 = vrot.slane %v533, 4
        %v545 = vrot.slane %v535, 4
        %v546 = vrot.slane %v537, 4
        %v547 = vrot.slane %v539, 4
        %vm548 = vcmask 1039360
        %v549 = vsel %vm548, %v525, %v540
        %v550 = vsel %vm548, %v527, %v541
        %v551 = vsel %vm548, %v529, %v542
        %v552 = vsel %vm548, %v531, %v543
        %v553 = vsel %vm548, %v533, %v544
        %v554 = vsel %vm548, %v535, %v545
        %v555 = vsel %vm548, %v537, %v546
        %v556 = vsel %vm548, %v539, %v547
        %565 = vst [vmem:[#allocation3 + $0x20] sm:$0xf] %v549
        %566 = vst [vmem:[#allocation3 + $0x24] sm:$0xf] %v550
        %567 = vst [vmem:[#allocation3 + $0x28] sm:$0xf] %v551
        %568 = vst [vmem:[#allocation3 + $0x2c] sm:$0xf] %v552
        %569 = vst [vmem:[#allocation3 + $0x30] sm:$0xf] %v553
        %570 = vst [vmem:[#allocation3 + $0x34] sm:$0xf] %v554
        %571 = vst [vmem:[#allocation3 + $0x38] sm:$0xf] %v555
        %572 = vst [vmem:[#allocation3 + $0x3c] sm:$0xf] %v556
        %v573 = vld [vmem:[#allocation2] sm:$0xff]
        %v574 = vld [vmem:[#allocation2 + $0x8] sm:$0xff]
        %v575 = vld [vmem:[#allocation2 + $0x10] sm:$0xff]
        %v576 = vld [vmem:[#allocation2 + $0x18] sm:$0xff]
        %v577 = vld [vmem:[#allocation2 + $0x20] sm:$0xff]
        %v578 = vld [vmem:[#allocation2 + $0x28] sm:$0xff]
        %v579 = vld [vmem:[#allocation2 + $0x30] sm:$0xff]
        %v580 = vld [vmem:[#allocation2 + $0x38] sm:$0xff]
        %589 = vrot.lane.b32.xlu0 %v573, 126
        %v590 = vpop.permute.xlu0 %589
        %591 = vrot.lane.b32.xlu0 %v574, 126
        %v592 = vpop.permute.xlu0 %591
        %593 = vrot.lane.b32.xlu0 %v575, 126
        %v594 = vpop.permute.xlu0 %593
        %595 = vrot.lane.b32.xlu0 %v576, 126
        %v596 = vpop.permute.xlu0 %595
        %597 = vrot.lane.b32.xlu0 %v577, 126
        %v598 = vpop.permute.xlu0 %597
        %599 = vrot.lane.b32.xlu0 %v578, 126
        %v600 = vpop.permute.xlu0 %599
        %601 = vrot.lane.b32.xlu0 %v579, 126
        %v602 = vpop.permute.xlu0 %601
        %603 = vrot.lane.b32.xlu0 %v580, 126
        %v604 = vpop.permute.xlu0 %603
        %v605 = vrot.slane %v590, 4
        %v606 = vrot.slane %v592, 4
        %v607 = vrot.slane %v594, 4
        %v608 = vrot.slane %v596, 4
        %v609 = vrot.slane %v598, 4
        %v610 = vrot.slane %v600, 4
        %v611 = vrot.slane %v602, 4
        %v612 = vrot.slane %v604, 4
        %vm613 = vcmask 1031168
        %v614 = vsel %vm613, %v590, %v605
        %v615 = vsel %vm613, %v592, %v606
        %v616 = vsel %vm613, %v594, %v607
        %v617 = vsel %vm613, %v596, %v608
        %v618 = vsel %vm613, %v598, %v609
        %v619 = vsel %vm613, %v600, %v610
        %v620 = vsel %vm613, %v602, %v611
        %v621 = vsel %vm613, %v604, %v612
        %630 = vst [vmem:[#allocation3 + $0x40] sm:$0xf] %v614
        %631 = vst [vmem:[#allocation3 + $0x44] sm:$0xf] %v615
        %632 = vst [vmem:[#allocation3 + $0x48] sm:$0xf] %v616
        %633 = vst [vmem:[#allocation3 + $0x4c] sm:$0xf] %v617
        %634 = vst [vmem:[#allocation3 + $0x50] sm:$0xf] %v618
        %635 = vst [vmem:[#allocation3 + $0x54] sm:$0xf] %v619
        %636 = vst [vmem:[#allocation3 + $0x58] sm:$0xf] %v620
        %637 = vst [vmem:[#allocation3 + $0x5c] sm:$0xf] %v621
        %v638 = vld [vmem:[#allocation2] sm:$0xff]
        %v639 = vld [vmem:[#allocation2 + $0x8] sm:$0xff]
        %v640 = vld [vmem:[#allocation2 + $0x10] sm:$0xff]
        %v641 = vld [vmem:[#allocation2 + $0x18] sm:$0xff]
        %v642 = vld [vmem:[#allocation2 + $0x20] sm:$0xff]
        %v643 = vld [vmem:[#allocation2 + $0x28] sm:$0xff]
        %v644 = vld [vmem:[#allocation2 + $0x30] sm:$0xff]
        %v645 = vld [vmem:[#allocation2 + $0x38] sm:$0xff]
        %654 = vrot.lane.b32.xlu0 %v638, 125
        %v655 = vpop.permute.xlu0 %654
        %656 = vrot.lane.b32.xlu0 %v639, 125
        %v657 = vpop.permute.xlu0 %656
        %658 = vrot.lane.b32.xlu0 %v640, 125
        %v659 = vpop.permute.xlu0 %658
        %660 = vrot.lane.b32.xlu0 %v641, 125
        %v661 = vpop.permute.xlu0 %660
        %662 = vrot.lane.b32.xlu0 %v642, 125
        %v663 = vpop.permute.xlu0 %662
        %664 = vrot.lane.b32.xlu0 %v643, 125
        %v665 = vpop.permute.xlu0 %664
        %666 = vrot.lane.b32.xlu0 %v644, 125
        %v667 = vpop.permute.xlu0 %666
        %668 = vrot.lane.b32.xlu0 %v645, 125
        %v669 = vpop.permute.xlu0 %668
        %v670 = vrot.slane %v655, 4
        %v671 = vrot.slane %v657, 4
        %v672 = vrot.slane %v659, 4
        %v673 = vrot.slane %v661, 4
        %v674 = vrot.slane %v663, 4
        %v675 = vrot.slane %v665, 4
        %v676 = vrot.slane %v667, 4
        %v677 = vrot.slane %v669, 4
        %vm678 = vcmask 1022976
        %v679 = vsel %vm678, %v655, %v670
        %v680 = vsel %vm678, %v657, %v671
        %v681 = vsel %vm678, %v659, %v672
        %v682 = vsel %vm678, %v661, %v673
        %v683 = vsel %vm678, %v663, %v674
        %v684 = vsel %vm678, %v665, %v675
        %v685 = vsel %vm678, %v667, %v676
        %v686 = vsel %vm678, %v669, %v677
        %695 = vst [vmem:[#allocation3 + $0x60] sm:$0xf] %v679
        %696 = vst [vmem:[#allocation3 + $0x64] sm:$0xf] %v680
        %697 = vst [vmem:[#allocation3 + $0x68] sm:$0xf] %v681
        %698 = vst [vmem:[#allocation3 + $0x6c] sm:$0xf] %v682
        %699 = vst [vmem:[#allocation3 + $0x70] sm:$0xf] %v683
        %700 = vst [vmem:[#allocation3 + $0x74] sm:$0xf] %v684
        %701 = vst [vmem:[#allocation3 + $0x78] sm:$0xf] %v685
        %702 = vst [vmem:[#allocation3 + $0x7c] sm:$0xf] %v686
        %v703 = vld [vmem:[#allocation2] sm:$0xff]
        %v704 = vld [vmem:[#allocation2 + $0x8] sm:$0xff]
        %v705 = vld [vmem:[#allocation2 + $0x10] sm:$0xff]
        %v706 = vld [vmem:[#allocation2 + $0x18] sm:$0xff]
        %v707 = vld [vmem:[#allocation2 + $0x20] sm:$0xff]
        %v708 = vld [vmem:[#allocation2 + $0x28] sm:$0xff]
        %v709 = vld [vmem:[#allocation2 + $0x30] sm:$0xff]
        %v710 = vld [vmem:[#allocation2 + $0x38] sm:$0xff]
        %719 = vrot.lane.b32.xlu0 %v703, 124
        %v720 = vpop.permute.xlu0 %719
        %721 = vrot.lane.b32.xlu0 %v704, 124
        %v722 = vpop.permute.xlu0 %721
        %723 = vrot.lane.b32.xlu0 %v705, 124
        %v724 = vpop.permute.xlu0 %723
        %725 = vrot.lane.b32.xlu0 %v706, 124
        %v726 = vpop.permute.xlu0 %725
        %727 = vrot.lane.b32.xlu0 %v707, 124
        %v728 = vpop.permute.xlu0 %727
        %729 = vrot.lane.b32.xlu0 %v708, 124
        %v730 = vpop.permute.xlu0 %729
        %731 = vrot.lane.b32.xlu0 %v709, 124
        %v732 = vpop.permute.xlu0 %731
        %733 = vrot.lane.b32.xlu0 %v710, 124
        %v734 = vpop.permute.xlu0 %733
        %v735 = vrot.slane %v720, 4
        %v736 = vrot.slane %v722, 4
        %v737 = vrot.slane %v724, 4
        %v738 = vrot.slane %v726, 4
        %v739 = vrot.slane %v728, 4
        %v740 = vrot.slane %v730, 4
        %v741 = vrot.slane %v732, 4
        %v742 = vrot.slane %v734, 4
        %vm743 = vcmask 1014784
        %v744 = vsel %vm743, %v720, %v735
        %v745 = vsel %vm743, %v722, %v736
        %v746 = vsel %vm743, %v724, %v737
        %v747 = vsel %vm743, %v726, %v738
        %v748 = vsel %vm743, %v728, %v739
        %v749 = vsel %vm743, %v730, %v740
        %v750 = vsel %vm743, %v732, %v741
        %v751 = vsel %vm743, %v734, %v742
        %760 = vst [vmem:[#allocation3 + $0x80] sm:$0xf] %v744
        %761 = vst [vmem:[#allocation3 + $0x84] sm:$0xf] %v745
        %762 = vst [vmem:[#allocation3 + $0x88] sm:$0xf] %v746
        %763 = vst [vmem:[#allocation3 + $0x8c] sm:$0xf] %v747
        %764 = vst [vmem:[#allocation3 + $0x90] sm:$0xf] %v748
        %765 = vst [vmem:[#allocation3 + $0x94] sm:$0xf] %v749
        %766 = vst [vmem:[#allocation3 + $0x98] sm:$0xf] %v750
        %767 = vst [vmem:[#allocation3 + $0x9c] sm:$0xf] %v751
        %v768 = vld [vmem:[#allocation2] sm:$0xff]
        %v769 = vld [vmem:[#allocation2 + $0x8] sm:$0xff]
        %v770 = vld [vmem:[#allocation2 + $0x10] sm:$0xff]
        %v771 = vld [vmem:[#allocation2 + $0x18] sm:$0xff]
        %v772 = vld [vmem:[#allocation2 + $0x20] sm:$0xff]
        %v773 = vld [vmem:[#allocation2 + $0x28] sm:$0xff]
        %v774 = vld [vmem:[#allocation2 + $0x30] sm:$0xff]
        %v775 = vld [vmem:[#allocation2 + $0x38] sm:$0xff]
        %784 = vrot.lane.b32.xlu0 %v768, 123
        %v785 = vpop.permute.xlu0 %784
        %786 = vrot.lane.b32.xlu0 %v769, 123
        %v787 = vpop.permute.xlu0 %786
        %788 = vrot.lane.b32.xlu0 %v770, 123
        %v789 = vpop.permute.xlu0 %788
        %790 = vrot.lane.b32.xlu0 %v771, 123
        %v791 = vpop.permute.xlu0 %790
        %792 = vrot.lane.b32.xlu0 %v772, 123
        %v793 = vpop.permute.xlu0 %792
        %794 = vrot.lane.b32.xlu0 %v773, 123
        %v795 = vpop.permute.xlu0 %794
        %796 = vrot.lane.b32.xlu0 %v774, 123
        %v797 = vpop.permute.xlu0 %796
        %798 = vrot.lane.b32.xlu0 %v775, 123
        %v799 = vpop.permute.xlu0 %798
        %v800 = vrot.slane %v785, 4
        %v801 = vrot.slane %v787, 4
        %v802 = vrot.slane %v789, 4
        %v803 = vrot.slane %v791, 4
        %v804 = vrot.slane %v793, 4
        %v805 = vrot.slane %v795, 4
        %v806 = vrot.slane %v797, 4
        %v807 = vrot.slane %v799, 4
        %vm808 = vcmask 1006592
        %v809 = vsel %vm808, %v785, %v800
        %v810 = vsel %vm808, %v787, %v801
        %v811 = vsel %vm808, %v789, %v802
        %v812 = vsel %vm808, %v791, %v803
        %v813 = vsel %vm808, %v793, %v804
        %v814 = vsel %vm808, %v795, %v805
        %v815 = vsel %vm808, %v797, %v806
        %v816 = vsel %vm808, %v799, %v807
        %825 = vst [vmem:[#allocation3 + $0xa0] sm:$0xf] %v809
        %826 = vst [vmem:[#allocation3 + $0xa4] sm:$0xf] %v810
        %827 = vst [vmem:[#allocation3 + $0xa8] sm:$0xf] %v811
        %828 = vst [vmem:[#allocation3 + $0xac] sm:$0xf] %v812
        %829 = vst [vmem:[#allocation3 + $0xb0] sm:$0xf] %v813
        %830 = vst [vmem:[#allocation3 + $0xb4] sm:$0xf] %v814
        %831 = vst [vmem:[#allocation3 + $0xb8] sm:$0xf] %v815
        %832 = vst [vmem:[#allocation3 + $0xbc] sm:$0xf] %v816
        %v833 = vld [vmem:[#allocation2] sm:$0xff]
        %v834 = vld [vmem:[#allocation2 + $0x8] sm:$0xff]
        %v835 = vld [vmem:[#allocation2 + $0x10] sm:$0xff]
        %v836 = vld [vmem:[#allocation2 + $0x18] sm:$0xff]
        %v837 = vld [vmem:[#allocation2 + $0x20] sm:$0xff]
        %v838 = vld [vmem:[#allocation2 + $0x28] sm:$0xff]
        %v839 = vld [vmem:[#allocation2 + $0x30] sm:$0xff]
        %v840 = vld [vmem:[#allocation2 + $0x38] sm:$0xff]
        %849 = vrot.lane.b32.xlu0 %v833, 122
        %v850 = vpop.permute.xlu0 %849
        %851 = vrot.lane.b32.xlu0 %v834, 122
        %v852 = vpop.permute.xlu0 %851
        %853 = vrot.lane.b32.xlu0 %v835, 122
        %v854 = vpop.permute.xlu0 %853
        %855 = vrot.lane.b32.xlu0 %v836, 122
        %v856 = vpop.permute.xlu0 %855
        %857 = vrot.lane.b32.xlu0 %v837, 122
        %v858 = vpop.permute.xlu0 %857
        %859 = vrot.lane.b32.xlu0 %v838, 122
        %v860 = vpop.permute.xlu0 %859
        %861 = vrot.lane.b32.xlu0 %v839, 122
        %v862 = vpop.permute.xlu0 %861
        %863 = vrot.lane.b32.xlu0 %v840, 122
        %v864 = vpop.permute.xlu0 %863
        %v865 = vrot.slane %v850, 4
        %v866 = vrot.slane %v852, 4
        %v867 = vrot.slane %v854, 4
        %v868 = vrot.slane %v856, 4
        %v869 = vrot.slane %v858, 4
        %v870 = vrot.slane %v860, 4
        %v871 = vrot.slane %v862, 4
        %v872 = vrot.slane %v864, 4
        %vm873 = vcmask 998400
        %v874 = vsel %vm873, %v850, %v865
        %v875 = vsel %vm873, %v852, %v866
        %v876 = vsel %vm873, %v854, %v867
        %v877 = vsel %vm873, %v856, %v868
        %v878 = vsel %vm873, %v858, %v869
        %v879 = vsel %vm873, %v860, %v870
        %v880 = vsel %vm873, %v862, %v871
        %v881 = vsel %vm873, %v864, %v872
        %890 = vst [vmem:[#allocation3 + $0xc0] sm:$0xf] %v874
        %891 = vst [vmem:[#allocation3 + $0xc4] sm:$0xf] %v875
        %892 = vst [vmem:[#allocation3 + $0xc8] sm:$0xf] %v876
        %893 = vst [vmem:[#allocation3 + $0xcc] sm:$0xf] %v877
        %894 = vst [vmem:[#allocation3 + $0xd0] sm:$0xf] %v878
        %895 = vst [vmem:[#allocation3 + $0xd4] sm:$0xf] %v879
        %896 = vst [vmem:[#allocation3 + $0xd8] sm:$0xf] %v880
        %897 = vst [vmem:[#allocation3 + $0xdc] sm:$0xf] %v881
        %v898 = vld [vmem:[#allocation2] sm:$0xff]
        %v899 = vld [vmem:[#allocation2 + $0x8] sm:$0xff]
        %v900 = vld [vmem:[#allocation2 + $0x10] sm:$0xff]
        %v901 = vld [vmem:[#allocation2 + $0x18] sm:$0xff]
        %v902 = vld [vmem:[#allocation2 + $0x20] sm:$0xff]
        %v903 = vld [vmem:[#allocation2 + $0x28] sm:$0xff]
        %v904 = vld [vmem:[#allocation2 + $0x30] sm:$0xff]
        %v905 = vld [vmem:[#allocation2 + $0x38] sm:$0xff]
        %914 = vrot.lane.b32.xlu0 %v898, 121
        %v915 = vpop.permute.xlu0 %914
        %916 = vrot.lane.b32.xlu0 %v899, 121
        %v917 = vpop.permute.xlu0 %916
        %918 = vrot.lane.b32.xlu0 %v900, 121
        %v919 = vpop.permute.xlu0 %918
        %920 = vrot.lane.b32.xlu0 %v901, 121
        %v921 = vpop.permute.xlu0 %920
        %922 = vrot.lane.b32.xlu0 %v902, 121
        %v923 = vpop.permute.xlu0 %922
        %924 = vrot.lane.b32.xlu0 %v903, 121
        %v925 = vpop.permute.xlu0 %924
        %926 = vrot.lane.b32.xlu0 %v904, 121
        %v927 = vpop.permute.xlu0 %926
        %928 = vrot.lane.b32.xlu0 %v905, 121
        %v929 = vpop.permute.xlu0 %928
        %v930 = vrot.slane %v915, 4
        %v931 = vrot.slane %v917, 4
        %v932 = vrot.slane %v919, 4
        %v933 = vrot.slane %v921, 4
        %v934 = vrot.slane %v923, 4
        %v935 = vrot.slane %v925, 4
        %v936 = vrot.slane %v927, 4
        %v937 = vrot.slane %v929, 4
        %vm938 = vcmask 990208
        %v939 = vsel %vm938, %v915, %v930
        %v940 = vsel %vm938, %v917, %v931
        %v941 = vsel %vm938, %v919, %v932
        %v942 = vsel %vm938, %v921, %v933
        %v943 = vsel %vm938, %v923, %v934
        %v944 = vsel %vm938, %v925, %v935
        %v945 = vsel %vm938, %v927, %v936
        %v946 = vsel %vm938, %v929, %v937
        %955 = vst [vmem:[#allocation3 + $0xe0] sm:$0xf] %v939
        %956 = vst [vmem:[#allocation3 + $0xe4] sm:$0xf] %v940
        %957 = vst [vmem:[#allocation3 + $0xe8] sm:$0xf] %v941
        %958 = vst [vmem:[#allocation3 + $0xec] sm:$0xf] %v942
        %959 = vst [vmem:[#allocation3 + $0xf0] sm:$0xf] %v943
        %960 = vst [vmem:[#allocation3 + $0xf4] sm:$0xf] %v944
        %961 = vst [vmem:[#allocation3 + $0xf8] sm:$0xf] %v945
        %962 = vst [vmem:[#allocation3 + $0xfc] sm:$0xf] %v946
        %v963 = vld [vmem:[#allocation3] sm:$0xf]
        %v964 = vld [vmem:[#allocation3 + $0x4] sm:$0xf]
        %v965 = vld [vmem:[#allocation3 + $0x8] sm:$0xf]
        %v966 = vld [vmem:[#allocation3 + $0xc] sm:$0xf]
        %v967 = vld [vmem:[#allocation3 + $0x10] sm:$0xf]
        %v968 = vld [vmem:[#allocation3 + $0x14] sm:$0xf]
        %v969 = vld [vmem:[#allocation3 + $0x18] sm:$0xf]
        %v970 = vld [vmem:[#allocation3 + $0x1c] sm:$0xf]
        %v971 = vld [vmem:[#allocation3 + $0x20] sm:$0xf]
        %v972 = vld [vmem:[#allocation3 + $0x24] sm:$0xf]
        %v973 = vld [vmem:[#allocation3 + $0x28] sm:$0xf]
        %v974 = vld [vmem:[#allocation3 + $0x2c] sm:$0xf]
        %v975 = vld [vmem:[#allocation3 + $0x30] sm:$0xf]
        %v976 = vld [vmem:[#allocation3 + $0x34] sm:$0xf]
        %v977 = vld [vmem:[#allocation3 + $0x38] sm:$0xf]
        %v978 = vld [vmem:[#allocation3 + $0x3c] sm:$0xf]
        %v979 = vld [vmem:[#allocation3 + $0x40] sm:$0xf]
        %v980 = vld [vmem:[#allocation3 + $0x44] sm:$0xf]
        %v981 = vld [vmem:[#allocation3 + $0x48] sm:$0xf]
        %v982 = vld [vmem:[#allocation3 + $0x4c] sm:$0xf]
        %v983 = vld [vmem:[#allocation3 + $0x50] sm:$0xf]
        %v984 = vld [vmem:[#allocation3 + $0x54] sm:$0xf]
        %v985 = vld [vmem:[#allocation3 + $0x58] sm:$0xf]
        %v986 = vld [vmem:[#allocation3 + $0x5c] sm:$0xf]
        %v987 = vld [vmem:[#allocation3 + $0x60] sm:$0xf]
        %v988 = vld [vmem:[#allocation3 + $0x64] sm:$0xf]
        %v989 = vld [vmem:[#allocation3 + $0x68] sm:$0xf]
        %v990 = vld [vmem:[#allocation3 + $0x6c] sm:$0xf]
        %v991 = vld [vmem:[#allocation3 + $0x70] sm:$0xf]
        %v992 = vld [vmem:[#allocation3 + $0x74] sm:$0xf]
        %v993 = vld [vmem:[#allocation3 + $0x78] sm:$0xf]
        %v994 = vld [vmem:[#allocation3 + $0x7c] sm:$0xf]
        %v995 = vld [vmem:[#allocation3 + $0x80] sm:$0xf]
        %v996 = vld [vmem:[#allocation3 + $0x84] sm:$0xf]
        %v997 = vld [vmem:[#allocation3 + $0x88] sm:$0xf]
        %v998 = vld [vmem:[#allocation3 + $0x8c] sm:$0xf]
        %v999 = vld [vmem:[#allocation3 + $0x90] sm:$0xf]
        %v1000 = vld [vmem:[#allocation3 + $0x94] sm:$0xf]
        %v1001 = vld [vmem:[#allocation3 + $0x98] sm:$0xf]
        %v1002 = vld [vmem:[#allocation3 + $0x9c] sm:$0xf]
        %v1003 = vld [vmem:[#allocation3 + $0xa0] sm:$0xf]
        %v1004 = vld [vmem:[#allocation3 + $0xa4] sm:$0xf]
        %v1005 = vld [vmem:[#allocation3 + $0xa8] sm:$0xf]
        %v1006 = vld [vmem:[#allocation3 + $0xac] sm:$0xf]
        %v1007 = vld [vmem:[#allocation3 + $0xb0] sm:$0xf]
        %v1008 = vld [vmem:[#allocation3 + $0xb4] sm:$0xf]
        %v1009 = vld [vmem:[#allocation3 + $0xb8] sm:$0xf]
        %v1010 = vld [vmem:[#allocation3 + $0xbc] sm:$0xf]
        %v1011 = vld [vmem:[#allocation3 + $0xc0] sm:$0xf]
        %v1012 = vld [vmem:[#allocation3 + $0xc4] sm:$0xf]
        %v1013 = vld [vmem:[#allocation3 + $0xc8] sm:$0xf]
        %v1014 = vld [vmem:[#allocation3 + $0xcc] sm:$0xf]
        %v1015 = vld [vmem:[#allocation3 + $0xd0] sm:$0xf]
        %v1016 = vld [vmem:[#allocation3 + $0xd4] sm:$0xf]
        %v1017 = vld [vmem:[#allocation3 + $0xd8] sm:$0xf]
        %v1018 = vld [vmem:[#allocation3 + $0xdc] sm:$0xf]
        %v1019 = vld [vmem:[#allocation3 + $0xe0] sm:$0xf]
        %v1020 = vld [vmem:[#allocation3 + $0xe4] sm:$0xf]
        %v1021 = vld [vmem:[#allocation3 + $0xe8] sm:$0xf]
        %v1022 = vld [vmem:[#allocation3 + $0xec] sm:$0xf]
        %v1023 = vld [vmem:[#allocation3 + $0xf0] sm:$0xf]
        %v1024 = vld [vmem:[#allocation3 + $0xf4] sm:$0xf]
        %v1025 = vld [vmem:[#allocation3 + $0xf8] sm:$0xf]
        %v1026 = vld [vmem:[#allocation3 + $0xfc] sm:$0xf]
        %1028 = vset.pattern.permute.xlu0 0
        %1029 = vperm.xlu0 %1028, %v420
        %v1030 = vpop.permute.xlu0 %1029
        %1033 = vset.pattern.permute.xlu0 0
        %1034 = vperm.xlu0 %1033, %v421
        %v1035 = vpop.permute.xlu0 %1034
        %1038 = vset.pattern.permute.xlu0 0
        %1039 = vperm.xlu0 %1038, %v422
        %v1040 = vpop.permute.xlu0 %1039
        %1043 = vset.pattern.permute.xlu0 0
        %1044 = vperm.xlu0 %1043, %v423
        %v1045 = vpop.permute.xlu0 %1044
        %v1055 = vunpack.c.l.b16 %v412
        %v1056 = vunpack.c.h.b16 %v412
        %v1057 = vunpack.c.l.b16 %v413
        %v1058 = vunpack.c.h.b16 %v413
        %v1059 = vunpack.c.l.b16 %v414
        %v1060 = vunpack.c.h.b16 %v414
        %v1061 = vunpack.c.l.b16 %v415
        %v1062 = vunpack.c.h.b16 %v415
        %v1063 = vunpack.c.l.b16 %v416
        %v1064 = vunpack.c.h.b16 %v416
        %v1065 = vunpack.c.l.b16 %v417
        %v1066 = vunpack.c.h.b16 %v417
        %v1067 = vunpack.c.l.b16 %v418
        %v1068 = vunpack.c.h.b16 %v418
        %v1069 = vunpack.c.l.b16 %v419
        %v1070 = vunpack.c.h.b16 %v419
        %v1071 = vpack.c.b16 %v1059, %v1055
        %v1072 = vpack.c.b16 %v1060, %v1056
        %v1073 = vpack.c.b16 %v1061, %v1057
        %v1074 = vpack.c.b16 %v1062, %v1058
        %v1075 = vpack.c.b16 %v1067, %v1063
        %v1076 = vpack.c.b16 %v1068, %v1064
        %v1077 = vpack.c.b16 %v1069, %v1065
        %v1078 = vpack.c.b16 %v1070, %v1066
        %v1151 = vunpack.c.l.b16 %v963
        %v1152 = vunpack.c.l.b16 %v964
        %v1153 = vunpack.c.l.b16 %v965
        %v1154 = vunpack.c.l.b16 %v966
        %v1155 = vunpack.c.l.b16 %v967
        %v1156 = vunpack.c.l.b16 %v968
        %v1157 = vunpack.c.l.b16 %v969
        %v1158 = vunpack.c.l.b16 %v970
        %v1159 = vunpack.c.l.b16 %v971
        %v1160 = vunpack.c.l.b16 %v972
        %v1161 = vunpack.c.l.b16 %v973
        %v1162 = vunpack.c.l.b16 %v974
        %v1163 = vunpack.c.l.b16 %v975
        %v1164 = vunpack.c.l.b16 %v976
        %v1165 = vunpack.c.l.b16 %v977
        %v1166 = vunpack.c.l.b16 %v978
        %v1167 = vunpack.c.l.b16 %v979
        %v1168 = vunpack.c.l.b16 %v980
        %v1169 = vunpack.c.l.b16 %v981
        %v1170 = vunpack.c.l.b16 %v982
        %v1171 = vunpack.c.l.b16 %v983
        %v1172 = vunpack.c.l.b16 %v984
        %v1173 = vunpack.c.l.b16 %v985
        %v1174 = vunpack.c.l.b16 %v986
        %v1175 = vunpack.c.l.b16 %v987
        %v1176 = vunpack.c.l.b16 %v988
        %v1177 = vunpack.c.l.b16 %v989
        %v1178 = vunpack.c.l.b16 %v990
        %v1179 = vunpack.c.l.b16 %v991
        %v1180 = vunpack.c.l.b16 %v992
        %v1181 = vunpack.c.l.b16 %v993
        %v1182 = vunpack.c.l.b16 %v994
        %v1183 = vunpack.c.l.b16 %v995
        %v1184 = vunpack.c.l.b16 %v996
        %v1185 = vunpack.c.l.b16 %v997
        %v1186 = vunpack.c.l.b16 %v998
        %v1187 = vunpack.c.l.b16 %v999
        %v1188 = vunpack.c.l.b16 %v1000
        %v1189 = vunpack.c.l.b16 %v1001
        %v1190 = vunpack.c.l.b16 %v1002
        %v1191 = vunpack.c.l.b16 %v1003
        %v1192 = vunpack.c.l.b16 %v1004
        %v1193 = vunpack.c.l.b16 %v1005
        %v1194 = vunpack.c.l.b16 %v1006
        %v1195 = vunpack.c.l.b16 %v1007
        %v1196 = vunpack.c.l.b16 %v1008
        %v1197 = vunpack.c.l.b16 %v1009
        %v1198 = vunpack.c.l.b16 %v1010
        %v1199 = vunpack.c.l.b16 %v1011
        %v1200 = vunpack.c.l.b16 %v1012
        %v1201 = vunpack.c.l.b16 %v1013
        %v1202 = vunpack.c.l.b16 %v1014
        %v1203 = vunpack.c.l.b16 %v1015
        %v1204 = vunpack.c.l.b16 %v1016
        %v1205 = vunpack.c.l.b16 %v1017
        %v1206 = vunpack.c.l.b16 %v1018
        %v1207 = vunpack.c.l.b16 %v1019
        %v1208 = vunpack.c.l.b16 %v1020
        %v1209 = vunpack.c.l.b16 %v1021
        %v1210 = vunpack.c.l.b16 %v1022
        %v1211 = vunpack.c.l.b16 %v1023
        %v1212 = vunpack.c.l.b16 %v1024
        %v1213 = vunpack.c.l.b16 %v1025
        %v1214 = vunpack.c.l.b16 %v1026
        %v1215 = vpack.c.b16 %v1152, %v1151
        %v1216 = vpack.c.b16 %v1154, %v1153
        %v1217 = vpack.c.b16 %v1156, %v1155
        %v1218 = vpack.c.b16 %v1158, %v1157
        %v1219 = vpack.c.b16 %v1160, %v1159
        %v1220 = vpack.c.b16 %v1162, %v1161
        %v1221 = vpack.c.b16 %v1164, %v1163
        %v1222 = vpack.c.b16 %v1166, %v1165
        %v1223 = vpack.c.b16 %v1168, %v1167
        %v1224 = vpack.c.b16 %v1170, %v1169
        %v1225 = vpack.c.b16 %v1172, %v1171
        %v1226 = vpack.c.b16 %v1174, %v1173
        %v1227 = vpack.c.b16 %v1176, %v1175
        %v1228 = vpack.c.b16 %v1178, %v1177
        %v1229 = vpack.c.b16 %v1180, %v1179
        %v1230 = vpack.c.b16 %v1182, %v1181
        %v1231 = vpack.c.b16 %v1184, %v1183
        %v1232 = vpack.c.b16 %v1186, %v1185
        %v1233 = vpack.c.b16 %v1188, %v1187
        %v1234 = vpack.c.b16 %v1190, %v1189
        %v1235 = vpack.c.b16 %v1192, %v1191
        %v1236 = vpack.c.b16 %v1194, %v1193
        %v1237 = vpack.c.b16 %v1196, %v1195
        %v1238 = vpack.c.b16 %v1198, %v1197
        %v1239 = vpack.c.b16 %v1200, %v1199
        %v1240 = vpack.c.b16 %v1202, %v1201
        %v1241 = vpack.c.b16 %v1204, %v1203
        %v1242 = vpack.c.b16 %v1206, %v1205
        %v1243 = vpack.c.b16 %v1208, %v1207
        %v1244 = vpack.c.b16 %v1210, %v1209
        %v1245 = vpack.c.b16 %v1212, %v1211
        %v1246 = vpack.c.b16 %v1214, %v1213
        %1279 = vmatpush.bf16.msra.mxu0 %v1222
        %1280 = vmatpush.bf16.msra.mxu0 %v1221
        %1281 = vmatpush.bf16.msra.mxu0 %v1220
        %1282 = vmatpush.bf16.msra.mxu0 %v1219
        %1283 = vmatpush.bf16.msra.mxu0 %v1218
        %1284 = vmatpush.bf16.msra.mxu0 %v1217
        %1285 = vmatpush.bf16.msra.mxu0 %v1216
        %1286 = vmatpush.bf16.msra.mxu0 %v1215
        %1287 = vmatmul.bf16.gmra.mxu0 %v1071
        %v1288 = vpop.f32.mrf.mxu0
        %v1289 = vadd.f32 %v1030, %v1288
        %v1290 = vpop.f32.mrf.mxu0
        %v1291 = vadd.f32 %v1035, %v1290
        %1292 = vmatmul.bf16.gmra.mxu0 %v1075
        %v1293 = vpop.f32.mrf.mxu0
        %v1294 = vadd.f32 %v1040, %v1293
        %v1295 = vpop.f32.mrf.mxu0
        %v1296 = vadd.f32 %v1045, %v1295
        %1297 = vdwg.mxu0
        %1298 = vmatpush.bf16.msra.mxu0 %v1230
        %1299 = vmatpush.bf16.msra.mxu0 %v1229
        %1300 = vmatpush.bf16.msra.mxu0 %v1228
        %1301 = vmatpush.bf16.msra.mxu0 %v1227
        %1302 = vmatpush.bf16.msra.mxu0 %v1226
        %1303 = vmatpush.bf16.msra.mxu0 %v1225
        %1304 = vmatpush.bf16.msra.mxu0 %v1224
        %1305 = vmatpush.bf16.msra.mxu0 %v1223
        %1306 = vmatmul.bf16.gmra.mxu0 %v1072
        %v1307 = vpop.f32.mrf.mxu0
        %v1308 = vadd.f32 %v1289, %v1307
        %v1309 = vpop.f32.mrf.mxu0
        %v1310 = vadd.f32 %v1291, %v1309
        %1311 = vmatmul.bf16.gmra.mxu0 %v1076
        %v1312 = vpop.f32.mrf.mxu0
        %v1313 = vadd.f32 %v1294, %v1312
        %v1314 = vpop.f32.mrf.mxu0
        %v1315 = vadd.f32 %v1296, %v1314
        %1316 = vdwg.mxu0
        %1317 = vmatpush.bf16.msra.mxu0 %v1238
        %1318 = vmatpush.bf16.msra.mxu0 %v1237
        %1319 = vmatpush.bf16.msra.mxu0 %v1236
        %1320 = vmatpush.bf16.msra.mxu0 %v1235
        %1321 = vmatpush.bf16.msra.mxu0 %v1234
        %1322 = vmatpush.bf16.msra.mxu0 %v1233
        %1323 = vmatpush.bf16.msra.mxu0 %v1232
        %1324 = vmatpush.bf16.msra.mxu0 %v1231
        %1325 = vmatmul.bf16.gmra.mxu0 %v1073
        %v1326 = vpop.f32.mrf.mxu0
        %v1327 = vadd.f32 %v1308, %v1326
        %v1328 = vpop.f32.mrf.mxu0
        %v1329 = vadd.f32 %v1310, %v1328
        %1330 = vmatmul.bf16.gmra.mxu0 %v1077
        %v1331 = vpop.f32.mrf.mxu0
        %v1332 = vadd.f32 %v1313, %v1331
        %v1333 = vpop.f32.mrf.mxu0
        %v1334 = vadd.f32 %v1315, %v1333
        %1335 = vdwg.mxu0
        %1336 = vmatpush.bf16.msra.mxu0 %v1246
        %1337 = vmatpush.bf16.msra.mxu0 %v1245
        %1338 = vmatpush.bf16.msra.mxu0 %v1244
        %1339 = vmatpush.bf16.msra.mxu0 %v1243
        %1340 = vmatpush.bf16.msra.mxu0 %v1242
        %1341 = vmatpush.bf16.msra.mxu0 %v1241
        %1342 = vmatpush.bf16.msra.mxu0 %v1240
        %1343 = vmatpush.bf16.msra.mxu0 %v1239
        %1344 = vmatmul.bf16.gmra.mxu0 %v1074
        %v1345 = vpop.f32.mrf.mxu0
        %v1346 = vadd.f32 %v1327, %v1345
        %v1347 = vpop.f32.mrf.mxu0
        %v1348 = vadd.f32 %v1329, %v1347
        %1349 = vmatmul.bf16.gmra.mxu0 %v1078
        %v1350 = vpop.f32.mrf.mxu0
        %v1351 = vadd.f32 %v1332, %v1350
        %v1352 = vpop.f32.mrf.mxu0
        %v1353 = vadd.f32 %v1334, %v1352
        %1354 = vdwg.mxu0
        %v1355 = vld [vmem:[%s3] sm:$0xff]
        %v1356 = vld [vmem:[%s3 + $0x8] sm:$0xff]
        %v1357 = vld [vmem:[%s3 + $0x10] sm:$0xff]
        %v1358 = vld [vmem:[%s3 + $0x18] sm:$0xff]
        %v1359 = vld [vmem:[%s4] sm:$0xff]
        %v1360 = vld [vmem:[%s4 + $0x8] sm:$0xff]
        %v1361 = vld [vmem:[%s4 + $0x10] sm:$0xff]
        %v1362 = vld [vmem:[%s4 + $0x18] sm:$0xff]
        %v1363 = vpack.c.bf16 %v1346, %v1346
        %v1364 = vpack.c.bf16 %v1348, %v1348
        %v1365 = vpack.c.bf16 %v1351, %v1351
        %v1366 = vpack.c.bf16 %v1353, %v1353
        %1371 = vrot.lane.b32.xlu0 %v1363, 3
        %v1372 = vpop.permute.xlu0 %1371
        %1373 = vrot.lane.b32.xlu0 %v1364, 3
        %v1374 = vpop.permute.xlu0 %1373
        %1375 = vrot.lane.b32.xlu0 %v1365, 3
        %v1376 = vpop.permute.xlu0 %1375
        %1377 = vrot.lane.b32.xlu0 %v1366, 3
        %v1378 = vpop.permute.xlu0 %1377
        %v1379 = vrot.slane %v1372, 4
        %v1380 = vrot.slane %v1374, 4
        %v1381 = vrot.slane %v1376, 4
        %v1382 = vrot.slane %v1378, 4
        %v1383 = vsel %vm464, %v1379, %v1372
        %v1384 = vsel %vm464, %v1380, %v1374
        %v1385 = vsel %vm464, %v1381, %v1376
        %v1386 = vsel %vm464, %v1382, %v1378
        %1391 = vst.msk [vmem:[#allocation2] sm:$0xff] %vm483, %v1383
        %1392 = vst.msk [vmem:[#allocation2 + $0x8] sm:$0xff] %vm483, %v1384
        %1393 = vst.msk [vmem:[#allocation2 + $0x10] sm:$0xff] %vm483, %v1385
        %1394 = vst.msk [vmem:[#allocation2 + $0x18] sm:$0xff] %vm483, %v1386
        %v1395 = vld [vmem:[#allocation2] sm:$0xf]
        %v1396 = vld [vmem:[#allocation2 + $0x8] sm:$0xf]
        %v1397 = vld [vmem:[#allocation2 + $0x10] sm:$0xf]
        %v1398 = vld [vmem:[#allocation2 + $0x18] sm:$0xf]
        %1399 = vst [vmem:[#allocation3] sm:$0xf] %v1395
        %1400 = vst [vmem:[#allocation3 + $0x4] sm:$0xf] %v1396
        %1401 = vst [vmem:[#allocation3 + $0x8] sm:$0xf] %v1397
        %1402 = vst [vmem:[#allocation3 + $0xc] sm:$0xf] %v1398
        %v1403 = vld [vmem:[#allocation2] sm:$0xff]
        %v1404 = vld [vmem:[#allocation2 + $0x8] sm:$0xff]
        %v1405 = vld [vmem:[#allocation2 + $0x10] sm:$0xff]
        %v1406 = vld [vmem:[#allocation2 + $0x18] sm:$0xff]
        %1411 = vrot.lane.b32.xlu0 %v1403, 127
        %v1412 = vpop.permute.xlu0 %1411
        %1413 = vrot.lane.b32.xlu0 %v1404, 127
        %v1414 = vpop.permute.xlu0 %1413
        %1415 = vrot.lane.b32.xlu0 %v1405, 127
        %v1416 = vpop.permute.xlu0 %1415
        %1417 = vrot.lane.b32.xlu0 %v1406, 127
        %v1418 = vpop.permute.xlu0 %1417
        %v1419 = vrot.slane %v1412, 4
        %v1420 = vrot.slane %v1414, 4
        %v1421 = vrot.slane %v1416, 4
        %v1422 = vrot.slane %v1418, 4
        %v1423 = vsel %vm548, %v1412, %v1419
        %v1424 = vsel %vm548, %v1414, %v1420
        %v1425 = vsel %vm548, %v1416, %v1421
        %v1426 = vsel %vm548, %v1418, %v1422
        %1431 = vst [vmem:[#allocation3 + $0x10] sm:$0xf] %v1423
        %1432 = vst [vmem:[#allocation3 + $0x14] sm:$0xf] %v1424
        %1433 = vst [vmem:[#allocation3 + $0x18] sm:$0xf] %v1425
        %1434 = vst [vmem:[#allocation3 + $0x1c] sm:$0xf] %v1426
        %v1435 = vld [vmem:[#allocation2] sm:$0xff]
        %v1436 = vld [vmem:[#allocation2 + $0x8] sm:$0xff]
        %v1437 = vld [vmem:[#allocation2 + $0x10] sm:$0xff]
        %v1438 = vld [vmem:[#allocation2 + $0x18] sm:$0xff]
        %1443 = vrot.lane.b32.xlu0 %v1435, 126
        %v1444 = vpop.permute.xlu0 %1443
        %1445 = vrot.lane.b32.xlu0 %v1436, 126
        %v1446 = vpop.permute.xlu0 %1445
        %1447 = vrot.lane.b32.xlu0 %v1437, 126
        %v1448 = vpop.permute.xlu0 %1447
        %1449 = vrot.lane.b32.xlu0 %v1438, 126
        %v1450 = vpop.permute.xlu0 %1449
        %v1451 = vrot.slane %v1444, 4
        %v1452 = vrot.slane %v1446, 4
        %v1453 = vrot.slane %v1448, 4
        %v1454 = vrot.slane %v1450, 4
        %v1455 = vsel %vm613, %v1444, %v1451
        %v1456 = vsel %vm613, %v1446, %v1452
        %v1457 = vsel %vm613, %v1448, %v1453
        %v1458 = vsel %vm613, %v1450, %v1454
        %1463 = vst [vmem:[#allocation3 + $0x20] sm:$0xf] %v1455
        %1464 = vst [vmem:[#allocation3 + $0x24] sm:$0xf] %v1456
        %1465 = vst [vmem:[#allocation3 + $0x28] sm:$0xf] %v1457
        %1466 = vst [vmem:[#allocation3 + $0x2c] sm:$0xf] %v1458
        %v1467 = vld [vmem:[#allocation2] sm:$0xff]
        %v1468 = vld [vmem:[#allocation2 + $0x8] sm:$0xff]
        %v1469 = vld [vmem:[#allocation2 + $0x10] sm:$0xff]
        %v1470 = vld [vmem:[#allocation2 + $0x18] sm:$0xff]
        %1475 = vrot.lane.b32.xlu0 %v1467, 125
        %v1476 = vpop.permute.xlu0 %1475
        %1477 = vrot.lane.b32.xlu0 %v1468, 125
        %v1478 = vpop.permute.xlu0 %1477
        %1479 = vrot.lane.b32.xlu0 %v1469, 125
        %v1480 = vpop.permute.xlu0 %1479
        %1481 = vrot.lane.b32.xlu0 %v1470, 125
        %v1482 = vpop.permute.xlu0 %1481
        %v1483 = vrot.slane %v1476, 4
        %v1484 = vrot.slane %v1478, 4
        %v1485 = vrot.slane %v1480, 4
        %v1486 = vrot.slane %v1482, 4
        %v1487 = vsel %vm678, %v1476, %v1483
        %v1488 = vsel %vm678, %v1478, %v1484
        %v1489 = vsel %vm678, %v1480, %v1485
        %v1490 = vsel %vm678, %v1482, %v1486
        %1495 = vst [vmem:[#allocation3 + $0x30] sm:$0xf] %v1487
        %1496 = vst [vmem:[#allocation3 + $0x34] sm:$0xf] %v1488
        %1497 = vst [vmem:[#allocation3 + $0x38] sm:$0xf] %v1489
        %1498 = vst [vmem:[#allocation3 + $0x3c] sm:$0xf] %v1490
        %v1499 = vld [vmem:[#allocation2] sm:$0xff]
        %v1500 = vld [vmem:[#allocation2 + $0x8] sm:$0xff]
        %v1501 = vld [vmem:[#allocation2 + $0x10] sm:$0xff]
        %v1502 = vld [vmem:[#allocation2 + $0x18] sm:$0xff]
        %1507 = vrot.lane.b32.xlu0 %v1499, 124
        %v1508 = vpop.permute.xlu0 %1507
        %1509 = vrot.lane.b32.xlu0 %v1500, 124
        %v1510 = vpop.permute.xlu0 %1509
        %1511 = vrot.lane.b32.xlu0 %v1501, 124
        %v1512 = vpop.permute.xlu0 %1511
        %1513 = vrot.lane.b32.xlu0 %v1502, 124
        %v1514 = vpop.permute.xlu0 %1513
        %v1515 = vrot.slane %v1508, 4
        %v1516 = vrot.slane %v1510, 4
        %v1517 = vrot.slane %v1512, 4
        %v1518 = vrot.slane %v1514, 4
        %v1519 = vsel %vm743, %v1508, %v1515
        %v1520 = vsel %vm743, %v1510, %v1516
        %v1521 = vsel %vm743, %v1512, %v1517
        %v1522 = vsel %vm743, %v1514, %v1518
        %1527 = vst [vmem:[#allocation3 + $0x40] sm:$0xf] %v1519
        %1528 = vst [vmem:[#allocation3 + $0x44] sm:$0xf] %v1520
        %1529 = vst [vmem:[#allocation3 + $0x48] sm:$0xf] %v1521
        %1530 = vst [vmem:[#allocation3 + $0x4c] sm:$0xf] %v1522
        %v1531 = vld [vmem:[#allocation2] sm:$0xff]
        %v1532 = vld [vmem:[#allocation2 + $0x8] sm:$0xff]
        %v1533 = vld [vmem:[#allocation2 + $0x10] sm:$0xff]
        %v1534 = vld [vmem:[#allocation2 + $0x18] sm:$0xff]
        %1539 = vrot.lane.b32.xlu0 %v1531, 123
        %v1540 = vpop.permute.xlu0 %1539
        %1541 = vrot.lane.b32.xlu0 %v1532, 123
        %v1542 = vpop.permute.xlu0 %1541
        %1543 = vrot.lane.b32.xlu0 %v1533, 123
        %v1544 = vpop.permute.xlu0 %1543
        %1545 = vrot.lane.b32.xlu0 %v1534, 123
        %v1546 = vpop.permute.xlu0 %1545
        %v1547 = vrot.slane %v1540, 4
        %v1548 = vrot.slane %v1542, 4
        %v1549 = vrot.slane %v1544, 4
        %v1550 = vrot.slane %v1546, 4
        %v1551 = vsel %vm808, %v1540, %v1547
        %v1552 = vsel %vm808, %v1542, %v1548
        %v1553 = vsel %vm808, %v1544, %v1549
        %v1554 = vsel %vm808, %v1546, %v1550
        %1559 = vst [vmem:[#allocation3 + $0x50] sm:$0xf] %v1551
        %1560 = vst [vmem:[#allocation3 + $0x54] sm:$0xf] %v1552
        %1561 = vst [vmem:[#allocation3 + $0x58] sm:$0xf] %v1553
        %1562 = vst [vmem:[#allocation3 + $0x5c] sm:$0xf] %v1554
        %v1563 = vld [vmem:[#allocation2] sm:$0xff]
        %v1564 = vld [vmem:[#allocation2 + $0x8] sm:$0xff]
        %v1565 = vld [vmem:[#allocation2 + $0x10] sm:$0xff]
        %v1566 = vld [vmem:[#allocation2 + $0x18] sm:$0xff]
        %1571 = vrot.lane.b32.xlu0 %v1563, 122
        %v1572 = vpop.permute.xlu0 %1571
        %1573 = vrot.lane.b32.xlu0 %v1564, 122
        %v1574 = vpop.permute.xlu0 %1573
        %1575 = vrot.lane.b32.xlu0 %v1565, 122
        %v1576 = vpop.permute.xlu0 %1575
        %1577 = vrot.lane.b32.xlu0 %v1566, 122
        %v1578 = vpop.permute.xlu0 %1577
        %v1579 = vrot.slane %v1572, 4
        %v1580 = vrot.slane %v1574, 4
        %v1581 = vrot.slane %v1576, 4
        %v1582 = vrot.slane %v1578, 4
        %v1583 = vsel %vm873, %v1572, %v1579
        %v1584 = vsel %vm873, %v1574, %v1580
        %v1585 = vsel %vm873, %v1576, %v1581
        %v1586 = vsel %vm873, %v1578, %v1582
        %1591 = vst [vmem:[#allocation3 + $0x60] sm:$0xf] %v1583
        %1592 = vst [vmem:[#allocation3 + $0x64] sm:$0xf] %v1584
        %1593 = vst [vmem:[#allocation3 + $0x68] sm:$0xf] %v1585
        %1594 = vst [vmem:[#allocation3 + $0x6c] sm:$0xf] %v1586
        %v1595 = vld [vmem:[#allocation2] sm:$0xff]
        %v1596 = vld [vmem:[#allocation2 + $0x8] sm:$0xff]
        %v1597 = vld [vmem:[#allocation2 + $0x10] sm:$0xff]
        %v1598 = vld [vmem:[#allocation2 + $0x18] sm:$0xff]
        %1603 = vrot.lane.b32.xlu0 %v1595, 121
        %v1604 = vpop.permute.xlu0 %1603
        %1605 = vrot.lane.b32.xlu0 %v1596, 121
        %v1606 = vpop.permute.xlu0 %1605
        %1607 = vrot.lane.b32.xlu0 %v1597, 121
        %v1608 = vpop.permute.xlu0 %1607
        %1609 = vrot.lane.b32.xlu0 %v1598, 121
        %v1610 = vpop.permute.xlu0 %1609
        %v1611 = vrot.slane %v1604, 4
        %v1612 = vrot.slane %v1606, 4
        %v1613 = vrot.slane %v1608, 4
        %v1614 = vrot.slane %v1610, 4
        %v1615 = vsel %vm938, %v1604, %v1611
        %v1616 = vsel %vm938, %v1606, %v1612
        %v1617 = vsel %vm938, %v1608, %v1613
        %v1618 = vsel %vm938, %v1610, %v1614
        %1623 = vst [vmem:[#allocation3 + $0x70] sm:$0xf] %v1615
        %1624 = vst [vmem:[#allocation3 + $0x74] sm:$0xf] %v1616
        %1625 = vst [vmem:[#allocation3 + $0x78] sm:$0xf] %v1617
        %1626 = vst [vmem:[#allocation3 + $0x7c] sm:$0xf] %v1618
        %v1627 = vld [vmem:[#allocation3] sm:$0xf]
        %v1628 = vld [vmem:[#allocation3 + $0x4] sm:$0xf]
        %v1629 = vld [vmem:[#allocation3 + $0x8] sm:$0xf]
        %v1630 = vld [vmem:[#allocation3 + $0xc] sm:$0xf]
        %v1631 = vld [vmem:[#allocation3 + $0x10] sm:$0xf]
        %v1632 = vld [vmem:[#allocation3 + $0x14] sm:$0xf]
        %v1633 = vld [vmem:[#allocation3 + $0x18] sm:$0xf]
        %v1634 = vld [vmem:[#allocation3 + $0x1c] sm:$0xf]
        %v1635 = vld [vmem:[#allocation3 + $0x20] sm:$0xf]
        %v1636 = vld [vmem:[#allocation3 + $0x24] sm:$0xf]
        %v1637 = vld [vmem:[#allocation3 + $0x28] sm:$0xf]
        %v1638 = vld [vmem:[#allocation3 + $0x2c] sm:$0xf]
        %v1639 = vld [vmem:[#allocation3 + $0x30] sm:$0xf]
        %v1640 = vld [vmem:[#allocation3 + $0x34] sm:$0xf]
        %v1641 = vld [vmem:[#allocation3 + $0x38] sm:$0xf]
        %v1642 = vld [vmem:[#allocation3 + $0x3c] sm:$0xf]
        %v1643 = vld [vmem:[#allocation3 + $0x40] sm:$0xf]
        %v1644 = vld [vmem:[#allocation3 + $0x44] sm:$0xf]
        %v1645 = vld [vmem:[#allocation3 + $0x48] sm:$0xf]
        %v1646 = vld [vmem:[#allocation3 + $0x4c] sm:$0xf]
        %v1647 = vld [vmem:[#allocation3 + $0x50] sm:$0xf]
        %v1648 = vld [vmem:[#allocation3 + $0x54] sm:$0xf]
        %v1649 = vld [vmem:[#allocation3 + $0x58] sm:$0xf]
        %v1650 = vld [vmem:[#allocation3 + $0x5c] sm:$0xf]
        %v1651 = vld [vmem:[#allocation3 + $0x60] sm:$0xf]
        %v1652 = vld [vmem:[#allocation3 + $0x64] sm:$0xf]
        %v1653 = vld [vmem:[#allocation3 + $0x68] sm:$0xf]
        %v1654 = vld [vmem:[#allocation3 + $0x6c] sm:$0xf]
        %v1655 = vld [vmem:[#allocation3 + $0x70] sm:$0xf]
        %v1656 = vld [vmem:[#allocation3 + $0x74] sm:$0xf]
        %v1657 = vld [vmem:[#allocation3 + $0x78] sm:$0xf]
        %v1658 = vld [vmem:[#allocation3 + $0x7c] sm:$0xf]
        %1660 = vset.pattern.permute.xlu0 0
        %1661 = vperm.xlu0 %1660, %v1359
        %v1662 = vpop.permute.xlu0 %1661
        %1665 = vset.pattern.permute.xlu0 0
        %1666 = vperm.xlu0 %1665, %v1360
        %v1667 = vpop.permute.xlu0 %1666
        %1670 = vset.pattern.permute.xlu0 0
        %1671 = vperm.xlu0 %1670, %v1361
        %v1672 = vpop.permute.xlu0 %1671
        %1675 = vset.pattern.permute.xlu0 0
        %1676 = vperm.xlu0 %1675, %v1362
        %v1677 = vpop.permute.xlu0 %1676
        %v1683 = vunpack.c.l.b16 %v1355
        %v1684 = vunpack.c.h.b16 %v1355
        %v1685 = vunpack.c.l.b16 %v1356
        %v1686 = vunpack.c.h.b16 %v1356
        %v1687 = vunpack.c.l.b16 %v1357
        %v1688 = vunpack.c.h.b16 %v1357
        %v1689 = vunpack.c.l.b16 %v1358
        %v1690 = vunpack.c.h.b16 %v1358
        %v1691 = vpack.c.b16 %v1685, %v1683
        %v1692 = vpack.c.b16 %v1686, %v1684
        %v1693 = vpack.c.b16 %v1689, %v1687
        %v1694 = vpack.c.b16 %v1690, %v1688
        %v1731 = vunpack.c.l.b16 %v1627
        %v1732 = vunpack.c.l.b16 %v1628
        %v1733 = vunpack.c.l.b16 %v1629
        %v1734 = vunpack.c.l.b16 %v1630
        %v1735 = vunpack.c.l.b16 %v1631
        %v1736 = vunpack.c.l.b16 %v1632
        %v1737 = vunpack.c.l.b16 %v1633
        %v1738 = vunpack.c.l.b16 %v1634
        %v1739 = vunpack.c.l.b16 %v1635
        %v1740 = vunpack.c.l.b16 %v1636
        %v1741 = vunpack.c.l.b16 %v1637
        %v1742 = vunpack.c.l.b16 %v1638
        %v1743 = vunpack.c.l.b16 %v1639
        %v1744 = vunpack.c.l.b16 %v1640
        %v1745 = vunpack.c.l.b16 %v1641
        %v1746 = vunpack.c.l.b16 %v1642
        %v1747 = vunpack.c.l.b16 %v1643
        %v1748 = vunpack.c.l.b16 %v1644
        %v1749 = vunpack.c.l.b16 %v1645
        %v1750 = vunpack.c.l.b16 %v1646
        %v1751 = vunpack.c.l.b16 %v1647
        %v1752 = vunpack.c.l.b16 %v1648
        %v1753 = vunpack.c.l.b16 %v1649
        %v1754 = vunpack.c.l.b16 %v1650
        %v1755 = vunpack.c.l.b16 %v1651
        %v1756 = vunpack.c.l.b16 %v1652
        %v1757 = vunpack.c.l.b16 %v1653
        %v1758 = vunpack.c.l.b16 %v1654
        %v1759 = vunpack.c.l.b16 %v1655
        %v1760 = vunpack.c.l.b16 %v1656
        %v1761 = vunpack.c.l.b16 %v1657
        %v1762 = vunpack.c.l.b16 %v1658
        %v1763 = vpack.c.b16 %v1732, %v1731
        %v1764 = vpack.c.b16 %v1734, %v1733
        %v1765 = vpack.c.b16 %v1736, %v1735
        %v1766 = vpack.c.b16 %v1738, %v1737
        %v1767 = vpack.c.b16 %v1740, %v1739
        %v1768 = vpack.c.b16 %v1742, %v1741
        %v1769 = vpack.c.b16 %v1744, %v1743
        %v1770 = vpack.c.b16 %v1746, %v1745
        %v1771 = vpack.c.b16 %v1748, %v1747
        %v1772 = vpack.c.b16 %v1750, %v1749
        %v1773 = vpack.c.b16 %v1752, %v1751
        %v1774 = vpack.c.b16 %v1754, %v1753
        %v1775 = vpack.c.b16 %v1756, %v1755
        %v1776 = vpack.c.b16 %v1758, %v1757
        %v1777 = vpack.c.b16 %v1760, %v1759
        %v1778 = vpack.c.b16 %v1762, %v1761
        %1795 = vmatpush.bf16.msra.mxu0 %v1770
        %1796 = vmatpush.bf16.msra.mxu0 %v1769
        %1797 = vmatpush.bf16.msra.mxu0 %v1768
        %1798 = vmatpush.bf16.msra.mxu0 %v1767
        %1799 = vmatpush.bf16.msra.mxu0 %v1766
        %1800 = vmatpush.bf16.msra.mxu0 %v1765
        %1801 = vmatpush.bf16.msra.mxu0 %v1764
        %1802 = vmatpush.bf16.msra.mxu0 %v1763
        %1803 = vmatmul.bf16.gmra.mxu0 %v1691
        %v1804 = vpop.f32.mrf.mxu0
        %v1805 = vadd.f32 %v1662, %v1804
        %v1806 = vpop.f32.mrf.mxu0
        %v1807 = vadd.f32 %v1667, %v1806
        %1808 = vmatmul.bf16.gmra.mxu0 %v1693
        %v1809 = vpop.f32.mrf.mxu0
        %v1810 = vadd.f32 %v1672, %v1809
        %v1811 = vpop.f32.mrf.mxu0
        %v1812 = vadd.f32 %v1677, %v1811
        %1813 = vdwg.mxu0
        %1814 = vmatpush.bf16.msra.mxu0 %v1778
        %1815 = vmatpush.bf16.msra.mxu0 %v1777
        %1816 = vmatpush.bf16.msra.mxu0 %v1776
        %1817 = vmatpush.bf16.msra.mxu0 %v1775
        %1818 = vmatpush.bf16.msra.mxu0 %v1774
        %1819 = vmatpush.bf16.msra.mxu0 %v1773
        %1820 = vmatpush.bf16.msra.mxu0 %v1772
        %1821 = vmatpush.bf16.msra.mxu0 %v1771
        %1822 = vmatmul.bf16.gmra.mxu0 %v1692
        %v1823 = vpop.f32.mrf.mxu0
        %v1824 = vadd.f32 %v1805, %v1823
        %v1825 = vpop.f32.mrf.mxu0
        %v1826 = vadd.f32 %v1807, %v1825
        %1827 = vmatmul.bf16.gmra.mxu0 %v1694
        %v1828 = vpop.f32.mrf.mxu0
        %v1829 = vadd.f32 %v1810, %v1828
        %v1830 = vpop.f32.mrf.mxu0
        %v1831 = vadd.f32 %v1812, %v1830
        %1832 = vdwg.mxu0
        %v1833 = vmul.f32 %v1824, 0.5
        %v1834 = vmul.f32 %v1826, 0.5
        %v1835 = vmul.f32 %v1829, 0.5
        %v1836 = vmul.f32 %v1831, 0.5
        %v1837 = vmul.f32 %v1824, 0.70710677
        %v1838 = vmul.f32 %v1826, 0.70710677
        %v1839 = vmul.f32 %v1829, 0.70710677
        %v1840 = vmul.f32 %v1831, 0.70710677
        %vm1841 = vcmp.ge.f32.partialorder %v1837, 0.0
        %vm1842 = vcmp.ge.f32.partialorder %v1838, 0.0
        %vm1843 = vcmp.ge.f32.partialorder %v1839, 0.0
        %vm1844 = vcmp.ge.f32.partialorder %v1840, 0.0
        %v1845 = vsel %vm1841, 1.0, -1.0
        %v1846 = vsel %vm1842, 1.0, -1.0
        %v1847 = vsel %vm1843, 1.0, -1.0
        %v1848 = vsel %vm1844, 1.0, -1.0
        %v1849 = vand.u32 2147483647, %v1837
        %v1850 = vand.u32 2147483647, %v1838
        %v1851 = vand.u32 2147483647, %v1839
        %v1852 = vand.u32 2147483647, %v1840
        %v1853 = vmul.f32 %v1849, 0.3275911
        %v1854 = vmul.f32 %v1850, 0.3275911
        %v1855 = vmul.f32 %v1851, 0.3275911
        %v1856 = vmul.f32 %v1852, 0.3275911
        %v1857 = vadd.f32 %v1853, 1.0
        %v1858 = vadd.f32 %v1854, 1.0
        %v1859 = vadd.f32 %v1855, 1.0
        %v1860 = vadd.f32 %v1856, 1.0
        %v1861 = vrcp.pop %v1857
        %v1862 = vrcp.pop %v1858
        %v1863 = vrcp.pop %v1859
        %v1864 = vrcp.pop %v1860
        %v1865 = vmul.f32 %v1861, 1.0614054
        %v1866 = vmul.f32 %v1862, 1.0614054
        %v1867 = vmul.f32 %v1863, 1.0614054
        %v1868 = vmul.f32 %v1864, 1.0614054
        %v1869 = vadd.f32 %v1865, -1.4531521
        %v1870 = vadd.f32 %v1866, -1.4531521
        %v1871 = vadd.f32 %v1867, -1.4531521
        %v1872 = vadd.f32 %v1868, -1.4531521
        %v1873 = vmul.f32 %v1869, %v1861
        %v1874 = vmul.f32 %v1870, %v1862
        %v1875 = vmul.f32 %v1871, %v1863
        %v1876 = vmul.f32 %v1872, %v1864
        %v1877 = vadd.f32 %v1873, 1.4214138
        %v1878 = vadd.f32 %v1874, 1.4214138
        %v1879 = vadd.f32 %v1875, 1.4214138
        %v1880 = vadd.f32 %v1876, 1.4214138
        %v1881 = vmul.f32 %v1877, %v1861
        %v1882 = vmul.f32 %v1878, %v1862
        %v1883 = vmul.f32 %v1879, %v1863
        %v1884 = vmul.f32 %v1880, %v1864
        %v1885 = vadd.f32 %v1881, -0.28449672
        %v1886 = vadd.f32 %v1882, -0.28449672
        %v1887 = vadd.f32 %v1883, -0.28449672
        %v1888 = vadd.f32 %v1884, -0.28449672
        %v1889 = vmul.f32 %v1885, %v1861
        %v1890 = vmul.f32 %v1886, %v1862
        %v1891 = vmul.f32 %v1887, %v1863
        %v1892 = vmul.f32 %v1888, %v1864
        %v1893 = vadd.f32 %v1889, 0.2548296
        %v1894 = vadd.f32 %v1890, 0.2548296
        %v1895 = vadd.f32 %v1891, 0.2548296
        %v1896 = vadd.f32 %v1892, 0.2548296
        %v1897 = vmul.f32 %v1893, %v1861
        %v1898 = vmul.f32 %v1894, %v1862
        %v1899 = vmul.f32 %v1895, %v1863
        %v1900 = vmul.f32 %v1896, %v1864
        %v1901 = vsub.f32 0.0, %v1849
        %v1902 = vsub.f32 0.0, %v1850
        %v1903 = vsub.f32 0.0, %v1851
        %v1904 = vsub.f32 0.0, %v1852
        %v1905 = vmul.f32 %v1901, %v1849
        %v1906 = vmul.f32 %v1902, %v1850
        %v1907 = vmul.f32 %v1903, %v1851
        %v1908 = vmul.f32 %v1904, %v1852
        %v1909 = vmul.f32 %v1905, 1.442695
        %v1910 = vpow.pop %v1909
        %v1911 = vmul.f32 %v1906, 1.442695
        %v1912 = vpow.pop %v1911
        %v1913 = vmul.f32 %v1907, 1.442695
        %v1914 = vpow.pop %v1913
        %v1915 = vmul.f32 %v1908, 1.442695
        %v1916 = vpow.pop %v1915
        %v1917 = vmul.f32 %v1897, %v1910
        %v1918 = vmul.f32 %v1898, %v1912
        %v1919 = vmul.f32 %v1899, %v1914
        %v1920 = vmul.f32 %v1900, %v1916
        %v1921 = vsub.f32 1.0, %v1917
        %v1922 = vsub.f32 1.0, %v1918
        %v1923 = vsub.f32 1.0, %v1919
        %v1924 = vsub.f32 1.0, %v1920
        %v1925 = vmul.f32 %v1845, %v1921
        %v1926 = vmul.f32 %v1846, %v1922
        %v1927 = vmul.f32 %v1847, %v1923
        %v1928 = vmul.f32 %v1848, %v1924
        %v1929 = vadd.f32 %v1925, 1.0
        %v1930 = vadd.f32 %v1926, 1.0
        %v1931 = vadd.f32 %v1927, 1.0
        %v1932 = vadd.f32 %v1928, 1.0
        %v1933 = vmul.f32 %v1833, %v1929
        %v1934 = vmul.f32 %v1834, %v1930
        %v1935 = vmul.f32 %v1835, %v1931
        %v1936 = vmul.f32 %v1836, %v1932
        %v1937 = vld [vmem:[%s5] sm:$0xff]
        %v1938 = vld [vmem:[%s5 + $0x8] sm:$0xff]
        %v1939 = vld [vmem:[%s5 + $0x10] sm:$0xff]
        %v1940 = vld [vmem:[%s5 + $0x18] sm:$0xff]
        %v1941 = vld [vmem:[%s6] sm:$0xff]
        %v1942 = vld [vmem:[%s6 + $0x8] sm:$0xff]
        %v1943 = vld [vmem:[%s6 + $0x10] sm:$0xff]
        %v1944 = vld [vmem:[%s6 + $0x18] sm:$0xff]
        %v1945 = vadd.f32 %v1933, %v1934
        %v1946 = vadd.f32 %v1945, %v1935
        %v1947 = vadd.f32 %v1946, %v1936
        %1948 = vadd.xlane.f32.xlu0 %v1947
        %v1949 = vpop.xlane.xlu0 %1948
        %v1950 = vrot.slane %v1949, 4
        %v1951 = vadd.f32 %v1949, %v1950
        %v1952 = vrot.slane %v1951, 2
        %v1953 = vadd.f32 %v1951, %v1952
        %v1954 = vrot.slane %v1953, 1
        %v1955 = vadd.f32 %v1953, %v1954
        %s1956 = vtos %v1955
        %s1957 = smul.f32 %s1956, 0.00024414063
        %v1958 = vmul.f32 %v1933, %v1933
        %v1959 = vmul.f32 %v1934, %v1934
        %v1960 = vmul.f32 %v1935, %v1935
        %v1961 = vmul.f32 %v1936, %v1936
        %v1962 = vadd.f32 %v1958, %v1959
        %v1963 = vadd.f32 %v1962, %v1960
        %v1964 = vadd.f32 %v1963, %v1961
        %1965 = vadd.xlane.f32.xlu0 %v1964
        %v1966 = vpop.xlane.xlu0 %1965
        %v1967 = vrot.slane %v1966, 4
        %v1968 = vadd.f32 %v1966, %v1967
        %v1969 = vrot.slane %v1968, 2
        %v1970 = vadd.f32 %v1968, %v1969
        %v1971 = vrot.slane %v1970, 1
        %v1972 = vadd.f32 %v1970, %v1971
        %s1973 = vtos %v1972
        %s1974 = smul.f32 %s1973, 0.00024414063
        %s1975 = smul.f32 %s1957, %s1957
        %s1976 = ssub.f32 %s1974, %s1975
        %v1977 = vstv %s1957
        %v1978 = vsub.f32 %v1933, %v1977
        %v1979 = vsub.f32 %v1934, %v1977
        %v1980 = vsub.f32 %v1935, %v1977
        %v1981 = vsub.f32 %v1936, %v1977
        %s1982 = sadd.f32 %s1976, 1e-05
        %v1983 = vstv %s1982
        %v1984 = vrsqrt.pop %v1983
        %v1985 = vmul.f32 %v1984, %v1983
        %v1986 = vmul.f32 %v1985, %v1984
        %v1987 = vmul.f32 0.5, %v1986
        %v1988 = vsub.f32 1.5, %v1987
        %v1989 = vmul.f32 %v1984, %v1988
        %vm1990 = vweird.f32 %v1983
        %vm1991 = vweird.f32 %v1984
        %vm1992 = vmor %vm1990, %vm1991
        %v1993 = vsel %vm1992, %v1984, %v1989
        %s1994 = vtos %v1993
        %v1995 = vstv %s1994
        %v1996 = vmul.f32 %v1978, %v1995
        %v1997 = vmul.f32 %v1979, %v1995
        %v1998 = vmul.f32 %v1980, %v1995
        %v1999 = vmul.f32 %v1981, %v1995
        %v2000 = vmul.f32 %v1996, %v1937
        %v2001 = vmul.f32 %v1997, %v1938
        %v2002 = vmul.f32 %v1998, %v1939
        %v2003 = vmul.f32 %v1999, %v1940
        %v2004 = vadd.f32 %v2000, %v1941
        %v2005 = vadd.f32 %v2001, %v1942
        %v2006 = vadd.f32 %v2002, %v1943
        %v2007 = vadd.f32 %v2003, %v1944
        %s2008 = scalar_lea.vmem %s3, 32
        %v2009 = vld [vmem:[%s2008] sm:$0xff]
        %v2010 = vld [vmem:[%s2008 + $0x8] sm:$0xff]
        %v2011 = vld [vmem:[%s2008 + $0x10] sm:$0xff]
        %v2012 = vld [vmem:[%s2008 + $0x18] sm:$0xff]
        %s2013 = scalar_lea.vmem %s4, 32
        %v2014 = vld [vmem:[%s2013] sm:$0xff]
        %v2015 = vld [vmem:[%s2013 + $0x8] sm:$0xff]
        %v2016 = vld [vmem:[%s2013 + $0x10] sm:$0xff]
        %v2017 = vld [vmem:[%s2013 + $0x18] sm:$0xff]
        %v2018 = vpack.c.bf16 %v2004, %v2004
        %v2019 = vpack.c.bf16 %v2005, %v2005
        %v2020 = vpack.c.bf16 %v2006, %v2006
        %v2021 = vpack.c.bf16 %v2007, %v2007
        %2026 = vrot.lane.b32.xlu0 %v2018, 3
        %v2027 = vpop.permute.xlu0 %2026
        %2028 = vrot.lane.b32.xlu0 %v2019, 3
        %v2029 = vpop.permute.xlu0 %2028
        %2030 = vrot.lane.b32.xlu0 %v2020, 3
        %v2031 = vpop.permute.xlu0 %2030
        %2032 = vrot.lane.b32.xlu0 %v2021, 3
        %v2033 = vpop.permute.xlu0 %2032
        %v2034 = vrot.slane %v2027, 4
        %v2035 = vrot.slane %v2029, 4
        %v2036 = vrot.slane %v2031, 4
        %v2037 = vrot.slane %v2033, 4
        %v2038 = vsel %vm464, %v2034, %v2027
        %v2039 = vsel %vm464, %v2035, %v2029
        %v2040 = vsel %vm464, %v2036, %v2031
        %v2041 = vsel %vm464, %v2037, %v2033
        %2046 = vst.msk [vmem:[#allocation2] sm:$0xff] %vm483, %v2038
        %2047 = vst.msk [vmem:[#allocation2 + $0x8] sm:$0xff] %vm483, %v2039
        %2048 = vst.msk [vmem:[#allocation2 + $0x10] sm:$0xff] %vm483, %v2040
        %2049 = vst.msk [vmem:[#allocation2 + $0x18] sm:$0xff] %vm483, %v2041
        %v2050 = vld [vmem:[#allocation2] sm:$0xf]
        %v2051 = vld [vmem:[#allocation2 + $0x8] sm:$0xf]
        %v2052 = vld [vmem:[#allocation2 + $0x10] sm:$0xf]
        %v2053 = vld [vmem:[#allocation2 + $0x18] sm:$0xf]
        %2054 = vst [vmem:[#allocation3] sm:$0xf] %v2050
        %2055 = vst [vmem:[#allocation3 + $0x4] sm:$0xf] %v2051
        %2056 = vst [vmem:[#allocation3 + $0x8] sm:$0xf] %v2052
        %2057 = vst [vmem:[#allocation3 + $0xc] sm:$0xf] %v2053
        %v2058 = vld [vmem:[#allocation2] sm:$0xff]
        %v2059 = vld [vmem:[#allocation2 + $0x8] sm:$0xff]
        %v2060 = vld [vmem:[#allocation2 + $0x10] sm:$0xff]
        %v2061 = vld [vmem:[#allocation2 + $0x18] sm:$0xff]
        %2066 = vrot.lane.b32.xlu0 %v2058, 127
        %v2067 = vpop.permute.xlu0 %2066
        %2068 = vrot.lane.b32.xlu0 %v2059, 127
        %v2069 = vpop.permute.xlu0 %2068
        %2070 = vrot.lane.b32.xlu0 %v2060, 127
        %v2071 = vpop.permute.xlu0 %2070
        %2072 = vrot.lane.b32.xlu0 %v2061, 127
        %v2073 = vpop.permute.xlu0 %2072
        %v2074 = vrot.slane %v2067, 4
        %v2075 = vrot.slane %v2069, 4
        %v2076 = vrot.slane %v2071, 4
        %v2077 = vrot.slane %v2073, 4
        %v2078 = vsel %vm548, %v2067, %v2074
        %v2079 = vsel %vm548, %v2069, %v2075
        %v2080 = vsel %vm548, %v2071, %v2076
        %v2081 = vsel %vm548, %v2073, %v2077
        %2086 = vst [vmem:[#allocation3 + $0x10] sm:$0xf] %v2078
        %2087 = vst [vmem:[#allocation3 + $0x14] sm:$0xf] %v2079
        %2088 = vst [vmem:[#allocation3 + $0x18] sm:$0xf] %v2080
        %2089 = vst [vmem:[#allocation3 + $0x1c] sm:$0xf] %v2081
        %v2090 = vld [vmem:[#allocation2] sm:$0xff]
        %v2091 = vld [vmem:[#allocation2 + $0x8] sm:$0xff]
        %v2092 = vld [vmem:[#allocation2 + $0x10] sm:$0xff]
        %v2093 = vld [vmem:[#allocation2 + $0x18] sm:$0xff]
        %2098 = vrot.lane.b32.xlu0 %v2090, 126
        %v2099 = vpop.permute.xlu0 %2098
        %2100 = vrot.lane.b32.xlu0 %v2091, 126
        %v2101 = vpop.permute.xlu0 %2100
        %2102 = vrot.lane.b32.xlu0 %v2092, 126
        %v2103 = vpop.permute.xlu0 %2102
        %2104 = vrot.lane.b32.xlu0 %v2093, 126
        %v2105 = vpop.permute.xlu0 %2104
        %v2106 = vrot.slane %v2099, 4
        %v2107 = vrot.slane %v2101, 4
        %v2108 = vrot.slane %v2103, 4
        %v2109 = vrot.slane %v2105, 4
        %v2110 = vsel %vm613, %v2099, %v2106
        %v2111 = vsel %vm613, %v2101, %v2107
        %v2112 = vsel %vm613, %v2103, %v2108
        %v2113 = vsel %vm613, %v2105, %v2109
        %2118 = vst [vmem:[#allocation3 + $0x20] sm:$0xf] %v2110
        %2119 = vst [vmem:[#allocation3 + $0x24] sm:$0xf] %v2111
        %2120 = vst [vmem:[#allocation3 + $0x28] sm:$0xf] %v2112
        %2121 = vst [vmem:[#allocation3 + $0x2c] sm:$0xf] %v2113
        %v2122 = vld [vmem:[#allocation2] sm:$0xff]
        %v2123 = vld [vmem:[#allocation2 + $0x8] sm:$0xff]
        %v2124 = vld [vmem:[#allocation2 + $0x10] sm:$0xff]
        %v2125 = vld [vmem:[#allocation2 + $0x18] sm:$0xff]
        %2130 = vrot.lane.b32.xlu0 %v2122, 125
        %v2131 = vpop.permute.xlu0 %2130
        %2132 = vrot.lane.b32.xlu0 %v2123, 125
        %v2133 = vpop.permute.xlu0 %2132
        %2134 = vrot.lane.b32.xlu0 %v2124, 125
        %v2135 = vpop.permute.xlu0 %2134
        %2136 = vrot.lane.b32.xlu0 %v2125, 125
        %v2137 = vpop.permute.xlu0 %2136
        %v2138 = vrot.slane %v2131, 4
        %v2139 = vrot.slane %v2133, 4
        %v2140 = vrot.slane %v2135, 4
        %v2141 = vrot.slane %v2137, 4
        %v2142 = vsel %vm678, %v2131, %v2138
        %v2143 = vsel %vm678, %v2133, %v2139
        %v2144 = vsel %vm678, %v2135, %v2140
        %v2145 = vsel %vm678, %v2137, %v2141
        %2150 = vst [vmem:[#allocation3 + $0x30] sm:$0xf] %v2142
        %2151 = vst [vmem:[#allocation3 + $0x34] sm:$0xf] %v2143
        %2152 = vst [vmem:[#allocation3 + $0x38] sm:$0xf] %v2144
        %2153 = vst [vmem:[#allocation3 + $0x3c] sm:$0xf] %v2145
        %v2154 = vld [vmem:[#allocation2] sm:$0xff]
        %v2155 = vld [vmem:[#allocation2 + $0x8] sm:$0xff]
        %v2156 = vld [vmem:[#allocation2 + $0x10] sm:$0xff]
        %v2157 = vld [vmem:[#allocation2 + $0x18] sm:$0xff]
        %2162 = vrot.lane.b32.xlu0 %v2154, 124
        %v2163 = vpop.permute.xlu0 %2162
        %2164 = vrot.lane.b32.xlu0 %v2155, 124
        %v2165 = vpop.permute.xlu0 %2164
        %2166 = vrot.lane.b32.xlu0 %v2156, 124
        %v2167 = vpop.permute.xlu0 %2166
        %2168 = vrot.lane.b32.xlu0 %v2157, 124
        %v2169 = vpop.permute.xlu0 %2168
        %v2170 = vrot.slane %v2163, 4
        %v2171 = vrot.slane %v2165, 4
        %v2172 = vrot.slane %v2167, 4
        %v2173 = vrot.slane %v2169, 4
        %v2174 = vsel %vm743, %v2163, %v2170
        %v2175 = vsel %vm743, %v2165, %v2171
        %v2176 = vsel %vm743, %v2167, %v2172
        %v2177 = vsel %vm743, %v2169, %v2173
        %2182 = vst [vmem:[#allocation3 + $0x40] sm:$0xf] %v2174
        %2183 = vst [vmem:[#allocation3 + $0x44] sm:$0xf] %v2175
        %2184 = vst [vmem:[#allocation3 + $0x48] sm:$0xf] %v2176
        %2185 = vst [vmem:[#allocation3 + $0x4c] sm:$0xf] %v2177
        %v2186 = vld [vmem:[#allocation2] sm:$0xff]
        %v2187 = vld [vmem:[#allocation2 + $0x8] sm:$0xff]
        %v2188 = vld [vmem:[#allocation2 + $0x10] sm:$0xff]
        %v2189 = vld [vmem:[#allocation2 + $0x18] sm:$0xff]
        %2194 = vrot.lane.b32.xlu0 %v2186, 123
        %v2195 = vpop.permute.xlu0 %2194
        %2196 = vrot.lane.b32.xlu0 %v2187, 123
        %v2197 = vpop.permute.xlu0 %2196
        %2198 = vrot.lane.b32.xlu0 %v2188, 123
        %v2199 = vpop.permute.xlu0 %2198
        %2200 = vrot.lane.b32.xlu0 %v2189, 123
        %v2201 = vpop.permute.xlu0 %2200
        %v2202 = vrot.slane %v2195, 4
        %v2203 = vrot.slane %v2197, 4
        %v2204 = vrot.slane %v2199, 4
        %v2205 = vrot.slane %v2201, 4
        %v2206 = vsel %vm808, %v2195, %v2202
        %v2207 = vsel %vm808, %v2197, %v2203
        %v2208 = vsel %vm808, %v2199, %v2204
        %v2209 = vsel %vm808, %v2201, %v2205
        %2214 = vst [vmem:[#allocation3 + $0x50] sm:$0xf] %v2206
        %2215 = vst [vmem:[#allocation3 + $0x54] sm:$0xf] %v2207
        %2216 = vst [vmem:[#allocation3 + $0x58] sm:$0xf] %v2208
        %2217 = vst [vmem:[#allocation3 + $0x5c] sm:$0xf] %v2209
        %v2218 = vld [vmem:[#allocation2] sm:$0xff]
        %v2219 = vld [vmem:[#allocation2 + $0x8] sm:$0xff]
        %v2220 = vld [vmem:[#allocation2 + $0x10] sm:$0xff]
        %v2221 = vld [vmem:[#allocation2 + $0x18] sm:$0xff]
        %2226 = vrot.lane.b32.xlu0 %v2218, 122
        %v2227 = vpop.permute.xlu0 %2226
        %2228 = vrot.lane.b32.xlu0 %v2219, 122
        %v2229 = vpop.permute.xlu0 %2228
        %2230 = vrot.lane.b32.xlu0 %v2220, 122
        %v2231 = vpop.permute.xlu0 %2230
        %2232 = vrot.lane.b32.xlu0 %v2221, 122
        %v2233 = vpop.permute.xlu0 %2232
        %v2234 = vrot.slane %v2227, 4
        %v2235 = vrot.slane %v2229, 4
        %v2236 = vrot.slane %v2231, 4
        %v2237 = vrot.slane %v2233, 4
        %v2238 = vsel %vm873, %v2227, %v2234
        %v2239 = vsel %vm873, %v2229, %v2235
        %v2240 = vsel %vm873, %v2231, %v2236
        %v2241 = vsel %vm873, %v2233, %v2237
        %2246 = vst [vmem:[#allocation3 + $0x60] sm:$0xf] %v2238
        %2247 = vst [vmem:[#allocation3 + $0x64] sm:$0xf] %v2239
        %2248 = vst [vmem:[#allocation3 + $0x68] sm:$0xf] %v2240
        %2249 = vst [vmem:[#allocation3 + $0x6c] sm:$0xf] %v2241
        %v2250 = vld [vmem:[#allocation2] sm:$0xff]
        %v2251 = vld [vmem:[#allocation2 + $0x8] sm:$0xff]
        %v2252 = vld [vmem:[#allocation2 + $0x10] sm:$0xff]
        %v2253 = vld [vmem:[#allocation2 + $0x18] sm:$0xff]
        %2258 = vrot.lane.b32.xlu0 %v2250, 121
        %v2259 = vpop.permute.xlu0 %2258
        %2260 = vrot.lane.b32.xlu0 %v2251, 121
        %v2261 = vpop.permute.xlu0 %2260
        %2262 = vrot.lane.b32.xlu0 %v2252, 121
        %v2263 = vpop.permute.xlu0 %2262
        %2264 = vrot.lane.b32.xlu0 %v2253, 121
        %v2265 = vpop.permute.xlu0 %2264
        %v2266 = vrot.slane %v2259, 4
        %v2267 = vrot.slane %v2261, 4
        %v2268 = vrot.slane %v2263, 4
        %v2269 = vrot.slane %v2265, 4
        %v2270 = vsel %vm938, %v2259, %v2266
        %v2271 = vsel %vm938, %v2261, %v2267
        %v2272 = vsel %vm938, %v2263, %v2268
        %v2273 = vsel %vm938, %v2265, %v2269
        %2278 = vst [vmem:[#allocation3 + $0x70] sm:$0xf] %v2270
        %2279 = vst [vmem:[#allocation3 + $0x74] sm:$0xf] %v2271
        %2280 = vst [vmem:[#allocation3 + $0x78] sm:$0xf] %v2272
        %2281 = vst [vmem:[#allocation3 + $0x7c] sm:$0xf] %v2273
        %v2282 = vld [vmem:[#allocation3] sm:$0xf]
        %v2283 = vld [vmem:[#allocation3 + $0x4] sm:$0xf]
        %v2284 = vld [vmem:[#allocation3 + $0x8] sm:$0xf]
        %v2285 = vld [vmem:[#allocation3 + $0xc] sm:$0xf]
        %v2286 = vld [vmem:[#allocation3 + $0x10] sm:$0xf]
        %v2287 = vld [vmem:[#allocation3 + $0x14] sm:$0xf]
        %v2288 = vld [vmem:[#allocation3 + $0x18] sm:$0xf]
        %v2289 = vld [vmem:[#allocation3 + $0x1c] sm:$0xf]
        %v2290 = vld [vmem:[#allocation3 + $0x20] sm:$0xf]
        %v2291 = vld [vmem:[#allocation3 + $0x24] sm:$0xf]
        %v2292 = vld [vmem:[#allocation3 + $0x28] sm:$0xf]
        %v2293 = vld [vmem:[#allocation3 + $0x2c] sm:$0xf]
        %v2294 = vld [vmem:[#allocation3 + $0x30] sm:$0xf]
        %v2295 = vld [vmem:[#allocation3 + $0x34] sm:$0xf]
        %v2296 = vld [vmem:[#allocation3 + $0x38] sm:$0xf]
        %v2297 = vld [vmem:[#allocation3 + $0x3c] sm:$0xf]
        %v2298 = vld [vmem:[#allocation3 + $0x40] sm:$0xf]
        %v2299 = vld [vmem:[#allocation3 + $0x44] sm:$0xf]
        %v2300 = vld [vmem:[#allocation3 + $0x48] sm:$0xf]
        %v2301 = vld [vmem:[#allocation3 + $0x4c] sm:$0xf]
        %v2302 = vld [vmem:[#allocation3 + $0x50] sm:$0xf]
        %v2303 = vld [vmem:[#allocation3 + $0x54] sm:$0xf]
        %v2304 = vld [vmem:[#allocation3 + $0x58] sm:$0xf]
        %v2305 = vld [vmem:[#allocation3 + $0x5c] sm:$0xf]
        %v2306 = vld [vmem:[#allocation3 + $0x60] sm:$0xf]
        %v2307 = vld [vmem:[#allocation3 + $0x64] sm:$0xf]
        %v2308 = vld [vmem:[#allocation3 + $0x68] sm:$0xf]
        %v2309 = vld [vmem:[#allocation3 + $0x6c] sm:$0xf]
        %v2310 = vld [vmem:[#allocation3 + $0x70] sm:$0xf]
        %v2311 = vld [vmem:[#allocation3 + $0x74] sm:$0xf]
        %v2312 = vld [vmem:[#allocation3 + $0x78] sm:$0xf]
        %v2313 = vld [vmem:[#allocation3 + $0x7c] sm:$0xf]
        %2315 = vset.pattern.permute.xlu0 0
        %2316 = vperm.xlu0 %2315, %v2014
        %v2317 = vpop.permute.xlu0 %2316
        %2320 = vset.pattern.permute.xlu0 0
        %2321 = vperm.xlu0 %2320, %v2015
        %v2322 = vpop.permute.xlu0 %2321
        %2325 = vset.pattern.permute.xlu0 0
        %2326 = vperm.xlu0 %2325, %v2016
        %v2327 = vpop.permute.xlu0 %2326
        %2330 = vset.pattern.permute.xlu0 0
        %2331 = vperm.xlu0 %2330, %v2017
        %v2332 = vpop.permute.xlu0 %2331
        %v2338 = vunpack.c.l.b16 %v2009
        %v2339 = vunpack.c.h.b16 %v2009
        %v2340 = vunpack.c.l.b16 %v2010
        %v2341 = vunpack.c.h.b16 %v2010
        %v2342 = vunpack.c.l.b16 %v2011
        %v2343 = vunpack.c.h.b16 %v2011
        %v2344 = vunpack.c.l.b16 %v2012
        %v2345 = vunpack.c.h.b16 %v2012
        %v2346 = vpack.c.b16 %v2340, %v2338
        %v2347 = vpack.c.b16 %v2341, %v2339
        %v2348 = vpack.c.b16 %v2344, %v2342
        %v2349 = vpack.c.b16 %v2345, %v2343
        %v2386 = vunpack.c.l.b16 %v2282
        %v2387 = vunpack.c.l.b16 %v2283
        %v2388 = vunpack.c.l.b16 %v2284
        %v2389 = vunpack.c.l.b16 %v2285
        %v2390 = vunpack.c.l.b16 %v2286
        %v2391 = vunpack.c.l.b16 %v2287
        %v2392 = vunpack.c.l.b16 %v2288
        %v2393 = vunpack.c.l.b16 %v2289
        %v2394 = vunpack.c.l.b16 %v2290
        %v2395 = vunpack.c.l.b16 %v2291
        %v2396 = vunpack.c.l.b16 %v2292
        %v2397 = vunpack.c.l.b16 %v2293
        %v2398 = vunpack.c.l.b16 %v2294
        %v2399 = vunpack.c.l.b16 %v2295
        %v2400 = vunpack.c.l.b16 %v2296
        %v2401 = vunpack.c.l.b16 %v2297
        %v2402 = vunpack.c.l.b16 %v2298
        %v2403 = vunpack.c.l.b16 %v2299
        %v2404 = vunpack.c.l.b16 %v2300
        %v2405 = vunpack.c.l.b16 %v2301
        %v2406 = vunpack.c.l.b16 %v2302
        %v2407 = vunpack.c.l.b16 %v2303
        %v2408 = vunpack.c.l.b16 %v2304
        %v2409 = vunpack.c.l.b16 %v2305
        %v2410 = vunpack.c.l.b16 %v2306
        %v2411 = vunpack.c.l.b16 %v2307
        %v2412 = vunpack.c.l.b16 %v2308
        %v2413 = vunpack.c.l.b16 %v2309
        %v2414 = vunpack.c.l.b16 %v2310
        %v2415 = vunpack.c.l.b16 %v2311
        %v2416 = vunpack.c.l.b16 %v2312
        %v2417 = vunpack.c.l.b16 %v2313
        %v2418 = vpack.c.b16 %v2387, %v2386
        %v2419 = vpack.c.b16 %v2389, %v2388
        %v2420 = vpack.c.b16 %v2391, %v2390
        %v2421 = vpack.c.b16 %v2393, %v2392
        %v2422 = vpack.c.b16 %v2395, %v2394
        %v2423 = vpack.c.b16 %v2397, %v2396
        %v2424 = vpack.c.b16 %v2399, %v2398
        %v2425 = vpack.c.b16 %v2401, %v2400
        %v2426 = vpack.c.b16 %v2403, %v2402
        %v2427 = vpack.c.b16 %v2405, %v2404
        %v2428 = vpack.c.b16 %v2407, %v2406
        %v2429 = vpack.c.b16 %v2409, %v2408
        %v2430 = vpack.c.b16 %v2411, %v2410
        %v2431 = vpack.c.b16 %v2413, %v2412
        %v2432 = vpack.c.b16 %v2415, %v2414
        %v2433 = vpack.c.b16 %v2417, %v2416
        %2450 = vmatpush.bf16.msra.mxu0 %v2425
        %2451 = vmatpush.bf16.msra.mxu0 %v2424
        %2452 = vmatpush.bf16.msra.mxu0 %v2423
        %2453 = vmatpush.bf16.msra.mxu0 %v2422
        %2454 = vmatpush.bf16.msra.mxu0 %v2421
        %2455 = vmatpush.bf16.msra.mxu0 %v2420
        %2456 = vmatpush.bf16.msra.mxu0 %v2419
        %2457 = vmatpush.bf16.msra.mxu0 %v2418
        %2458 = vmatmul.bf16.gmra.mxu0 %v2346
        %v2459 = vpop.f32.mrf.mxu0
        %v2460 = vadd.f32 %v2317, %v2459
        %v2461 = vpop.f32.mrf.mxu0
        %v2462 = vadd.f32 %v2322, %v2461
        %2463 = vmatmul.bf16.gmra.mxu0 %v2348
        %v2464 = vpop.f32.mrf.mxu0
        %v2465 = vadd.f32 %v2327, %v2464
        %v2466 = vpop.f32.mrf.mxu0
        %v2467 = vadd.f32 %v2332, %v2466
        %2468 = vdwg.mxu0
        %2469 = vmatpush.bf16.msra.mxu0 %v2433
        %2470 = vmatpush.bf16.msra.mxu0 %v2432
        %2471 = vmatpush.bf16.msra.mxu0 %v2431
        %2472 = vmatpush.bf16.msra.mxu0 %v2430
        %2473 = vmatpush.bf16.msra.mxu0 %v2429
        %2474 = vmatpush.bf16.msra.mxu0 %v2428
        %2475 = vmatpush.bf16.msra.mxu0 %v2427
        %2476 = vmatpush.bf16.msra.mxu0 %v2426
        %2477 = vmatmul.bf16.gmra.mxu0 %v2347
        %v2478 = vpop.f32.mrf.mxu0
        %v2479 = vadd.f32 %v2460, %v2478
        %v2480 = vpop.f32.mrf.mxu0
        %v2481 = vadd.f32 %v2462, %v2480
        %2482 = vmatmul.bf16.gmra.mxu0 %v2349
        %v2483 = vpop.f32.mrf.mxu0
        %v2484 = vadd.f32 %v2465, %v2483
        %v2485 = vpop.f32.mrf.mxu0
        %v2486 = vadd.f32 %v2467, %v2485
        %2487 = vdwg.mxu0
        %v2488 = vmul.f32 %v2479, 0.5
        %v2489 = vmul.f32 %v2481, 0.5
        %v2490 = vmul.f32 %v2484, 0.5
        %v2491 = vmul.f32 %v2486, 0.5
        %v2492 = vmul.f32 %v2479, 0.70710677
        %v2493 = vmul.f32 %v2481, 0.70710677
        %v2494 = vmul.f32 %v2484, 0.70710677
        %v2495 = vmul.f32 %v2486, 0.70710677
        %vm2496 = vcmp.ge.f32.partialorder %v2492, 0.0
        %vm2497 = vcmp.ge.f32.partialorder %v2493, 0.0
        %vm2498 = vcmp.ge.f32.partialorder %v2494, 0.0
        %vm2499 = vcmp.ge.f32.partialorder %v2495, 0.0
        %v2500 = vsel %vm2496, 1.0, -1.0
        %v2501 = vsel %vm2497, 1.0, -1.0
        %v2502 = vsel %vm2498, 1.0, -1.0
        %v2503 = vsel %vm2499, 1.0, -1.0
        %v2504 = vand.u32 2147483647, %v2492
        %v2505 = vand.u32 2147483647, %v2493
        %v2506 = vand.u32 2147483647, %v2494
        %v2507 = vand.u32 2147483647, %v2495
        %v2508 = vmul.f32 %v2504, 0.3275911
        %v2509 = vmul.f32 %v2505, 0.3275911
        %v2510 = vmul.f32 %v2506, 0.3275911
        %v2511 = vmul.f32 %v2507, 0.3275911
        %v2512 = vadd.f32 %v2508, 1.0
        %v2513 = vadd.f32 %v2509, 1.0
        %v2514 = vadd.f32 %v2510, 1.0
        %v2515 = vadd.f32 %v2511, 1.0
        %v2516 = vrcp.pop %v2512
        %v2517 = vrcp.pop %v2513
        %v2518 = vrcp.pop %v2514
        %v2519 = vrcp.pop %v2515
        %v2520 = vmul.f32 %v2516, 1.0614054
        %v2521 = vmul.f32 %v2517, 1.0614054
        %v2522 = vmul.f32 %v2518, 1.0614054
        %v2523 = vmul.f32 %v2519, 1.0614054
        %v2524 = vadd.f32 %v2520, -1.4531521
        %v2525 = vadd.f32 %v2521, -1.4531521
        %v2526 = vadd.f32 %v2522, -1.4531521
        %v2527 = vadd.f32 %v2523, -1.4531521
        %v2528 = vmul.f32 %v2524, %v2516
        %v2529 = vmul.f32 %v2525, %v2517
        %v2530 = vmul.f32 %v2526, %v2518
        %v2531 = vmul.f32 %v2527, %v2519
        %v2532 = vadd.f32 %v2528, 1.4214138
        %v2533 = vadd.f32 %v2529, 1.4214138
        %v2534 = vadd.f32 %v2530, 1.4214138
        %v2535 = vadd.f32 %v2531, 1.4214138
        %v2536 = vmul.f32 %v2532, %v2516
        %v2537 = vmul.f32 %v2533, %v2517
        %v2538 = vmul.f32 %v2534, %v2518
        %v2539 = vmul.f32 %v2535, %v2519
        %v2540 = vadd.f32 %v2536, -0.28449672
        %v2541 = vadd.f32 %v2537, -0.28449672
        %v2542 = vadd.f32 %v2538, -0.28449672
        %v2543 = vadd.f32 %v2539, -0.28449672
        %v2544 = vmul.f32 %v2540, %v2516
        %v2545 = vmul.f32 %v2541, %v2517
        %v2546 = vmul.f32 %v2542, %v2518
        %v2547 = vmul.f32 %v2543, %v2519
        %v2548 = vadd.f32 %v2544, 0.2548296
        %v2549 = vadd.f32 %v2545, 0.2548296
        %v2550 = vadd.f32 %v2546, 0.2548296
        %v2551 = vadd.f32 %v2547, 0.2548296
        %v2552 = vmul.f32 %v2548, %v2516
        %v2553 = vmul.f32 %v2549, %v2517
        %v2554 = vmul.f32 %v2550, %v2518
        %v2555 = vmul.f32 %v2551, %v2519
        %v2556 = vsub.f32 0.0, %v2504
        %v2557 = vsub.f32 0.0, %v2505
        %v2558 = vsub.f32 0.0, %v2506
        %v2559 = vsub.f32 0.0, %v2507
        %v2560 = vmul.f32 %v2556, %v2504
        %v2561 = vmul.f32 %v2557, %v2505
        %v2562 = vmul.f32 %v2558, %v2506
        %v2563 = vmul.f32 %v2559, %v2507
        %v2564 = vmul.f32 %v2560, 1.442695
        %v2565 = vpow.pop %v2564
        %v2566 = vmul.f32 %v2561, 1.442695
        %v2567 = vpow.pop %v2566
        %v2568 = vmul.f32 %v2562, 1.442695
        %v2569 = vpow.pop %v2568
        %v2570 = vmul.f32 %v2563, 1.442695
        %v2571 = vpow.pop %v2570
        %v2572 = vmul.f32 %v2552, %v2565
        %v2573 = vmul.f32 %v2553, %v2567
        %v2574 = vmul.f32 %v2554, %v2569
        %v2575 = vmul.f32 %v2555, %v2571
        %v2576 = vsub.f32 1.0, %v2572
        %v2577 = vsub.f32 1.0, %v2573
        %v2578 = vsub.f32 1.0, %v2574
        %v2579 = vsub.f32 1.0, %v2575
        %v2580 = vmul.f32 %v2500, %v2576
        %v2581 = vmul.f32 %v2501, %v2577
        %v2582 = vmul.f32 %v2502, %v2578
        %v2583 = vmul.f32 %v2503, %v2579
        %v2584 = vadd.f32 %v2580, 1.0
        %v2585 = vadd.f32 %v2581, 1.0
        %v2586 = vadd.f32 %v2582, 1.0
        %v2587 = vadd.f32 %v2583, 1.0
        %v2588 = vmul.f32 %v2488, %v2584
        %v2589 = vmul.f32 %v2489, %v2585
        %v2590 = vmul.f32 %v2490, %v2586
        %v2591 = vmul.f32 %v2491, %v2587
        %s2592 = scalar_lea.vmem %s5, 32
        %v2593 = vld [vmem:[%s2592] sm:$0xff]
        %v2594 = vld [vmem:[%s2592 + $0x8] sm:$0xff]
        %v2595 = vld [vmem:[%s2592 + $0x10] sm:$0xff]
        %v2596 = vld [vmem:[%s2592 + $0x18] sm:$0xff]
        %s2597 = scalar_lea.vmem %s6, 32
        %v2598 = vld [vmem:[%s2597] sm:$0xff]
        %v2599 = vld [vmem:[%s2597 + $0x8] sm:$0xff]
        %v2600 = vld [vmem:[%s2597 + $0x10] sm:$0xff]
        %v2601 = vld [vmem:[%s2597 + $0x18] sm:$0xff]
        %v2602 = vadd.f32 %v2588, %v2589
        %v2603 = vadd.f32 %v2602, %v2590
        %v2604 = vadd.f32 %v2603, %v2591
        %2605 = vadd.xlane.f32.xlu0 %v2604
        %v2606 = vpop.xlane.xlu0 %2605
        %v2607 = vrot.slane %v2606, 4
        %v2608 = vadd.f32 %v2606, %v2607
        %v2609 = vrot.slane %v2608, 2
        %v2610 = vadd.f32 %v2608, %v2609
        %v2611 = vrot.slane %v2610, 1
        %v2612 = vadd.f32 %v2610, %v2611
        %s2613 = vtos %v2612
        %s2614 = smul.f32 %s2613, 0.00024414063
        %v2615 = vmul.f32 %v2588, %v2588
        %v2616 = vmul.f32 %v2589, %v2589
        %v2617 = vmul.f32 %v2590, %v2590
        %v2618 = vmul.f32 %v2591, %v2591
        %v2619 = vadd.f32 %v2615, %v2616
        %v2620 = vadd.f32 %v2619, %v2617
        %v2621 = vadd.f32 %v2620, %v2618
        %2622 = vadd.xlane.f32.xlu0 %v2621
        %v2623 = vpop.xlane.xlu0 %2622
        %v2624 = vrot.slane %v2623, 4
        %v2625 = vadd.f32 %v2623, %v2624
        %v2626 = vrot.slane %v2625, 2
        %v2627 = vadd.f32 %v2625, %v2626
        %v2628 = vrot.slane %v2627, 1
        %v2629 = vadd.f32 %v2627, %v2628
        %s2630 = vtos %v2629
        %s2631 = smul.f32 %s2630, 0.00024414063
        %s2632 = smul.f32 %s2614, %s2614
        %s2633 = ssub.f32 %s2631, %s2632
        %v2634 = vstv %s2614
        %v2635 = vsub.f32 %v2588, %v2634
        %v2636 = vsub.f32 %v2589, %v2634
        %v2637 = vsub.f32 %v2590, %v2634
        %v2638 = vsub.f32 %v2591, %v2634
        %s2639 = sadd.f32 %s2633, 1e-05
        %v2640 = vstv %s2639
        %v2641 = vrsqrt.pop %v2640
        %v2642 = vmul.f32 %v2641, %v2640
        %v2643 = vmul.f32 %v2642, %v2641
        %v2644 = vmul.f32 0.5, %v2643
        %v2645 = vsub.f32 1.5, %v2644
        %v2646 = vmul.f32 %v2641, %v2645
        %vm2647 = vweird.f32 %v2640
        %vm2648 = vweird.f32 %v2641
        %vm2649 = vmor %vm2647, %vm2648
        %v2650 = vsel %vm2649, %v2641, %v2646
        %s2651 = vtos %v2650
        %v2652 = vstv %s2651
        %v2653 = vmul.f32 %v2635, %v2652
        %v2654 = vmul.f32 %v2636, %v2652
        %v2655 = vmul.f32 %v2637, %v2652
        %v2656 = vmul.f32 %v2638, %v2652
        %v2657 = vmul.f32 %v2653, %v2593
        %v2658 = vmul.f32 %v2654, %v2594
        %v2659 = vmul.f32 %v2655, %v2595
        %v2660 = vmul.f32 %v2656, %v2596
        %v2661 = vadd.f32 %v2657, %v2598
        %v2662 = vadd.f32 %v2658, %v2599
        %v2663 = vadd.f32 %v2659, %v2600
        %v2664 = vadd.f32 %v2660, %v2601
        %v2665 = vld [vmem:[%s7] sm:$0xf]
        %v2666 = vld [vmem:[%s7 + $0x4] sm:$0xf]
        %v2667 = vld [vmem:[%s7 + $0x8] sm:$0xf]
        %v2668 = vld [vmem:[%s7 + $0xc] sm:$0xf]
        %v2669 = vpack.c.bf16 %v2662, %v2661
        %v2670 = vpack.c.bf16 %v2664, %v2663
        %v2671 = vld [vmem:[%s8] sm:$0xff]
        %v2672 = vld [vmem:[%s8 + $0x8] sm:$0xff]
        %v2673 = vld [vmem:[%s8 + $0x10] sm:$0xff]
        %v2674 = vld [vmem:[%s8 + $0x18] sm:$0xff]
        %2676 = vset.pattern.permute.xlu0 0
        %2677 = vperm.xlu0 %2676, %v2671
        %v2678 = vpop.permute.xlu0 %2677
        %2681 = vset.pattern.permute.xlu0 0
        %2682 = vperm.xlu0 %2681, %v2672
        %v2683 = vpop.permute.xlu0 %2682
        %2686 = vset.pattern.permute.xlu0 0
        %2687 = vperm.xlu0 %2686, %v2673
        %v2688 = vpop.permute.xlu0 %2687
        %2691 = vset.pattern.permute.xlu0 0
        %2692 = vperm.xlu0 %2691, %v2674
        %v2693 = vpop.permute.xlu0 %2692
        %v2699 = vunpack.c.l.b16 %v2665
        %v2700 = vunpack.c.l.b16 %v2666
        %v2701 = vunpack.c.l.b16 %v2667
        %v2702 = vunpack.c.l.b16 %v2668
        %v2703 = vpack.c.b16 %v2700, %v2699
        %v2704 = vpack.c.b16 %v2702, %v2701
        %vm2705 = vcmask 261120
        %v2707 = vsel %vm2705, %v2703, 0
        %v2710 = vsel %vm2705, %v2704, 0
        %2712 = vmatpush.bf16.msra.mxu0 0
        %2713 = vmatpush.bf16.msra.mxu0 0
        %2714 = vmatpush.bf16.msra.mxu0 0
        %2715 = vmatpush.bf16.msra.mxu0 0
        %2716 = vmatpush.bf16.msra.mxu0 0
        %2717 = vmatpush.bf16.msra.mxu0 0
        %2718 = vmatpush.bf16.msra.mxu0 %v2670
        %2719 = vmatpush.bf16.msra.mxu0 %v2669
        %2720 = vmatmul.bf16.gmra.mxu0 %v2707
        %v2721 = vpop.f32.mrf.mxu0
        %v2722 = vadd.f32 %v2678, %v2721
        %v2723 = vpop.f32.mrf.mxu0
        %v2724 = vadd.f32 %v2683, %v2723
        %2725 = vmatmul.bf16.gmra.mxu0 %v2710
        %v2726 = vpop.f32.mrf.mxu0
        %v2727 = vadd.f32 %v2688, %v2726
        %v2728 = vpop.f32.mrf.mxu0
        %v2729 = vadd.f32 %v2693, %v2728
        %2730 = vdwg.mxu0
        %v2731 = vld [vmem:[%s9] sm:$0xff]
        %v2732 = vld [vmem:[%s9 + $0x8] sm:$0xff]
        %v2733 = vld [vmem:[%s9 + $0x10] sm:$0xff]
        %v2734 = vld [vmem:[%s9 + $0x18] sm:$0xff]
        %v2735 = vld [vmem:[%s9 + $0x20] sm:$0xff]
        %v2736 = vld [vmem:[%s9 + $0x28] sm:$0xff]
        %v2737 = vld [vmem:[%s9 + $0x30] sm:$0xff]
        %v2738 = vld [vmem:[%s9 + $0x38] sm:$0xff]
        %v2739 = vld [vmem:[%s10] sm:$0xff]
        %v2740 = vld [vmem:[%s10 + $0x8] sm:$0xff]
        %v2741 = vld [vmem:[%s10 + $0x10] sm:$0xff]
        %v2742 = vld [vmem:[%s10 + $0x18] sm:$0xff]
        %v2743 = vld [vmem:[%s10 + $0x20] sm:$0xff]
        %v2744 = vld [vmem:[%s10 + $0x28] sm:$0xff]
        %v2745 = vld [vmem:[%s10 + $0x30] sm:$0xff]
        %v2746 = vld [vmem:[%s10 + $0x38] sm:$0xff]
        %v2747 = vpack.c.bf16 %v2722, %v2722
        %v2748 = vpack.c.bf16 %v2724, %v2724
        %v2749 = vpack.c.bf16 %v2727, %v2727
        %v2750 = vpack.c.bf16 %v2729, %v2729
        %2755 = vrot.lane.b32.xlu0 %v2747, 3
        %v2756 = vpop.permute.xlu0 %2755
        %2757 = vrot.lane.b32.xlu0 %v2748, 3
        %v2758 = vpop.permute.xlu0 %2757
        %2759 = vrot.lane.b32.xlu0 %v2749, 3
        %v2760 = vpop.permute.xlu0 %2759
        %2761 = vrot.lane.b32.xlu0 %v2750, 3
        %v2762 = vpop.permute.xlu0 %2761
        %v2763 = vrot.slane %v2756, 4
        %v2764 = vrot.slane %v2758, 4
        %v2765 = vrot.slane %v2760, 4
        %v2766 = vrot.slane %v2762, 4
        %v2767 = vsel %vm464, %v2763, %v2756
        %v2768 = vsel %vm464, %v2764, %v2758
        %v2769 = vsel %vm464, %v2765, %v2760
        %v2770 = vsel %vm464, %v2766, %v2762
        %2775 = vst.msk [vmem:[#allocation2] sm:$0xff] %vm483, %v2767
        %2776 = vst.msk [vmem:[#allocation2 + $0x8] sm:$0xff] %vm483, %v2768
        %2777 = vst.msk [vmem:[#allocation2 + $0x10] sm:$0xff] %vm483, %v2769
        %2778 = vst.msk [vmem:[#allocation2 + $0x18] sm:$0xff] %vm483, %v2770
        %v2779 = vld [vmem:[#allocation2] sm:$0xf]
        %v2780 = vld [vmem:[#allocation2 + $0x8] sm:$0xf]
        %v2781 = vld [vmem:[#allocation2 + $0x10] sm:$0xf]
        %v2782 = vld [vmem:[#allocation2 + $0x18] sm:$0xf]
        %2783 = vst [vmem:[#allocation3] sm:$0xf] %v2779
        %2784 = vst [vmem:[#allocation3 + $0x4] sm:$0xf] %v2780
        %2785 = vst [vmem:[#allocation3 + $0x8] sm:$0xf] %v2781
        %2786 = vst [vmem:[#allocation3 + $0xc] sm:$0xf] %v2782
        %v2787 = vld [vmem:[#allocation2] sm:$0xff]
        %v2788 = vld [vmem:[#allocation2 + $0x8] sm:$0xff]
        %v2789 = vld [vmem:[#allocation2 + $0x10] sm:$0xff]
        %v2790 = vld [vmem:[#allocation2 + $0x18] sm:$0xff]
        %2795 = vrot.lane.b32.xlu0 %v2787, 127
        %v2796 = vpop.permute.xlu0 %2795
        %2797 = vrot.lane.b32.xlu0 %v2788, 127
        %v2798 = vpop.permute.xlu0 %2797
        %2799 = vrot.lane.b32.xlu0 %v2789, 127
        %v2800 = vpop.permute.xlu0 %2799
        %2801 = vrot.lane.b32.xlu0 %v2790, 127
        %v2802 = vpop.permute.xlu0 %2801
        %v2803 = vrot.slane %v2796, 4
        %v2804 = vrot.slane %v2798, 4
        %v2805 = vrot.slane %v2800, 4
        %v2806 = vrot.slane %v2802, 4
        %v2807 = vsel %vm548, %v2796, %v2803
        %v2808 = vsel %vm548, %v2798, %v2804
        %v2809 = vsel %vm548, %v2800, %v2805
        %v2810 = vsel %vm548, %v2802, %v2806
        %2815 = vst [vmem:[#allocation3 + $0x10] sm:$0xf] %v2807
        %2816 = vst [vmem:[#allocation3 + $0x14] sm:$0xf] %v2808
        %2817 = vst [vmem:[#allocation3 + $0x18] sm:$0xf] %v2809
        %2818 = vst [vmem:[#allocation3 + $0x1c] sm:$0xf] %v2810
        %v2819 = vld [vmem:[#allocation2] sm:$0xff]
        %v2820 = vld [vmem:[#allocation2 + $0x8] sm:$0xff]
        %v2821 = vld [vmem:[#allocation2 + $0x10] sm:$0xff]
        %v2822 = vld [vmem:[#allocation2 + $0x18] sm:$0xff]
        %2827 = vrot.lane.b32.xlu0 %v2819, 126
        %v2828 = vpop.permute.xlu0 %2827
        %2829 = vrot.lane.b32.xlu0 %v2820, 126
        %v2830 = vpop.permute.xlu0 %2829
        %2831 = vrot.lane.b32.xlu0 %v2821, 126
        %v2832 = vpop.permute.xlu0 %2831
        %2833 = vrot.lane.b32.xlu0 %v2822, 126
        %v2834 = vpop.permute.xlu0 %2833
        %v2835 = vrot.slane %v2828, 4
        %v2836 = vrot.slane %v2830, 4
        %v2837 = vrot.slane %v2832, 4
        %v2838 = vrot.slane %v2834, 4
        %v2839 = vsel %vm613, %v2828, %v2835
        %v2840 = vsel %vm613, %v2830, %v2836
        %v2841 = vsel %vm613, %v2832, %v2837
        %v2842 = vsel %vm613, %v2834, %v2838
        %2847 = vst [vmem:[#allocation3 + $0x20] sm:$0xf] %v2839
        %2848 = vst [vmem:[#allocation3 + $0x24] sm:$0xf] %v2840
        %2849 = vst [vmem:[#allocation3 + $0x28] sm:$0xf] %v2841
        %2850 = vst [vmem:[#allocation3 + $0x2c] sm:$0xf] %v2842
        %v2851 = vld [vmem:[#allocation2] sm:$0xff]
        %v2852 = vld [vmem:[#allocation2 + $0x8] sm:$0xff]
        %v2853 = vld [vmem:[#allocation2 + $0x10] sm:$0xff]
        %v2854 = vld [vmem:[#allocation2 + $0x18] sm:$0xff]
        %2859 = vrot.lane.b32.xlu0 %v2851, 125
        %v2860 = vpop.permute.xlu0 %2859
        %2861 = vrot.lane.b32.xlu0 %v2852, 125
        %v2862 = vpop.permute.xlu0 %2861
        %2863 = vrot.lane.b32.xlu0 %v2853, 125
        %v2864 = vpop.permute.xlu0 %2863
        %2865 = vrot.lane.b32.xlu0 %v2854, 125
        %v2866 = vpop.permute.xlu0 %2865
        %v2867 = vrot.slane %v2860, 4
        %v2868 = vrot.slane %v2862, 4
        %v2869 = vrot.slane %v2864, 4
        %v2870 = vrot.slane %v2866, 4
        %v2871 = vsel %vm678, %v2860, %v2867
        %v2872 = vsel %vm678, %v2862, %v2868
        %v2873 = vsel %vm678, %v2864, %v2869
        %v2874 = vsel %vm678, %v2866, %v2870
        %2879 = vst [vmem:[#allocation3 + $0x30] sm:$0xf] %v2871
        %2880 = vst [vmem:[#allocation3 + $0x34] sm:$0xf] %v2872
        %2881 = vst [vmem:[#allocation3 + $0x38] sm:$0xf] %v2873
        %2882 = vst [vmem:[#allocation3 + $0x3c] sm:$0xf] %v2874
        %v2883 = vld [vmem:[#allocation2] sm:$0xff]
        %v2884 = vld [vmem:[#allocation2 + $0x8] sm:$0xff]
        %v2885 = vld [vmem:[#allocation2 + $0x10] sm:$0xff]
        %v2886 = vld [vmem:[#allocation2 + $0x18] sm:$0xff]
        %2891 = vrot.lane.b32.xlu0 %v2883, 124
        %v2892 = vpop.permute.xlu0 %2891
        %2893 = vrot.lane.b32.xlu0 %v2884, 124
        %v2894 = vpop.permute.xlu0 %2893
        %2895 = vrot.lane.b32.xlu0 %v2885, 124
        %v2896 = vpop.permute.xlu0 %2895
        %2897 = vrot.lane.b32.xlu0 %v2886, 124
        %v2898 = vpop.permute.xlu0 %2897
        %v2899 = vrot.slane %v2892, 4
        %v2900 = vrot.slane %v2894, 4
        %v2901 = vrot.slane %v2896, 4
        %v2902 = vrot.slane %v2898, 4
        %v2903 = vsel %vm743, %v2892, %v2899
        %v2904 = vsel %vm743, %v2894, %v2900
        %v2905 = vsel %vm743, %v2896, %v2901
        %v2906 = vsel %vm743, %v2898, %v2902
        %2911 = vst [vmem:[#allocation3 + $0x40] sm:$0xf] %v2903
        %2912 = vst [vmem:[#allocation3 + $0x44] sm:$0xf] %v2904
        %2913 = vst [vmem:[#allocation3 + $0x48] sm:$0xf] %v2905
        %2914 = vst [vmem:[#allocation3 + $0x4c] sm:$0xf] %v2906
        %v2915 = vld [vmem:[#allocation2] sm:$0xff]
        %v2916 = vld [vmem:[#allocation2 + $0x8] sm:$0xff]
        %v2917 = vld [vmem:[#allocation2 + $0x10] sm:$0xff]
        %v2918 = vld [vmem:[#allocation2 + $0x18] sm:$0xff]
        %2923 = vrot.lane.b32.xlu0 %v2915, 123
        %v2924 = vpop.permute.xlu0 %2923
        %2925 = vrot.lane.b32.xlu0 %v2916, 123
        %v2926 = vpop.permute.xlu0 %2925
        %2927 = vrot.lane.b32.xlu0 %v2917, 123
        %v2928 = vpop.permute.xlu0 %2927
        %2929 = vrot.lane.b32.xlu0 %v2918, 123
        %v2930 = vpop.permute.xlu0 %2929
        %v2931 = vrot.slane %v2924, 4
        %v2932 = vrot.slane %v2926, 4
        %v2933 = vrot.slane %v2928, 4
        %v2934 = vrot.slane %v2930, 4
        %v2935 = vsel %vm808, %v2924, %v2931
        %v2936 = vsel %vm808, %v2926, %v2932
        %v2937 = vsel %vm808, %v2928, %v2933
        %v2938 = vsel %vm808, %v2930, %v2934
        %2943 = vst [vmem:[#allocation3 + $0x50] sm:$0xf] %v2935
        %2944 = vst [vmem:[#allocation3 + $0x54] sm:$0xf] %v2936
        %2945 = vst [vmem:[#allocation3 + $0x58] sm:$0xf] %v2937
        %2946 = vst [vmem:[#allocation3 + $0x5c] sm:$0xf] %v2938
        %v2947 = vld [vmem:[#allocation2] sm:$0xff]
        %v2948 = vld [vmem:[#allocation2 + $0x8] sm:$0xff]
        %v2949 = vld [vmem:[#allocation2 + $0x10] sm:$0xff]
        %v2950 = vld [vmem:[#allocation2 + $0x18] sm:$0xff]
        %2955 = vrot.lane.b32.xlu0 %v2947, 122
        %v2956 = vpop.permute.xlu0 %2955
        %2957 = vrot.lane.b32.xlu0 %v2948, 122
        %v2958 = vpop.permute.xlu0 %2957
        %2959 = vrot.lane.b32.xlu0 %v2949, 122
        %v2960 = vpop.permute.xlu0 %2959
        %2961 = vrot.lane.b32.xlu0 %v2950, 122
        %v2962 = vpop.permute.xlu0 %2961
        %v2963 = vrot.slane %v2956, 4
        %v2964 = vrot.slane %v2958, 4
        %v2965 = vrot.slane %v2960, 4
        %v2966 = vrot.slane %v2962, 4
        %v2967 = vsel %vm873, %v2956, %v2963
        %v2968 = vsel %vm873, %v2958, %v2964
        %v2969 = vsel %vm873, %v2960, %v2965
        %v2970 = vsel %vm873, %v2962, %v2966
        %2975 = vst [vmem:[#allocation3 + $0x60] sm:$0xf] %v2967
        %2976 = vst [vmem:[#allocation3 + $0x64] sm:$0xf] %v2968
        %2977 = vst [vmem:[#allocation3 + $0x68] sm:$0xf] %v2969
        %2978 = vst [vmem:[#allocation3 + $0x6c] sm:$0xf] %v2970
        %v2979 = vld [vmem:[#allocation2] sm:$0xff]
        %v2980 = vld [vmem:[#allocation2 + $0x8] sm:$0xff]
        %v2981 = vld [vmem:[#allocation2 + $0x10] sm:$0xff]
        %v2982 = vld [vmem:[#allocation2 + $0x18] sm:$0xff]
        %2987 = vrot.lane.b32.xlu0 %v2979, 121
        %v2988 = vpop.permute.xlu0 %2987
        %2989 = vrot.lane.b32.xlu0 %v2980, 121
        %v2990 = vpop.permute.xlu0 %2989
        %2991 = vrot.lane.b32.xlu0 %v2981, 121
        %v2992 = vpop.permute.xlu0 %2991
        %2993 = vrot.lane.b32.xlu0 %v2982, 121
        %v2994 = vpop.permute.xlu0 %2993
        %v2995 = vrot.slane %v2988, 4
        %v2996 = vrot.slane %v2990, 4
        %v2997 = vrot.slane %v2992, 4
        %v2998 = vrot.slane %v2994, 4
        %v2999 = vsel %vm938, %v2988, %v2995
        %v3000 = vsel %vm938, %v2990, %v2996
        %v3001 = vsel %vm938, %v2992, %v2997
        %v3002 = vsel %vm938, %v2994, %v2998
        %3007 = vst [vmem:[#allocation3 + $0x70] sm:$0xf] %v2999
        %3008 = vst [vmem:[#allocation3 + $0x74] sm:$0xf] %v3000
        %3009 = vst [vmem:[#allocation3 + $0x78] sm:$0xf] %v3001
        %3010 = vst [vmem:[#allocation3 + $0x7c] sm:$0xf] %v3002
        %v3011 = vld [vmem:[#allocation3] sm:$0xf]
        %v3012 = vld [vmem:[#allocation3 + $0x4] sm:$0xf]
        %v3013 = vld [vmem:[#allocation3 + $0x8] sm:$0xf]
        %v3014 = vld [vmem:[#allocation3 + $0xc] sm:$0xf]
        %v3015 = vld [vmem:[#allocation3 + $0x10] sm:$0xf]
        %v3016 = vld [vmem:[#allocation3 + $0x14] sm:$0xf]
        %v3017 = vld [vmem:[#allocation3 + $0x18] sm:$0xf]
        %v3018 = vld [vmem:[#allocation3 + $0x1c] sm:$0xf]
        %v3019 = vld [vmem:[#allocation3 + $0x20] sm:$0xf]
        %v3020 = vld [vmem:[#allocation3 + $0x24] sm:$0xf]
        %v3021 = vld [vmem:[#allocation3 + $0x28] sm:$0xf]
        %v3022 = vld [vmem:[#allocation3 + $0x2c] sm:$0xf]
        %v3023 = vld [vmem:[#allocation3 + $0x30] sm:$0xf]
        %v3024 = vld [vmem:[#allocation3 + $0x34] sm:$0xf]
        %v3025 = vld [vmem:[#allocation3 + $0x38] sm:$0xf]
        %v3026 = vld [vmem:[#allocation3 + $0x3c] sm:$0xf]
        %v3027 = vld [vmem:[#allocation3 + $0x40] sm:$0xf]
        %v3028 = vld [vmem:[#allocation3 + $0x44] sm:$0xf]
        %v3029 = vld [vmem:[#allocation3 + $0x48] sm:$0xf]
        %v3030 = vld [vmem:[#allocation3 + $0x4c] sm:$0xf]
        %v3031 = vld [vmem:[#allocation3 + $0x50] sm:$0xf]
        %v3032 = vld [vmem:[#allocation3 + $0x54] sm:$0xf]
        %v3033 = vld [vmem:[#allocation3 + $0x58] sm:$0xf]
        %v3034 = vld [vmem:[#allocation3 + $0x5c] sm:$0xf]
        %v3035 = vld [vmem:[#allocation3 + $0x60] sm:$0xf]
        %v3036 = vld [vmem:[#allocation3 + $0x64] sm:$0xf]
        %v3037 = vld [vmem:[#allocation3 + $0x68] sm:$0xf]
        %v3038 = vld [vmem:[#allocation3 + $0x6c] sm:$0xf]
        %v3039 = vld [vmem:[#allocation3 + $0x70] sm:$0xf]
        %v3040 = vld [vmem:[#allocation3 + $0x74] sm:$0xf]
        %v3041 = vld [vmem:[#allocation3 + $0x78] sm:$0xf]
        %v3042 = vld [vmem:[#allocation3 + $0x7c] sm:$0xf]
        %3044 = vset.pattern.permute.xlu0 0
        %3045 = vperm.xlu0 %3044, %v2739
        %v3046 = vpop.permute.xlu0 %3045
        %3049 = vset.pattern.permute.xlu0 0
        %3050 = vperm.xlu0 %3049, %v2740
        %v3051 = vpop.permute.xlu0 %3050
        %3054 = vset.pattern.permute.xlu0 0
        %3055 = vperm.xlu0 %3054, %v2741
        %v3056 = vpop.permute.xlu0 %3055
        %3059 = vset.pattern.permute.xlu0 0
        %3060 = vperm.xlu0 %3059, %v2742
        %v3061 = vpop.permute.xlu0 %3060
        %3064 = vset.pattern.permute.xlu0 0
        %3065 = vperm.xlu0 %3064, %v2743
        %v3066 = vpop.permute.xlu0 %3065
        %3069 = vset.pattern.permute.xlu0 0
        %3070 = vperm.xlu0 %3069, %v2744
        %v3071 = vpop.permute.xlu0 %3070
        %3074 = vset.pattern.permute.xlu0 0
        %3075 = vperm.xlu0 %3074, %v2745
        %v3076 = vpop.permute.xlu0 %3075
        %3079 = vset.pattern.permute.xlu0 0
        %3080 = vperm.xlu0 %3079, %v2746
        %v3081 = vpop.permute.xlu0 %3080
        %v3091 = vunpack.c.l.b16 %v2731
        %v3092 = vunpack.c.h.b16 %v2731
        %v3093 = vunpack.c.l.b16 %v2732
        %v3094 = vunpack.c.h.b16 %v2732
        %v3095 = vunpack.c.l.b16 %v2733
        %v3096 = vunpack.c.h.b16 %v2733
        %v3097 = vunpack.c.l.b16 %v2734
        %v3098 = vunpack.c.h.b16 %v2734
        %v3099 = vunpack.c.l.b16 %v2735
        %v3100 = vunpack.c.h.b16 %v2735
        %v3101 = vunpack.c.l.b16 %v2736
        %v3102 = vunpack.c.h.b16 %v2736
        %v3103 = vunpack.c.l.b16 %v2737
        %v3104 = vunpack.c.h.b16 %v2737
        %v3105 = vunpack.c.l.b16 %v2738
        %v3106 = vunpack.c.h.b16 %v2738
        %v3107 = vpack.c.b16 %v3093, %v3091
        %v3108 = vpack.c.b16 %v3094, %v3092
        %v3109 = vpack.c.b16 %v3097, %v3095
        %v3110 = vpack.c.b16 %v3098, %v3096
        %v3111 = vpack.c.b16 %v3101, %v3099
        %v3112 = vpack.c.b16 %v3102, %v3100
        %v3113 = vpack.c.b16 %v3105, %v3103
        %v3114 = vpack.c.b16 %v3106, %v3104
        %v3155 = vunpack.c.l.b16 %v3011
        %v3156 = vunpack.c.l.b16 %v3012
        %v3157 = vunpack.c.l.b16 %v3013
        %v3158 = vunpack.c.l.b16 %v3014
        %v3159 = vunpack.c.l.b16 %v3015
        %v3160 = vunpack.c.l.b16 %v3016
        %v3161 = vunpack.c.l.b16 %v3017
        %v3162 = vunpack.c.l.b16 %v3018
        %v3163 = vunpack.c.l.b16 %v3019
        %v3164 = vunpack.c.l.b16 %v3020
        %v3165 = vunpack.c.l.b16 %v3021
        %v3166 = vunpack.c.l.b16 %v3022
        %v3167 = vunpack.c.l.b16 %v3023
        %v3168 = vunpack.c.l.b16 %v3024
        %v3169 = vunpack.c.l.b16 %v3025
        %v3170 = vunpack.c.l.b16 %v3026
        %v3171 = vunpack.c.l.b16 %v3027
        %v3172 = vunpack.c.l.b16 %v3028
        %v3173 = vunpack.c.l.b16 %v3029
        %v3174 = vunpack.c.l.b16 %v3030
        %v3175 = vunpack.c.l.b16 %v3031
        %v3176 = vunpack.c.l.b16 %v3032
        %v3177 = vunpack.c.l.b16 %v3033
        %v3178 = vunpack.c.l.b16 %v3034
        %v3179 = vunpack.c.l.b16 %v3035
        %v3180 = vunpack.c.l.b16 %v3036
        %v3181 = vunpack.c.l.b16 %v3037
        %v3182 = vunpack.c.l.b16 %v3038
        %v3183 = vunpack.c.l.b16 %v3039
        %v3184 = vunpack.c.l.b16 %v3040
        %v3185 = vunpack.c.l.b16 %v3041
        %v3186 = vunpack.c.l.b16 %v3042
        %v3187 = vpack.c.b16 %v3156, %v3155
        %v3188 = vpack.c.b16 %v3158, %v3157
        %v3189 = vpack.c.b16 %v3160, %v3159
        %v3190 = vpack.c.b16 %v3162, %v3161
        %v3191 = vpack.c.b16 %v3164, %v3163
        %v3192 = vpack.c.b16 %v3166, %v3165
        %v3193 = vpack.c.b16 %v3168, %v3167
        %v3194 = vpack.c.b16 %v3170, %v3169
        %v3195 = vpack.c.b16 %v3172, %v3171
        %v3196 = vpack.c.b16 %v3174, %v3173
        %v3197 = vpack.c.b16 %v3176, %v3175
        %v3198 = vpack.c.b16 %v3178, %v3177
        %v3199 = vpack.c.b16 %v3180, %v3179
        %v3200 = vpack.c.b16 %v3182, %v3181
        %v3201 = vpack.c.b16 %v3184, %v3183
        %v3202 = vpack.c.b16 %v3186, %v3185
        %3219 = vmatpush.bf16.msra.mxu0 %v3194
        %3220 = vmatpush.bf16.msra.mxu0 %v3193
        %3221 = vmatpush.bf16.msra.mxu0 %v3192
        %3222 = vmatpush.bf16.msra.mxu0 %v3191
        %3223 = vmatpush.bf16.msra.mxu0 %v3190
        %3224 = vmatpush.bf16.msra.mxu0 %v3189
        %3225 = vmatpush.bf16.msra.mxu0 %v3188
        %3226 = vmatpush.bf16.msra.mxu0 %v3187
        %3227 = vmatmul.bf16.gmra.mxu0 %v3107
        %v3228 = vpop.f32.mrf.mxu0
        %v3229 = vadd.f32 %v3046, %v3228
        %v3230 = vpop.f32.mrf.mxu0
        %v3231 = vadd.f32 %v3051, %v3230
        %3232 = vmatmul.bf16.gmra.mxu0 %v3109
        %v3233 = vpop.f32.mrf.mxu0
        %v3234 = vadd.f32 %v3056, %v3233
        %v3235 = vpop.f32.mrf.mxu0
        %v3236 = vadd.f32 %v3061, %v3235
        %3237 = vmatmul.bf16.gmra.mxu0 %v3111
        %v3238 = vpop.f32.mrf.mxu0
        %v3239 = vadd.f32 %v3066, %v3238
        %v3240 = vpop.f32.mrf.mxu0
        %v3241 = vadd.f32 %v3071, %v3240
        %3242 = vmatmul.bf16.gmra.mxu0 %v3113
        %v3243 = vpop.f32.mrf.mxu0
        %v3244 = vadd.f32 %v3076, %v3243
        %v3245 = vpop.f32.mrf.mxu0
        %v3246 = vadd.f32 %v3081, %v3245
        %3247 = vdwg.mxu0
        %3248 = vmatpush.bf16.msra.mxu0 %v3202
        %3249 = vmatpush.bf16.msra.mxu0 %v3201
        %3250 = vmatpush.bf16.msra.mxu0 %v3200
        %3251 = vmatpush.bf16.msra.mxu0 %v3199
        %3252 = vmatpush.bf16.msra.mxu0 %v3198
        %3253 = vmatpush.bf16.msra.mxu0 %v3197
        %3254 = vmatpush.bf16.msra.mxu0 %v3196
        %3255 = vmatpush.bf16.msra.mxu0 %v3195
        %3256 = vmatmul.bf16.gmra.mxu0 %v3108
        %v3257 = vpop.f32.mrf.mxu0
        %v3258 = vadd.f32 %v3229, %v3257
        %v3259 = vpop.f32.mrf.mxu0
        %v3260 = vadd.f32 %v3231, %v3259
        %3261 = vmatmul.bf16.gmra.mxu0 %v3110
        %v3262 = vpop.f32.mrf.mxu0
        %v3263 = vadd.f32 %v3234, %v3262
        %v3264 = vpop.f32.mrf.mxu0
        %v3265 = vadd.f32 %v3236, %v3264
        %3266 = vmatmul.bf16.gmra.mxu0 %v3112
        %v3267 = vpop.f32.mrf.mxu0
        %v3268 = vadd.f32 %v3239, %v3267
        %v3269 = vpop.f32.mrf.mxu0
        %v3270 = vadd.f32 %v3241, %v3269
        %3271 = vmatmul.bf16.gmra.mxu0 %v3114
        %v3272 = vpop.f32.mrf.mxu0
        %v3273 = vadd.f32 %v3244, %v3272
        %v3274 = vpop.f32.mrf.mxu0
        %v3275 = vadd.f32 %v3246, %v3274
        %3276 = vdwg.mxu0
        %v3277 = vmul.f32 %v3258, 0.5
        %v3278 = vmul.f32 %v3260, 0.5
        %v3279 = vmul.f32 %v3263, 0.5
        %v3280 = vmul.f32 %v3265, 0.5
        %v3281 = vmul.f32 %v3268, 0.5
        %v3282 = vmul.f32 %v3270, 0.5
        %v3283 = vmul.f32 %v3273, 0.5
        %v3284 = vmul.f32 %v3275, 0.5
        %v3285 = vmul.f32 %v3258, 0.70710677
        %v3286 = vmul.f32 %v3260, 0.70710677
        %v3287 = vmul.f32 %v3263, 0.70710677
        %v3288 = vmul.f32 %v3265, 0.70710677
        %v3289 = vmul.f32 %v3268, 0.70710677
        %v3290 = vmul.f32 %v3270, 0.70710677
        %v3291 = vmul.f32 %v3273, 0.70710677
        %v3292 = vmul.f32 %v3275, 0.70710677
        %vm3293 = vcmp.ge.f32.partialorder %v3285, 0.0
        %vm3294 = vcmp.ge.f32.partialorder %v3286, 0.0
        %vm3295 = vcmp.ge.f32.partialorder %v3287, 0.0
        %vm3296 = vcmp.ge.f32.partialorder %v3288, 0.0
        %vm3297 = vcmp.ge.f32.partialorder %v3289, 0.0
        %vm3298 = vcmp.ge.f32.partialorder %v3290, 0.0
        %vm3299 = vcmp.ge.f32.partialorder %v3291, 0.0
        %vm3300 = vcmp.ge.f32.partialorder %v3292, 0.0
        %v3301 = vsel %vm3293, 1.0, -1.0
        %v3302 = vsel %vm3294, 1.0, -1.0
        %v3303 = vsel %vm3295, 1.0, -1.0
        %v3304 = vsel %vm3296, 1.0, -1.0
        %v3305 = vsel %vm3297, 1.0, -1.0
        %v3306 = vsel %vm3298, 1.0, -1.0
        %v3307 = vsel %vm3299, 1.0, -1.0
        %v3308 = vsel %vm3300, 1.0, -1.0
        %v3309 = vand.u32 2147483647, %v3285
        %v3310 = vand.u32 2147483647, %v3286
        %v3311 = vand.u32 2147483647, %v3287
        %v3312 = vand.u32 2147483647, %v3288
        %v3313 = vand.u32 2147483647, %v3289
        %v3314 = vand.u32 2147483647, %v3290
        %v3315 = vand.u32 2147483647, %v3291
        %v3316 = vand.u32 2147483647, %v3292
        %v3317 = vmul.f32 %v3309, 0.3275911
        %v3318 = vmul.f32 %v3310, 0.3275911
        %v3319 = vmul.f32 %v3311, 0.3275911
        %v3320 = vmul.f32 %v3312, 0.3275911
        %v3321 = vmul.f32 %v3313, 0.3275911
        %v3322 = vmul.f32 %v3314, 0.3275911
        %v3323 = vmul.f32 %v3315, 0.3275911
        %v3324 = vmul.f32 %v3316, 0.3275911
        %v3325 = vadd.f32 %v3317, 1.0
        %v3326 = vadd.f32 %v3318, 1.0
        %v3327 = vadd.f32 %v3319, 1.0
        %v3328 = vadd.f32 %v3320, 1.0
        %v3329 = vadd.f32 %v3321, 1.0
        %v3330 = vadd.f32 %v3322, 1.0
        %v3331 = vadd.f32 %v3323, 1.0
        %v3332 = vadd.f32 %v3324, 1.0
        %v3333 = vrcp.pop %v3325
        %v3334 = vrcp.pop %v3326
        %v3335 = vrcp.pop %v3327
        %v3336 = vrcp.pop %v3328
        %v3337 = vrcp.pop %v3329
        %v3338 = vrcp.pop %v3330
        %v3339 = vrcp.pop %v3331
        %v3340 = vrcp.pop %v3332
        %v3341 = vmul.f32 %v3333, 1.0614054
        %v3342 = vmul.f32 %v3334, 1.0614054
        %v3343 = vmul.f32 %v3335, 1.0614054
        %v3344 = vmul.f32 %v3336, 1.0614054
        %v3345 = vmul.f32 %v3337, 1.0614054
        %v3346 = vmul.f32 %v3338, 1.0614054
        %v3347 = vmul.f32 %v3339, 1.0614054
        %v3348 = vmul.f32 %v3340, 1.0614054
        %v3349 = vadd.f32 %v3341, -1.4531521
        %v3350 = vadd.f32 %v3342, -1.4531521
        %v3351 = vadd.f32 %v3343, -1.4531521
        %v3352 = vadd.f32 %v3344, -1.4531521
        %v3353 = vadd.f32 %v3345, -1.4531521
        %v3354 = vadd.f32 %v3346, -1.4531521
        %v3355 = vadd.f32 %v3347, -1.4531521
        %v3356 = vadd.f32 %v3348, -1.4531521
        %v3357 = vmul.f32 %v3349, %v3333
        %v3358 = vmul.f32 %v3350, %v3334
        %v3359 = vmul.f32 %v3351, %v3335
        %v3360 = vmul.f32 %v3352, %v3336
        %v3361 = vmul.f32 %v3353, %v3337
        %v3362 = vmul.f32 %v3354, %v3338
        %v3363 = vmul.f32 %v3355, %v3339
        %v3364 = vmul.f32 %v3356, %v3340
        %v3365 = vadd.f32 %v3357, 1.4214138
        %v3366 = vadd.f32 %v3358, 1.4214138
        %v3367 = vadd.f32 %v3359, 1.4214138
        %v3368 = vadd.f32 %v3360, 1.4214138
        %v3369 = vadd.f32 %v3361, 1.4214138
        %v3370 = vadd.f32 %v3362, 1.4214138
        %v3371 = vadd.f32 %v3363, 1.4214138
        %v3372 = vadd.f32 %v3364, 1.4214138
        %v3373 = vmul.f32 %v3365, %v3333
        %v3374 = vmul.f32 %v3366, %v3334
        %v3375 = vmul.f32 %v3367, %v3335
        %v3376 = vmul.f32 %v3368, %v3336
        %v3377 = vmul.f32 %v3369, %v3337
        %v3378 = vmul.f32 %v3370, %v3338
        %v3379 = vmul.f32 %v3371, %v3339
        %v3380 = vmul.f32 %v3372, %v3340
        %v3381 = vadd.f32 %v3373, -0.28449672
        %v3382 = vadd.f32 %v3374, -0.28449672
        %v3383 = vadd.f32 %v3375, -0.28449672
        %v3384 = vadd.f32 %v3376, -0.28449672
        %v3385 = vadd.f32 %v3377, -0.28449672
        %v3386 = vadd.f32 %v3378, -0.28449672
        %v3387 = vadd.f32 %v3379, -0.28449672
        %v3388 = vadd.f32 %v3380, -0.28449672
        %v3389 = vmul.f32 %v3381, %v3333
        %v3390 = vmul.f32 %v3382, %v3334
        %v3391 = vmul.f32 %v3383, %v3335
        %v3392 = vmul.f32 %v3384, %v3336
        %v3393 = vmul.f32 %v3385, %v3337
        %v3394 = vmul.f32 %v3386, %v3338
        %v3395 = vmul.f32 %v3387, %v3339
        %v3396 = vmul.f32 %v3388, %v3340
        %v3397 = vadd.f32 %v3389, 0.2548296
        %v3398 = vadd.f32 %v3390, 0.2548296
        %v3399 = vadd.f32 %v3391, 0.2548296
        %v3400 = vadd.f32 %v3392, 0.2548296
        %v3401 = vadd.f32 %v3393, 0.2548296
        %v3402 = vadd.f32 %v3394, 0.2548296
        %v3403 = vadd.f32 %v3395, 0.2548296
        %v3404 = vadd.f32 %v3396, 0.2548296
        %v3405 = vmul.f32 %v3397, %v3333
        %v3406 = vmul.f32 %v3398, %v3334
        %v3407 = vmul.f32 %v3399, %v3335
        %v3408 = vmul.f32 %v3400, %v3336
        %v3409 = vmul.f32 %v3401, %v3337
        %v3410 = vmul.f32 %v3402, %v3338
        %v3411 = vmul.f32 %v3403, %v3339
        %v3412 = vmul.f32 %v3404, %v3340
        %v3413 = vsub.f32 0.0, %v3309
        %v3414 = vsub.f32 0.0, %v3310
        %v3415 = vsub.f32 0.0, %v3311
        %v3416 = vsub.f32 0.0, %v3312
        %v3417 = vsub.f32 0.0, %v3313
        %v3418 = vsub.f32 0.0, %v3314
        %v3419 = vsub.f32 0.0, %v3315
        %v3420 = vsub.f32 0.0, %v3316
        %v3421 = vmul.f32 %v3413, %v3309
        %v3422 = vmul.f32 %v3414, %v3310
        %v3423 = vmul.f32 %v3415, %v3311
        %v3424 = vmul.f32 %v3416, %v3312
        %v3425 = vmul.f32 %v3417, %v3313
        %v3426 = vmul.f32 %v3418, %v3314
        %v3427 = vmul.f32 %v3419, %v3315
        %v3428 = vmul.f32 %v3420, %v3316
        %v3429 = vmul.f32 %v3421, 1.442695
        %v3430 = vpow.pop %v3429
        %v3431 = vmul.f32 %v3422, 1.442695
        %v3432 = vpow.pop %v3431
        %v3433 = vmul.f32 %v3423, 1.442695
        %v3434 = vpow.pop %v3433
        %v3435 = vmul.f32 %v3424, 1.442695
        %v3436 = vpow.pop %v3435
        %v3437 = vmul.f32 %v3425, 1.442695
        %v3438 = vpow.pop %v3437
        %v3439 = vmul.f32 %v3426, 1.442695
        %v3440 = vpow.pop %v3439
        %v3441 = vmul.f32 %v3427, 1.442695
        %v3442 = vpow.pop %v3441
        %v3443 = vmul.f32 %v3428, 1.442695
        %v3444 = vpow.pop %v3443
        %v3445 = vmul.f32 %v3405, %v3430
        %v3446 = vmul.f32 %v3406, %v3432
        %v3447 = vmul.f32 %v3407, %v3434
        %v3448 = vmul.f32 %v3408, %v3436
        %v3449 = vmul.f32 %v3409, %v3438
        %v3450 = vmul.f32 %v3410, %v3440
        %v3451 = vmul.f32 %v3411, %v3442
        %v3452 = vmul.f32 %v3412, %v3444
        %v3453 = vsub.f32 1.0, %v3445
        %v3454 = vsub.f32 1.0, %v3446
        %v3455 = vsub.f32 1.0, %v3447
        %v3456 = vsub.f32 1.0, %v3448
        %v3457 = vsub.f32 1.0, %v3449
        %v3458 = vsub.f32 1.0, %v3450
        %v3459 = vsub.f32 1.0, %v3451
        %v3460 = vsub.f32 1.0, %v3452
        %v3461 = vmul.f32 %v3301, %v3453
        %v3462 = vmul.f32 %v3302, %v3454
        %v3463 = vmul.f32 %v3303, %v3455
        %v3464 = vmul.f32 %v3304, %v3456
        %v3465 = vmul.f32 %v3305, %v3457
        %v3466 = vmul.f32 %v3306, %v3458
        %v3467 = vmul.f32 %v3307, %v3459
        %v3468 = vmul.f32 %v3308, %v3460
        %v3469 = vadd.f32 %v3461, 1.0
        %v3470 = vadd.f32 %v3462, 1.0
        %v3471 = vadd.f32 %v3463, 1.0
        %v3472 = vadd.f32 %v3464, 1.0
        %v3473 = vadd.f32 %v3465, 1.0
        %v3474 = vadd.f32 %v3466, 1.0
        %v3475 = vadd.f32 %v3467, 1.0
        %v3476 = vadd.f32 %v3468, 1.0
        %v3477 = vmul.f32 %v3277, %v3469
        %v3478 = vmul.f32 %v3278, %v3470
        %v3479 = vmul.f32 %v3279, %v3471
        %v3480 = vmul.f32 %v3280, %v3472
        %v3481 = vmul.f32 %v3281, %v3473
        %v3482 = vmul.f32 %v3282, %v3474
        %v3483 = vmul.f32 %v3283, %v3475
        %v3484 = vmul.f32 %v3284, %v3476
        %v3485 = vadd.f32 %v3477, %v3478
        %v3486 = vadd.f32 %v3485, %v3479
        %v3487 = vadd.f32 %v3486, %v3480
        %v3488 = vadd.f32 %v3487, %v3481
        %v3489 = vadd.f32 %v3488, %v3482
        %v3490 = vadd.f32 %v3489, %v3483
        %v3491 = vadd.f32 %v3490, %v3484
        %3492 = vadd.xlane.f32.xlu0 %v3491
        %v3493 = vpop.xlane.xlu0 %3492
        %v3494 = vrot.slane %v3493, 4
        %v3495 = vadd.f32 %v3493, %v3494
        %v3496 = vrot.slane %v3495, 2
        %v3497 = vadd.f32 %v3495, %v3496
        %v3498 = vrot.slane %v3497, 1
        %v3499 = vadd.f32 %v3497, %v3498
        %s3500 = vtos %v3499
        %s3501 = smul.f32 %s3500, 0.00012207031
        %v3502 = vmul.f32 %v3477, %v3477
        %v3503 = vmul.f32 %v3478, %v3478
        %v3504 = vmul.f32 %v3479, %v3479
        %v3505 = vmul.f32 %v3480, %v3480
        %v3506 = vmul.f32 %v3481, %v3481
        %v3507 = vmul.f32 %v3482, %v3482
        %v3508 = vmul.f32 %v3483, %v3483
        %v3509 = vmul.f32 %v3484, %v3484
        %v3510 = vadd.f32 %v3502, %v3503
        %v3511 = vadd.f32 %v3510, %v3504
        %v3512 = vadd.f32 %v3511, %v3505
        %v3513 = vadd.f32 %v3512, %v3506
        %v3514 = vadd.f32 %v3513, %v3507
        %v3515 = vadd.f32 %v3514, %v3508
        %v3516 = vadd.f32 %v3515, %v3509
        %3517 = vadd.xlane.f32.xlu0 %v3516
        %v3518 = vpop.xlane.xlu0 %3517
        %v3519 = vrot.slane %v3518, 4
        %v3520 = vadd.f32 %v3518, %v3519
        %v3521 = vrot.slane %v3520, 2
        %v3522 = vadd.f32 %v3520, %v3521
        %v3523 = vrot.slane %v3522, 1
        %v3524 = vadd.f32 %v3522, %v3523
        %s3525 = vtos %v3524
        %s3526 = smul.f32 %s3525, 0.00012207031
        %s3527 = smul.f32 %s3501, %s3501
        %s3528 = ssub.f32 %s3526, %s3527
        %v3529 = vstv %s3501
        %v3530 = vsub.f32 %v3477, %v3529
        %v3531 = vsub.f32 %v3478, %v3529
        %v3532 = vsub.f32 %v3479, %v3529
        %v3533 = vsub.f32 %v3480, %v3529
        %v3534 = vsub.f32 %v3481, %v3529
        %v3535 = vsub.f32 %v3482, %v3529
        %v3536 = vsub.f32 %v3483, %v3529
        %v3537 = vsub.f32 %v3484, %v3529
        %s3538 = sadd.f32 %s3528, 1e-05
        %v3539 = vstv %s3538
        %v3540 = vrsqrt.pop %v3539
        %v3541 = vmul.f32 %v3540, %v3539
        %v3542 = vmul.f32 %v3541, %v3540
        %v3543 = vmul.f32 0.5, %v3542
        %v3544 = vsub.f32 1.5, %v3543
        %v3545 = vmul.f32 %v3540, %v3544
        %vm3546 = vweird.f32 %v3539
        %vm3547 = vweird.f32 %v3540
        %vm3548 = vmor %vm3546, %vm3547
        %v3549 = vsel %vm3548, %v3540, %v3545
        %s3550 = vtos %v3549
        %v3551 = vstv %s3550
        %v3552 = vmul.f32 %v3530, %v3551
        %v3553 = vmul.f32 %v3531, %v3551
        %v3554 = vmul.f32 %v3532, %v3551
        %v3555 = vmul.f32 %v3533, %v3551
        %v3556 = vmul.f32 %v3534, %v3551
        %v3557 = vmul.f32 %v3535, %v3551
        %v3558 = vmul.f32 %v3536, %v3551
        %v3559 = vmul.f32 %v3537, %v3551
        %v3560 = vadd.f32 %v404, %v3552
        %v3561 = vadd.f32 %v405, %v3553
        %v3562 = vadd.f32 %v406, %v3554
        %v3563 = vadd.f32 %v407, %v3555
        %v3564 = vadd.f32 %v408, %v3556
        %v3565 = vadd.f32 %v409, %v3557
        %v3566 = vadd.f32 %v410, %v3558
        %v3567 = vadd.f32 %v411, %v3559
        %s3568 = scalar_lea.vmem %s1, 64
        %v3569 = vld [vmem:[%s3568] sm:$0xff]
        %v3570 = vld [vmem:[%s3568 + $0x8] sm:$0xff]
        %v3571 = vld [vmem:[%s3568 + $0x10] sm:$0xff]
        %v3572 = vld [vmem:[%s3568 + $0x18] sm:$0xff]
        %v3573 = vld [vmem:[%s3568 + $0x20] sm:$0xff]
        %v3574 = vld [vmem:[%s3568 + $0x28] sm:$0xff]
        %v3575 = vld [vmem:[%s3568 + $0x30] sm:$0xff]
        %v3576 = vld [vmem:[%s3568 + $0x38] sm:$0xff]
        %s3577 = scalar_lea.vmem %s2, 32
        %v3578 = vld [vmem:[%s3577] sm:$0xff]
        %v3579 = vld [vmem:[%s3577 + $0x8] sm:$0xff]
        %v3580 = vld [vmem:[%s3577 + $0x10] sm:$0xff]
        %v3581 = vld [vmem:[%s3577 + $0x18] sm:$0xff]
        %v3582 = vpack.c.bf16 %v3560, %v3560
        %v3583 = vpack.c.bf16 %v3561, %v3561
        %v3584 = vpack.c.bf16 %v3562, %v3562
        %v3585 = vpack.c.bf16 %v3563, %v3563
        %v3586 = vpack.c.bf16 %v3564, %v3564
        %v3587 = vpack.c.bf16 %v3565, %v3565
        %v3588 = vpack.c.bf16 %v3566, %v3566
        %v3589 = vpack.c.bf16 %v3567, %v3567
        %3598 = vrot.lane.b32.xlu0 %v3582, 3
        %v3599 = vpop.permute.xlu0 %3598
        %3600 = vrot.lane.b32.xlu0 %v3583, 3
        %v3601 = vpop.permute.xlu0 %3600
        %3602 = vrot.lane.b32.xlu0 %v3584, 3
        %v3603 = vpop.permute.xlu0 %3602
        %3604 = vrot.lane.b32.xlu0 %v3585, 3
        %v3605 = vpop.permute.xlu0 %3604
        %3606 = vrot.lane.b32.xlu0 %v3586, 3
        %v3607 = vpop.permute.xlu0 %3606
        %3608 = vrot.lane.b32.xlu0 %v3587, 3
        %v3609 = vpop.permute.xlu0 %3608
        %3610 = vrot.lane.b32.xlu0 %v3588, 3
        %v3611 = vpop.permute.xlu0 %3610
        %3612 = vrot.lane.b32.xlu0 %v3589, 3
        %v3613 = vpop.permute.xlu0 %3612
        %v3614 = vrot.slane %v3599, 4
        %v3615 = vrot.slane %v3601, 4
        %v3616 = vrot.slane %v3603, 4
        %v3617 = vrot.slane %v3605, 4
        %v3618 = vrot.slane %v3607, 4
        %v3619 = vrot.slane %v3609, 4
        %v3620 = vrot.slane %v3611, 4
        %v3621 = vrot.slane %v3613, 4
        %v3622 = vsel %vm464, %v3614, %v3599
        %v3623 = vsel %vm464, %v3615, %v3601
        %v3624 = vsel %vm464, %v3616, %v3603
        %v3625 = vsel %vm464, %v3617, %v3605
        %v3626 = vsel %vm464, %v3618, %v3607
        %v3627 = vsel %vm464, %v3619, %v3609
        %v3628 = vsel %vm464, %v3620, %v3611
        %v3629 = vsel %vm464, %v3621, %v3613
        %3638 = vst.msk [vmem:[#allocation2] sm:$0xff] %vm483, %v3622
        %3639 = vst.msk [vmem:[#allocation2 + $0x8] sm:$0xff] %vm483, %v3623
        %3640 = vst.msk [vmem:[#allocation2 + $0x10] sm:$0xff] %vm483, %v3624
        %3641 = vst.msk [vmem:[#allocation2 + $0x18] sm:$0xff] %vm483, %v3625
        %3642 = vst.msk [vmem:[#allocation2 + $0x20] sm:$0xff] %vm483, %v3626
        %3643 = vst.msk [vmem:[#allocation2 + $0x28] sm:$0xff] %vm483, %v3627
        %3644 = vst.msk [vmem:[#allocation2 + $0x30] sm:$0xff] %vm483, %v3628
        %3645 = vst.msk [vmem:[#allocation2 + $0x38] sm:$0xff] %vm483, %v3629
        %v3646 = vld [vmem:[#allocation2] sm:$0xf]
        %v3647 = vld [vmem:[#allocation2 + $0x8] sm:$0xf]
        %v3648 = vld [vmem:[#allocation2 + $0x10] sm:$0xf]
        %v3649 = vld [vmem:[#allocation2 + $0x18] sm:$0xf]
        %v3650 = vld [vmem:[#allocation2 + $0x20] sm:$0xf]
        %v3651 = vld [vmem:[#allocation2 + $0x28] sm:$0xf]
        %v3652 = vld [vmem:[#allocation2 + $0x30] sm:$0xf]
        %v3653 = vld [vmem:[#allocation2 + $0x38] sm:$0xf]
        %3654 = vst [vmem:[#allocation3] sm:$0xf] %v3646
        %3655 = vst [vmem:[#allocation3 + $0x4] sm:$0xf] %v3647
        %3656 = vst [vmem:[#allocation3 + $0x8] sm:$0xf] %v3648
        %3657 = vst [vmem:[#allocation3 + $0xc] sm:$0xf] %v3649
        %3658 = vst [vmem:[#allocation3 + $0x10] sm:$0xf] %v3650
        %3659 = vst [vmem:[#allocation3 + $0x14] sm:$0xf] %v3651
        %3660 = vst [vmem:[#allocation3 + $0x18] sm:$0xf] %v3652
        %3661 = vst [vmem:[#allocation3 + $0x1c] sm:$0xf] %v3653
        %v3662 = vld [vmem:[#allocation2] sm:$0xff]
        %v3663 = vld [vmem:[#allocation2 + $0x8] sm:$0xff]
        %v3664 = vld [vmem:[#allocation2 + $0x10] sm:$0xff]
        %v3665 = vld [vmem:[#allocation2 + $0x18] sm:$0xff]
        %v3666 = vld [vmem:[#allocation2 + $0x20] sm:$0xff]
        %v3667 = vld [vmem:[#allocation2 + $0x28] sm:$0xff]
        %v3668 = vld [vmem:[#allocation2 + $0x30] sm:$0xff]
        %v3669 = vld [vmem:[#allocation2 + $0x38] sm:$0xff]
        %3678 = vrot.lane.b32.xlu0 %v3662, 127
        %v3679 = vpop.permute.xlu0 %3678
        %3680 = vrot.lane.b32.xlu0 %v3663, 127
        %v3681 = vpop.permute.xlu0 %3680
        %3682 = vrot.lane.b32.xlu0 %v3664, 127
        %v3683 = vpop.permute.xlu0 %3682
        %3684 = vrot.lane.b32.xlu0 %v3665, 127
        %v3685 = vpop.permute.xlu0 %3684
        %3686 = vrot.lane.b32.xlu0 %v3666, 127
        %v3687 = vpop.permute.xlu0 %3686
        %3688 = vrot.lane.b32.xlu0 %v3667, 127
        %v3689 = vpop.permute.xlu0 %3688
        %3690 = vrot.lane.b32.xlu0 %v3668, 127
        %v3691 = vpop.permute.xlu0 %3690
        %3692 = vrot.lane.b32.xlu0 %v3669, 127
        %v3693 = vpop.permute.xlu0 %3692
        %v3694 = vrot.slane %v3679, 4
        %v3695 = vrot.slane %v3681, 4
        %v3696 = vrot.slane %v3683, 4
        %v3697 = vrot.slane %v3685, 4
        %v3698 = vrot.slane %v3687, 4
        %v3699 = vrot.slane %v3689, 4
        %v3700 = vrot.slane %v3691, 4
        %v3701 = vrot.slane %v3693, 4
        %v3702 = vsel %vm548, %v3679, %v3694
        %v3703 = vsel %vm548, %v3681, %v3695
        %v3704 = vsel %vm548, %v3683, %v3696
        %v3705 = vsel %vm548, %v3685, %v3697
        %v3706 = vsel %vm548, %v3687, %v3698
        %v3707 = vsel %vm548, %v3689, %v3699
        %v3708 = vsel %vm548, %v3691, %v3700
        %v3709 = vsel %vm548, %v3693, %v3701
        %3718 = vst [vmem:[#allocation3 + $0x20] sm:$0xf] %v3702
        %3719 = vst [vmem:[#allocation3 + $0x24] sm:$0xf] %v3703
        %3720 = vst [vmem:[#allocation3 + $0x28] sm:$0xf] %v3704
        %3721 = vst [vmem:[#allocation3 + $0x2c] sm:$0xf] %v3705
        %3722 = vst [vmem:[#allocation3 + $0x30] sm:$0xf] %v3706
        %3723 = vst [vmem:[#allocation3 + $0x34] sm:$0xf] %v3707
        %3724 = vst [vmem:[#allocation3 + $0x38] sm:$0xf] %v3708
        %3725 = vst [vmem:[#allocation3 + $0x3c] sm:$0xf] %v3709
        %v3726 = vld [vmem:[#allocation2] sm:$0xff]
        %v3727 = vld [vmem:[#allocation2 + $0x8] sm:$0xff]
        %v3728 = vld [vmem:[#allocation2 + $0x10] sm:$0xff]
        %v3729 = vld [vmem:[#allocation2 + $0x18] sm:$0xff]
        %v3730 = vld [vmem:[#allocation2 + $0x20] sm:$0xff]
        %v3731 = vld [vmem:[#allocation2 + $0x28] sm:$0xff]
        %v3732 = vld [vmem:[#allocation2 + $0x30] sm:$0xff]
        %v3733 = vld [vmem:[#allocation2 + $0x38] sm:$0xff]
        %3742 = vrot.lane.b32.xlu0 %v3726, 126
        %v3743 = vpop.permute.xlu0 %3742
        %3744 = vrot.lane.b32.xlu0 %v3727, 126
        %v3745 = vpop.permute.xlu0 %3744
        %3746 = vrot.lane.b32.xlu0 %v3728, 126
        %v3747 = vpop.permute.xlu0 %3746
        %3748 = vrot.lane.b32.xlu0 %v3729, 126
        %v3749 = vpop.permute.xlu0 %3748
        %3750 = vrot.lane.b32.xlu0 %v3730, 126
        %v3751 = vpop.permute.xlu0 %3750
        %3752 = vrot.lane.b32.xlu0 %v3731, 126
        %v3753 = vpop.permute.xlu0 %3752
        %3754 = vrot.lane.b32.xlu0 %v3732, 126
        %v3755 = vpop.permute.xlu0 %3754
        %3756 = vrot.lane.b32.xlu0 %v3733, 126
        %v3757 = vpop.permute.xlu0 %3756
        %v3758 = vrot.slane %v3743, 4
        %v3759 = vrot.slane %v3745, 4
        %v3760 = vrot.slane %v3747, 4
        %v3761 = vrot.slane %v3749, 4
        %v3762 = vrot.slane %v3751, 4
        %v3763 = vrot.slane %v3753, 4
        %v3764 = vrot.slane %v3755, 4
        %v3765 = vrot.slane %v3757, 4
        %v3766 = vsel %vm613, %v3743, %v3758
        %v3767 = vsel %vm613, %v3745, %v3759
        %v3768 = vsel %vm613, %v3747, %v3760
        %v3769 = vsel %vm613, %v3749, %v3761
        %v3770 = vsel %vm613, %v3751, %v3762
        %v3771 = vsel %vm613, %v3753, %v3763
        %v3772 = vsel %vm613, %v3755, %v3764
        %v3773 = vsel %vm613, %v3757, %v3765
        %3782 = vst [vmem:[#allocation3 + $0x40] sm:$0xf] %v3766
        %3783 = vst [vmem:[#allocation3 + $0x44] sm:$0xf] %v3767
        %3784 = vst [vmem:[#allocation3 + $0x48] sm:$0xf] %v3768
        %3785 = vst [vmem:[#allocation3 + $0x4c] sm:$0xf] %v3769
        %3786 = vst [vmem:[#allocation3 + $0x50] sm:$0xf] %v3770
        %3787 = vst [vmem:[#allocation3 + $0x54] sm:$0xf] %v3771
        %3788 = vst [vmem:[#allocation3 + $0x58] sm:$0xf] %v3772
        %3789 = vst [vmem:[#allocation3 + $0x5c] sm:$0xf] %v3773
        %v3790 = vld [vmem:[#allocation2] sm:$0xff]
        %v3791 = vld [vmem:[#allocation2 + $0x8] sm:$0xff]
        %v3792 = vld [vmem:[#allocation2 + $0x10] sm:$0xff]
        %v3793 = vld [vmem:[#allocation2 + $0x18] sm:$0xff]
        %v3794 = vld [vmem:[#allocation2 + $0x20] sm:$0xff]
        %v3795 = vld [vmem:[#allocation2 + $0x28] sm:$0xff]
        %v3796 = vld [vmem:[#allocation2 + $0x30] sm:$0xff]
        %v3797 = vld [vmem:[#allocation2 + $0x38] sm:$0xff]
        %3806 = vrot.lane.b32.xlu0 %v3790, 125
        %v3807 = vpop.permute.xlu0 %3806
        %3808 = vrot.lane.b32.xlu0 %v3791, 125
        %v3809 = vpop.permute.xlu0 %3808
        %3810 = vrot.lane.b32.xlu0 %v3792, 125
        %v3811 = vpop.permute.xlu0 %3810
        %3812 = vrot.lane.b32.xlu0 %v3793, 125
        %v3813 = vpop.permute.xlu0 %3812
        %3814 = vrot.lane.b32.xlu0 %v3794, 125
        %v3815 = vpop.permute.xlu0 %3814
        %3816 = vrot.lane.b32.xlu0 %v3795, 125
        %v3817 = vpop.permute.xlu0 %3816
        %3818 = vrot.lane.b32.xlu0 %v3796, 125
        %v3819 = vpop.permute.xlu0 %3818
        %3820 = vrot.lane.b32.xlu0 %v3797, 125
        %v3821 = vpop.permute.xlu0 %3820
        %v3822 = vrot.slane %v3807, 4
        %v3823 = vrot.slane %v3809, 4
        %v3824 = vrot.slane %v3811, 4
        %v3825 = vrot.slane %v3813, 4
        %v3826 = vrot.slane %v3815, 4
        %v3827 = vrot.slane %v3817, 4
        %v3828 = vrot.slane %v3819, 4
        %v3829 = vrot.slane %v3821, 4
        %v3830 = vsel %vm678, %v3807, %v3822
        %v3831 = vsel %vm678, %v3809, %v3823
        %v3832 = vsel %vm678, %v3811, %v3824
        %v3833 = vsel %vm678, %v3813, %v3825
        %v3834 = vsel %vm678, %v3815, %v3826
        %v3835 = vsel %vm678, %v3817, %v3827
        %v3836 = vsel %vm678, %v3819, %v3828
        %v3837 = vsel %vm678, %v3821, %v3829
        %3846 = vst [vmem:[#allocation3 + $0x60] sm:$0xf] %v3830
        %3847 = vst [vmem:[#allocation3 + $0x64] sm:$0xf] %v3831
        %3848 = vst [vmem:[#allocation3 + $0x68] sm:$0xf] %v3832
        %3849 = vst [vmem:[#allocation3 + $0x6c] sm:$0xf] %v3833
        %3850 = vst [vmem:[#allocation3 + $0x70] sm:$0xf] %v3834
        %3851 = vst [vmem:[#allocation3 + $0x74] sm:$0xf] %v3835
        %3852 = vst [vmem:[#allocation3 + $0x78] sm:$0xf] %v3836
        %3853 = vst [vmem:[#allocation3 + $0x7c] sm:$0xf] %v3837
        %v3854 = vld [vmem:[#allocation2] sm:$0xff]
        %v3855 = vld [vmem:[#allocation2 + $0x8] sm:$0xff]
        %v3856 = vld [vmem:[#allocation2 + $0x10] sm:$0xff]
        %v3857 = vld [vmem:[#allocation2 + $0x18] sm:$0xff]
        %v3858 = vld [vmem:[#allocation2 + $0x20] sm:$0xff]
        %v3859 = vld [vmem:[#allocation2 + $0x28] sm:$0xff]
        %v3860 = vld [vmem:[#allocation2 + $0x30] sm:$0xff]
        %v3861 = vld [vmem:[#allocation2 + $0x38] sm:$0xff]
        %3870 = vrot.lane.b32.xlu0 %v3854, 124
        %v3871 = vpop.permute.xlu0 %3870
        %3872 = vrot.lane.b32.xlu0 %v3855, 124
        %v3873 = vpop.permute.xlu0 %3872
        %3874 = vrot.lane.b32.xlu0 %v3856, 124
        %v3875 = vpop.permute.xlu0 %3874
        %3876 = vrot.lane.b32.xlu0 %v3857, 124
        %v3877 = vpop.permute.xlu0 %3876
        %3878 = vrot.lane.b32.xlu0 %v3858, 124
        %v3879 = vpop.permute.xlu0 %3878
        %3880 = vrot.lane.b32.xlu0 %v3859, 124
        %v3881 = vpop.permute.xlu0 %3880
        %3882 = vrot.lane.b32.xlu0 %v3860, 124
        %v3883 = vpop.permute.xlu0 %3882
        %3884 = vrot.lane.b32.xlu0 %v3861, 124
        %v3885 = vpop.permute.xlu0 %3884
        %v3886 = vrot.slane %v3871, 4
        %v3887 = vrot.slane %v3873, 4
        %v3888 = vrot.slane %v3875, 4
        %v3889 = vrot.slane %v3877, 4
        %v3890 = vrot.slane %v3879, 4
        %v3891 = vrot.slane %v3881, 4
        %v3892 = vrot.slane %v3883, 4
        %v3893 = vrot.slane %v3885, 4
        %v3894 = vsel %vm743, %v3871, %v3886
        %v3895 = vsel %vm743, %v3873, %v3887
        %v3896 = vsel %vm743, %v3875, %v3888
        %v3897 = vsel %vm743, %v3877, %v3889
        %v3898 = vsel %vm743, %v3879, %v3890
        %v3899 = vsel %vm743, %v3881, %v3891
        %v3900 = vsel %vm743, %v3883, %v3892
        %v3901 = vsel %vm743, %v3885, %v3893
        %3910 = vst [vmem:[#allocation3 + $0x80] sm:$0xf] %v3894
        %3911 = vst [vmem:[#allocation3 + $0x84] sm:$0xf] %v3895
        %3912 = vst [vmem:[#allocation3 + $0x88] sm:$0xf] %v3896
        %3913 = vst [vmem:[#allocation3 + $0x8c] sm:$0xf] %v3897
        %3914 = vst [vmem:[#allocation3 + $0x90] sm:$0xf] %v3898
        %3915 = vst [vmem:[#allocation3 + $0x94] sm:$0xf] %v3899
        %3916 = vst [vmem:[#allocation3 + $0x98] sm:$0xf] %v3900
        %3917 = vst [vmem:[#allocation3 + $0x9c] sm:$0xf] %v3901
        %v3918 = vld [vmem:[#allocation2] sm:$0xff]
        %v3919 = vld [vmem:[#allocation2 + $0x8] sm:$0xff]
        %v3920 = vld [vmem:[#allocation2 + $0x10] sm:$0xff]
        %v3921 = vld [vmem:[#allocation2 + $0x18] sm:$0xff]
        %v3922 = vld [vmem:[#allocation2 + $0x20] sm:$0xff]
        %v3923 = vld [vmem:[#allocation2 + $0x28] sm:$0xff]
        %v3924 = vld [vmem:[#allocation2 + $0x30] sm:$0xff]
        %v3925 = vld [vmem:[#allocation2 + $0x38] sm:$0xff]
        %3934 = vrot.lane.b32.xlu0 %v3918, 123
        %v3935 = vpop.permute.xlu0 %3934
        %3936 = vrot.lane.b32.xlu0 %v3919, 123
        %v3937 = vpop.permute.xlu0 %3936
        %3938 = vrot.lane.b32.xlu0 %v3920, 123
        %v3939 = vpop.permute.xlu0 %3938
        %3940 = vrot.lane.b32.xlu0 %v3921, 123
        %v3941 = vpop.permute.xlu0 %3940
        %3942 = vrot.lane.b32.xlu0 %v3922, 123
        %v3943 = vpop.permute.xlu0 %3942
        %3944 = vrot.lane.b32.xlu0 %v3923, 123
        %v3945 = vpop.permute.xlu0 %3944
        %3946 = vrot.lane.b32.xlu0 %v3924, 123
        %v3947 = vpop.permute.xlu0 %3946
        %3948 = vrot.lane.b32.xlu0 %v3925, 123
        %v3949 = vpop.permute.xlu0 %3948
        %v3950 = vrot.slane %v3935, 4
        %v3951 = vrot.slane %v3937, 4
        %v3952 = vrot.slane %v3939, 4
        %v3953 = vrot.slane %v3941, 4
        %v3954 = vrot.slane %v3943, 4
        %v3955 = vrot.slane %v3945, 4
        %v3956 = vrot.slane %v3947, 4
        %v3957 = vrot.slane %v3949, 4
        %v3958 = vsel %vm808, %v3935, %v3950
        %v3959 = vsel %vm808, %v3937, %v3951
        %v3960 = vsel %vm808, %v3939, %v3952
        %v3961 = vsel %vm808, %v3941, %v3953
        %v3962 = vsel %vm808, %v3943, %v3954
        %v3963 = vsel %vm808, %v3945, %v3955
        %v3964 = vsel %vm808, %v3947, %v3956
        %v3965 = vsel %vm808, %v3949, %v3957
        %3974 = vst [vmem:[#allocation3 + $0xa0] sm:$0xf] %v3958
        %3975 = vst [vmem:[#allocation3 + $0xa4] sm:$0xf] %v3959
        %3976 = vst [vmem:[#allocation3 + $0xa8] sm:$0xf] %v3960
        %3977 = vst [vmem:[#allocation3 + $0xac] sm:$0xf] %v3961
        %3978 = vst [vmem:[#allocation3 + $0xb0] sm:$0xf] %v3962
        %3979 = vst [vmem:[#allocation3 + $0xb4] sm:$0xf] %v3963
        %3980 = vst [vmem:[#allocation3 + $0xb8] sm:$0xf] %v3964
        %3981 = vst [vmem:[#allocation3 + $0xbc] sm:$0xf] %v3965
        %v3982 = vld [vmem:[#allocation2] sm:$0xff]
        %v3983 = vld [vmem:[#allocation2 + $0x8] sm:$0xff]
        %v3984 = vld [vmem:[#allocation2 + $0x10] sm:$0xff]
        %v3985 = vld [vmem:[#allocation2 + $0x18] sm:$0xff]
        %v3986 = vld [vmem:[#allocation2 + $0x20] sm:$0xff]
        %v3987 = vld [vmem:[#allocation2 + $0x28] sm:$0xff]
        %v3988 = vld [vmem:[#allocation2 + $0x30] sm:$0xff]
        %v3989 = vld [vmem:[#allocation2 + $0x38] sm:$0xff]
        %3998 = vrot.lane.b32.xlu0 %v3982, 122
        %v3999 = vpop.permute.xlu0 %3998
        %4000 = vrot.lane.b32.xlu0 %v3983, 122
        %v4001 = vpop.permute.xlu0 %4000
        %4002 = vrot.lane.b32.xlu0 %v3984, 122
        %v4003 = vpop.permute.xlu0 %4002
        %4004 = vrot.lane.b32.xlu0 %v3985, 122
        %v4005 = vpop.permute.xlu0 %4004
        %4006 = vrot.lane.b32.xlu0 %v3986, 122
        %v4007 = vpop.permute.xlu0 %4006
        %4008 = vrot.lane.b32.xlu0 %v3987, 122
        %v4009 = vpop.permute.xlu0 %4008
        %4010 = vrot.lane.b32.xlu0 %v3988, 122
        %v4011 = vpop.permute.xlu0 %4010
        %4012 = vrot.lane.b32.xlu0 %v3989, 122
        %v4013 = vpop.permute.xlu0 %4012
        %v4014 = vrot.slane %v3999, 4
        %v4015 = vrot.slane %v4001, 4
        %v4016 = vrot.slane %v4003, 4
        %v4017 = vrot.slane %v4005, 4
        %v4018 = vrot.slane %v4007, 4
        %v4019 = vrot.slane %v4009, 4
        %v4020 = vrot.slane %v4011, 4
        %v4021 = vrot.slane %v4013, 4
        %v4022 = vsel %vm873, %v3999, %v4014
        %v4023 = vsel %vm873, %v4001, %v4015
        %v4024 = vsel %vm873, %v4003, %v4016
        %v4025 = vsel %vm873, %v4005, %v4017
        %v4026 = vsel %vm873, %v4007, %v4018
        %v4027 = vsel %vm873, %v4009, %v4019
        %v4028 = vsel %vm873, %v4011, %v4020
        %v4029 = vsel %vm873, %v4013, %v4021
        %4038 = vst [vmem:[#allocation3 + $0xc0] sm:$0xf] %v4022
        %4039 = vst [vmem:[#allocation3 + $0xc4] sm:$0xf] %v4023
        %4040 = vst [vmem:[#allocation3 + $0xc8] sm:$0xf] %v4024
        %4041 = vst [vmem:[#allocation3 + $0xcc] sm:$0xf] %v4025
        %4042 = vst [vmem:[#allocation3 + $0xd0] sm:$0xf] %v4026
        %4043 = vst [vmem:[#allocation3 + $0xd4] sm:$0xf] %v4027
        %4044 = vst [vmem:[#allocation3 + $0xd8] sm:$0xf] %v4028
        %4045 = vst [vmem:[#allocation3 + $0xdc] sm:$0xf] %v4029
        %v4046 = vld [vmem:[#allocation2] sm:$0xff]
        %v4047 = vld [vmem:[#allocation2 + $0x8] sm:$0xff]
        %v4048 = vld [vmem:[#allocation2 + $0x10] sm:$0xff]
        %v4049 = vld [vmem:[#allocation2 + $0x18] sm:$0xff]
        %v4050 = vld [vmem:[#allocation2 + $0x20] sm:$0xff]
        %v4051 = vld [vmem:[#allocation2 + $0x28] sm:$0xff]
        %v4052 = vld [vmem:[#allocation2 + $0x30] sm:$0xff]
        %v4053 = vld [vmem:[#allocation2 + $0x38] sm:$0xff]
        %4062 = vrot.lane.b32.xlu0 %v4046, 121
        %v4063 = vpop.permute.xlu0 %4062
        %4064 = vrot.lane.b32.xlu0 %v4047, 121
        %v4065 = vpop.permute.xlu0 %4064
        %4066 = vrot.lane.b32.xlu0 %v4048, 121
        %v4067 = vpop.permute.xlu0 %4066
        %4068 = vrot.lane.b32.xlu0 %v4049, 121
        %v4069 = vpop.permute.xlu0 %4068
        %4070 = vrot.lane.b32.xlu0 %v4050, 121
        %v4071 = vpop.permute.xlu0 %4070
        %4072 = vrot.lane.b32.xlu0 %v4051, 121
        %v4073 = vpop.permute.xlu0 %4072
        %4074 = vrot.lane.b32.xlu0 %v4052, 121
        %v4075 = vpop.permute.xlu0 %4074
        %4076 = vrot.lane.b32.xlu0 %v4053, 121
        %v4077 = vpop.permute.xlu0 %4076
        %v4078 = vrot.slane %v4063, 4
        %v4079 = vrot.slane %v4065, 4
        %v4080 = vrot.slane %v4067, 4
        %v4081 = vrot.slane %v4069, 4
        %v4082 = vrot.slane %v4071, 4
        %v4083 = vrot.slane %v4073, 4
        %v4084 = vrot.slane %v4075, 4
        %v4085 = vrot.slane %v4077, 4
        %v4086 = vsel %vm938, %v4063, %v4078
        %v4087 = vsel %vm938, %v4065, %v4079
        %v4088 = vsel %vm938, %v4067, %v4080
        %v4089 = vsel %vm938, %v4069, %v4081
        %v4090 = vsel %vm938, %v4071, %v4082
        %v4091 = vsel %vm938, %v4073, %v4083
        %v4092 = vsel %vm938, %v4075, %v4084
        %v4093 = vsel %vm938, %v4077, %v4085
        %4102 = vst [vmem:[#allocation3 + $0xe0] sm:$0xf] %v4086
        %4103 = vst [vmem:[#allocation3 + $0xe4] sm:$0xf] %v4087
        %4104 = vst [vmem:[#allocation3 + $0xe8] sm:$0xf] %v4088
        %4105 = vst [vmem:[#allocation3 + $0xec] sm:$0xf] %v4089
        %4106 = vst [vmem:[#allocation3 + $0xf0] sm:$0xf] %v4090
        %4107 = vst [vmem:[#allocation3 + $0xf4] sm:$0xf] %v4091
        %4108 = vst [vmem:[#allocation3 + $0xf8] sm:$0xf] %v4092
        %4109 = vst [vmem:[#allocation3 + $0xfc] sm:$0xf] %v4093
        %v4110 = vld [vmem:[#allocation3] sm:$0xf]
        %v4111 = vld [vmem:[#allocation3 + $0x4] sm:$0xf]
        %v4112 = vld [vmem:[#allocation3 + $0x8] sm:$0xf]
        %v4113 = vld [vmem:[#allocation3 + $0xc] sm:$0xf]
        %v4114 = vld [vmem:[#allocation3 + $0x10] sm:$0xf]
        %v4115 = vld [vmem:[#allocation3 + $0x14] sm:$0xf]
        %v4116 = vld [vmem:[#allocation3 + $0x18] sm:$0xf]
        %v4117 = vld [vmem:[#allocation3 + $0x1c] sm:$0xf]
        %v4118 = vld [vmem:[#allocation3 + $0x20] sm:$0xf]
        %v4119 = vld [vmem:[#allocation3 + $0x24] sm:$0xf]
        %v4120 = vld [vmem:[#allocation3 + $0x28] sm:$0xf]
        %v4121 = vld [vmem:[#allocation3 + $0x2c] sm:$0xf]
        %v4122 = vld [vmem:[#allocation3 + $0x30] sm:$0xf]
        %v4123 = vld [vmem:[#allocation3 + $0x34] sm:$0xf]
        %v4124 = vld [vmem:[#allocation3 + $0x38] sm:$0xf]
        %v4125 = vld [vmem:[#allocation3 + $0x3c] sm:$0xf]
        %v4126 = vld [vmem:[#allocation3 + $0x40] sm:$0xf]
        %v4127 = vld [vmem:[#allocation3 + $0x44] sm:$0xf]
        %v4128 = vld [vmem:[#allocation3 + $0x48] sm:$0xf]
        %v4129 = vld [vmem:[#allocation3 + $0x4c] sm:$0xf]
        %v4130 = vld [vmem:[#allocation3 + $0x50] sm:$0xf]
        %v4131 = vld [vmem:[#allocation3 + $0x54] sm:$0xf]
        %v4132 = vld [vmem:[#allocation3 + $0x58] sm:$0xf]
        %v4133 = vld [vmem:[#allocation3 + $0x5c] sm:$0xf]
        %v4134 = vld [vmem:[#allocation3 + $0x60] sm:$0xf]
        %v4135 = vld [vmem:[#allocation3 + $0x64] sm:$0xf]
        %v4136 = vld [vmem:[#allocation3 + $0x68] sm:$0xf]
        %v4137 = vld [vmem:[#allocation3 + $0x6c] sm:$0xf]
        %v4138 = vld [vmem:[#allocation3 + $0x70] sm:$0xf]
        %v4139 = vld [vmem:[#allocation3 + $0x74] sm:$0xf]
        %v4140 = vld [vmem:[#allocation3 + $0x78] sm:$0xf]
        %v4141 = vld [vmem:[#allocation3 + $0x7c] sm:$0xf]
        %v4142 = vld [vmem:[#allocation3 + $0x80] sm:$0xf]
        %v4143 = vld [vmem:[#allocation3 + $0x84] sm:$0xf]
        %v4144 = vld [vmem:[#allocation3 + $0x88] sm:$0xf]
        %v4145 = vld [vmem:[#allocation3 + $0x8c] sm:$0xf]
        %v4146 = vld [vmem:[#allocation3 + $0x90] sm:$0xf]
        %v4147 = vld [vmem:[#allocation3 + $0x94] sm:$0xf]
        %v4148 = vld [vmem:[#allocation3 + $0x98] sm:$0xf]
        %v4149 = vld [vmem:[#allocation3 + $0x9c] sm:$0xf]
        %v4150 = vld [vmem:[#allocation3 + $0xa0] sm:$0xf]
        %v4151 = vld [vmem:[#allocation3 + $0xa4] sm:$0xf]
        %v4152 = vld [vmem:[#allocation3 + $0xa8] sm:$0xf]
        %v4153 = vld [vmem:[#allocation3 + $0xac] sm:$0xf]
        %v4154 = vld [vmem:[#allocation3 + $0xb0] sm:$0xf]
        %v4155 = vld [vmem:[#allocation3 + $0xb4] sm:$0xf]
        %v4156 = vld [vmem:[#allocation3 + $0xb8] sm:$0xf]
        %v4157 = vld [vmem:[#allocation3 + $0xbc] sm:$0xf]
        %v4158 = vld [vmem:[#allocation3 + $0xc0] sm:$0xf]
        %v4159 = vld [vmem:[#allocation3 + $0xc4] sm:$0xf]
        %v4160 = vld [vmem:[#allocation3 + $0xc8] sm:$0xf]
        %v4161 = vld [vmem:[#allocation3 + $0xcc] sm:$0xf]
        %v4162 = vld [vmem:[#allocation3 + $0xd0] sm:$0xf]
        %v4163 = vld [vmem:[#allocation3 + $0xd4] sm:$0xf]
        %v4164 = vld [vmem:[#allocation3 + $0xd8] sm:$0xf]
        %v4165 = vld [vmem:[#allocation3 + $0xdc] sm:$0xf]
        %v4166 = vld [vmem:[#allocation3 + $0xe0] sm:$0xf]
        %v4167 = vld [vmem:[#allocation3 + $0xe4] sm:$0xf]
        %v4168 = vld [vmem:[#allocation3 + $0xe8] sm:$0xf]
        %v4169 = vld [vmem:[#allocation3 + $0xec] sm:$0xf]
        %v4170 = vld [vmem:[#allocation3 + $0xf0] sm:$0xf]
        %v4171 = vld [vmem:[#allocation3 + $0xf4] sm:$0xf]
        %v4172 = vld [vmem:[#allocation3 + $0xf8] sm:$0xf]
        %v4173 = vld [vmem:[#allocation3 + $0xfc] sm:$0xf]
        %4175 = vset.pattern.permute.xlu0 0
        %4176 = vperm.xlu0 %4175, %v3578
        %v4177 = vpop.permute.xlu0 %4176
        %4180 = vset.pattern.permute.xlu0 0
        %4181 = vperm.xlu0 %4180, %v3579
        %v4182 = vpop.permute.xlu0 %4181
        %4185 = vset.pattern.permute.xlu0 0
        %4186 = vperm.xlu0 %4185, %v3580
        %v4187 = vpop.permute.xlu0 %4186
        %4190 = vset.pattern.permute.xlu0 0
        %4191 = vperm.xlu0 %4190, %v3581
        %v4192 = vpop.permute.xlu0 %4191
        %v4202 = vunpack.c.l.b16 %v3569
        %v4203 = vunpack.c.h.b16 %v3569
        %v4204 = vunpack.c.l.b16 %v3570
        %v4205 = vunpack.c.h.b16 %v3570
        %v4206 = vunpack.c.l.b16 %v3571
        %v4207 = vunpack.c.h.b16 %v3571
        %v4208 = vunpack.c.l.b16 %v3572
        %v4209 = vunpack.c.h.b16 %v3572
        %v4210 = vunpack.c.l.b16 %v3573
        %v4211 = vunpack.c.h.b16 %v3573
        %v4212 = vunpack.c.l.b16 %v3574
        %v4213 = vunpack.c.h.b16 %v3574
        %v4214 = vunpack.c.l.b16 %v3575
        %v4215 = vunpack.c.h.b16 %v3575
        %v4216 = vunpack.c.l.b16 %v3576
        %v4217 = vunpack.c.h.b16 %v3576
        %v4218 = vpack.c.b16 %v4206, %v4202
        %v4219 = vpack.c.b16 %v4207, %v4203
        %v4220 = vpack.c.b16 %v4208, %v4204
        %v4221 = vpack.c.b16 %v4209, %v4205
        %v4222 = vpack.c.b16 %v4214, %v4210
        %v4223 = vpack.c.b16 %v4215, %v4211
        %v4224 = vpack.c.b16 %v4216, %v4212
        %v4225 = vpack.c.b16 %v4217, %v4213
        %v4298 = vunpack.c.l.b16 %v4110
        %v4299 = vunpack.c.l.b16 %v4111
        %v4300 = vunpack.c.l.b16 %v4112
        %v4301 = vunpack.c.l.b16 %v4113
        %v4302 = vunpack.c.l.b16 %v4114
        %v4303 = vunpack.c.l.b16 %v4115
        %v4304 = vunpack.c.l.b16 %v4116
        %v4305 = vunpack.c.l.b16 %v4117
        %v4306 = vunpack.c.l.b16 %v4118
        %v4307 = vunpack.c.l.b16 %v4119
        %v4308 = vunpack.c.l.b16 %v4120
        %v4309 = vunpack.c.l.b16 %v4121
        %v4310 = vunpack.c.l.b16 %v4122
        %v4311 = vunpack.c.l.b16 %v4123
        %v4312 = vunpack.c.l.b16 %v4124
        %v4313 = vunpack.c.l.b16 %v4125
        %v4314 = vunpack.c.l.b16 %v4126
        %v4315 = vunpack.c.l.b16 %v4127
        %v4316 = vunpack.c.l.b16 %v4128
        %v4317 = vunpack.c.l.b16 %v4129
        %v4318 = vunpack.c.l.b16 %v4130
        %v4319 = vunpack.c.l.b16 %v4131
        %v4320 = vunpack.c.l.b16 %v4132
        %v4321 = vunpack.c.l.b16 %v4133
        %v4322 = vunpack.c.l.b16 %v4134
        %v4323 = vunpack.c.l.b16 %v4135
        %v4324 = vunpack.c.l.b16 %v4136
        %v4325 = vunpack.c.l.b16 %v4137
        %v4326 = vunpack.c.l.b16 %v4138
        %v4327 = vunpack.c.l.b16 %v4139
        %v4328 = vunpack.c.l.b16 %v4140
        %v4329 = vunpack.c.l.b16 %v4141
        %v4330 = vunpack.c.l.b16 %v4142
        %v4331 = vunpack.c.l.b16 %v4143
        %v4332 = vunpack.c.l.b16 %v4144
        %v4333 = vunpack.c.l.b16 %v4145
        %v4334 = vunpack.c.l.b16 %v4146
        %v4335 = vunpack.c.l.b16 %v4147
        %v4336 = vunpack.c.l.b16 %v4148
        %v4337 = vunpack.c.l.b16 %v4149
        %v4338 = vunpack.c.l.b16 %v4150
        %v4339 = vunpack.c.l.b16 %v4151
        %v4340 = vunpack.c.l.b16 %v4152
        %v4341 = vunpack.c.l.b16 %v4153
        %v4342 = vunpack.c.l.b16 %v4154
        %v4343 = vunpack.c.l.b16 %v4155
        %v4344 = vunpack.c.l.b16 %v4156
        %v4345 = vunpack.c.l.b16 %v4157
        %v4346 = vunpack.c.l.b16 %v4158
        %v4347 = vunpack.c.l.b16 %v4159
        %v4348 = vunpack.c.l.b16 %v4160
        %v4349 = vunpack.c.l.b16 %v4161
        %v4350 = vunpack.c.l.b16 %v4162
        %v4351 = vunpack.c.l.b16 %v4163
        %v4352 = vunpack.c.l.b16 %v4164
        %v4353 = vunpack.c.l.b16 %v4165
        %v4354 = vunpack.c.l.b16 %v4166
        %v4355 = vunpack.c.l.b16 %v4167
        %v4356 = vunpack.c.l.b16 %v4168
        %v4357 = vunpack.c.l.b16 %v4169
        %v4358 = vunpack.c.l.b16 %v4170
        %v4359 = vunpack.c.l.b16 %v4171
        %v4360 = vunpack.c.l.b16 %v4172
        %v4361 = vunpack.c.l.b16 %v4173
        %v4362 = vpack.c.b16 %v4299, %v4298
        %v4363 = vpack.c.b16 %v4301, %v4300
        %v4364 = vpack.c.b16 %v4303, %v4302
        %v4365 = vpack.c.b16 %v4305, %v4304
        %v4366 = vpack.c.b16 %v4307, %v4306
        %v4367 = vpack.c.b16 %v4309, %v4308
        %v4368 = vpack.c.b16 %v4311, %v4310
        %v4369 = vpack.c.b16 %v4313, %v4312
        %v4370 = vpack.c.b16 %v4315, %v4314
        %v4371 = vpack.c.b16 %v4317, %v4316
        %v4372 = vpack.c.b16 %v4319, %v4318
        %v4373 = vpack.c.b16 %v4321, %v4320
        %v4374 = vpack.c.b16 %v4323, %v4322
        %v4375 = vpack.c.b16 %v4325, %v4324
        %v4376 = vpack.c.b16 %v4327, %v4326
        %v4377 = vpack.c.b16 %v4329, %v4328
        %v4378 = vpack.c.b16 %v4331, %v4330
        %v4379 = vpack.c.b16 %v4333, %v4332
        %v4380 = vpack.c.b16 %v4335, %v4334
        %v4381 = vpack.c.b16 %v4337, %v4336
        %v4382 = vpack.c.b16 %v4339, %v4338
        %v4383 = vpack.c.b16 %v4341, %v4340
        %v4384 = vpack.c.b16 %v4343, %v4342
        %v4385 = vpack.c.b16 %v4345, %v4344
        %v4386 = vpack.c.b16 %v4347, %v4346
        %v4387 = vpack.c.b16 %v4349, %v4348
        %v4388 = vpack.c.b16 %v4351, %v4350
        %v4389 = vpack.c.b16 %v4353, %v4352
        %v4390 = vpack.c.b16 %v4355, %v4354
        %v4391 = vpack.c.b16 %v4357, %v4356
        %v4392 = vpack.c.b16 %v4359, %v4358
        %v4393 = vpack.c.b16 %v4361, %v4360
        %4426 = vmatpush.bf16.msra.mxu0 %v4369
        %4427 = vmatpush.bf16.msra.mxu0 %v4368
        %4428 = vmatpush.bf16.msra.mxu0 %v4367
        %4429 = vmatpush.bf16.msra.mxu0 %v4366
        %4430 = vmatpush.bf16.msra.mxu0 %v4365
        %4431 = vmatpush.bf16.msra.mxu0 %v4364
        %4432 = vmatpush.bf16.msra.mxu0 %v4363
        %4433 = vmatpush.bf16.msra.mxu0 %v4362
        %4434 = vmatmul.bf16.gmra.mxu0 %v4218
        %v4435 = vpop.f32.mrf.mxu0
        %v4436 = vadd.f32 %v4177, %v4435
        %v4437 = vpop.f32.mrf.mxu0
        %v4438 = vadd.f32 %v4182, %v4437
        %4439 = vmatmul.bf16.gmra.mxu0 %v4222
        %v4440 = vpop.f32.mrf.mxu0
        %v4441 = vadd.f32 %v4187, %v4440
        %v4442 = vpop.f32.mrf.mxu0
        %v4443 = vadd.f32 %v4192, %v4442
        %4444 = vdwg.mxu0
        %4445 = vmatpush.bf16.msra.mxu0 %v4377
        %4446 = vmatpush.bf16.msra.mxu0 %v4376
        %4447 = vmatpush.bf16.msra.mxu0 %v4375
        %4448 = vmatpush.bf16.msra.mxu0 %v4374
        %4449 = vmatpush.bf16.msra.mxu0 %v4373
        %4450 = vmatpush.bf16.msra.mxu0 %v4372
        %4451 = vmatpush.bf16.msra.mxu0 %v4371
        %4452 = vmatpush.bf16.msra.mxu0 %v4370
        %4453 = vmatmul.bf16.gmra.mxu0 %v4219
        %v4454 = vpop.f32.mrf.mxu0
        %v4455 = vadd.f32 %v4436, %v4454
        %v4456 = vpop.f32.mrf.mxu0
        %v4457 = vadd.f32 %v4438, %v4456
        %4458 = vmatmul.bf16.gmra.mxu0 %v4223
        %v4459 = vpop.f32.mrf.mxu0
        %v4460 = vadd.f32 %v4441, %v4459
        %v4461 = vpop.f32.mrf.mxu0
        %v4462 = vadd.f32 %v4443, %v4461
        %4463 = vdwg.mxu0
        %4464 = vmatpush.bf16.msra.mxu0 %v4385
        %4465 = vmatpush.bf16.msra.mxu0 %v4384
        %4466 = vmatpush.bf16.msra.mxu0 %v4383
        %4467 = vmatpush.bf16.msra.mxu0 %v4382
        %4468 = vmatpush.bf16.msra.mxu0 %v4381
        %4469 = vmatpush.bf16.msra.mxu0 %v4380
        %4470 = vmatpush.bf16.msra.mxu0 %v4379
        %4471 = vmatpush.bf16.msra.mxu0 %v4378
        %4472 = vmatmul.bf16.gmra.mxu0 %v4220
        %v4473 = vpop.f32.mrf.mxu0
        %v4474 = vadd.f32 %v4455, %v4473
        %v4475 = vpop.f32.mrf.mxu0
        %v4476 = vadd.f32 %v4457, %v4475
        %4477 = vmatmul.bf16.gmra.mxu0 %v4224
        %v4478 = vpop.f32.mrf.mxu0
        %v4479 = vadd.f32 %v4460, %v4478
        %v4480 = vpop.f32.mrf.mxu0
        %v4481 = vadd.f32 %v4462, %v4480
        %4482 = vdwg.mxu0
        %4483 = vmatpush.bf16.msra.mxu0 %v4393
        %4484 = vmatpush.bf16.msra.mxu0 %v4392
        %4485 = vmatpush.bf16.msra.mxu0 %v4391
        %4486 = vmatpush.bf16.msra.mxu0 %v4390
        %4487 = vmatpush.bf16.msra.mxu0 %v4389
        %4488 = vmatpush.bf16.msra.mxu0 %v4388
        %4489 = vmatpush.bf16.msra.mxu0 %v4387
        %4490 = vmatpush.bf16.msra.mxu0 %v4386
        %4491 = vmatmul.bf16.gmra.mxu0 %v4221
        %v4492 = vpop.f32.mrf.mxu0
        %v4493 = vadd.f32 %v4474, %v4492
        %v4494 = vpop.f32.mrf.mxu0
        %v4495 = vadd.f32 %v4476, %v4494
        %4496 = vmatmul.bf16.gmra.mxu0 %v4225
        %v4497 = vpop.f32.mrf.mxu0
        %v4498 = vadd.f32 %v4479, %v4497
        %v4499 = vpop.f32.mrf.mxu0
        %v4500 = vadd.f32 %v4481, %v4499
        %4501 = vdwg.mxu0
        %s4502 = scalar_lea.vmem %s3, 64
        %v4503 = vld [vmem:[%s4502] sm:$0xff]
        %v4504 = vld [vmem:[%s4502 + $0x8] sm:$0xff]
        %v4505 = vld [vmem:[%s4502 + $0x10] sm:$0xff]
        %v4506 = vld [vmem:[%s4502 + $0x18] sm:$0xff]
        %s4507 = scalar_lea.vmem %s4, 64
        %v4508 = vld [vmem:[%s4507] sm:$0xff]
        %v4509 = vld [vmem:[%s4507 + $0x8] sm:$0xff]
        %v4510 = vld [vmem:[%s4507 + $0x10] sm:$0xff]
        %v4511 = vld [vmem:[%s4507 + $0x18] sm:$0xff]
        %v4512 = vpack.c.bf16 %v4493, %v4493
        %v4513 = vpack.c.bf16 %v4495, %v4495
        %v4514 = vpack.c.bf16 %v4498, %v4498
        %v4515 = vpack.c.bf16 %v4500, %v4500
        %4520 = vrot.lane.b32.xlu0 %v4512, 3
        %v4521 = vpop.permute.xlu0 %4520
        %4522 = vrot.lane.b32.xlu0 %v4513, 3
        %v4523 = vpop.permute.xlu0 %4522
        %4524 = vrot.lane.b32.xlu0 %v4514, 3
        %v4525 = vpop.permute.xlu0 %4524
        %4526 = vrot.lane.b32.xlu0 %v4515, 3
        %v4527 = vpop.permute.xlu0 %4526
        %v4528 = vrot.slane %v4521, 4
        %v4529 = vrot.slane %v4523, 4
        %v4530 = vrot.slane %v4525, 4
        %v4531 = vrot.slane %v4527, 4
        %v4532 = vsel %vm464, %v4528, %v4521
        %v4533 = vsel %vm464, %v4529, %v4523
        %v4534 = vsel %vm464, %v4530, %v4525
        %v4535 = vsel %vm464, %v4531, %v4527
        %4540 = vst.msk [vmem:[#allocation2] sm:$0xff] %vm483, %v4532
        %4541 = vst.msk [vmem:[#allocation2 + $0x8] sm:$0xff] %vm483, %v4533
        %4542 = vst.msk [vmem:[#allocation2 + $0x10] sm:$0xff] %vm483, %v4534
        %4543 = vst.msk [vmem:[#allocation2 + $0x18] sm:$0xff] %vm483, %v4535
        %v4544 = vld [vmem:[#allocation2] sm:$0xf]
        %v4545 = vld [vmem:[#allocation2 + $0x8] sm:$0xf]
        %v4546 = vld [vmem:[#allocation2 + $0x10] sm:$0xf]
        %v4547 = vld [vmem:[#allocation2 + $0x18] sm:$0xf]
        %4548 = vst [vmem:[#allocation3] sm:$0xf] %v4544
        %4549 = vst [vmem:[#allocation3 + $0x4] sm:$0xf] %v4545
        %4550 = vst [vmem:[#allocation3 + $0x8] sm:$0xf] %v4546
        %4551 = vst [vmem:[#allocation3 + $0xc] sm:$0xf] %v4547
        %v4552 = vld [vmem:[#allocation2] sm:$0xff]
        %v4553 = vld [vmem:[#allocation2 + $0x8] sm:$0xff]
        %v4554 = vld [vmem:[#allocation2 + $0x10] sm:$0xff]
        %v4555 = vld [vmem:[#allocation2 + $0x18] sm:$0xff]
        %4560 = vrot.lane.b32.xlu0 %v4552, 127
        %v4561 = vpop.permute.xlu0 %4560
        %4562 = vrot.lane.b32.xlu0 %v4553, 127
        %v4563 = vpop.permute.xlu0 %4562
        %4564 = vrot.lane.b32.xlu0 %v4554, 127
        %v4565 = vpop.permute.xlu0 %4564
        %4566 = vrot.lane.b32.xlu0 %v4555, 127
        %v4567 = vpop.permute.xlu0 %4566
        %v4568 = vrot.slane %v4561, 4
        %v4569 = vrot.slane %v4563, 4
        %v4570 = vrot.slane %v4565, 4
        %v4571 = vrot.slane %v4567, 4
        %v4572 = vsel %vm548, %v4561, %v4568
        %v4573 = vsel %vm548, %v4563, %v4569
        %v4574 = vsel %vm548, %v4565, %v4570
        %v4575 = vsel %vm548, %v4567, %v4571
        %4580 = vst [vmem:[#allocation3 + $0x10] sm:$0xf] %v4572
        %4581 = vst [vmem:[#allocation3 + $0x14] sm:$0xf] %v4573
        %4582 = vst [vmem:[#allocation3 + $0x18] sm:$0xf] %v4574
        %4583 = vst [vmem:[#allocation3 + $0x1c] sm:$0xf] %v4575
        %v4584 = vld [vmem:[#allocation2] sm:$0xff]
        %v4585 = vld [vmem:[#allocation2 + $0x8] sm:$0xff]
        %v4586 = vld [vmem:[#allocation2 + $0x10] sm:$0xff]
        %v4587 = vld [vmem:[#allocation2 + $0x18] sm:$0xff]
        %4592 = vrot.lane.b32.xlu0 %v4584, 126
        %v4593 = vpop.permute.xlu0 %4592
        %4594 = vrot.lane.b32.xlu0 %v4585, 126
        %v4595 = vpop.permute.xlu0 %4594
        %4596 = vrot.lane.b32.xlu0 %v4586, 126
        %v4597 = vpop.permute.xlu0 %4596
        %4598 = vrot.lane.b32.xlu0 %v4587, 126
        %v4599 = vpop.permute.xlu0 %4598
        %v4600 = vrot.slane %v4593, 4
        %v4601 = vrot.slane %v4595, 4
        %v4602 = vrot.slane %v4597, 4
        %v4603 = vrot.slane %v4599, 4
        %v4604 = vsel %vm613, %v4593, %v4600
        %v4605 = vsel %vm613, %v4595, %v4601
        %v4606 = vsel %vm613, %v4597, %v4602
        %v4607 = vsel %vm613, %v4599, %v4603
        %4612 = vst [vmem:[#allocation3 + $0x20] sm:$0xf] %v4604
        %4613 = vst [vmem:[#allocation3 + $0x24] sm:$0xf] %v4605
        %4614 = vst [vmem:[#allocation3 + $0x28] sm:$0xf] %v4606
        %4615 = vst [vmem:[#allocation3 + $0x2c] sm:$0xf] %v4607
        %v4616 = vld [vmem:[#allocation2] sm:$0xff]
        %v4617 = vld [vmem:[#allocation2 + $0x8] sm:$0xff]
        %v4618 = vld [vmem:[#allocation2 + $0x10] sm:$0xff]
        %v4619 = vld [vmem:[#allocation2 + $0x18] sm:$0xff]
        %4624 = vrot.lane.b32.xlu0 %v4616, 125
        %v4625 = vpop.permute.xlu0 %4624
        %4626 = vrot.lane.b32.xlu0 %v4617, 125
        %v4627 = vpop.permute.xlu0 %4626
        %4628 = vrot.lane.b32.xlu0 %v4618, 125
        %v4629 = vpop.permute.xlu0 %4628
        %4630 = vrot.lane.b32.xlu0 %v4619, 125
        %v4631 = vpop.permute.xlu0 %4630
        %v4632 = vrot.slane %v4625, 4
        %v4633 = vrot.slane %v4627, 4
        %v4634 = vrot.slane %v4629, 4
        %v4635 = vrot.slane %v4631, 4
        %v4636 = vsel %vm678, %v4625, %v4632
        %v4637 = vsel %vm678, %v4627, %v4633
        %v4638 = vsel %vm678, %v4629, %v4634
        %v4639 = vsel %vm678, %v4631, %v4635
        %4644 = vst [vmem:[#allocation3 + $0x30] sm:$0xf] %v4636
        %4645 = vst [vmem:[#allocation3 + $0x34] sm:$0xf] %v4637
        %4646 = vst [vmem:[#allocation3 + $0x38] sm:$0xf] %v4638
        %4647 = vst [vmem:[#allocation3 + $0x3c] sm:$0xf] %v4639
        %v4648 = vld [vmem:[#allocation2] sm:$0xff]
        %v4649 = vld [vmem:[#allocation2 + $0x8] sm:$0xff]
        %v4650 = vld [vmem:[#allocation2 + $0x10] sm:$0xff]
        %v4651 = vld [vmem:[#allocation2 + $0x18] sm:$0xff]
        %4656 = vrot.lane.b32.xlu0 %v4648, 124
        %v4657 = vpop.permute.xlu0 %4656
        %4658 = vrot.lane.b32.xlu0 %v4649, 124
        %v4659 = vpop.permute.xlu0 %4658
        %4660 = vrot.lane.b32.xlu0 %v4650, 124
        %v4661 = vpop.permute.xlu0 %4660
        %4662 = vrot.lane.b32.xlu0 %v4651, 124
        %v4663 = vpop.permute.xlu0 %4662
        %v4664 = vrot.slane %v4657, 4
        %v4665 = vrot.slane %v4659, 4
        %v4666 = vrot.slane %v4661, 4
        %v4667 = vrot.slane %v4663, 4
        %v4668 = vsel %vm743, %v4657, %v4664
        %v4669 = vsel %vm743, %v4659, %v4665
        %v4670 = vsel %vm743, %v4661, %v4666
        %v4671 = vsel %vm743, %v4663, %v4667
        %4676 = vst [vmem:[#allocation3 + $0x40] sm:$0xf] %v4668
        %4677 = vst [vmem:[#allocation3 + $0x44] sm:$0xf] %v4669
        %4678 = vst [vmem:[#allocation3 + $0x48] sm:$0xf] %v4670
        %4679 = vst [vmem:[#allocation3 + $0x4c] sm:$0xf] %v4671
        %v4680 = vld [vmem:[#allocation2] sm:$0xff]
        %v4681 = vld [vmem:[#allocation2 + $0x8] sm:$0xff]
        %v4682 = vld [vmem:[#allocation2 + $0x10] sm:$0xff]
        %v4683 = vld [vmem:[#allocation2 + $0x18] sm:$0xff]
        %4688 = vrot.lane.b32.xlu0 %v4680, 123
        %v4689 = vpop.permute.xlu0 %4688
        %4690 = vrot.lane.b32.xlu0 %v4681, 123
        %v4691 = vpop.permute.xlu0 %4690
        %4692 = vrot.lane.b32.xlu0 %v4682, 123
        %v4693 = vpop.permute.xlu0 %4692
        %4694 = vrot.lane.b32.xlu0 %v4683, 123
        %v4695 = vpop.permute.xlu0 %4694
        %v4696 = vrot.slane %v4689, 4
        %v4697 = vrot.slane %v4691, 4
        %v4698 = vrot.slane %v4693, 4
        %v4699 = vrot.slane %v4695, 4
        %v4700 = vsel %vm808, %v4689, %v4696
        %v4701 = vsel %vm808, %v4691, %v4697
        %v4702 = vsel %vm808, %v4693, %v4698
        %v4703 = vsel %vm808, %v4695, %v4699
        %4708 = vst [vmem:[#allocation3 + $0x50] sm:$0xf] %v4700
        %4709 = vst [vmem:[#allocation3 + $0x54] sm:$0xf] %v4701
        %4710 = vst [vmem:[#allocation3 + $0x58] sm:$0xf] %v4702
        %4711 = vst [vmem:[#allocation3 + $0x5c] sm:$0xf] %v4703
        %v4712 = vld [vmem:[#allocation2] sm:$0xff]
        %v4713 = vld [vmem:[#allocation2 + $0x8] sm:$0xff]
        %v4714 = vld [vmem:[#allocation2 + $0x10] sm:$0xff]
        %v4715 = vld [vmem:[#allocation2 + $0x18] sm:$0xff]
        %4720 = vrot.lane.b32.xlu0 %v4712, 122
        %v4721 = vpop.permute.xlu0 %4720
        %4722 = vrot.lane.b32.xlu0 %v4713, 122
        %v4723 = vpop.permute.xlu0 %4722
        %4724 = vrot.lane.b32.xlu0 %v4714, 122
        %v4725 = vpop.permute.xlu0 %4724
        %4726 = vrot.lane.b32.xlu0 %v4715, 122
        %v4727 = vpop.permute.xlu0 %4726
        %v4728 = vrot.slane %v4721, 4
        %v4729 = vrot.slane %v4723, 4
        %v4730 = vrot.slane %v4725, 4
        %v4731 = vrot.slane %v4727, 4
        %v4732 = vsel %vm873, %v4721, %v4728
        %v4733 = vsel %vm873, %v4723, %v4729
        %v4734 = vsel %vm873, %v4725, %v4730
        %v4735 = vsel %vm873, %v4727, %v4731
        %4740 = vst [vmem:[#allocation3 + $0x60] sm:$0xf] %v4732
        %4741 = vst [vmem:[#allocation3 + $0x64] sm:$0xf] %v4733
        %4742 = vst [vmem:[#allocation3 + $0x68] sm:$0xf] %v4734
        %4743 = vst [vmem:[#allocation3 + $0x6c] sm:$0xf] %v4735
        %v4744 = vld [vmem:[#allocation2] sm:$0xff]
        %v4745 = vld [vmem:[#allocation2 + $0x8] sm:$0xff]
        %v4746 = vld [vmem:[#allocation2 + $0x10] sm:$0xff]
        %v4747 = vld [vmem:[#allocation2 + $0x18] sm:$0xff]
        %4752 = vrot.lane.b32.xlu0 %v4744, 121
        %v4753 = vpop.permute.xlu0 %4752
        %4754 = vrot.lane.b32.xlu0 %v4745, 121
        %v4755 = vpop.permute.xlu0 %4754
        %4756 = vrot.lane.b32.xlu0 %v4746, 121
        %v4757 = vpop.permute.xlu0 %4756
        %4758 = vrot.lane.b32.xlu0 %v4747, 121
        %v4759 = vpop.permute.xlu0 %4758
        %v4760 = vrot.slane %v4753, 4
        %v4761 = vrot.slane %v4755, 4
        %v4762 = vrot.slane %v4757, 4
        %v4763 = vrot.slane %v4759, 4
        %v4764 = vsel %vm938, %v4753, %v4760
        %v4765 = vsel %vm938, %v4755, %v4761
        %v4766 = vsel %vm938, %v4757, %v4762
        %v4767 = vsel %vm938, %v4759, %v4763
        %4772 = vst [vmem:[#allocation3 + $0x70] sm:$0xf] %v4764
        %4773 = vst [vmem:[#allocation3 + $0x74] sm:$0xf] %v4765
        %4774 = vst [vmem:[#allocation3 + $0x78] sm:$0xf] %v4766
        %4775 = vst [vmem:[#allocation3 + $0x7c] sm:$0xf] %v4767
        %v4776 = vld [vmem:[#allocation3] sm:$0xf]
        %v4777 = vld [vmem:[#allocation3 + $0x4] sm:$0xf]
        %v4778 = vld [vmem:[#allocation3 + $0x8] sm:$0xf]
        %v4779 = vld [vmem:[#allocation3 + $0xc] sm:$0xf]
        %v4780 = vld [vmem:[#allocation3 + $0x10] sm:$0xf]
        %v4781 = vld [vmem:[#allocation3 + $0x14] sm:$0xf]
        %v4782 = vld [vmem:[#allocation3 + $0x18] sm:$0xf]
        %v4783 = vld [vmem:[#allocation3 + $0x1c] sm:$0xf]
        %v4784 = vld [vmem:[#allocation3 + $0x20] sm:$0xf]
        %v4785 = vld [vmem:[#allocation3 + $0x24] sm:$0xf]
        %v4786 = vld [vmem:[#allocation3 + $0x28] sm:$0xf]
        %v4787 = vld [vmem:[#allocation3 + $0x2c] sm:$0xf]
        %v4788 = vld [vmem:[#allocation3 + $0x30] sm:$0xf]
        %v4789 = vld [vmem:[#allocation3 + $0x34] sm:$0xf]
        %v4790 = vld [vmem:[#allocation3 + $0x38] sm:$0xf]
        %v4791 = vld [vmem:[#allocation3 + $0x3c] sm:$0xf]
        %v4792 = vld [vmem:[#allocation3 + $0x40] sm:$0xf]
        %v4793 = vld [vmem:[#allocation3 + $0x44] sm:$0xf]
        %v4794 = vld [vmem:[#allocation3 + $0x48] sm:$0xf]
        %v4795 = vld [vmem:[#allocation3 + $0x4c] sm:$0xf]
        %v4796 = vld [vmem:[#allocation3 + $0x50] sm:$0xf]
        %v4797 = vld [vmem:[#allocation3 + $0x54] sm:$0xf]
        %v4798 = vld [vmem:[#allocation3 + $0x58] sm:$0xf]
        %v4799 = vld [vmem:[#allocation3 + $0x5c] sm:$0xf]
        %v4800 = vld [vmem:[#allocation3 + $0x60] sm:$0xf]
        %v4801 = vld [vmem:[#allocation3 + $0x64] sm:$0xf]
        %v4802 = vld [vmem:[#allocation3 + $0x68] sm:$0xf]
        %v4803 = vld [vmem:[#allocation3 + $0x6c] sm:$0xf]
        %v4804 = vld [vmem:[#allocation3 + $0x70] sm:$0xf]
        %v4805 = vld [vmem:[#allocation3 + $0x74] sm:$0xf]
        %v4806 = vld [vmem:[#allocation3 + $0x78] sm:$0xf]
        %v4807 = vld [vmem:[#allocation3 + $0x7c] sm:$0xf]
        %4809 = vset.pattern.permute.xlu0 0
        %4810 = vperm.xlu0 %4809, %v4508
        %v4811 = vpop.permute.xlu0 %4810
        %4814 = vset.pattern.permute.xlu0 0
        %4815 = vperm.xlu0 %4814, %v4509
        %v4816 = vpop.permute.xlu0 %4815
        %4819 = vset.pattern.permute.xlu0 0
        %4820 = vperm.xlu0 %4819, %v4510
        %v4821 = vpop.permute.xlu0 %4820
        %4824 = vset.pattern.permute.xlu0 0
        %4825 = vperm.xlu0 %4824, %v4511
        %v4826 = vpop.permute.xlu0 %4825
        %v4832 = vunpack.c.l.b16 %v4503
        %v4833 = vunpack.c.h.b16 %v4503
        %v4834 = vunpack.c.l.b16 %v4504
        %v4835 = vunpack.c.h.b16 %v4504
        %v4836 = vunpack.c.l.b16 %v4505
        %v4837 = vunpack.c.h.b16 %v4505
        %v4838 = vunpack.c.l.b16 %v4506
        %v4839 = vunpack.c.h.b16 %v4506
        %v4840 = vpack.c.b16 %v4834, %v4832
        %v4841 = vpack.c.b16 %v4835, %v4833
        %v4842 = vpack.c.b16 %v4838, %v4836
        %v4843 = vpack.c.b16 %v4839, %v4837
        %v4880 = vunpack.c.l.b16 %v4776
        %v4881 = vunpack.c.l.b16 %v4777
        %v4882 = vunpack.c.l.b16 %v4778
        %v4883 = vunpack.c.l.b16 %v4779
        %v4884 = vunpack.c.l.b16 %v4780
        %v4885 = vunpack.c.l.b16 %v4781
        %v4886 = vunpack.c.l.b16 %v4782
        %v4887 = vunpack.c.l.b16 %v4783
        %v4888 = vunpack.c.l.b16 %v4784
        %v4889 = vunpack.c.l.b16 %v4785
        %v4890 = vunpack.c.l.b16 %v4786
        %v4891 = vunpack.c.l.b16 %v4787
        %v4892 = vunpack.c.l.b16 %v4788
        %v4893 = vunpack.c.l.b16 %v4789
        %v4894 = vunpack.c.l.b16 %v4790
        %v4895 = vunpack.c.l.b16 %v4791
        %v4896 = vunpack.c.l.b16 %v4792
        %v4897 = vunpack.c.l.b16 %v4793
        %v4898 = vunpack.c.l.b16 %v4794
        %v4899 = vunpack.c.l.b16 %v4795
        %v4900 = vunpack.c.l.b16 %v4796
        %v4901 = vunpack.c.l.b16 %v4797
        %v4902 = vunpack.c.l.b16 %v4798
        %v4903 = vunpack.c.l.b16 %v4799
        %v4904 = vunpack.c.l.b16 %v4800
        %v4905 = vunpack.c.l.b16 %v4801
        %v4906 = vunpack.c.l.b16 %v4802
        %v4907 = vunpack.c.l.b16 %v4803
        %v4908 = vunpack.c.l.b16 %v4804
        %v4909 = vunpack.c.l.b16 %v4805
        %v4910 = vunpack.c.l.b16 %v4806
        %v4911 = vunpack.c.l.b16 %v4807
        %v4912 = vpack.c.b16 %v4881, %v4880
        %v4913 = vpack.c.b16 %v4883, %v4882
        %v4914 = vpack.c.b16 %v4885, %v4884
        %v4915 = vpack.c.b16 %v4887, %v4886
        %v4916 = vpack.c.b16 %v4889, %v4888
        %v4917 = vpack.c.b16 %v4891, %v4890
        %v4918 = vpack.c.b16 %v4893, %v4892
        %v4919 = vpack.c.b16 %v4895, %v4894
        %v4920 = vpack.c.b16 %v4897, %v4896
        %v4921 = vpack.c.b16 %v4899, %v4898
        %v4922 = vpack.c.b16 %v4901, %v4900
        %v4923 = vpack.c.b16 %v4903, %v4902
        %v4924 = vpack.c.b16 %v4905, %v4904
        %v4925 = vpack.c.b16 %v4907, %v4906
        %v4926 = vpack.c.b16 %v4909, %v4908
        %v4927 = vpack.c.b16 %v4911, %v4910
        %4944 = vmatpush.bf16.msra.mxu0 %v4919
        %4945 = vmatpush.bf16.msra.mxu0 %v4918
        %4946 = vmatpush.bf16.msra.mxu0 %v4917
        %4947 = vmatpush.bf16.msra.mxu0 %v4916
        %4948 = vmatpush.bf16.msra.mxu0 %v4915
        %4949 = vmatpush.bf16.msra.mxu0 %v4914
        %4950 = vmatpush.bf16.msra.mxu0 %v4913
        %4951 = vmatpush.bf16.msra.mxu0 %v4912
        %4952 = vmatmul.bf16.gmra.mxu0 %v4840
        %v4953 = vpop.f32.mrf.mxu0
        %v4954 = vadd.f32 %v4811, %v4953
        %v4955 = vpop.f32.mrf.mxu0
        %v4956 = vadd.f32 %v4816, %v4955
        %4957 = vmatmul.bf16.gmra.mxu0 %v4842
        %v4958 = vpop.f32.mrf.mxu0
        %v4959 = vadd.f32 %v4821, %v4958
        %v4960 = vpop.f32.mrf.mxu0
        %v4961 = vadd.f32 %v4826, %v4960
        %4962 = vdwg.mxu0
        %4963 = vmatpush.bf16.msra.mxu0 %v4927
        %4964 = vmatpush.bf16.msra.mxu0 %v4926
        %4965 = vmatpush.bf16.msra.mxu0 %v4925
        %4966 = vmatpush.bf16.msra.mxu0 %v4924
        %4967 = vmatpush.bf16.msra.mxu0 %v4923
        %4968 = vmatpush.bf16.msra.mxu0 %v4922
        %4969 = vmatpush.bf16.msra.mxu0 %v4921
        %4970 = vmatpush.bf16.msra.mxu0 %v4920
        %4971 = vmatmul.bf16.gmra.mxu0 %v4841
        %v4972 = vpop.f32.mrf.mxu0
        %v4973 = vadd.f32 %v4954, %v4972
        %v4974 = vpop.f32.mrf.mxu0
        %v4975 = vadd.f32 %v4956, %v4974
        %4976 = vmatmul.bf16.gmra.mxu0 %v4843
        %v4977 = vpop.f32.mrf.mxu0
        %v4978 = vadd.f32 %v4959, %v4977
        %v4979 = vpop.f32.mrf.mxu0
        %v4980 = vadd.f32 %v4961, %v4979
        %4981 = vdwg.mxu0
        %v4982 = vmul.f32 %v4973, 0.5
        %v4983 = vmul.f32 %v4975, 0.5
        %v4984 = vmul.f32 %v4978, 0.5
        %v4985 = vmul.f32 %v4980, 0.5
        %v4986 = vmul.f32 %v4973, 0.70710677
        %v4987 = vmul.f32 %v4975, 0.70710677
        %v4988 = vmul.f32 %v4978, 0.70710677
        %v4989 = vmul.f32 %v4980, 0.70710677
        %vm4990 = vcmp.ge.f32.partialorder %v4986, 0.0
        %vm4991 = vcmp.ge.f32.partialorder %v4987, 0.0
        %vm4992 = vcmp.ge.f32.partialorder %v4988, 0.0
        %vm4993 = vcmp.ge.f32.partialorder %v4989, 0.0
        %v4994 = vsel %vm4990, 1.0, -1.0
        %v4995 = vsel %vm4991, 1.0, -1.0
        %v4996 = vsel %vm4992, 1.0, -1.0
        %v4997 = vsel %vm4993, 1.0, -1.0
        %v4998 = vand.u32 2147483647, %v4986
        %v4999 = vand.u32 2147483647, %v4987
        %v5000 = vand.u32 2147483647, %v4988
        %v5001 = vand.u32 2147483647, %v4989
        %v5002 = vmul.f32 %v4998, 0.3275911
        %v5003 = vmul.f32 %v4999, 0.3275911
        %v5004 = vmul.f32 %v5000, 0.3275911
        %v5005 = vmul.f32 %v5001, 0.3275911
        %v5006 = vadd.f32 %v5002, 1.0
        %v5007 = vadd.f32 %v5003, 1.0
        %v5008 = vadd.f32 %v5004, 1.0
        %v5009 = vadd.f32 %v5005, 1.0
        %v5010 = vrcp.pop %v5006
        %v5011 = vrcp.pop %v5007
        %v5012 = vrcp.pop %v5008
        %v5013 = vrcp.pop %v5009
        %v5014 = vmul.f32 %v5010, 1.0614054
        %v5015 = vmul.f32 %v5011, 1.0614054
        %v5016 = vmul.f32 %v5012, 1.0614054
        %v5017 = vmul.f32 %v5013, 1.0614054
        %v5018 = vadd.f32 %v5014, -1.4531521
        %v5019 = vadd.f32 %v5015, -1.4531521
        %v5020 = vadd.f32 %v5016, -1.4531521
        %v5021 = vadd.f32 %v5017, -1.4531521
        %v5022 = vmul.f32 %v5018, %v5010
        %v5023 = vmul.f32 %v5019, %v5011
        %v5024 = vmul.f32 %v5020, %v5012
        %v5025 = vmul.f32 %v5021, %v5013
        %v5026 = vadd.f32 %v5022, 1.4214138
        %v5027 = vadd.f32 %v5023, 1.4214138
        %v5028 = vadd.f32 %v5024, 1.4214138
        %v5029 = vadd.f32 %v5025, 1.4214138
        %v5030 = vmul.f32 %v5026, %v5010
        %v5031 = vmul.f32 %v5027, %v5011
        %v5032 = vmul.f32 %v5028, %v5012
        %v5033 = vmul.f32 %v5029, %v5013
        %v5034 = vadd.f32 %v5030, -0.28449672
        %v5035 = vadd.f32 %v5031, -0.28449672
        %v5036 = vadd.f32 %v5032, -0.28449672
        %v5037 = vadd.f32 %v5033, -0.28449672
        %v5038 = vmul.f32 %v5034, %v5010
        %v5039 = vmul.f32 %v5035, %v5011
        %v5040 = vmul.f32 %v5036, %v5012
        %v5041 = vmul.f32 %v5037, %v5013
        %v5042 = vadd.f32 %v5038, 0.2548296
        %v5043 = vadd.f32 %v5039, 0.2548296
        %v5044 = vadd.f32 %v5040, 0.2548296
        %v5045 = vadd.f32 %v5041, 0.2548296
        %v5046 = vmul.f32 %v5042, %v5010
        %v5047 = vmul.f32 %v5043, %v5011
        %v5048 = vmul.f32 %v5044, %v5012
        %v5049 = vmul.f32 %v5045, %v5013
        %v5050 = vsub.f32 0.0, %v4998
        %v5051 = vsub.f32 0.0, %v4999
        %v5052 = vsub.f32 0.0, %v5000
        %v5053 = vsub.f32 0.0, %v5001
        %v5054 = vmul.f32 %v5050, %v4998
        %v5055 = vmul.f32 %v5051, %v4999
        %v5056 = vmul.f32 %v5052, %v5000
        %v5057 = vmul.f32 %v5053, %v5001
        %v5058 = vmul.f32 %v5054, 1.442695
        %v5059 = vpow.pop %v5058
        %v5060 = vmul.f32 %v5055, 1.442695
        %v5061 = vpow.pop %v5060
        %v5062 = vmul.f32 %v5056, 1.442695
        %v5063 = vpow.pop %v5062
        %v5064 = vmul.f32 %v5057, 1.442695
        %v5065 = vpow.pop %v5064
        %v5066 = vmul.f32 %v5046, %v5059
        %v5067 = vmul.f32 %v5047, %v5061
        %v5068 = vmul.f32 %v5048, %v5063
        %v5069 = vmul.f32 %v5049, %v5065
        %v5070 = vsub.f32 1.0, %v5066
        %v5071 = vsub.f32 1.0, %v5067
        %v5072 = vsub.f32 1.0, %v5068
        %v5073 = vsub.f32 1.0, %v5069
        %v5074 = vmul.f32 %v4994, %v5070
        %v5075 = vmul.f32 %v4995, %v5071
        %v5076 = vmul.f32 %v4996, %v5072
        %v5077 = vmul.f32 %v4997, %v5073
        %v5078 = vadd.f32 %v5074, 1.0
        %v5079 = vadd.f32 %v5075, 1.0
        %v5080 = vadd.f32 %v5076, 1.0
        %v5081 = vadd.f32 %v5077, 1.0
        %v5082 = vmul.f32 %v4982, %v5078
        %v5083 = vmul.f32 %v4983, %v5079
        %v5084 = vmul.f32 %v4984, %v5080
        %v5085 = vmul.f32 %v4985, %v5081
        %s5086 = scalar_lea.vmem %s5, 64
        %v5087 = vld [vmem:[%s5086] sm:$0xff]
        %v5088 = vld [vmem:[%s5086 + $0x8] sm:$0xff]
        %v5089 = vld [vmem:[%s5086 + $0x10] sm:$0xff]
        %v5090 = vld [vmem:[%s5086 + $0x18] sm:$0xff]
        %s5091 = scalar_lea.vmem %s6, 64
        %v5092 = vld [vmem:[%s5091] sm:$0xff]
        %v5093 = vld [vmem:[%s5091 + $0x8] sm:$0xff]
        %v5094 = vld [vmem:[%s5091 + $0x10] sm:$0xff]
        %v5095 = vld [vmem:[%s5091 + $0x18] sm:$0xff]
        %v5096 = vadd.f32 %v5082, %v5083
        %v5097 = vadd.f32 %v5096, %v5084
        %v5098 = vadd.f32 %v5097, %v5085
        %5099 = vadd.xlane.f32.xlu0 %v5098
        %v5100 = vpop.xlane.xlu0 %5099
        %v5101 = vrot.slane %v5100, 4
        %v5102 = vadd.f32 %v5100, %v5101
        %v5103 = vrot.slane %v5102, 2
        %v5104 = vadd.f32 %v5102, %v5103
        %v5105 = vrot.slane %v5104, 1
        %v5106 = vadd.f32 %v5104, %v5105
        %s5107 = vtos %v5106
        %s5108 = smul.f32 %s5107, 0.00024414063
        %v5109 = vmul.f32 %v5082, %v5082
        %v5110 = vmul.f32 %v5083, %v5083
        %v5111 = vmul.f32 %v5084, %v5084
        %v5112 = vmul.f32 %v5085, %v5085
        %v5113 = vadd.f32 %v5109, %v5110
        %v5114 = vadd.f32 %v5113, %v5111
        %v5115 = vadd.f32 %v5114, %v5112
        %5116 = vadd.xlane.f32.xlu0 %v5115
        %v5117 = vpop.xlane.xlu0 %5116
        %v5118 = vrot.slane %v5117, 4
        %v5119 = vadd.f32 %v5117, %v5118
        %v5120 = vrot.slane %v5119, 2
        %v5121 = vadd.f32 %v5119, %v5120
        %v5122 = vrot.slane %v5121, 1
        %v5123 = vadd.f32 %v5121, %v5122
        %s5124 = vtos %v5123
        %s5125 = smul.f32 %s5124, 0.00024414063
        %s5126 = smul.f32 %s5108, %s5108
        %s5127 = ssub.f32 %s5125, %s5126
        %v5128 = vstv %s5108
        %v5129 = vsub.f32 %v5082, %v5128
        %v5130 = vsub.f32 %v5083, %v5128
        %v5131 = vsub.f32 %v5084, %v5128
        %v5132 = vsub.f32 %v5085, %v5128
        %s5133 = sadd.f32 %s5127, 1e-05
        %v5134 = vstv %s5133
        %v5135 = vrsqrt.pop %v5134
        %v5136 = vmul.f32 %v5135, %v5134
        %v5137 = vmul.f32 %v5136, %v5135
        %v5138 = vmul.f32 0.5, %v5137
        %v5139 = vsub.f32 1.5, %v5138
        %v5140 = vmul.f32 %v5135, %v5139
        %vm5141 = vweird.f32 %v5134
        %vm5142 = vweird.f32 %v5135
        %vm5143 = vmor %vm5141, %vm5142
        %v5144 = vsel %vm5143, %v5135, %v5140
        %s5145 = vtos %v5144
        %v5146 = vstv %s5145
        %v5147 = vmul.f32 %v5129, %v5146
        %v5148 = vmul.f32 %v5130, %v5146
        %v5149 = vmul.f32 %v5131, %v5146
        %v5150 = vmul.f32 %v5132, %v5146
        %v5151 = vmul.f32 %v5147, %v5087
        %v5152 = vmul.f32 %v5148, %v5088
        %v5153 = vmul.f32 %v5149, %v5089
        %v5154 = vmul.f32 %v5150, %v5090
        %v5155 = vadd.f32 %v5151, %v5092
        %v5156 = vadd.f32 %v5152, %v5093
        %v5157 = vadd.f32 %v5153, %v5094
        %v5158 = vadd.f32 %v5154, %v5095
        %s5159 = scalar_lea.vmem %s3, 96
        %v5160 = vld [vmem:[%s5159] sm:$0xff]
        %v5161 = vld [vmem:[%s5159 + $0x8] sm:$0xff]
        %v5162 = vld [vmem:[%s5159 + $0x10] sm:$0xff]
        %v5163 = vld [vmem:[%s5159 + $0x18] sm:$0xff]
        %s5164 = scalar_lea.vmem %s4, 96
        %v5165 = vld [vmem:[%s5164] sm:$0xff]
        %v5166 = vld [vmem:[%s5164 + $0x8] sm:$0xff]
        %v5167 = vld [vmem:[%s5164 + $0x10] sm:$0xff]
        %v5168 = vld [vmem:[%s5164 + $0x18] sm:$0xff]
        %v5169 = vpack.c.bf16 %v5155, %v5155
        %v5170 = vpack.c.bf16 %v5156, %v5156
        %v5171 = vpack.c.bf16 %v5157, %v5157
        %v5172 = vpack.c.bf16 %v5158, %v5158
        %5177 = vrot.lane.b32.xlu0 %v5169, 3
        %v5178 = vpop.permute.xlu0 %5177
        %5179 = vrot.lane.b32.xlu0 %v5170, 3
        %v5180 = vpop.permute.xlu0 %5179
        %5181 = vrot.lane.b32.xlu0 %v5171, 3
        %v5182 = vpop.permute.xlu0 %5181
        %5183 = vrot.lane.b32.xlu0 %v5172, 3
        %v5184 = vpop.permute.xlu0 %5183
        %v5185 = vrot.slane %v5178, 4
        %v5186 = vrot.slane %v5180, 4
        %v5187 = vrot.slane %v5182, 4
        %v5188 = vrot.slane %v5184, 4
        %v5189 = vsel %vm464, %v5185, %v5178
        %v5190 = vsel %vm464, %v5186, %v5180
        %v5191 = vsel %vm464, %v5187, %v5182
        %v5192 = vsel %vm464, %v5188, %v5184
        %5197 = vst.msk [vmem:[#allocation2] sm:$0xff] %vm483, %v5189
        %5198 = vst.msk [vmem:[#allocation2 + $0x8] sm:$0xff] %vm483, %v5190
        %5199 = vst.msk [vmem:[#allocation2 + $0x10] sm:$0xff] %vm483, %v5191
        %5200 = vst.msk [vmem:[#allocation2 + $0x18] sm:$0xff] %vm483, %v5192
        %v5201 = vld [vmem:[#allocation2] sm:$0xf]
        %v5202 = vld [vmem:[#allocation2 + $0x8] sm:$0xf]
        %v5203 = vld [vmem:[#allocation2 + $0x10] sm:$0xf]
        %v5204 = vld [vmem:[#allocation2 + $0x18] sm:$0xf]
        %5205 = vst [vmem:[#allocation3] sm:$0xf] %v5201
        %5206 = vst [vmem:[#allocation3 + $0x4] sm:$0xf] %v5202
        %5207 = vst [vmem:[#allocation3 + $0x8] sm:$0xf] %v5203
        %5208 = vst [vmem:[#allocation3 + $0xc] sm:$0xf] %v5204
        %v5209 = vld [vmem:[#allocation2] sm:$0xff]
        %v5210 = vld [vmem:[#allocation2 + $0x8] sm:$0xff]
        %v5211 = vld [vmem:[#allocation2 + $0x10] sm:$0xff]
        %v5212 = vld [vmem:[#allocation2 + $0x18] sm:$0xff]
        %5217 = vrot.lane.b32.xlu0 %v5209, 127
        %v5218 = vpop.permute.xlu0 %5217
        %5219 = vrot.lane.b32.xlu0 %v5210, 127
        %v5220 = vpop.permute.xlu0 %5219
        %5221 = vrot.lane.b32.xlu0 %v5211, 127
        %v5222 = vpop.permute.xlu0 %5221
        %5223 = vrot.lane.b32.xlu0 %v5212, 127
        %v5224 = vpop.permute.xlu0 %5223
        %v5225 = vrot.slane %v5218, 4
        %v5226 = vrot.slane %v5220, 4
        %v5227 = vrot.slane %v5222, 4
        %v5228 = vrot.slane %v5224, 4
        %v5229 = vsel %vm548, %v5218, %v5225
        %v5230 = vsel %vm548, %v5220, %v5226
        %v5231 = vsel %vm548, %v5222, %v5227
        %v5232 = vsel %vm548, %v5224, %v5228
        %5237 = vst [vmem:[#allocation3 + $0x10] sm:$0xf] %v5229
        %5238 = vst [vmem:[#allocation3 + $0x14] sm:$0xf] %v5230
        %5239 = vst [vmem:[#allocation3 + $0x18] sm:$0xf] %v5231
        %5240 = vst [vmem:[#allocation3 + $0x1c] sm:$0xf] %v5232
        %v5241 = vld [vmem:[#allocation2] sm:$0xff]
        %v5242 = vld [vmem:[#allocation2 + $0x8] sm:$0xff]
        %v5243 = vld [vmem:[#allocation2 + $0x10] sm:$0xff]
        %v5244 = vld [vmem:[#allocation2 + $0x18] sm:$0xff]
        %5249 = vrot.lane.b32.xlu0 %v5241, 126
        %v5250 = vpop.permute.xlu0 %5249
        %5251 = vrot.lane.b32.xlu0 %v5242, 126
        %v5252 = vpop.permute.xlu0 %5251
        %5253 = vrot.lane.b32.xlu0 %v5243, 126
        %v5254 = vpop.permute.xlu0 %5253
        %5255 = vrot.lane.b32.xlu0 %v5244, 126
        %v5256 = vpop.permute.xlu0 %5255
        %v5257 = vrot.slane %v5250, 4
        %v5258 = vrot.slane %v5252, 4
        %v5259 = vrot.slane %v5254, 4
        %v5260 = vrot.slane %v5256, 4
        %v5261 = vsel %vm613, %v5250, %v5257
        %v5262 = vsel %vm613, %v5252, %v5258
        %v5263 = vsel %vm613, %v5254, %v5259
        %v5264 = vsel %vm613, %v5256, %v5260
        %5269 = vst [vmem:[#allocation3 + $0x20] sm:$0xf] %v5261
        %5270 = vst [vmem:[#allocation3 + $0x24] sm:$0xf] %v5262
        %5271 = vst [vmem:[#allocation3 + $0x28] sm:$0xf] %v5263
        %5272 = vst [vmem:[#allocation3 + $0x2c] sm:$0xf] %v5264
        %v5273 = vld [vmem:[#allocation2] sm:$0xff]
        %v5274 = vld [vmem:[#allocation2 + $0x8] sm:$0xff]
        %v5275 = vld [vmem:[#allocation2 + $0x10] sm:$0xff]
        %v5276 = vld [vmem:[#allocation2 + $0x18] sm:$0xff]
        %5281 = vrot.lane.b32.xlu0 %v5273, 125
        %v5282 = vpop.permute.xlu0 %5281
        %5283 = vrot.lane.b32.xlu0 %v5274, 125
        %v5284 = vpop.permute.xlu0 %5283
        %5285 = vrot.lane.b32.xlu0 %v5275, 125
        %v5286 = vpop.permute.xlu0 %5285
        %5287 = vrot.lane.b32.xlu0 %v5276, 125
        %v5288 = vpop.permute.xlu0 %5287
        %v5289 = vrot.slane %v5282, 4
        %v5290 = vrot.slane %v5284, 4
        %v5291 = vrot.slane %v5286, 4
        %v5292 = vrot.slane %v5288, 4
        %v5293 = vsel %vm678, %v5282, %v5289
        %v5294 = vsel %vm678, %v5284, %v5290
        %v5295 = vsel %vm678, %v5286, %v5291
        %v5296 = vsel %vm678, %v5288, %v5292
        %5301 = vst [vmem:[#allocation3 + $0x30] sm:$0xf] %v5293
        %5302 = vst [vmem:[#allocation3 + $0x34] sm:$0xf] %v5294
        %5303 = vst [vmem:[#allocation3 + $0x38] sm:$0xf] %v5295
        %5304 = vst [vmem:[#allocation3 + $0x3c] sm:$0xf] %v5296
        %v5305 = vld [vmem:[#allocation2] sm:$0xff]
        %v5306 = vld [vmem:[#allocation2 + $0x8] sm:$0xff]
        %v5307 = vld [vmem:[#allocation2 + $0x10] sm:$0xff]
        %v5308 = vld [vmem:[#allocation2 + $0x18] sm:$0xff]
        %5313 = vrot.lane.b32.xlu0 %v5305, 124
        %v5314 = vpop.permute.xlu0 %5313
        %5315 = vrot.lane.b32.xlu0 %v5306, 124
        %v5316 = vpop.permute.xlu0 %5315
        %5317 = vrot.lane.b32.xlu0 %v5307, 124
        %v5318 = vpop.permute.xlu0 %5317
        %5319 = vrot.lane.b32.xlu0 %v5308, 124
        %v5320 = vpop.permute.xlu0 %5319
        %v5321 = vrot.slane %v5314, 4
        %v5322 = vrot.slane %v5316, 4
        %v5323 = vrot.slane %v5318, 4
        %v5324 = vrot.slane %v5320, 4
        %v5325 = vsel %vm743, %v5314, %v5321
        %v5326 = vsel %vm743, %v5316, %v5322
        %v5327 = vsel %vm743, %v5318, %v5323
        %v5328 = vsel %vm743, %v5320, %v5324
        %5333 = vst [vmem:[#allocation3 + $0x40] sm:$0xf] %v5325
        %5334 = vst [vmem:[#allocation3 + $0x44] sm:$0xf] %v5326
        %5335 = vst [vmem:[#allocation3 + $0x48] sm:$0xf] %v5327
        %5336 = vst [vmem:[#allocation3 + $0x4c] sm:$0xf] %v5328
        %v5337 = vld [vmem:[#allocation2] sm:$0xff]
        %v5338 = vld [vmem:[#allocation2 + $0x8] sm:$0xff]
        %v5339 = vld [vmem:[#allocation2 + $0x10] sm:$0xff]
        %v5340 = vld [vmem:[#allocation2 + $0x18] sm:$0xff]
        %5345 = vrot.lane.b32.xlu0 %v5337, 123
        %v5346 = vpop.permute.xlu0 %5345
        %5347 = vrot.lane.b32.xlu0 %v5338, 123
        %v5348 = vpop.permute.xlu0 %5347
        %5349 = vrot.lane.b32.xlu0 %v5339, 123
        %v5350 = vpop.permute.xlu0 %5349
        %5351 = vrot.lane.b32.xlu0 %v5340, 123
        %v5352 = vpop.permute.xlu0 %5351
        %v5353 = vrot.slane %v5346, 4
        %v5354 = vrot.slane %v5348, 4
        %v5355 = vrot.slane %v5350, 4
        %v5356 = vrot.slane %v5352, 4
        %v5357 = vsel %vm808, %v5346, %v5353
        %v5358 = vsel %vm808, %v5348, %v5354
        %v5359 = vsel %vm808, %v5350, %v5355
        %v5360 = vsel %vm808, %v5352, %v5356
        %5365 = vst [vmem:[#allocation3 + $0x50] sm:$0xf] %v5357
        %5366 = vst [vmem:[#allocation3 + $0x54] sm:$0xf] %v5358
        %5367 = vst [vmem:[#allocation3 + $0x58] sm:$0xf] %v5359
        %5368 = vst [vmem:[#allocation3 + $0x5c] sm:$0xf] %v5360
        %v5369 = vld [vmem:[#allocation2] sm:$0xff]
        %v5370 = vld [vmem:[#allocation2 + $0x8] sm:$0xff]
        %v5371 = vld [vmem:[#allocation2 + $0x10] sm:$0xff]
        %v5372 = vld [vmem:[#allocation2 + $0x18] sm:$0xff]
        %5377 = vrot.lane.b32.xlu0 %v5369, 122
        %v5378 = vpop.permute.xlu0 %5377
        %5379 = vrot.lane.b32.xlu0 %v5370, 122
        %v5380 = vpop.permute.xlu0 %5379
        %5381 = vrot.lane.b32.xlu0 %v5371, 122
        %v5382 = vpop.permute.xlu0 %5381
        %5383 = vrot.lane.b32.xlu0 %v5372, 122
        %v5384 = vpop.permute.xlu0 %5383
        %v5385 = vrot.slane %v5378, 4
        %v5386 = vrot.slane %v5380, 4
        %v5387 = vrot.slane %v5382, 4
        %v5388 = vrot.slane %v5384, 4
        %v5389 = vsel %vm873, %v5378, %v5385
        %v5390 = vsel %vm873, %v5380, %v5386
        %v5391 = vsel %vm873, %v5382, %v5387
        %v5392 = vsel %vm873, %v5384, %v5388
        %5397 = vst [vmem:[#allocation3 + $0x60] sm:$0xf] %v5389
        %5398 = vst [vmem:[#allocation3 + $0x64] sm:$0xf] %v5390
        %5399 = vst [vmem:[#allocation3 + $0x68] sm:$0xf] %v5391
        %5400 = vst [vmem:[#allocation3 + $0x6c] sm:$0xf] %v5392
        %v5401 = vld [vmem:[#allocation2] sm:$0xff]
        %v5402 = vld [vmem:[#allocation2 + $0x8] sm:$0xff]
        %v5403 = vld [vmem:[#allocation2 + $0x10] sm:$0xff]
        %v5404 = vld [vmem:[#allocation2 + $0x18] sm:$0xff]
        %5409 = vrot.lane.b32.xlu0 %v5401, 121
        %v5410 = vpop.permute.xlu0 %5409
        %5411 = vrot.lane.b32.xlu0 %v5402, 121
        %v5412 = vpop.permute.xlu0 %5411
        %5413 = vrot.lane.b32.xlu0 %v5403, 121
        %v5414 = vpop.permute.xlu0 %5413
        %5415 = vrot.lane.b32.xlu0 %v5404, 121
        %v5416 = vpop.permute.xlu0 %5415
        %v5417 = vrot.slane %v5410, 4
        %v5418 = vrot.slane %v5412, 4
        %v5419 = vrot.slane %v5414, 4
        %v5420 = vrot.slane %v5416, 4
        %v5421 = vsel %vm938, %v5410, %v5417
        %v5422 = vsel %vm938, %v5412, %v5418
        %v5423 = vsel %vm938, %v5414, %v5419
        %v5424 = vsel %vm938, %v5416, %v5420
        %5429 = vst [vmem:[#allocation3 + $0x70] sm:$0xf] %v5421
        %5430 = vst [vmem:[#allocation3 + $0x74] sm:$0xf] %v5422
        %5431 = vst [vmem:[#allocation3 + $0x78] sm:$0xf] %v5423
        %5432 = vst [vmem:[#allocation3 + $0x7c] sm:$0xf] %v5424
        %v5433 = vld [vmem:[#allocation3] sm:$0xf]
        %v5434 = vld [vmem:[#allocation3 + $0x4] sm:$0xf]
        %v5435 = vld [vmem:[#allocation3 + $0x8] sm:$0xf]
        %v5436 = vld [vmem:[#allocation3 + $0xc] sm:$0xf]
        %v5437 = vld [vmem:[#allocation3 + $0x10] sm:$0xf]
        %v5438 = vld [vmem:[#allocation3 + $0x14] sm:$0xf]
        %v5439 = vld [vmem:[#allocation3 + $0x18] sm:$0xf]
        %v5440 = vld [vmem:[#allocation3 + $0x1c] sm:$0xf]
        %v5441 = vld [vmem:[#allocation3 + $0x20] sm:$0xf]
        %v5442 = vld [vmem:[#allocation3 + $0x24] sm:$0xf]
        %v5443 = vld [vmem:[#allocation3 + $0x28] sm:$0xf]
        %v5444 = vld [vmem:[#allocation3 + $0x2c] sm:$0xf]
        %v5445 = vld [vmem:[#allocation3 + $0x30] sm:$0xf]
        %v5446 = vld [vmem:[#allocation3 + $0x34] sm:$0xf]
        %v5447 = vld [vmem:[#allocation3 + $0x38] sm:$0xf]
        %v5448 = vld [vmem:[#allocation3 + $0x3c] sm:$0xf]
        %v5449 = vld [vmem:[#allocation3 + $0x40] sm:$0xf]
        %v5450 = vld [vmem:[#allocation3 + $0x44] sm:$0xf]
        %v5451 = vld [vmem:[#allocation3 + $0x48] sm:$0xf]
        %v5452 = vld [vmem:[#allocation3 + $0x4c] sm:$0xf]
        %v5453 = vld [vmem:[#allocation3 + $0x50] sm:$0xf]
        %v5454 = vld [vmem:[#allocation3 + $0x54] sm:$0xf]
        %v5455 = vld [vmem:[#allocation3 + $0x58] sm:$0xf]
        %v5456 = vld [vmem:[#allocation3 + $0x5c] sm:$0xf]
        %v5457 = vld [vmem:[#allocation3 + $0x60] sm:$0xf]
        %v5458 = vld [vmem:[#allocation3 + $0x64] sm:$0xf]
        %v5459 = vld [vmem:[#allocation3 + $0x68] sm:$0xf]
        %v5460 = vld [vmem:[#allocation3 + $0x6c] sm:$0xf]
        %v5461 = vld [vmem:[#allocation3 + $0x70] sm:$0xf]
        %v5462 = vld [vmem:[#allocation3 + $0x74] sm:$0xf]
        %v5463 = vld [vmem:[#allocation3 + $0x78] sm:$0xf]
        %v5464 = vld [vmem:[#allocation3 + $0x7c] sm:$0xf]
        %5466 = vset.pattern.permute.xlu0 0
        %5467 = vperm.xlu0 %5466, %v5165
        %v5468 = vpop.permute.xlu0 %5467
        %5471 = vset.pattern.permute.xlu0 0
        %5472 = vperm.xlu0 %5471, %v5166
        %v5473 = vpop.permute.xlu0 %5472
        %5476 = vset.pattern.permute.xlu0 0
        %5477 = vperm.xlu0 %5476, %v5167
        %v5478 = vpop.permute.xlu0 %5477
        %5481 = vset.pattern.permute.xlu0 0
        %5482 = vperm.xlu0 %5481, %v5168
        %v5483 = vpop.permute.xlu0 %5482
        %v5489 = vunpack.c.l.b16 %v5160
        %v5490 = vunpack.c.h.b16 %v5160
        %v5491 = vunpack.c.l.b16 %v5161
        %v5492 = vunpack.c.h.b16 %v5161
        %v5493 = vunpack.c.l.b16 %v5162
        %v5494 = vunpack.c.h.b16 %v5162
        %v5495 = vunpack.c.l.b16 %v5163
        %v5496 = vunpack.c.h.b16 %v5163
        %v5497 = vpack.c.b16 %v5491, %v5489
        %v5498 = vpack.c.b16 %v5492, %v5490
        %v5499 = vpack.c.b16 %v5495, %v5493
        %v5500 = vpack.c.b16 %v5496, %v5494
        %v5537 = vunpack.c.l.b16 %v5433
        %v5538 = vunpack.c.l.b16 %v5434
        %v5539 = vunpack.c.l.b16 %v5435
        %v5540 = vunpack.c.l.b16 %v5436
        %v5541 = vunpack.c.l.b16 %v5437
        %v5542 = vunpack.c.l.b16 %v5438
        %v5543 = vunpack.c.l.b16 %v5439
        %v5544 = vunpack.c.l.b16 %v5440
        %v5545 = vunpack.c.l.b16 %v5441
        %v5546 = vunpack.c.l.b16 %v5442
        %v5547 = vunpack.c.l.b16 %v5443
        %v5548 = vunpack.c.l.b16 %v5444
        %v5549 = vunpack.c.l.b16 %v5445
        %v5550 = vunpack.c.l.b16 %v5446
        %v5551 = vunpack.c.l.b16 %v5447
        %v5552 = vunpack.c.l.b16 %v5448
        %v5553 = vunpack.c.l.b16 %v5449
        %v5554 = vunpack.c.l.b16 %v5450
        %v5555 = vunpack.c.l.b16 %v5451
        %v5556 = vunpack.c.l.b16 %v5452
        %v5557 = vunpack.c.l.b16 %v5453
        %v5558 = vunpack.c.l.b16 %v5454
        %v5559 = vunpack.c.l.b16 %v5455
        %v5560 = vunpack.c.l.b16 %v5456
        %v5561 = vunpack.c.l.b16 %v5457
        %v5562 = vunpack.c.l.b16 %v5458
        %v5563 = vunpack.c.l.b16 %v5459
        %v5564 = vunpack.c.l.b16 %v5460
        %v5565 = vunpack.c.l.b16 %v5461
        %v5566 = vunpack.c.l.b16 %v5462
        %v5567 = vunpack.c.l.b16 %v5463
        %v5568 = vunpack.c.l.b16 %v5464
        %v5569 = vpack.c.b16 %v5538, %v5537
        %v5570 = vpack.c.b16 %v5540, %v5539
        %v5571 = vpack.c.b16 %v5542, %v5541
        %v5572 = vpack.c.b16 %v5544, %v5543
        %v5573 = vpack.c.b16 %v5546, %v5545
        %v5574 = vpack.c.b16 %v5548, %v5547
        %v5575 = vpack.c.b16 %v5550, %v5549
        %v5576 = vpack.c.b16 %v5552, %v5551
        %v5577 = vpack.c.b16 %v5554, %v5553
        %v5578 = vpack.c.b16 %v5556, %v5555
        %v5579 = vpack.c.b16 %v5558, %v5557
        %v5580 = vpack.c.b16 %v5560, %v5559
        %v5581 = vpack.c.b16 %v5562, %v5561
        %v5582 = vpack.c.b16 %v5564, %v5563
        %v5583 = vpack.c.b16 %v5566, %v5565
        %v5584 = vpack.c.b16 %v5568, %v5567
        %5601 = vmatpush.bf16.msra.mxu0 %v5576
        %5602 = vmatpush.bf16.msra.mxu0 %v5575
        %5603 = vmatpush.bf16.msra.mxu0 %v5574
        %5604 = vmatpush.bf16.msra.mxu0 %v5573
        %5605 = vmatpush.bf16.msra.mxu0 %v5572
        %5606 = vmatpush.bf16.msra.mxu0 %v5571
        %5607 = vmatpush.bf16.msra.mxu0 %v5570
        %5608 = vmatpush.bf16.msra.mxu0 %v5569
        %5609 = vmatmul.bf16.gmra.mxu0 %v5497
        %v5610 = vpop.f32.mrf.mxu0
        %v5611 = vadd.f32 %v5468, %v5610
        %v5612 = vpop.f32.mrf.mxu0
        %v5613 = vadd.f32 %v5473, %v5612
        %5614 = vmatmul.bf16.gmra.mxu0 %v5499
        %v5615 = vpop.f32.mrf.mxu0
        %v5616 = vadd.f32 %v5478, %v5615
        %v5617 = vpop.f32.mrf.mxu0
        %v5618 = vadd.f32 %v5483, %v5617
        %5619 = vdwg.mxu0
        %5620 = vmatpush.bf16.msra.mxu0 %v5584
        %5621 = vmatpush.bf16.msra.mxu0 %v5583
        %5622 = vmatpush.bf16.msra.mxu0 %v5582
        %5623 = vmatpush.bf16.msra.mxu0 %v5581
        %5624 = vmatpush.bf16.msra.mxu0 %v5580
        %5625 = vmatpush.bf16.msra.mxu0 %v5579
        %5626 = vmatpush.bf16.msra.mxu0 %v5578
        %5627 = vmatpush.bf16.msra.mxu0 %v5577
        %5628 = vmatmul.bf16.gmra.mxu0 %v5498
        %v5629 = vpop.f32.mrf.mxu0
        %v5630 = vadd.f32 %v5611, %v5629
        %v5631 = vpop.f32.mrf.mxu0
        %v5632 = vadd.f32 %v5613, %v5631
        %5633 = vmatmul.bf16.gmra.mxu0 %v5500
        %v5634 = vpop.f32.mrf.mxu0
        %v5635 = vadd.f32 %v5616, %v5634
        %v5636 = vpop.f32.mrf.mxu0
        %v5637 = vadd.f32 %v5618, %v5636
        %5638 = vdwg.mxu0
        %v5639 = vmul.f32 %v5630, 0.5
        %v5640 = vmul.f32 %v5632, 0.5
        %v5641 = vmul.f32 %v5635, 0.5
        %v5642 = vmul.f32 %v5637, 0.5
        %v5643 = vmul.f32 %v5630, 0.70710677
        %v5644 = vmul.f32 %v5632, 0.70710677
        %v5645 = vmul.f32 %v5635, 0.70710677
        %v5646 = vmul.f32 %v5637, 0.70710677
        %vm5647 = vcmp.ge.f32.partialorder %v5643, 0.0
        %vm5648 = vcmp.ge.f32.partialorder %v5644, 0.0
        %vm5649 = vcmp.ge.f32.partialorder %v5645, 0.0
        %vm5650 = vcmp.ge.f32.partialorder %v5646, 0.0
        %v5651 = vsel %vm5647, 1.0, -1.0
        %v5652 = vsel %vm5648, 1.0, -1.0
        %v5653 = vsel %vm5649, 1.0, -1.0
        %v5654 = vsel %vm5650, 1.0, -1.0
        %v5655 = vand.u32 2147483647, %v5643
        %v5656 = vand.u32 2147483647, %v5644
        %v5657 = vand.u32 2147483647, %v5645
        %v5658 = vand.u32 2147483647, %v5646
        %v5659 = vmul.f32 %v5655, 0.3275911
        %v5660 = vmul.f32 %v5656, 0.3275911
        %v5661 = vmul.f32 %v5657, 0.3275911
        %v5662 = vmul.f32 %v5658, 0.3275911
        %v5663 = vadd.f32 %v5659, 1.0
        %v5664 = vadd.f32 %v5660, 1.0
        %v5665 = vadd.f32 %v5661, 1.0
        %v5666 = vadd.f32 %v5662, 1.0
        %v5667 = vrcp.pop %v5663
        %v5668 = vrcp.pop %v5664
        %v5669 = vrcp.pop %v5665
        %v5670 = vrcp.pop %v5666
        %v5671 = vmul.f32 %v5667, 1.0614054
        %v5672 = vmul.f32 %v5668, 1.0614054
        %v5673 = vmul.f32 %v5669, 1.0614054
        %v5674 = vmul.f32 %v5670, 1.0614054
        %v5675 = vadd.f32 %v5671, -1.4531521
        %v5676 = vadd.f32 %v5672, -1.4531521
        %v5677 = vadd.f32 %v5673, -1.4531521
        %v5678 = vadd.f32 %v5674, -1.4531521
        %v5679 = vmul.f32 %v5675, %v5667
        %v5680 = vmul.f32 %v5676, %v5668
        %v5681 = vmul.f32 %v5677, %v5669
        %v5682 = vmul.f32 %v5678, %v5670
        %v5683 = vadd.f32 %v5679, 1.4214138
        %v5684 = vadd.f32 %v5680, 1.4214138
        %v5685 = vadd.f32 %v5681, 1.4214138
        %v5686 = vadd.f32 %v5682, 1.4214138
        %v5687 = vmul.f32 %v5683, %v5667
        %v5688 = vmul.f32 %v5684, %v5668
        %v5689 = vmul.f32 %v5685, %v5669
        %v5690 = vmul.f32 %v5686, %v5670
        %v5691 = vadd.f32 %v5687, -0.28449672
        %v5692 = vadd.f32 %v5688, -0.28449672
        %v5693 = vadd.f32 %v5689, -0.28449672
        %v5694 = vadd.f32 %v5690, -0.28449672
        %v5695 = vmul.f32 %v5691, %v5667
        %v5696 = vmul.f32 %v5692, %v5668
        %v5697 = vmul.f32 %v5693, %v5669
        %v5698 = vmul.f32 %v5694, %v5670
        %v5699 = vadd.f32 %v5695, 0.2548296
        %v5700 = vadd.f32 %v5696, 0.2548296
        %v5701 = vadd.f32 %v5697, 0.2548296
        %v5702 = vadd.f32 %v5698, 0.2548296
        %v5703 = vmul.f32 %v5699, %v5667
        %v5704 = vmul.f32 %v5700, %v5668
        %v5705 = vmul.f32 %v5701, %v5669
        %v5706 = vmul.f32 %v5702, %v5670
        %v5707 = vsub.f32 0.0, %v5655
        %v5708 = vsub.f32 0.0, %v5656
        %v5709 = vsub.f32 0.0, %v5657
        %v5710 = vsub.f32 0.0, %v5658
        %v5711 = vmul.f32 %v5707, %v5655
        %v5712 = vmul.f32 %v5708, %v5656
        %v5713 = vmul.f32 %v5709, %v5657
        %v5714 = vmul.f32 %v5710, %v5658
        %v5715 = vmul.f32 %v5711, 1.442695
        %v5716 = vpow.pop %v5715
        %v5717 = vmul.f32 %v5712, 1.442695
        %v5718 = vpow.pop %v5717
        %v5719 = vmul.f32 %v5713, 1.442695
        %v5720 = vpow.pop %v5719
        %v5721 = vmul.f32 %v5714, 1.442695
        %v5722 = vpow.pop %v5721
        %v5723 = vmul.f32 %v5703, %v5716
        %v5724 = vmul.f32 %v5704, %v5718
        %v5725 = vmul.f32 %v5705, %v5720
        %v5726 = vmul.f32 %v5706, %v5722
        %v5727 = vsub.f32 1.0, %v5723
        %v5728 = vsub.f32 1.0, %v5724
        %v5729 = vsub.f32 1.0, %v5725
        %v5730 = vsub.f32 1.0, %v5726
        %v5731 = vmul.f32 %v5651, %v5727
        %v5732 = vmul.f32 %v5652, %v5728
        %v5733 = vmul.f32 %v5653, %v5729
        %v5734 = vmul.f32 %v5654, %v5730
        %v5735 = vadd.f32 %v5731, 1.0
        %v5736 = vadd.f32 %v5732, 1.0
        %v5737 = vadd.f32 %v5733, 1.0
        %v5738 = vadd.f32 %v5734, 1.0
        %v5739 = vmul.f32 %v5639, %v5735
        %v5740 = vmul.f32 %v5640, %v5736
        %v5741 = vmul.f32 %v5641, %v5737
        %v5742 = vmul.f32 %v5642, %v5738
        %s5743 = scalar_lea.vmem %s5, 96
        %v5744 = vld [vmem:[%s5743] sm:$0xff]
        %v5745 = vld [vmem:[%s5743 + $0x8] sm:$0xff]
        %v5746 = vld [vmem:[%s5743 + $0x10] sm:$0xff]
        %v5747 = vld [vmem:[%s5743 + $0x18] sm:$0xff]
        %s5748 = scalar_lea.vmem %s6, 96
        %v5749 = vld [vmem:[%s5748] sm:$0xff]
        %v5750 = vld [vmem:[%s5748 + $0x8] sm:$0xff]
        %v5751 = vld [vmem:[%s5748 + $0x10] sm:$0xff]
        %v5752 = vld [vmem:[%s5748 + $0x18] sm:$0xff]
        %v5753 = vadd.f32 %v5739, %v5740
        %v5754 = vadd.f32 %v5753, %v5741
        %v5755 = vadd.f32 %v5754, %v5742
        %5756 = vadd.xlane.f32.xlu0 %v5755
        %v5757 = vpop.xlane.xlu0 %5756
        %v5758 = vrot.slane %v5757, 4
        %v5759 = vadd.f32 %v5757, %v5758
        %v5760 = vrot.slane %v5759, 2
        %v5761 = vadd.f32 %v5759, %v5760
        %v5762 = vrot.slane %v5761, 1
        %v5763 = vadd.f32 %v5761, %v5762
        %s5764 = vtos %v5763
        %s5765 = smul.f32 %s5764, 0.00024414063
        %v5766 = vmul.f32 %v5739, %v5739
        %v5767 = vmul.f32 %v5740, %v5740
        %v5768 = vmul.f32 %v5741, %v5741
        %v5769 = vmul.f32 %v5742, %v5742
        %v5770 = vadd.f32 %v5766, %v5767
        %v5771 = vadd.f32 %v5770, %v5768
        %v5772 = vadd.f32 %v5771, %v5769
        %5773 = vadd.xlane.f32.xlu0 %v5772
        %v5774 = vpop.xlane.xlu0 %5773
        %v5775 = vrot.slane %v5774, 4
        %v5776 = vadd.f32 %v5774, %v5775
        %v5777 = vrot.slane %v5776, 2
        %v5778 = vadd.f32 %v5776, %v5777
        %v5779 = vrot.slane %v5778, 1
        %v5780 = vadd.f32 %v5778, %v5779
        %s5781 = vtos %v5780
        %s5782 = smul.f32 %s5781, 0.00024414063
        %s5783 = smul.f32 %s5765, %s5765
        %s5784 = ssub.f32 %s5782, %s5783
        %v5785 = vstv %s5765
        %v5786 = vsub.f32 %v5739, %v5785
        %v5787 = vsub.f32 %v5740, %v5785
        %v5788 = vsub.f32 %v5741, %v5785
        %v5789 = vsub.f32 %v5742, %v5785
        %s5790 = sadd.f32 %s5784, 1e-05
        %v5791 = vstv %s5790
        %v5792 = vrsqrt.pop %v5791
        %v5793 = vmul.f32 %v5792, %v5791
        %v5794 = vmul.f32 %v5793, %v5792
        %v5795 = vmul.f32 0.5, %v5794
        %v5796 = vsub.f32 1.5, %v5795
        %v5797 = vmul.f32 %v5792, %v5796
        %vm5798 = vweird.f32 %v5791
        %vm5799 = vweird.f32 %v5792
        %vm5800 = vmor %vm5798, %vm5799
        %v5801 = vsel %vm5800, %v5792, %v5797
        %s5802 = vtos %v5801
        %v5803 = vstv %s5802
        %v5804 = vmul.f32 %v5786, %v5803
        %v5805 = vmul.f32 %v5787, %v5803
        %v5806 = vmul.f32 %v5788, %v5803
        %v5807 = vmul.f32 %v5789, %v5803
        %v5808 = vmul.f32 %v5804, %v5744
        %v5809 = vmul.f32 %v5805, %v5745
        %v5810 = vmul.f32 %v5806, %v5746
        %v5811 = vmul.f32 %v5807, %v5747
        %v5812 = vadd.f32 %v5808, %v5749
        %v5813 = vadd.f32 %v5809, %v5750
        %v5814 = vadd.f32 %v5810, %v5751
        %v5815 = vadd.f32 %v5811, %v5752
        %s5816 = scalar_lea.vmem %s7, 16
        %v5817 = vld [vmem:[%s5816] sm:$0xf]
        %v5818 = vld [vmem:[%s5816 + $0x4] sm:$0xf]
        %v5819 = vld [vmem:[%s5816 + $0x8] sm:$0xf]
        %v5820 = vld [vmem:[%s5816 + $0xc] sm:$0xf]
        %v5821 = vpack.c.bf16 %v5813, %v5812
        %v5822 = vpack.c.bf16 %v5815, %v5814
        %s5823 = scalar_lea.vmem %s8, 32
        %v5824 = vld [vmem:[%s5823] sm:$0xff]
        %v5825 = vld [vmem:[%s5823 + $0x8] sm:$0xff]
        %v5826 = vld [vmem:[%s5823 + $0x10] sm:$0xff]
        %v5827 = vld [vmem:[%s5823 + $0x18] sm:$0xff]
        %5829 = vset.pattern.permute.xlu0 0
        %5830 = vperm.xlu0 %5829, %v5824
        %v5831 = vpop.permute.xlu0 %5830
        %5834 = vset.pattern.permute.xlu0 0
        %5835 = vperm.xlu0 %5834, %v5825
        %v5836 = vpop.permute.xlu0 %5835
        %5839 = vset.pattern.permute.xlu0 0
        %5840 = vperm.xlu0 %5839, %v5826
        %v5841 = vpop.permute.xlu0 %5840
        %5844 = vset.pattern.permute.xlu0 0
        %5845 = vperm.xlu0 %5844, %v5827
        %v5846 = vpop.permute.xlu0 %5845
        %v5852 = vunpack.c.l.b16 %v5817
        %v5853 = vunpack.c.l.b16 %v5818
        %v5854 = vunpack.c.l.b16 %v5819
        %v5855 = vunpack.c.l.b16 %v5820
        %v5856 = vpack.c.b16 %v5853, %v5852
        %v5857 = vpack.c.b16 %v5855, %v5854
        %v5859 = vsel %vm2705, %v5856, 0
        %v5862 = vsel %vm2705, %v5857, 0
        %5864 = vmatpush.bf16.msra.mxu0 0
        %5865 = vmatpush.bf16.msra.mxu0 0
        %5866 = vmatpush.bf16.msra.mxu0 0
        %5867 = vmatpush.bf16.msra.mxu0 0
        %5868 = vmatpush.bf16.msra.mxu0 0
        %5869 = vmatpush.bf16.msra.mxu0 0
        %5870 = vmatpush.bf16.msra.mxu0 %v5822
        %5871 = vmatpush.bf16.msra.mxu0 %v5821
        %5872 = vmatmul.bf16.gmra.mxu0 %v5859
        %v5873 = vpop.f32.mrf.mxu0
        %v5874 = vadd.f32 %v5831, %v5873
        %v5875 = vpop.f32.mrf.mxu0
        %v5876 = vadd.f32 %v5836, %v5875
        %5877 = vmatmul.bf16.gmra.mxu0 %v5862
        %v5878 = vpop.f32.mrf.mxu0
        %v5879 = vadd.f32 %v5841, %v5878
        %v5880 = vpop.f32.mrf.mxu0
        %v5881 = vadd.f32 %v5846, %v5880
        %5882 = vdwg.mxu0
        %s5883 = scalar_lea.vmem %s9, 64
        %v5884 = vld [vmem:[%s5883] sm:$0xff]
        %v5885 = vld [vmem:[%s5883 + $0x8] sm:$0xff]
        %v5886 = vld [vmem:[%s5883 + $0x10] sm:$0xff]
        %v5887 = vld [vmem:[%s5883 + $0x18] sm:$0xff]
        %v5888 = vld [vmem:[%s5883 + $0x20] sm:$0xff]
        %v5889 = vld [vmem:[%s5883 + $0x28] sm:$0xff]
        %v5890 = vld [vmem:[%s5883 + $0x30] sm:$0xff]
        %v5891 = vld [vmem:[%s5883 + $0x38] sm:$0xff]
        %s5892 = scalar_lea.vmem %s10, 64
        %v5893 = vld [vmem:[%s5892] sm:$0xff]
        %v5894 = vld [vmem:[%s5892 + $0x8] sm:$0xff]
        %v5895 = vld [vmem:[%s5892 + $0x10] sm:$0xff]
        %v5896 = vld [vmem:[%s5892 + $0x18] sm:$0xff]
        %v5897 = vld [vmem:[%s5892 + $0x20] sm:$0xff]
        %v5898 = vld [vmem:[%s5892 + $0x28] sm:$0xff]
        %v5899 = vld [vmem:[%s5892 + $0x30] sm:$0xff]
        %v5900 = vld [vmem:[%s5892 + $0x38] sm:$0xff]
        %v5901 = vpack.c.bf16 %v5874, %v5874
        %v5902 = vpack.c.bf16 %v5876, %v5876
        %v5903 = vpack.c.bf16 %v5879, %v5879
        %v5904 = vpack.c.bf16 %v5881, %v5881
        %5909 = vrot.lane.b32.xlu0 %v5901, 3
        %v5910 = vpop.permute.xlu0 %5909
        %5911 = vrot.lane.b32.xlu0 %v5902, 3
        %v5912 = vpop.permute.xlu0 %5911
        %5913 = vrot.lane.b32.xlu0 %v5903, 3
        %v5914 = vpop.permute.xlu0 %5913
        %5915 = vrot.lane.b32.xlu0 %v5904, 3
        %v5916 = vpop.permute.xlu0 %5915
        %v5917 = vrot.slane %v5910, 4
        %v5918 = vrot.slane %v5912, 4
        %v5919 = vrot.slane %v5914, 4
        %v5920 = vrot.slane %v5916, 4
        %v5921 = vsel %vm464, %v5917, %v5910
        %v5922 = vsel %vm464, %v5918, %v5912
        %v5923 = vsel %vm464, %v5919, %v5914
        %v5924 = vsel %vm464, %v5920, %v5916
        %5929 = vst.msk [vmem:[#allocation2] sm:$0xff] %vm483, %v5921
        %5930 = vst.msk [vmem:[#allocation2 + $0x8] sm:$0xff] %vm483, %v5922
        %5931 = vst.msk [vmem:[#allocation2 + $0x10] sm:$0xff] %vm483, %v5923
        %5932 = vst.msk [vmem:[#allocation2 + $0x18] sm:$0xff] %vm483, %v5924
        %v5933 = vld [vmem:[#allocation2] sm:$0xf]
        %v5934 = vld [vmem:[#allocation2 + $0x8] sm:$0xf]
        %v5935 = vld [vmem:[#allocation2 + $0x10] sm:$0xf]
        %v5936 = vld [vmem:[#allocation2 + $0x18] sm:$0xf]
        %5937 = vst [vmem:[#allocation3] sm:$0xf] %v5933
        %5938 = vst [vmem:[#allocation3 + $0x4] sm:$0xf] %v5934
        %5939 = vst [vmem:[#allocation3 + $0x8] sm:$0xf] %v5935
        %5940 = vst [vmem:[#allocation3 + $0xc] sm:$0xf] %v5936
        %v5941 = vld [vmem:[#allocation2] sm:$0xff]
        %v5942 = vld [vmem:[#allocation2 + $0x8] sm:$0xff]
        %v5943 = vld [vmem:[#allocation2 + $0x10] sm:$0xff]
        %v5944 = vld [vmem:[#allocation2 + $0x18] sm:$0xff]
        %5949 = vrot.lane.b32.xlu0 %v5941, 127
        %v5950 = vpop.permute.xlu0 %5949
        %5951 = vrot.lane.b32.xlu0 %v5942, 127
        %v5952 = vpop.permute.xlu0 %5951
        %5953 = vrot.lane.b32.xlu0 %v5943, 127
        %v5954 = vpop.permute.xlu0 %5953
        %5955 = vrot.lane.b32.xlu0 %v5944, 127
        %v5956 = vpop.permute.xlu0 %5955
        %v5957 = vrot.slane %v5950, 4
        %v5958 = vrot.slane %v5952, 4
        %v5959 = vrot.slane %v5954, 4
        %v5960 = vrot.slane %v5956, 4
        %v5961 = vsel %vm548, %v5950, %v5957
        %v5962 = vsel %vm548, %v5952, %v5958
        %v5963 = vsel %vm548, %v5954, %v5959
        %v5964 = vsel %vm548, %v5956, %v5960
        %5969 = vst [vmem:[#allocation3 + $0x10] sm:$0xf] %v5961
        %5970 = vst [vmem:[#allocation3 + $0x14] sm:$0xf] %v5962
        %5971 = vst [vmem:[#allocation3 + $0x18] sm:$0xf] %v5963
        %5972 = vst [vmem:[#allocation3 + $0x1c] sm:$0xf] %v5964
        %v5973 = vld [vmem:[#allocation2] sm:$0xff]
        %v5974 = vld [vmem:[#allocation2 + $0x8] sm:$0xff]
        %v5975 = vld [vmem:[#allocation2 + $0x10] sm:$0xff]
        %v5976 = vld [vmem:[#allocation2 + $0x18] sm:$0xff]
        %5981 = vrot.lane.b32.xlu0 %v5973, 126
        %v5982 = vpop.permute.xlu0 %5981
        %5983 = vrot.lane.b32.xlu0 %v5974, 126
        %v5984 = vpop.permute.xlu0 %5983
        %5985 = vrot.lane.b32.xlu0 %v5975, 126
        %v5986 = vpop.permute.xlu0 %5985
        %5987 = vrot.lane.b32.xlu0 %v5976, 126
        %v5988 = vpop.permute.xlu0 %5987
        %v5989 = vrot.slane %v5982, 4
        %v5990 = vrot.slane %v5984, 4
        %v5991 = vrot.slane %v5986, 4
        %v5992 = vrot.slane %v5988, 4
        %v5993 = vsel %vm613, %v5982, %v5989
        %v5994 = vsel %vm613, %v5984, %v5990
        %v5995 = vsel %vm613, %v5986, %v5991
        %v5996 = vsel %vm613, %v5988, %v5992
        %6001 = vst [vmem:[#allocation3 + $0x20] sm:$0xf] %v5993
        %6002 = vst [vmem:[#allocation3 + $0x24] sm:$0xf] %v5994
        %6003 = vst [vmem:[#allocation3 + $0x28] sm:$0xf] %v5995
        %6004 = vst [vmem:[#allocation3 + $0x2c] sm:$0xf] %v5996
        %v6005 = vld [vmem:[#allocation2] sm:$0xff]
        %v6006 = vld [vmem:[#allocation2 + $0x8] sm:$0xff]
        %v6007 = vld [vmem:[#allocation2 + $0x10] sm:$0xff]
        %v6008 = vld [vmem:[#allocation2 + $0x18] sm:$0xff]
        %6013 = vrot.lane.b32.xlu0 %v6005, 125
        %v6014 = vpop.permute.xlu0 %6013
        %6015 = vrot.lane.b32.xlu0 %v6006, 125
        %v6016 = vpop.permute.xlu0 %6015
        %6017 = vrot.lane.b32.xlu0 %v6007, 125
        %v6018 = vpop.permute.xlu0 %6017
        %6019 = vrot.lane.b32.xlu0 %v6008, 125
        %v6020 = vpop.permute.xlu0 %6019
        %v6021 = vrot.slane %v6014, 4
        %v6022 = vrot.slane %v6016, 4
        %v6023 = vrot.slane %v6018, 4
        %v6024 = vrot.slane %v6020, 4
        %v6025 = vsel %vm678, %v6014, %v6021
        %v6026 = vsel %vm678, %v6016, %v6022
        %v6027 = vsel %vm678, %v6018, %v6023
        %v6028 = vsel %vm678, %v6020, %v6024
        %6033 = vst [vmem:[#allocation3 + $0x30] sm:$0xf] %v6025
        %6034 = vst [vmem:[#allocation3 + $0x34] sm:$0xf] %v6026
        %6035 = vst [vmem:[#allocation3 + $0x38] sm:$0xf] %v6027
        %6036 = vst [vmem:[#allocation3 + $0x3c] sm:$0xf] %v6028
        %v6037 = vld [vmem:[#allocation2] sm:$0xff]
        %v6038 = vld [vmem:[#allocation2 + $0x8] sm:$0xff]
        %v6039 = vld [vmem:[#allocation2 + $0x10] sm:$0xff]
        %v6040 = vld [vmem:[#allocation2 + $0x18] sm:$0xff]
        %6045 = vrot.lane.b32.xlu0 %v6037, 124
        %v6046 = vpop.permute.xlu0 %6045
        %6047 = vrot.lane.b32.xlu0 %v6038, 124
        %v6048 = vpop.permute.xlu0 %6047
        %6049 = vrot.lane.b32.xlu0 %v6039, 124
        %v6050 = vpop.permute.xlu0 %6049
        %6051 = vrot.lane.b32.xlu0 %v6040, 124
        %v6052 = vpop.permute.xlu0 %6051
        %v6053 = vrot.slane %v6046, 4
        %v6054 = vrot.slane %v6048, 4
        %v6055 = vrot.slane %v6050, 4
        %v6056 = vrot.slane %v6052, 4
        %v6057 = vsel %vm743, %v6046, %v6053
        %v6058 = vsel %vm743, %v6048, %v6054
        %v6059 = vsel %vm743, %v6050, %v6055
        %v6060 = vsel %vm743, %v6052, %v6056
        %6065 = vst [vmem:[#allocation3 + $0x40] sm:$0xf] %v6057
        %6066 = vst [vmem:[#allocation3 + $0x44] sm:$0xf] %v6058
        %6067 = vst [vmem:[#allocation3 + $0x48] sm:$0xf] %v6059
        %6068 = vst [vmem:[#allocation3 + $0x4c] sm:$0xf] %v6060
        %v6069 = vld [vmem:[#allocation2] sm:$0xff]
        %v6070 = vld [vmem:[#allocation2 + $0x8] sm:$0xff]
        %v6071 = vld [vmem:[#allocation2 + $0x10] sm:$0xff]
        %v6072 = vld [vmem:[#allocation2 + $0x18] sm:$0xff]
        %6077 = vrot.lane.b32.xlu0 %v6069, 123
        %v6078 = vpop.permute.xlu0 %6077
        %6079 = vrot.lane.b32.xlu0 %v6070, 123
        %v6080 = vpop.permute.xlu0 %6079
        %6081 = vrot.lane.b32.xlu0 %v6071, 123
        %v6082 = vpop.permute.xlu0 %6081
        %6083 = vrot.lane.b32.xlu0 %v6072, 123
        %v6084 = vpop.permute.xlu0 %6083
        %v6085 = vrot.slane %v6078, 4
        %v6086 = vrot.slane %v6080, 4
        %v6087 = vrot.slane %v6082, 4
        %v6088 = vrot.slane %v6084, 4
        %v6089 = vsel %vm808, %v6078, %v6085
        %v6090 = vsel %vm808, %v6080, %v6086
        %v6091 = vsel %vm808, %v6082, %v6087
        %v6092 = vsel %vm808, %v6084, %v6088
        %6097 = vst [vmem:[#allocation3 + $0x50] sm:$0xf] %v6089
        %6098 = vst [vmem:[#allocation3 + $0x54] sm:$0xf] %v6090
        %6099 = vst [vmem:[#allocation3 + $0x58] sm:$0xf] %v6091
        %6100 = vst [vmem:[#allocation3 + $0x5c] sm:$0xf] %v6092
        %v6101 = vld [vmem:[#allocation2] sm:$0xff]
        %v6102 = vld [vmem:[#allocation2 + $0x8] sm:$0xff]
        %v6103 = vld [vmem:[#allocation2 + $0x10] sm:$0xff]
        %v6104 = vld [vmem:[#allocation2 + $0x18] sm:$0xff]
        %6109 = vrot.lane.b32.xlu0 %v6101, 122
        %v6110 = vpop.permute.xlu0 %6109
        %6111 = vrot.lane.b32.xlu0 %v6102, 122
        %v6112 = vpop.permute.xlu0 %6111
        %6113 = vrot.lane.b32.xlu0 %v6103, 122
        %v6114 = vpop.permute.xlu0 %6113
        %6115 = vrot.lane.b32.xlu0 %v6104, 122
        %v6116 = vpop.permute.xlu0 %6115
        %v6117 = vrot.slane %v6110, 4
        %v6118 = vrot.slane %v6112, 4
        %v6119 = vrot.slane %v6114, 4
        %v6120 = vrot.slane %v6116, 4
        %v6121 = vsel %vm873, %v6110, %v6117
        %v6122 = vsel %vm873, %v6112, %v6118
        %v6123 = vsel %vm873, %v6114, %v6119
        %v6124 = vsel %vm873, %v6116, %v6120
        %6129 = vst [vmem:[#allocation3 + $0x60] sm:$0xf] %v6121
        %6130 = vst [vmem:[#allocation3 + $0x64] sm:$0xf] %v6122
        %6131 = vst [vmem:[#allocation3 + $0x68] sm:$0xf] %v6123
        %6132 = vst [vmem:[#allocation3 + $0x6c] sm:$0xf] %v6124
        %v6133 = vld [vmem:[#allocation2] sm:$0xff]
        %v6134 = vld [vmem:[#allocation2 + $0x8] sm:$0xff]
        %v6135 = vld [vmem:[#allocation2 + $0x10] sm:$0xff]
        %v6136 = vld [vmem:[#allocation2 + $0x18] sm:$0xff]
        %6141 = vrot.lane.b32.xlu0 %v6133, 121
        %v6142 = vpop.permute.xlu0 %6141
        %6143 = vrot.lane.b32.xlu0 %v6134, 121
        %v6144 = vpop.permute.xlu0 %6143
        %6145 = vrot.lane.b32.xlu0 %v6135, 121
        %v6146 = vpop.permute.xlu0 %6145
        %6147 = vrot.lane.b32.xlu0 %v6136, 121
        %v6148 = vpop.permute.xlu0 %6147
        %v6149 = vrot.slane %v6142, 4
        %v6150 = vrot.slane %v6144, 4
        %v6151 = vrot.slane %v6146, 4
        %v6152 = vrot.slane %v6148, 4
        %v6153 = vsel %vm938, %v6142, %v6149
        %v6154 = vsel %vm938, %v6144, %v6150
        %v6155 = vsel %vm938, %v6146, %v6151
        %v6156 = vsel %vm938, %v6148, %v6152
        %6161 = vst [vmem:[#allocation3 + $0x70] sm:$0xf] %v6153
        %6162 = vst [vmem:[#allocation3 + $0x74] sm:$0xf] %v6154
        %6163 = vst [vmem:[#allocation3 + $0x78] sm:$0xf] %v6155
        %6164 = vst [vmem:[#allocation3 + $0x7c] sm:$0xf] %v6156
        %v6165 = vld [vmem:[#allocation3] sm:$0xf]
        %v6166 = vld [vmem:[#allocation3 + $0x4] sm:$0xf]
        %v6167 = vld [vmem:[#allocation3 + $0x8] sm:$0xf]
        %v6168 = vld [vmem:[#allocation3 + $0xc] sm:$0xf]
        %v6169 = vld [vmem:[#allocation3 + $0x10] sm:$0xf]
        %v6170 = vld [vmem:[#allocation3 + $0x14] sm:$0xf]
        %v6171 = vld [vmem:[#allocation3 + $0x18] sm:$0xf]
        %v6172 = vld [vmem:[#allocation3 + $0x1c] sm:$0xf]
        %v6173 = vld [vmem:[#allocation3 + $0x20] sm:$0xf]
        %v6174 = vld [vmem:[#allocation3 + $0x24] sm:$0xf]
        %v6175 = vld [vmem:[#allocation3 + $0x28] sm:$0xf]
        %v6176 = vld [vmem:[#allocation3 + $0x2c] sm:$0xf]
        %v6177 = vld [vmem:[#allocation3 + $0x30] sm:$0xf]
        %v6178 = vld [vmem:[#allocation3 + $0x34] sm:$0xf]
        %v6179 = vld [vmem:[#allocation3 + $0x38] sm:$0xf]
        %v6180 = vld [vmem:[#allocation3 + $0x3c] sm:$0xf]
        %v6181 = vld [vmem:[#allocation3 + $0x40] sm:$0xf]
        %v6182 = vld [vmem:[#allocation3 + $0x44] sm:$0xf]
        %v6183 = vld [vmem:[#allocation3 + $0x48] sm:$0xf]
        %v6184 = vld [vmem:[#allocation3 + $0x4c] sm:$0xf]
        %v6185 = vld [vmem:[#allocation3 + $0x50] sm:$0xf]
        %v6186 = vld [vmem:[#allocation3 + $0x54] sm:$0xf]
        %v6187 = vld [vmem:[#allocation3 + $0x58] sm:$0xf]
        %v6188 = vld [vmem:[#allocation3 + $0x5c] sm:$0xf]
        %v6189 = vld [vmem:[#allocation3 + $0x60] sm:$0xf]
        %v6190 = vld [vmem:[#allocation3 + $0x64] sm:$0xf]
        %v6191 = vld [vmem:[#allocation3 + $0x68] sm:$0xf]
        %v6192 = vld [vmem:[#allocation3 + $0x6c] sm:$0xf]
        %v6193 = vld [vmem:[#allocation3 + $0x70] sm:$0xf]
        %v6194 = vld [vmem:[#allocation3 + $0x74] sm:$0xf]
        %v6195 = vld [vmem:[#allocation3 + $0x78] sm:$0xf]
        %v6196 = vld [vmem:[#allocation3 + $0x7c] sm:$0xf]
        %6198 = vset.pattern.permute.xlu0 0
        %6199 = vperm.xlu0 %6198, %v5893
        %v6200 = vpop.permute.xlu0 %6199
        %6203 = vset.pattern.permute.xlu0 0
        %6204 = vperm.xlu0 %6203, %v5894
        %v6205 = vpop.permute.xlu0 %6204
        %6208 = vset.pattern.permute.xlu0 0
        %6209 = vperm.xlu0 %6208, %v5895
        %v6210 = vpop.permute.xlu0 %6209
        %6213 = vset.pattern.permute.xlu0 0
        %6214 = vperm.xlu0 %6213, %v5896
        %v6215 = vpop.permute.xlu0 %6214
        %6218 = vset.pattern.permute.xlu0 0
        %6219 = vperm.xlu0 %6218, %v5897
        %v6220 = vpop.permute.xlu0 %6219
        %6223 = vset.pattern.permute.xlu0 0
        %6224 = vperm.xlu0 %6223, %v5898
        %v6225 = vpop.permute.xlu0 %6224
        %6228 = vset.pattern.permute.xlu0 0
        %6229 = vperm.xlu0 %6228, %v5899
        %v6230 = vpop.permute.xlu0 %6229
        %6233 = vset.pattern.permute.xlu0 0
        %6234 = vperm.xlu0 %6233, %v5900
        %v6235 = vpop.permute.xlu0 %6234
        %v6245 = vunpack.c.l.b16 %v5884
        %v6246 = vunpack.c.h.b16 %v5884
        %v6247 = vunpack.c.l.b16 %v5885
        %v6248 = vunpack.c.h.b16 %v5885
        %v6249 = vunpack.c.l.b16 %v5886
        %v6250 = vunpack.c.h.b16 %v5886
        %v6251 = vunpack.c.l.b16 %v5887
        %v6252 = vunpack.c.h.b16 %v5887
        %v6253 = vunpack.c.l.b16 %v5888
        %v6254 = vunpack.c.h.b16 %v5888
        %v6255 = vunpack.c.l.b16 %v5889
        %v6256 = vunpack.c.h.b16 %v5889
        %v6257 = vunpack.c.l.b16 %v5890
        %v6258 = vunpack.c.h.b16 %v5890
        %v6259 = vunpack.c.l.b16 %v5891
        %v6260 = vunpack.c.h.b16 %v5891
        %v6261 = vpack.c.b16 %v6247, %v6245
        %v6262 = vpack.c.b16 %v6248, %v6246
        %v6263 = vpack.c.b16 %v6251, %v6249
        %v6264 = vpack.c.b16 %v6252, %v6250
        %v6265 = vpack.c.b16 %v6255, %v6253
        %v6266 = vpack.c.b16 %v6256, %v6254
        %v6267 = vpack.c.b16 %v6259, %v6257
        %v6268 = vpack.c.b16 %v6260, %v6258
        %v6309 = vunpack.c.l.b16 %v6165
        %v6310 = vunpack.c.l.b16 %v6166
        %v6311 = vunpack.c.l.b16 %v6167
        %v6312 = vunpack.c.l.b16 %v6168
        %v6313 = vunpack.c.l.b16 %v6169
        %v6314 = vunpack.c.l.b16 %v6170
        %v6315 = vunpack.c.l.b16 %v6171
        %v6316 = vunpack.c.l.b16 %v6172
        %v6317 = vunpack.c.l.b16 %v6173
        %v6318 = vunpack.c.l.b16 %v6174
        %v6319 = vunpack.c.l.b16 %v6175
        %v6320 = vunpack.c.l.b16 %v6176
        %v6321 = vunpack.c.l.b16 %v6177
        %v6322 = vunpack.c.l.b16 %v6178
        %v6323 = vunpack.c.l.b16 %v6179
        %v6324 = vunpack.c.l.b16 %v6180
        %v6325 = vunpack.c.l.b16 %v6181
        %v6326 = vunpack.c.l.b16 %v6182
        %v6327 = vunpack.c.l.b16 %v6183
        %v6328 = vunpack.c.l.b16 %v6184
        %v6329 = vunpack.c.l.b16 %v6185
        %v6330 = vunpack.c.l.b16 %v6186
        %v6331 = vunpack.c.l.b16 %v6187
        %v6332 = vunpack.c.l.b16 %v6188
        %v6333 = vunpack.c.l.b16 %v6189
        %v6334 = vunpack.c.l.b16 %v6190
        %v6335 = vunpack.c.l.b16 %v6191
        %v6336 = vunpack.c.l.b16 %v6192
        %v6337 = vunpack.c.l.b16 %v6193
        %v6338 = vunpack.c.l.b16 %v6194
        %v6339 = vunpack.c.l.b16 %v6195
        %v6340 = vunpack.c.l.b16 %v6196
        %v6341 = vpack.c.b16 %v6310, %v6309
        %v6342 = vpack.c.b16 %v6312, %v6311
        %v6343 = vpack.c.b16 %v6314, %v6313
        %v6344 = vpack.c.b16 %v6316, %v6315
        %v6345 = vpack.c.b16 %v6318, %v6317
        %v6346 = vpack.c.b16 %v6320, %v6319
        %v6347 = vpack.c.b16 %v6322, %v6321
        %v6348 = vpack.c.b16 %v6324, %v6323
        %v6349 = vpack.c.b16 %v6326, %v6325
        %v6350 = vpack.c.b16 %v6328, %v6327
        %v6351 = vpack.c.b16 %v6330, %v6329
        %v6352 = vpack.c.b16 %v6332, %v6331
        %v6353 = vpack.c.b16 %v6334, %v6333
        %v6354 = vpack.c.b16 %v6336, %v6335
        %v6355 = vpack.c.b16 %v6338, %v6337
        %v6356 = vpack.c.b16 %v6340, %v6339
        %6373 = vmatpush.bf16.msra.mxu0 %v6348
        %6374 = vmatpush.bf16.msra.mxu0 %v6347
        %6375 = vmatpush.bf16.msra.mxu0 %v6346
        %6376 = vmatpush.bf16.msra.mxu0 %v6345
        %6377 = vmatpush.bf16.msra.mxu0 %v6344
        %6378 = vmatpush.bf16.msra.mxu0 %v6343
        %6379 = vmatpush.bf16.msra.mxu0 %v6342
        %6380 = vmatpush.bf16.msra.mxu0 %v6341
        %6381 = vmatmul.bf16.gmra.mxu0 %v6261
        %v6382 = vpop.f32.mrf.mxu0
        %v6383 = vadd.f32 %v6200, %v6382
        %v6384 = vpop.f32.mrf.mxu0
        %v6385 = vadd.f32 %v6205, %v6384
        %6386 = vmatmul.bf16.gmra.mxu0 %v6263
        %v6387 = vpop.f32.mrf.mxu0
        %v6388 = vadd.f32 %v6210, %v6387
        %v6389 = vpop.f32.mrf.mxu0
        %v6390 = vadd.f32 %v6215, %v6389
        %6391 = vmatmul.bf16.gmra.mxu0 %v6265
        %v6392 = vpop.f32.mrf.mxu0
        %v6393 = vadd.f32 %v6220, %v6392
        %v6394 = vpop.f32.mrf.mxu0
        %v6395 = vadd.f32 %v6225, %v6394
        %6396 = vmatmul.bf16.gmra.mxu0 %v6267
        %v6397 = vpop.f32.mrf.mxu0
        %v6398 = vadd.f32 %v6230, %v6397
        %v6399 = vpop.f32.mrf.mxu0
        %v6400 = vadd.f32 %v6235, %v6399
        %6401 = vdwg.mxu0
        %6402 = vmatpush.bf16.msra.mxu0 %v6356
        %6403 = vmatpush.bf16.msra.mxu0 %v6355
        %6404 = vmatpush.bf16.msra.mxu0 %v6354
        %6405 = vmatpush.bf16.msra.mxu0 %v6353
        %6406 = vmatpush.bf16.msra.mxu0 %v6352
        %6407 = vmatpush.bf16.msra.mxu0 %v6351
        %6408 = vmatpush.bf16.msra.mxu0 %v6350
        %6409 = vmatpush.bf16.msra.mxu0 %v6349
        %6410 = vmatmul.bf16.gmra.mxu0 %v6262
        %v6411 = vpop.f32.mrf.mxu0
        %v6412 = vadd.f32 %v6383, %v6411
        %v6413 = vpop.f32.mrf.mxu0
        %v6414 = vadd.f32 %v6385, %v6413
        %6415 = vmatmul.bf16.gmra.mxu0 %v6264
        %v6416 = vpop.f32.mrf.mxu0
        %v6417 = vadd.f32 %v6388, %v6416
        %v6418 = vpop.f32.mrf.mxu0
        %v6419 = vadd.f32 %v6390, %v6418
        %6420 = vmatmul.bf16.gmra.mxu0 %v6266
        %v6421 = vpop.f32.mrf.mxu0
        %v6422 = vadd.f32 %v6393, %v6421
        %v6423 = vpop.f32.mrf.mxu0
        %v6424 = vadd.f32 %v6395, %v6423
        %6425 = vmatmul.bf16.gmra.mxu0 %v6268
        %v6426 = vpop.f32.mrf.mxu0
        %v6427 = vadd.f32 %v6398, %v6426
        %v6428 = vpop.f32.mrf.mxu0
        %v6429 = vadd.f32 %v6400, %v6428
        %6430 = vdwg.mxu0
        %v6431 = vmul.f32 %v6412, 0.5
        %v6432 = vmul.f32 %v6414, 0.5
        %v6433 = vmul.f32 %v6417, 0.5
        %v6434 = vmul.f32 %v6419, 0.5
        %v6435 = vmul.f32 %v6422, 0.5
        %v6436 = vmul.f32 %v6424, 0.5
        %v6437 = vmul.f32 %v6427, 0.5
        %v6438 = vmul.f32 %v6429, 0.5
        %v6439 = vmul.f32 %v6412, 0.70710677
        %v6440 = vmul.f32 %v6414, 0.70710677
        %v6441 = vmul.f32 %v6417, 0.70710677
        %v6442 = vmul.f32 %v6419, 0.70710677
        %v6443 = vmul.f32 %v6422, 0.70710677
        %v6444 = vmul.f32 %v6424, 0.70710677
        %v6445 = vmul.f32 %v6427, 0.70710677
        %v6446 = vmul.f32 %v6429, 0.70710677
        %vm6447 = vcmp.ge.f32.partialorder %v6439, 0.0
        %vm6448 = vcmp.ge.f32.partialorder %v6440, 0.0
        %vm6449 = vcmp.ge.f32.partialorder %v6441, 0.0
        %vm6450 = vcmp.ge.f32.partialorder %v6442, 0.0
        %vm6451 = vcmp.ge.f32.partialorder %v6443, 0.0
        %vm6452 = vcmp.ge.f32.partialorder %v6444, 0.0
        %vm6453 = vcmp.ge.f32.partialorder %v6445, 0.0
        %vm6454 = vcmp.ge.f32.partialorder %v6446, 0.0
        %v6455 = vsel %vm6447, 1.0, -1.0
        %v6456 = vsel %vm6448, 1.0, -1.0
        %v6457 = vsel %vm6449, 1.0, -1.0
        %v6458 = vsel %vm6450, 1.0, -1.0
        %v6459 = vsel %vm6451, 1.0, -1.0
        %v6460 = vsel %vm6452, 1.0, -1.0
        %v6461 = vsel %vm6453, 1.0, -1.0
        %v6462 = vsel %vm6454, 1.0, -1.0
        %v6463 = vand.u32 2147483647, %v6439
        %v6464 = vand.u32 2147483647, %v6440
        %v6465 = vand.u32 2147483647, %v6441
        %v6466 = vand.u32 2147483647, %v6442
        %v6467 = vand.u32 2147483647, %v6443
        %v6468 = vand.u32 2147483647, %v6444
        %v6469 = vand.u32 2147483647, %v6445
        %v6470 = vand.u32 2147483647, %v6446
        %v6471 = vmul.f32 %v6463, 0.3275911
        %v6472 = vmul.f32 %v6464, 0.3275911
        %v6473 = vmul.f32 %v6465, 0.3275911
        %v6474 = vmul.f32 %v6466, 0.3275911
        %v6475 = vmul.f32 %v6467, 0.3275911
        %v6476 = vmul.f32 %v6468, 0.3275911
        %v6477 = vmul.f32 %v6469, 0.3275911
        %v6478 = vmul.f32 %v6470, 0.3275911
        %v6479 = vadd.f32 %v6471, 1.0
        %v6480 = vadd.f32 %v6472, 1.0
        %v6481 = vadd.f32 %v6473, 1.0
        %v6482 = vadd.f32 %v6474, 1.0
        %v6483 = vadd.f32 %v6475, 1.0
        %v6484 = vadd.f32 %v6476, 1.0
        %v6485 = vadd.f32 %v6477, 1.0
        %v6486 = vadd.f32 %v6478, 1.0
        %v6487 = vrcp.pop %v6479
        %v6488 = vrcp.pop %v6480
        %v6489 = vrcp.pop %v6481
        %v6490 = vrcp.pop %v6482
        %v6491 = vrcp.pop %v6483
        %v6492 = vrcp.pop %v6484
        %v6493 = vrcp.pop %v6485
        %v6494 = vrcp.pop %v6486
        %v6495 = vmul.f32 %v6487, 1.0614054
        %v6496 = vmul.f32 %v6488, 1.0614054
        %v6497 = vmul.f32 %v6489, 1.0614054
        %v6498 = vmul.f32 %v6490, 1.0614054
        %v6499 = vmul.f32 %v6491, 1.0614054
        %v6500 = vmul.f32 %v6492, 1.0614054
        %v6501 = vmul.f32 %v6493, 1.0614054
        %v6502 = vmul.f32 %v6494, 1.0614054
        %v6503 = vadd.f32 %v6495, -1.4531521
        %v6504 = vadd.f32 %v6496, -1.4531521
        %v6505 = vadd.f32 %v6497, -1.4531521
        %v6506 = vadd.f32 %v6498, -1.4531521
        %v6507 = vadd.f32 %v6499, -1.4531521
        %v6508 = vadd.f32 %v6500, -1.4531521
        %v6509 = vadd.f32 %v6501, -1.4531521
        %v6510 = vadd.f32 %v6502, -1.4531521
        %v6511 = vmul.f32 %v6503, %v6487
        %v6512 = vmul.f32 %v6504, %v6488
        %v6513 = vmul.f32 %v6505, %v6489
        %v6514 = vmul.f32 %v6506, %v6490
        %v6515 = vmul.f32 %v6507, %v6491
        %v6516 = vmul.f32 %v6508, %v6492
        %v6517 = vmul.f32 %v6509, %v6493
        %v6518 = vmul.f32 %v6510, %v6494
        %v6519 = vadd.f32 %v6511, 1.4214138
        %v6520 = vadd.f32 %v6512, 1.4214138
        %v6521 = vadd.f32 %v6513, 1.4214138
        %v6522 = vadd.f32 %v6514, 1.4214138
        %v6523 = vadd.f32 %v6515, 1.4214138
        %v6524 = vadd.f32 %v6516, 1.4214138
        %v6525 = vadd.f32 %v6517, 1.4214138
        %v6526 = vadd.f32 %v6518, 1.4214138
        %v6527 = vmul.f32 %v6519, %v6487
        %v6528 = vmul.f32 %v6520, %v6488
        %v6529 = vmul.f32 %v6521, %v6489
        %v6530 = vmul.f32 %v6522, %v6490
        %v6531 = vmul.f32 %v6523, %v6491
        %v6532 = vmul.f32 %v6524, %v6492
        %v6533 = vmul.f32 %v6525, %v6493
        %v6534 = vmul.f32 %v6526, %v6494
        %v6535 = vadd.f32 %v6527, -0.28449672
        %v6536 = vadd.f32 %v6528, -0.28449672
        %v6537 = vadd.f32 %v6529, -0.28449672
        %v6538 = vadd.f32 %v6530, -0.28449672
        %v6539 = vadd.f32 %v6531, -0.28449672
        %v6540 = vadd.f32 %v6532, -0.28449672
        %v6541 = vadd.f32 %v6533, -0.28449672
        %v6542 = vadd.f32 %v6534, -0.28449672
        %v6543 = vmul.f32 %v6535, %v6487
        %v6544 = vmul.f32 %v6536, %v6488
        %v6545 = vmul.f32 %v6537, %v6489
        %v6546 = vmul.f32 %v6538, %v6490
        %v6547 = vmul.f32 %v6539, %v6491
        %v6548 = vmul.f32 %v6540, %v6492
        %v6549 = vmul.f32 %v6541, %v6493
        %v6550 = vmul.f32 %v6542, %v6494
        %v6551 = vadd.f32 %v6543, 0.2548296
        %v6552 = vadd.f32 %v6544, 0.2548296
        %v6553 = vadd.f32 %v6545, 0.2548296
        %v6554 = vadd.f32 %v6546, 0.2548296
        %v6555 = vadd.f32 %v6547, 0.2548296
        %v6556 = vadd.f32 %v6548, 0.2548296
        %v6557 = vadd.f32 %v6549, 0.2548296
        %v6558 = vadd.f32 %v6550, 0.2548296
        %v6559 = vmul.f32 %v6551, %v6487
        %v6560 = vmul.f32 %v6552, %v6488
        %v6561 = vmul.f32 %v6553, %v6489
        %v6562 = vmul.f32 %v6554, %v6490
        %v6563 = vmul.f32 %v6555, %v6491
        %v6564 = vmul.f32 %v6556, %v6492
        %v6565 = vmul.f32 %v6557, %v6493
        %v6566 = vmul.f32 %v6558, %v6494
        %v6567 = vsub.f32 0.0, %v6463
        %v6568 = vsub.f32 0.0, %v6464
        %v6569 = vsub.f32 0.0, %v6465
        %v6570 = vsub.f32 0.0, %v6466
        %v6571 = vsub.f32 0.0, %v6467
        %v6572 = vsub.f32 0.0, %v6468
        %v6573 = vsub.f32 0.0, %v6469
        %v6574 = vsub.f32 0.0, %v6470
        %v6575 = vmul.f32 %v6567, %v6463
        %v6576 = vmul.f32 %v6568, %v6464
        %v6577 = vmul.f32 %v6569, %v6465
        %v6578 = vmul.f32 %v6570, %v6466
        %v6579 = vmul.f32 %v6571, %v6467
        %v6580 = vmul.f32 %v6572, %v6468
        %v6581 = vmul.f32 %v6573, %v6469
        %v6582 = vmul.f32 %v6574, %v6470
        %v6583 = vmul.f32 %v6575, 1.442695
        %v6584 = vpow.pop %v6583
        %v6585 = vmul.f32 %v6576, 1.442695
        %v6586 = vpow.pop %v6585
        %v6587 = vmul.f32 %v6577, 1.442695
        %v6588 = vpow.pop %v6587
        %v6589 = vmul.f32 %v6578, 1.442695
        %v6590 = vpow.pop %v6589
        %v6591 = vmul.f32 %v6579, 1.442695
        %v6592 = vpow.pop %v6591
        %v6593 = vmul.f32 %v6580, 1.442695
        %v6594 = vpow.pop %v6593
        %v6595 = vmul.f32 %v6581, 1.442695
        %v6596 = vpow.pop %v6595
        %v6597 = vmul.f32 %v6582, 1.442695
        %v6598 = vpow.pop %v6597
        %v6599 = vmul.f32 %v6559, %v6584
        %v6600 = vmul.f32 %v6560, %v6586
        %v6601 = vmul.f32 %v6561, %v6588
        %v6602 = vmul.f32 %v6562, %v6590
        %v6603 = vmul.f32 %v6563, %v6592
        %v6604 = vmul.f32 %v6564, %v6594
        %v6605 = vmul.f32 %v6565, %v6596
        %v6606 = vmul.f32 %v6566, %v6598
        %v6607 = vsub.f32 1.0, %v6599
        %v6608 = vsub.f32 1.0, %v6600
        %v6609 = vsub.f32 1.0, %v6601
        %v6610 = vsub.f32 1.0, %v6602
        %v6611 = vsub.f32 1.0, %v6603
        %v6612 = vsub.f32 1.0, %v6604
        %v6613 = vsub.f32 1.0, %v6605
        %v6614 = vsub.f32 1.0, %v6606
        %v6615 = vmul.f32 %v6455, %v6607
        %v6616 = vmul.f32 %v6456, %v6608
        %v6617 = vmul.f32 %v6457, %v6609
        %v6618 = vmul.f32 %v6458, %v6610
        %v6619 = vmul.f32 %v6459, %v6611
        %v6620 = vmul.f32 %v6460, %v6612
        %v6621 = vmul.f32 %v6461, %v6613
        %v6622 = vmul.f32 %v6462, %v6614
        %v6623 = vadd.f32 %v6615, 1.0
        %v6624 = vadd.f32 %v6616, 1.0
        %v6625 = vadd.f32 %v6617, 1.0
        %v6626 = vadd.f32 %v6618, 1.0
        %v6627 = vadd.f32 %v6619, 1.0
        %v6628 = vadd.f32 %v6620, 1.0
        %v6629 = vadd.f32 %v6621, 1.0
        %v6630 = vadd.f32 %v6622, 1.0
        %v6631 = vmul.f32 %v6431, %v6623
        %v6632 = vmul.f32 %v6432, %v6624
        %v6633 = vmul.f32 %v6433, %v6625
        %v6634 = vmul.f32 %v6434, %v6626
        %v6635 = vmul.f32 %v6435, %v6627
        %v6636 = vmul.f32 %v6436, %v6628
        %v6637 = vmul.f32 %v6437, %v6629
        %v6638 = vmul.f32 %v6438, %v6630
        %v6639 = vadd.f32 %v6631, %v6632
        %v6640 = vadd.f32 %v6639, %v6633
        %v6641 = vadd.f32 %v6640, %v6634
        %v6642 = vadd.f32 %v6641, %v6635
        %v6643 = vadd.f32 %v6642, %v6636
        %v6644 = vadd.f32 %v6643, %v6637
        %v6645 = vadd.f32 %v6644, %v6638
        %6646 = vadd.xlane.f32.xlu0 %v6645
        %v6647 = vpop.xlane.xlu0 %6646
        %v6648 = vrot.slane %v6647, 4
        %v6649 = vadd.f32 %v6647, %v6648
        %v6650 = vrot.slane %v6649, 2
        %v6651 = vadd.f32 %v6649, %v6650
        %v6652 = vrot.slane %v6651, 1
        %v6653 = vadd.f32 %v6651, %v6652
        %s6654 = vtos %v6653
        %s6655 = smul.f32 %s6654, 0.00012207031
        %v6656 = vmul.f32 %v6631, %v6631
        %v6657 = vmul.f32 %v6632, %v6632
        %v6658 = vmul.f32 %v6633, %v6633
        %v6659 = vmul.f32 %v6634, %v6634
        %v6660 = vmul.f32 %v6635, %v6635
        %v6661 = vmul.f32 %v6636, %v6636
        %v6662 = vmul.f32 %v6637, %v6637
        %v6663 = vmul.f32 %v6638, %v6638
        %v6664 = vadd.f32 %v6656, %v6657
        %v6665 = vadd.f32 %v6664, %v6658
        %v6666 = vadd.f32 %v6665, %v6659
        %v6667 = vadd.f32 %v6666, %v6660
        %v6668 = vadd.f32 %v6667, %v6661
        %v6669 = vadd.f32 %v6668, %v6662
        %v6670 = vadd.f32 %v6669, %v6663
        %6671 = vadd.xlane.f32.xlu0 %v6670
        %v6672 = vpop.xlane.xlu0 %6671
        %v6673 = vrot.slane %v6672, 4
        %v6674 = vadd.f32 %v6672, %v6673
        %v6675 = vrot.slane %v6674, 2
        %v6676 = vadd.f32 %v6674, %v6675
        %v6677 = vrot.slane %v6676, 1
        %v6678 = vadd.f32 %v6676, %v6677
        %s6679 = vtos %v6678
        %s6680 = smul.f32 %s6679, 0.00012207031
        %s6681 = smul.f32 %s6655, %s6655
        %s6682 = ssub.f32 %s6680, %s6681
        %v6683 = vstv %s6655
        %v6684 = vsub.f32 %v6631, %v6683
        %v6685 = vsub.f32 %v6632, %v6683
        %v6686 = vsub.f32 %v6633, %v6683
        %v6687 = vsub.f32 %v6634, %v6683
        %v6688 = vsub.f32 %v6635, %v6683
        %v6689 = vsub.f32 %v6636, %v6683
        %v6690 = vsub.f32 %v6637, %v6683
        %v6691 = vsub.f32 %v6638, %v6683
        %s6692 = sadd.f32 %s6682, 1e-05
        %v6693 = vstv %s6692
        %v6694 = vrsqrt.pop %v6693
        %v6695 = vmul.f32 %v6694, %v6693
        %v6696 = vmul.f32 %v6695, %v6694
        %v6697 = vmul.f32 0.5, %v6696
        %v6698 = vsub.f32 1.5, %v6697
        %v6699 = vmul.f32 %v6694, %v6698
        %vm6700 = vweird.f32 %v6693
        %vm6701 = vweird.f32 %v6694
        %vm6702 = vmor %vm6700, %vm6701
        %v6703 = vsel %vm6702, %v6694, %v6699
        %s6704 = vtos %v6703
        %v6705 = vstv %s6704
        %v6706 = vmul.f32 %v6684, %v6705
        %v6707 = vmul.f32 %v6685, %v6705
        %v6708 = vmul.f32 %v6686, %v6705
        %v6709 = vmul.f32 %v6687, %v6705
        %v6710 = vmul.f32 %v6688, %v6705
        %v6711 = vmul.f32 %v6689, %v6705
        %v6712 = vmul.f32 %v6690, %v6705
        %v6713 = vmul.f32 %v6691, %v6705
        %v6714 = vadd.f32 %v3560, %v6706
        %v6715 = vadd.f32 %v3561, %v6707
        %v6716 = vadd.f32 %v3562, %v6708
        %v6717 = vadd.f32 %v3563, %v6709
        %v6718 = vadd.f32 %v3564, %v6710
        %v6719 = vadd.f32 %v3565, %v6711
        %v6720 = vadd.f32 %v3566, %v6712
        %v6721 = vadd.f32 %v3567, %v6713
        %6722 = vst [vmem:[%s379] sm:$0xff] %v6714
        %6723 = vst [vmem:[%s379 + $0x8] sm:$0xff] %v6715
        %6724 = vst [vmem:[%s379 + $0x10] sm:$0xff] %v6716
        %6725 = vst [vmem:[%s379 + $0x18] sm:$0xff] %v6717
        %6726 = vst [vmem:[%s379 + $0x20] sm:$0xff] %v6718
        %6727 = vst [vmem:[%s379 + $0x28] sm:$0xff] %v6719
        %6728 = vst [vmem:[%s379 + $0x30] sm:$0xff] %v6720
        %6729 = vst [vmem:[%s379 + $0x38] sm:$0xff] %v6721
        %s6730 = sand.u32 %s269, 1
        %s6731 = scalar_lea.sflag [#allocation5], %s6730
        %s6732 = sand.u32 %s269, 1
        %s6733 = smul.addr %s6732, 64
        %s6734 = scalar_lea.vmem [#allocation4], %s6733
        // Predicated region
        $region65: #{encoder_prenet_forward.1} parent=63 // pred_check
          %p6735 = pneg %p279
        $region66: #{encoder_prenet_forward.1} parent=63 // pred_check_branch
          %6737 = sbr.rel (%p6735) target = $region68
        $region67: #{encoder_prenet_forward.1} parent=63 // pred_region
          %6739 = vsyncadd %s6731, 0
          %s6740 = smul.addr %s25, 8
          %s6741 = smul.addr %s6740, 8
          %s6742 = scalar_lea.hbm %s11, %s6741
          %s6743 = sshll.u32 %s6734, 4
          %s6744 = int_to_ptr.vmem [resolvable:$true] %s6743
          %s6745 = sshll.u32 %s6742, 4
          %s6746 = int_to_ptr.hbm [resolvable:$true] %s6745
          %6751 = dma.vmem_to_hbm [thread:$0]  %s6744, 1024, %s6746, %s6731, 128, 128, 8
        $region68: #{encoder_prenet_forward.1} parent=63 // pred_fallthru
          _
      $region64: #{encoder_prenet_forward.1} parent=5 // pred_fallthru
        _
      %p6752 = scmp.le.s32.totalorder 2, %s20
      // Predicated region
      $region69: #{encoder_prenet_forward.1} parent=5 // pred_check
        %p6753 = pneg %p6752
      $region70: #{encoder_prenet_forward.1} parent=5 // pred_check_branch
        %6755 = sbr.rel (%p6753) target = $region72
      $region71: #{encoder_prenet_forward.1} parent=5 // pred_region
        %s6756 = ssub.s32 %s20, 2
        // Predicated region
        $region73: #{encoder_prenet_forward.1} parent=71 // pred_check
          %p6757 = pneg %p285
        $region74: #{encoder_prenet_forward.1} parent=71 // pred_check_branch
          %6759 = sbr.rel (%p6757) target = $region76
        $region75: #{encoder_prenet_forward.1} parent=71 // pred_region
          %s6760 = sand.u32 %s270, 1
          %s6761 = scalar_lea.sflag [#allocation5], %s6760
          %s6762 = sand.u32 %s270, 1
          %s6763 = smul.addr %s6762, 64
          %s6764 = scalar_lea.vmem [#allocation4], %s6763
          %6766 = dma.done %s6761, 1024
        $region76: #{encoder_prenet_forward.1} parent=71 // pred_fallthru
          _
      $region72: #{encoder_prenet_forward.1} parent=5 // pred_fallthru
        _
    $region6: #{encoder_prenet_forward.1} parent=1 // loop_footer
      %s24 = sadd.s32 1, %s20
    $region7: #{encoder_prenet_forward.1} parent=1 // loop_footer_branch
      %19 = sbr.rel target = $region3
    $region8: #{encoder_prenet_forward.1} parent=1 // loop_exit
      _
    %6767 = vsyncpa [#allocation5], 1
    %s6768 = scalar_lea.sflag [#allocation5], 1
    %6769 = vsyncpa %s6768, 1

</llo_original>
